<compile_context>
chip_gen: v5e
topology: v5e:2x2
jax: 0.10.0
libtpu: 0.0.40
codegen_flags: <defaults>
</compile_context>

<pallas_src>
import functools

import jax
import jax.numpy as jnp
from jax.experimental import pallas as pl
from jax.experimental.pallas import tpu as pltpu

_EPS = 1e-5


def _round_up(v, m):
    return (v + m - 1) // m * m


@functools.lru_cache(maxsize=None)
def _vmem_limit_bytes():
    """Generation-aware scoped-VMEM cap: ~half of physical VMEM, clamped to [32, 96] MiB."""
    cap = None
    try:
        cap = getattr(pltpu.get_tpu_info(), "vmem_capacity_bytes", None)
    except Exception:
        cap = None
    if not cap:
        return 32 * 1024 * 1024  # conservative fallback, safe on every generation
    return int(min(96 << 20, max(32 << 20, int(cap) // 2)))


def _pick_batch_tile(N, HW, Cin, Cout, pad_rows, store_bytes, mxu_bytes, vmem_limit):
    """Images per grid step for the conv passes, from a per-image VMEM estimate."""
    lane = lambda c: _round_up(c, 128)          # lanes are physically padded to 128
    per_img = (HW * lane(Cin) * store_bytes                       # x block
               + HW * lane(Cout) * store_bytes                    # y block
               + (HW + 2 * pad_rows) * lane(Cin) * mxu_bytes      # padded-image scratch
               + HW * lane(9 * Cin) * mxu_bytes                   # im2col patch (concat path)
               + HW * lane(Cout) * 4)                             # f32 conv accumulator
    budget = max(vmem_limit // 8, 1)            # headroom for double-buffered blocks
    bt = max(1, min(N, 8, budget // max(per_img, 1)))
    while N % bt:
        bt -= 1
    return bt


def _pick_row_tile(R, L, itemsize=4, max_bytes=4 << 20):
    """Largest row tile (divisor of R, multiple of 8 or R itself) fitting max_bytes."""
    if R * L * itemsize <= max_bytes:
        return R
    best = None
    for d in range(8, R, 8):
        if R % d == 0 and d * L * itemsize <= max_bytes:
            best = d
    if best is None:
        best = 8 if R % 8 == 0 else R
    return best


def _make_conv_stats_kernel(H, W, pad_rows, b_tile, mxu_dtype, store_dtype,
                            apply_affine, has_residual, per_tap):
    """[optional fused BN affine (+ residual) + ReLU] -> 3x3 'same' conv on the MXU
    -> per-image (sum, centered sum-of-squares) channel stats."""
    HW = H * W
    HWpad = HW + 2 * pad_rows
    inv_hw = 1.0 / float(HW)

    def kernel(*refs):
        it = iter(refs)
        x_ref = next(it)
        r_ref = next(it) if has_residual else None
        if apply_affine:
            s_ref = next(it)
            t_ref = next(it)
        w_ref = next(it)
        y_ref = next(it)
        stats_ref = next(it)
        pad_ref = next(it)

        cin = pad_ref.shape[1]

        # w-edge validity masks, shared by all images / taps in this step.
        w_col = jax.lax.broadcasted_iota(jnp.int32, (HW, 1), 0) % W
        not_left = w_col > 0              # tap at kw == -1 is valid
        not_right = w_col < (W - 1)       # tap at kw == +1 is valid
        zero = jnp.zeros((), mxu_dtype)

        # Zero the halo rows of every per-image section (re-done each step: see header).
        zpad = jnp.zeros((pad_rows, cin), mxu_dtype)
        for b in range(b_tile):
            base = b * HWpad
            pad_ref[base:base + pad_rows, :] = zpad
            pad_ref[base + pad_rows + HW:base + HWpad, :] = zpad

        for b in range(b_tile):
            x = x_ref[b]                                   # (HW, Cin) in store_dtype
            if apply_affine or has_residual:
                xf = x.astype(jnp.float32)
                if apply_affine:
                    xf = xf * s_ref[...] + t_ref[...]      # fused BN affine (f32, VPU)
                if has_residual:
                    xf = xf + r_ref[b].astype(jnp.float32)  # fused shortcut of prev block
                x = jnp.maximum(xf, 0.0)

            base = b * HWpad
            pad_ref[base + pad_rows:base + pad_rows + HW, :] = x.astype(mxu_dtype)

            # nine 3x3 taps = static row-offset slices of the zero-padded image
            taps = []
            for t in range(9):
                kh, kw = divmod(t, 3)
                start = base + pad_rows + (kh - 1) * W + (kw - 1)
                tap = pad_ref[start:start + HW, :]
                if kw == 0:
                    tap = jnp.where(not_left, tap, zero)
                elif kw == 2:
                    tap = jnp.where(not_right, tap, zero)
                taps.append(tap)

            if per_tap:
                # Cin alone already fills the MXU depth: nine accumulating matmuls,
                # no (HW, 9*Cin) concat buffer / cross-lane repack.
                y = jnp.dot(taps[0], w_ref[0:cin, :],
                            preferred_element_type=jnp.float32)
                for t in range(1, 9):
                    y = y + jnp.dot(taps[t], w_ref[t * cin:(t + 1) * cin, :],
                                    preferred_element_type=jnp.float32)
            else:
                patch = jnp.concatenate(taps, axis=1)           # (HW, 9*Cin)
                y = jnp.dot(patch, w_ref[...],
                            preferred_element_type=jnp.float32)

            # narrow intermediate to HBM; stats in f32 from the pre-cast accumulator
            y_ref[b] = y.astype(store_dtype)
            s_b = jnp.sum(y, axis=0, keepdims=True)             # (1, Cout)
            m_b = s_b * inv_hw
            css_b = jnp.sum((y - m_b) ** 2, axis=0, keepdims=True)
            stats_ref[b] = jnp.concatenate([s_b, css_b], axis=0)  # (2, Cout)

    return kernel


def _conv_stats_pass(x2d, weight, scale_shift, residual2d, H, W,
                     mxu_dtype, store_dtype, b_tile, vmem_limit):
    """One pipelined conv pass over the batch (b_tile images per grid step)."""
    # TODO(synk): on v7x (2 TCs, 64 MiB VMEM) add a second "parallel" grid axis over
    # HW row-chunks (with a +-1 row halo) so odd/small batches keep both cores busy.
    N, HW, Cin = x2d.shape
    Cout = weight.shape[1]
    pad_rows = _round_up(W + 1, 16)
    apply_affine = scale_shift is not None
    has_residual = residual2d is not None
    per_tap = Cin >= 128   # MXU systolic depth already filled -> skip the big-K concat

    in_specs = [pl.BlockSpec((b_tile, HW, Cin), lambda n: (n, 0, 0))]
    args = [x2d]
    if has_residual:
        in_specs.append(pl.BlockSpec((b_tile, HW, Cin), lambda n: (n, 0, 0)))
        args.append(residual2d)
    if apply_affine:
        in_specs += [pl.BlockSpec((1, Cin), lambda n: (0, 0)),
                     pl.BlockSpec((1, Cin), lambda n: (0, 0))]
        args += list(scale_shift)
    in_specs.append(pl.BlockSpec((9 * Cin, Cout), lambda n: (0, 0)))
    args.append(weight)

    grid_spec = pltpu.PrefetchScalarGridSpec(
        num_scalar_prefetch=0,
        grid=(N // b_tile,),
        in_specs=in_specs,
        out_specs=[pl.BlockSpec((b_tile, HW, Cout), lambda n: (n, 0, 0)),
                   pl.BlockSpec((b_tile, 2, Cout), lambda n: (n, 0, 0))],
        scratch_shapes=[pltpu.VMEM((b_tile * (HW + 2 * pad_rows), Cin), mxu_dtype)],
    )
    y, stats = pl.pallas_call(
        _make_conv_stats_kernel(H, W, pad_rows, b_tile, mxu_dtype, store_dtype,
                                apply_affine, has_residual, per_tap),
        out_shape=(jax.ShapeDtypeStruct((N, HW, Cout), store_dtype),
                   jax.ShapeDtypeStruct((N, 2, Cout), jnp.float32)),
        grid_spec=grid_spec,
        compiler_params=pltpu.CompilerParams(
            dimension_semantics=("parallel",),
            vmem_limit_bytes=vmem_limit),
    )(*args)
    return y, stats


def _finalize_kernel(y_ref, x_ref, s_ref, t_ref, o_ref):
    # fused BN2 affine + identity shortcut + ReLU (pure elementwise, f32 on the VPU)
    y = y_ref[...].astype(jnp.float32)
    res = x_ref[...].astype(jnp.float32)
    o_ref[...] = jnp.maximum(y * s_ref[...] + t_ref[...] + res, 0.0)


def _finalize_pass(y2, x_res, s2, t2, N, H, W, C, vmem_limit):
    """Lane-dense elementwise pass: tensors as (N*H, W*C), large row tiles."""
    R, L = N * H, W * C
    y2r = y2.reshape(R, L)
    xr = x_res.reshape(R, L)
    s_l = jnp.tile(s2, (1, W))        # per-channel affine tiled along the lane dim
    t_l = jnp.tile(t2, (1, W))
    TR = _pick_row_tile(R, L)
    grid_spec = pltpu.PrefetchScalarGridSpec(
        num_scalar_prefetch=0,
        grid=(R // TR,),
        in_specs=[pl.BlockSpec((TR, L), lambda i: (i, 0)),
                  pl.BlockSpec((TR, L), lambda i: (i, 0)),
                  pl.BlockSpec((1, L), lambda i: (0, 0)),
                  pl.BlockSpec((1, L), lambda i: (0, 0))],
        out_specs=pl.BlockSpec((TR, L), lambda i: (i, 0)),
    )
    out = pl.pallas_call(
        _finalize_kernel,
        out_shape=jax.ShapeDtypeStruct((R, L), jnp.float32),
        grid_spec=grid_spec,
        compiler_params=pltpu.CompilerParams(
            dimension_semantics=("parallel",),
            vmem_limit_bytes=vmem_limit),
    )(y2r, xr, s_l, t_l)
    return out.reshape(N, H, W, C)


def _bn_scale_shift(per_image_stats, gamma, beta, hw, n_images):
    """Combine per-image (sum, centered sumsq) with the parallel-variance formula and
    fold gamma/beta into a per-channel scale/shift (1, C)."""
    sums = per_image_stats[:, 0, :]                    # (N, C)
    css = per_image_stats[:, 1, :]                     # (N, C)
    hw_f = float(hw)
    total_n = float(hw * n_images)
    mean_i = sums / hw_f
    total_mean = jnp.sum(sums, axis=0) / total_n
    css_total = jnp.sum(css, axis=0) + hw_f * jnp.sum(
        (mean_i - total_mean[None, :]) ** 2, axis=0)
    var = jnp.maximum(css_total / total_n, 0.0)
    scale = gamma * jax.lax.rsqrt(var + _EPS)
    shift = beta - total_mean * scale
    return (scale.reshape(1, -1).astype(jnp.float32),
            shift.reshape(1, -1).astype(jnp.float32))


@functools.partial(jax.jit, static_argnames=("stride", "mxu_dtype"))
def basic_block_forward_nhwc(x_nhwc, params, stride=1, mxu_dtype=jnp.bfloat16):
    """BasicBlock forward on an NHWC input (the preferred kernel boundary)."""
    if stride != 1:
        # TODO(synk): projection shortcut (strided 1x1 conv + BN) for stride != 1 not implemented.
        raise NotImplementedError("stride != 1 not supported by this kernel")
    N, H, W, Cin = x_nhwc.shape
    w1, w2 = params["w1"], params["w2"]
    C1 = w1.shape[0]
    assert Cin == C1, "identity shortcut requires in_planes == planes"
    HW = H * W

    mxu_dt = jnp.dtype(mxu_dtype)
    store_dt = mxu_dt if mxu_dt.itemsize < 4 else jnp.dtype(jnp.float32)
    vmem_limit = _vmem_limit_bytes()
    pad_rows = _round_up(W + 1, 16)
    b_tile = _pick_batch_tile(N, HW, Cin, C1, pad_rows,
                              store_dt.itemsize, mxu_dt.itemsize, vmem_limit)

    # OIHW -> (kh, kw, I, O) -> (9*I, O), matching the im2col tap ordering.
    w1_mat = jnp.transpose(w1, (2, 3, 1, 0)).reshape(9 * Cin, C1).astype(mxu_dt)
    w2_mat = jnp.transpose(w2, (2, 3, 1, 0)).reshape(9 * C1, C1).astype(mxu_dt)
    g1 = params["gamma1"].astype(jnp.float32)
    b1 = params["beta1"].astype(jnp.float32)
    g2 = params["gamma2"].astype(jnp.float32)
    b2 = params["beta2"].astype(jnp.float32)

    # Keep activations in the narrow storage dtype in HBM (inter-pass bandwidth).
    x2d = x_nhwc.reshape(N, HW, Cin).astype(store_dt)

    # pass 1: conv1 + per-image channel stats
    y1, st1 = _conv_stats_pass(x2d, w1_mat, None, None, H, W,
                               mxu_dt, store_dt, b_tile, vmem_limit)
    s1, t1 = _bn_scale_shift(st1, g1, b1, HW, N)
    # pass 2: fused BN1 affine + ReLU + conv2 + per-image channel stats
    y2, st2 = _conv_stats_pass(y1, w2_mat, (s1, t1), None, H, W,
                               mxu_dt, store_dt, b_tile, vmem_limit)
    s2, t2 = _bn_scale_shift(st2, g2, b2, HW, N)
    # pass 3: fused BN2 affine + identity shortcut + ReLU (lane-dense tiling).
    # TODO(synk): when blocks are chained, fold this into the next block's pass-1
    # prologue via the `residual2d` argument of _conv_stats_pass (keep the standalone
    # finalize only for the last block) to save one activation write+read per block.
    return _finalize_pass(y2, x2d, s2, t2, N, H, W, C1, vmem_limit)


def basic_block_forward(x_nchw, params, stride=1, mxu_dtype=jnp.bfloat16):
    """Module-compatible NCHW wrapper.  In a real network, convert to NHWC once at the
    network boundary and call basic_block_forward_nhwc directly."""
    x_nhwc = jnp.transpose(x_nchw, (0, 2, 3, 1))
    out = basic_block_forward_nhwc(x_nhwc, params, stride=stride, mxu_dtype=mxu_dtype)
    return jnp.transpose(out, (0, 3, 1, 2))


def reference_forward(x, p, mxu_dtype=jnp.float32):
    """Pure-JAX reference.  mxu_dtype quantizes the conv operands and the stored
    shortcut the same way the kernel does (f32 = exact, bf16 = fast path)."""
    def conv(x_, w_):
        return jax.lax.conv_general_dilated(
            x_.astype(mxu_dtype), w_.astype(mxu_dtype),
            window_strides=(1, 1), padding=((1, 1), (1, 1)),
            dimension_numbers=("NCHW", "OIHW", "NCHW"),
            preferred_element_type=jnp.float32)

    def bn(y, g, b):
        mu = jnp.mean(y, axis=(0, 2, 3), keepdims=True)
        var = jnp.mean((y - mu) ** 2, axis=(0, 2, 3), keepdims=True)
        return ((y - mu) * jax.lax.rsqrt(var + _EPS)
                * g.reshape(1, -1, 1, 1) + b.reshape(1, -1, 1, 1))

    out = jax.nn.relu(bn(conv(x, p["w1"]), p["gamma1"], p["beta1"]))
    out = bn(conv(out, p["w2"]), p["gamma2"], p["beta2"])
    shortcut = x.astype(mxu_dtype).astype(jnp.float32)   # kernel stores x narrow on fast path
    return jax.nn.relu(out + shortcut)


if __name__ == "__main__":
    key = jax.random.PRNGKey(0)
    N, C, H, W = 2, 4, 16, 16  # in_planes = planes = 4, stride = 1
    ks = jax.random.split(key, 7)
    x = jax.random.normal(ks[0], (N, C, H, W), jnp.float32)
    params = {
        "w1": jax.random.normal(ks[1], (C, C, 3, 3), jnp.float32) * 0.2,
        "w2": jax.random.normal(ks[2], (C, C, 3, 3), jnp.float32) * 0.2,
        "gamma1": 1.0 + 0.1 * jax.random.normal(ks[3], (C,), jnp.float32),
        "beta1": 0.1 * jax.random.normal(ks[4], (C,), jnp.float32),
        "gamma2": 1.0 + 0.1 * jax.random.normal(ks[5], (C,), jnp.float32),
        "beta2": 0.1 * jax.random.normal(ks[6], (C,), jnp.float32),
    }

    # Exact-math path (f32 MXU operands, f32 intermediates) vs exact f32 reference.
    ref_f32 = jax.block_until_ready(reference_forward(x, params, jnp.float32))
    out_f32 = jax.block_until_ready(basic_block_forward(x, params, mxu_dtype=jnp.float32))
    assert out_f32.shape == ref_f32.shape == (N, C, H, W)
    err_f32 = float(jnp.max(jnp.abs(out_f32 - ref_f32)))
    assert err_f32 < 1e-3, f"f32 path mismatch vs reference: max abs err = {err_f32}"

    # Fast path (bf16 MXU operands + bf16 intermediates, f32 accumulation) vs an
    # equivalently bf16-quantized reference.  The looser bound covers the different
    # quantization points (the kernel rounds y1/y2 to bf16 in HBM) + summation order.
    ref_bf16 = jax.block_until_ready(reference_forward(x, params, jnp.bfloat16))
    out_bf16 = jax.block_until_ready(basic_block_forward(x, params, mxu_dtype=jnp.bfloat16))
    err_bf16 = float(jnp.max(jnp.abs(out_bf16 - ref_bf16)))
    assert err_bf16 < 5e-2, f"bf16 path mismatch vs bf16 reference: max abs err = {err_bf16}"

    print("KERNEL_OK")
</pallas_src>

<mosaic_0001>
module attributes {stable_mosaic.version = 11 : i64} {
  func.func @kernel(%arg0: i32, %arg1: memref<2x256x4xf32, #tpu.memory_space<vmem>>, %arg2: memref<36x4xf32, #tpu.memory_space<vmem>>, %arg3: memref<2x256x4xf32, #tpu.memory_space<vmem>>, %arg4: memref<2x2x4xf32, #tpu.memory_space<vmem>>, %arg5: memref<640x4xf32, #tpu.memory_space<vmem>>) attributes {dimension_semantics = [#tpu.dimension_semantics<parallel>], iteration_bounds = array<i64: 1>, scalar_prefetch = 0 : i64, scratch_operands = 1 : i64, tpu.core_type = #tpu.core_type<tc>, window_params = [{transform_indices = @transform_0, window_bounds = array<i64: 2, 256, 4>}, {pipeline_mode = #tpu.pipeline_mode<synchronous>, transform_indices = @transform_1, window_bounds = array<i64: 36, 4>}, {transform_indices = @transform_2, window_bounds = array<i64: 2, 256, 4>}, {transform_indices = @transform_3, window_bounds = array<i64: 2, 2, 4>}]} {
    %0 = tpu.iota {dimensions = array<i32: 0>} : vector<256x1xi32>
    %c16_i32 = arith.constant 16 : i32
    %c0_i32 = arith.constant 0 : i32
    %1 = arith.cmpi eq, %c16_i32, %c0_i32 : i32
    %c1_i32 = arith.constant 1 : i32
    %2 = arith.select %1, %c1_i32, %c16_i32 : i32
    %3 = vector.broadcast %2 : i32 to vector<256x1xi32>
    %4 = arith.remsi %0, %3 : vector<256x1xi32>
    %c0_i32_0 = arith.constant 0 : i32
    %5 = vector.broadcast %c0_i32_0 : i32 to vector<256x1xi32>
    %6 = arith.cmpi ne, %4, %5 : vector<256x1xi32>
    %c0_i32_1 = arith.constant 0 : i32
    %7 = vector.broadcast %c0_i32_1 : i32 to vector<256x1xi32>
    %8 = arith.cmpi slt, %4, %7 : vector<256x1xi32>
    %c0_i32_2 = arith.constant 0 : i32
    %9 = arith.cmpi slt, %2, %c0_i32_2 : i32
    %10 = vector.broadcast %9 : i1 to vector<256x1xi1>
    %11 = vector.broadcast %10 : vector<256x1xi1> to vector<256x1xi1>
    %12 = arith.xori %8, %11 : vector<256x1xi1>
    %13 = arith.andi %12, %6 : vector<256x1xi1>
    %14 = vector.broadcast %2 : i32 to vector<256x1xi32>
    %15 = arith.addi %4, %14 : vector<256x1xi32>
    %16 = arith.select %13, %15, %4 : vector<256x1xi1>, vector<256x1xi32>
    %c0_i32_3 = arith.constant 0 : i32
    %17 = vector.broadcast %c0_i32_3 : i32 to vector<256x1xi32>
    %18 = arith.cmpi sgt, %16, %17 : vector<256x1xi32>
    %c15_i32 = arith.constant 15 : i32
    %19 = vector.broadcast %c15_i32 : i32 to vector<256x1xi32>
    %20 = arith.cmpi slt, %16, %19 : vector<256x1xi32>
    %cst = arith.constant 0.000000e+00 : f32
    %21 = vector.broadcast %cst : f32 to vector<32x4xf32>
    %c0 = arith.constant 0 : index
    %c0_4 = arith.constant 0 : index
    %22 = vector.load %arg5[%c0, %c0_4] : memref<640x4xf32, #tpu.memory_space<vmem>>, vector<32x4xf32>
    tpu.vector_store %arg5[%c0, %c0_4], %21 {strides = array<i32>} : memref<640x4xf32, #tpu.memory_space<vmem>>, vector<32x4xf32>,
    %c288 = arith.constant 288 : index
    %c0_5 = arith.constant 0 : index
    %23 = vector.load %arg5[%c288, %c0_5] : memref<640x4xf32, #tpu.memory_space<vmem>>, vector<32x4xf32>
    tpu.vector_store %arg5[%c288, %c0_5], %21 {strides = array<i32>} : memref<640x4xf32, #tpu.memory_space<vmem>>, vector<32x4xf32>,
    %c320 = arith.constant 320 : index
    %c0_6 = arith.constant 0 : index
    %24 = vector.load %arg5[%c320, %c0_6] : memref<640x4xf32, #tpu.memory_space<vmem>>, vector<32x4xf32>
    tpu.vector_store %arg5[%c320, %c0_6], %21 {strides = array<i32>} : memref<640x4xf32, #tpu.memory_space<vmem>>, vector<32x4xf32>,
    %c608 = arith.constant 608 : index
    %c0_7 = arith.constant 0 : index
    %25 = vector.load %arg5[%c608, %c0_7] : memref<640x4xf32, #tpu.memory_space<vmem>>, vector<32x4xf32>
    tpu.vector_store %arg5[%c608, %c0_7], %21 {strides = array<i32>} : memref<640x4xf32, #tpu.memory_space<vmem>>, vector<32x4xf32>,
    %c0_8 = arith.constant 0 : index
    %c0_9 = arith.constant 0 : index
    %c0_10 = arith.constant 0 : index
    %26 = vector.load %arg1[%c0_8, %c0_9, %c0_10] : memref<2x256x4xf32, #tpu.memory_space<vmem>>, vector<1x256x4xf32>
    %27 = vector.shape_cast %26 : vector<1x256x4xf32> to vector<256x4xf32>
    %c32 = arith.constant 32 : index
    %c0_11 = arith.constant 0 : index
    %28 = vector.load %arg5[%c32, %c0_11] : memref<640x4xf32, #tpu.memory_space<vmem>>, vector<256x4xf32>
    tpu.vector_store %arg5[%c32, %c0_11], %27 {strides = array<i32>} : memref<640x4xf32, #tpu.memory_space<vmem>>, vector<256x4xf32>,
    %c15 = arith.constant 15 : index
    %c0_12 = arith.constant 0 : index
    %29 = vector.load %arg5[%c15, %c0_12] : memref<640x4xf32, #tpu.memory_space<vmem>>, vector<256x4xf32>
    %cst_13 = arith.constant 0.000000e+00 : f32
    %30 = vector.shape_cast %18 : vector<256x1xi1> to vector<256x1xi1>
    %31 = vector.broadcast %30 : vector<256x1xi1> to vector<256x4xi1>
    %32 = vector.broadcast %cst_13 : f32 to vector<256x4xf32>
    %33 = arith.select %31, %29, %32 : vector<256x4xi1>, vector<256x4xf32>
    %c16 = arith.constant 16 : index
    %c0_14 = arith.constant 0 : index
    %34 = vector.load %arg5[%c16, %c0_14] : memref<640x4xf32, #tpu.memory_space<vmem>>, vector<256x4xf32>
    %c17 = arith.constant 17 : index
    %c0_15 = arith.constant 0 : index
    %35 = vector.load %arg5[%c17, %c0_15] : memref<640x4xf32, #tpu.memory_space<vmem>>, vector<256x4xf32>
    %cst_16 = arith.constant 0.000000e+00 : f32
    %36 = vector.shape_cast %20 : vector<256x1xi1> to vector<256x1xi1>
    %37 = vector.broadcast %36 : vector<256x1xi1> to vector<256x4xi1>
    %38 = vector.broadcast %cst_16 : f32 to vector<256x4xf32>
    %39 = arith.select %37, %35, %38 : vector<256x4xi1>, vector<256x4xf32>
    %c31 = arith.constant 31 : index
    %c0_17 = arith.constant 0 : index
    %40 = vector.load %arg5[%c31, %c0_17] : memref<640x4xf32, #tpu.memory_space<vmem>>, vector<256x4xf32>
    %cst_18 = arith.constant 0.000000e+00 : f32
    %41 = vector.shape_cast %18 : vector<256x1xi1> to vector<256x1xi1>
    %42 = vector.broadcast %41 : vector<256x1xi1> to vector<256x4xi1>
    %43 = vector.broadcast %cst_18 : f32 to vector<256x4xf32>
    %44 = arith.select %42, %40, %43 : vector<256x4xi1>, vector<256x4xf32>
    %c32_19 = arith.constant 32 : index
    %c0_20 = arith.constant 0 : index
    %45 = vector.load %arg5[%c32_19, %c0_20] : memref<640x4xf32, #tpu.memory_space<vmem>>, vector<256x4xf32>
    %c33 = arith.constant 33 : index
    %c0_21 = arith.constant 0 : index
    %46 = vector.load %arg5[%c33, %c0_21] : memref<640x4xf32, #tpu.memory_space<vmem>>, vector<256x4xf32>
    %cst_22 = arith.constant 0.000000e+00 : f32
    %47 = vector.shape_cast %20 : vector<256x1xi1> to vector<256x1xi1>
    %48 = vector.broadcast %47 : vector<256x1xi1> to vector<256x4xi1>
    %49 = vector.broadcast %cst_22 : f32 to vector<256x4xf32>
    %50 = arith.select %48, %46, %49 : vector<256x4xi1>, vector<256x4xf32>
    %c47 = arith.constant 47 : index
    %c0_23 = arith.constant 0 : index
    %51 = vector.load %arg5[%c47, %c0_23] : memref<640x4xf32, #tpu.memory_space<vmem>>, vector<256x4xf32>
    %cst_24 = arith.constant 0.000000e+00 : f32
    %52 = vector.shape_cast %18 : vector<256x1xi1> to vector<256x1xi1>
    %53 = vector.broadcast %52 : vector<256x1xi1> to vector<256x4xi1>
    %54 = vector.broadcast %cst_24 : f32 to vector<256x4xf32>
    %55 = arith.select %53, %51, %54 : vector<256x4xi1>, vector<256x4xf32>
    %c48 = arith.constant 48 : index
    %c0_25 = arith.constant 0 : index
    %56 = vector.load %arg5[%c48, %c0_25] : memref<640x4xf32, #tpu.memory_space<vmem>>, vector<256x4xf32>
    %c49 = arith.constant 49 : index
    %c0_26 = arith.constant 0 : index
    %57 = vector.load %arg5[%c49, %c0_26] : memref<640x4xf32, #tpu.memory_space<vmem>>, vector<256x4xf32>
    %cst_27 = arith.constant 0.000000e+00 : f32
    %58 = vector.shape_cast %20 : vector<256x1xi1> to vector<256x1xi1>
    %59 = vector.broadcast %58 : vector<256x1xi1> to vector<256x4xi1>
    %60 = vector.broadcast %cst_27 : f32 to vector<256x4xf32>
    %61 = arith.select %59, %57, %60 : vector<256x4xi1>, vector<256x4xf32>
    %62 = tpu.concatenate %33, %34, %39, %44, %45, %50, %55, %56, %61 in 1 : vector<256x4xf32>, vector<256x4xf32>, vector<256x4xf32>, vector<256x4xf32>, vector<256x4xf32>, vector<256x4xf32>, vector<256x4xf32>, vector<256x4xf32>, vector<256x4xf32> -> vector<256x36xf32>
    %c0_28 = arith.constant 0 : index
    %c0_29 = arith.constant 0 : index
    %63 = vector.load %arg2[%c0_28, %c0_29] : memref<36x4xf32, #tpu.memory_space<vmem>>, vector<36x4xf32>
    %cst_30 = arith.constant dense<0.000000e+00> : vector<256x4xf32>
    %64 = tpu.matmul %62, %63, %cst_30 {dimension_numbers = #tpu.dot_dimension_numbers<[1], [0], [0], [1], [0, 0, 1, 1], [], []>} : vector<256x36xf32>, vector<36x4xf32>, vector<256x4xf32> -> vector<256x4xf32>
    %c0_31 = arith.constant 0 : index
    %c0_32 = arith.constant 0 : index
    %c0_33 = arith.constant 0 : index
    %65 = vector.load %arg3[%c0_31, %c0_32, %c0_33] : memref<2x256x4xf32, #tpu.memory_space<vmem>>, vector<1x256x4xf32>
    %66 = vector.shape_cast %65 : vector<1x256x4xf32> to vector<256x4xf32>
    %67 = vector.shape_cast %64 : vector<256x4xf32> to vector<1x256x4xf32>
    tpu.vector_store %arg3[%c0_31, %c0_32, %c0_33], %67 {strides = array<i32>} : memref<2x256x4xf32, #tpu.memory_space<vmem>>, vector<1x256x4xf32>,
    %cst_34 = arith.constant dense<0.000000e+00> : vector<4xf32>
    %68 = vector.multi_reduction <add>, %64, %cst_34 [0] : vector<256x4xf32> to vector<4xf32>
    %69 = vector.shape_cast %68 : vector<4xf32> to vector<1x4xf32>
    %cst_35 = arith.constant 3.906250e-03 : f32
    %70 = vector.broadcast %cst_35 : f32 to vector<1x4xf32>
    %71 = arith.mulf %69, %70 : vector<1x4xf32>
    %72 = vector.broadcast %71 : vector<1x4xf32> to vector<256x4xf32>
    %73 = arith.subf %64, %72 : vector<256x4xf32>
    %74 = arith.mulf %73, %73 : vector<256x4xf32>
    %cst_36 = arith.constant dense<0.000000e+00> : vector<4xf32>
    %75 = vector.multi_reduction <add>, %74, %cst_36 [0] : vector<256x4xf32> to vector<4xf32>
    %76 = vector.shape_cast %75 : vector<4xf32> to vector<1x4xf32>
    %77 = tpu.concatenate %69, %76 in 0 : vector<1x4xf32>, vector<1x4xf32> -> vector<2x4xf32>
    %c0_37 = arith.constant 0 : index
    %c0_38 = arith.constant 0 : index
    %c0_39 = arith.constant 0 : index
    %78 = vector.load %arg4[%c0_37, %c0_38, %c0_39] : memref<2x2x4xf32, #tpu.memory_space<vmem>>, vector<1x2x4xf32>
    %79 = vector.shape_cast %78 : vector<1x2x4xf32> to vector<2x4xf32>
    %80 = vector.shape_cast %77 : vector<2x4xf32> to vector<1x2x4xf32>
    tpu.vector_store %arg4[%c0_37, %c0_38, %c0_39], %80 {strides = array<i32>} : memref<2x2x4xf32, #tpu.memory_space<vmem>>, vector<1x2x4xf32>,
    %c1 = arith.constant 1 : index
    %c0_40 = arith.constant 0 : index
    %c0_41 = arith.constant 0 : index
    %81 = vector.load %arg1[%c1, %c0_40, %c0_41] : memref<2x256x4xf32, #tpu.memory_space<vmem>>, vector<1x256x4xf32>
    %82 = vector.shape_cast %81 : vector<1x256x4xf32> to vector<256x4xf32>
    %c352 = arith.constant 352 : index
    %c0_42 = arith.constant 0 : index
    %83 = vector.load %arg5[%c352, %c0_42] : memref<640x4xf32, #tpu.memory_space<vmem>>, vector<256x4xf32>
    tpu.vector_store %arg5[%c352, %c0_42], %82 {strides = array<i32>} : memref<640x4xf32, #tpu.memory_space<vmem>>, vector<256x4xf32>,
    %c335 = arith.constant 335 : index
    %c0_43 = arith.constant 0 : index
    %84 = vector.load %arg5[%c335, %c0_43] : memref<640x4xf32, #tpu.memory_space<vmem>>, vector<256x4xf32>
    %cst_44 = arith.constant 0.000000e+00 : f32
    %85 = vector.shape_cast %18 : vector<256x1xi1> to vector<256x1xi1>
    %86 = vector.broadcast %85 : vector<256x1xi1> to vector<256x4xi1>
    %87 = vector.broadcast %cst_44 : f32 to vector<256x4xf32>
    %88 = arith.select %86, %84, %87 : vector<256x4xi1>, vector<256x4xf32>
    %c336 = arith.constant 336 : index
    %c0_45 = arith.constant 0 : index
    %89 = vector.load %arg5[%c336, %c0_45] : memref<640x4xf32, #tpu.memory_space<vmem>>, vector<256x4xf32>
    %c337 = arith.constant 337 : index
    %c0_46 = arith.constant 0 : index
    %90 = vector.load %arg5[%c337, %c0_46] : memref<640x4xf32, #tpu.memory_space<vmem>>, vector<256x4xf32>
    %cst_47 = arith.constant 0.000000e+00 : f32
    %91 = vector.shape_cast %20 : vector<256x1xi1> to vector<256x1xi1>
    %92 = vector.broadcast %91 : vector<256x1xi1> to vector<256x4xi1>
    %93 = vector.broadcast %cst_47 : f32 to vector<256x4xf32>
    %94 = arith.select %92, %90, %93 : vector<256x4xi1>, vector<256x4xf32>
    %c351 = arith.constant 351 : index
    %c0_48 = arith.constant 0 : index
    %95 = vector.load %arg5[%c351, %c0_48] : memref<640x4xf32, #tpu.memory_space<vmem>>, vector<256x4xf32>
    %cst_49 = arith.constant 0.000000e+00 : f32
    %96 = vector.shape_cast %18 : vector<256x1xi1> to vector<256x1xi1>
    %97 = vector.broadcast %96 : vector<256x1xi1> to vector<256x4xi1>
    %98 = vector.broadcast %cst_49 : f32 to vector<256x4xf32>
    %99 = arith.select %97, %95, %98 : vector<256x4xi1>, vector<256x4xf32>
    %c352_50 = arith.constant 352 : index
    %c0_51 = arith.constant 0 : index
    %100 = vector.load %arg5[%c352_50, %c0_51] : memref<640x4xf32, #tpu.memory_space<vmem>>, vector<256x4xf32>
    %c353 = arith.constant 353 : index
    %c0_52 = arith.constant 0 : index
    %101 = vector.load %arg5[%c353, %c0_52] : memref<640x4xf32, #tpu.memory_space<vmem>>, vector<256x4xf32>
    %cst_53 = arith.constant 0.000000e+00 : f32
    %102 = vector.shape_cast %20 : vector<256x1xi1> to vector<256x1xi1>
    %103 = vector.broadcast %102 : vector<256x1xi1> to vector<256x4xi1>
    %104 = vector.broadcast %cst_53 : f32 to vector<256x4xf32>
    %105 = arith.select %103, %101, %104 : vector<256x4xi1>, vector<256x4xf32>
    %c367 = arith.constant 367 : index
    %c0_54 = arith.constant 0 : index
    %106 = vector.load %arg5[%c367, %c0_54] : memref<640x4xf32, #tpu.memory_space<vmem>>, vector<256x4xf32>
    %cst_55 = arith.constant 0.000000e+00 : f32
    %107 = vector.shape_cast %18 : vector<256x1xi1> to vector<256x1xi1>
    %108 = vector.broadcast %107 : vector<256x1xi1> to vector<256x4xi1>
    %109 = vector.broadcast %cst_55 : f32 to vector<256x4xf32>
    %110 = arith.select %108, %106, %109 : vector<256x4xi1>, vector<256x4xf32>
    %c368 = arith.constant 368 : index
    %c0_56 = arith.constant 0 : index
    %111 = vector.load %arg5[%c368, %c0_56] : memref<640x4xf32, #tpu.memory_space<vmem>>, vector<256x4xf32>
    %c369 = arith.constant 369 : index
    %c0_57 = arith.constant 0 : index
    %112 = vector.load %arg5[%c369, %c0_57] : memref<640x4xf32, #tpu.memory_space<vmem>>, vector<256x4xf32>
    %cst_58 = arith.constant 0.000000e+00 : f32
    %113 = vector.shape_cast %20 : vector<256x1xi1> to vector<256x1xi1>
    %114 = vector.broadcast %113 : vector<256x1xi1> to vector<256x4xi1>
    %115 = vector.broadcast %cst_58 : f32 to vector<256x4xf32>
    %116 = arith.select %114, %112, %115 : vector<256x4xi1>, vector<256x4xf32>
    %117 = tpu.concatenate %88, %89, %94, %99, %100, %105, %110, %111, %116 in 1 : vector<256x4xf32>, vector<256x4xf32>, vector<256x4xf32>, vector<256x4xf32>, vector<256x4xf32>, vector<256x4xf32>, vector<256x4xf32>, vector<256x4xf32>, vector<256x4xf32> -> vector<256x36xf32>
    %c0_59 = arith.constant 0 : index
    %c0_60 = arith.constant 0 : index
    %118 = vector.load %arg2[%c0_59, %c0_60] : memref<36x4xf32, #tpu.memory_space<vmem>>, vector<36x4xf32>
    %cst_61 = arith.constant dense<0.000000e+00> : vector<256x4xf32>
    %119 = tpu.matmul %117, %118, %cst_61 {dimension_numbers = #tpu.dot_dimension_numbers<[1], [0], [0], [1], [0, 0, 1, 1], [], []>} : vector<256x36xf32>, vector<36x4xf32>, vector<256x4xf32> -> vector<256x4xf32>
    %c1_62 = arith.constant 1 : index
    %c0_63 = arith.constant 0 : index
    %c0_64 = arith.constant 0 : index
    %120 = vector.load %arg3[%c1_62, %c0_63, %c0_64] : memref<2x256x4xf32, #tpu.memory_space<vmem>>, vector<1x256x4xf32>
    %121 = vector.shape_cast %120 : vector<1x256x4xf32> to vector<256x4xf32>
    %122 = vector.shape_cast %119 : vector<256x4xf32> to vector<1x256x4xf32>
    tpu.vector_store %arg3[%c1_62, %c0_63, %c0_64], %122 {strides = array<i32>} : memref<2x256x4xf32, #tpu.memory_space<vmem>>, vector<1x256x4xf32>,
    %cst_65 = arith.constant dense<0.000000e+00> : vector<4xf32>
    %123 = vector.multi_reduction <add>, %119, %cst_65 [0] : vector<256x4xf32> to vector<4xf32>
    %124 = vector.shape_cast %123 : vector<4xf32> to vector<1x4xf32>
    %cst_66 = arith.constant 3.906250e-03 : f32
    %125 = vector.broadcast %cst_66 : f32 to vector<1x4xf32>
    %126 = arith.mulf %124, %125 : vector<1x4xf32>
    %127 = vector.broadcast %126 : vector<1x4xf32> to vector<256x4xf32>
    %128 = arith.subf %119, %127 : vector<256x4xf32>
    %129 = arith.mulf %128, %128 : vector<256x4xf32>
    %cst_67 = arith.constant dense<0.000000e+00> : vector<4xf32>
    %130 = vector.multi_reduction <add>, %129, %cst_67 [0] : vector<256x4xf32> to vector<4xf32>
    %131 = vector.shape_cast %130 : vector<4xf32> to vector<1x4xf32>
    %132 = tpu.concatenate %124, %131 in 0 : vector<1x4xf32>, vector<1x4xf32> -> vector<2x4xf32>
    %c1_68 = arith.constant 1 : index
    %c0_69 = arith.constant 0 : index
    %c0_70 = arith.constant 0 : index
    %133 = vector.load %arg4[%c1_68, %c0_69, %c0_70] : memref<2x2x4xf32, #tpu.memory_space<vmem>>, vector<1x2x4xf32>
    %134 = vector.shape_cast %133 : vector<1x2x4xf32> to vector<2x4xf32>
    %135 = vector.shape_cast %132 : vector<2x4xf32> to vector<1x2x4xf32>
    tpu.vector_store %arg4[%c1_68, %c0_69, %c0_70], %135 {strides = array<i32>} : memref<2x2x4xf32, #tpu.memory_space<vmem>>, vector<1x2x4xf32>,
    return
  }
  func.func @transform_0(%arg0: i32) -> (i32, i32, i32) {
    %c0_i32 = arith.constant 0 : i32
    %c0_i32_0 = arith.constant 0 : i32
    %c0_i32_1 = arith.constant 0 : i32
    return %arg0, %c0_i32, %c0_i32_0 : i32, i32, i32
  }
  func.func @transform_1(%arg0: i32) -> (i32, i32) {
    %c0_i32 = arith.constant 0 : i32
    %c0_i32_0 = arith.constant 0 : i32
    %c0_i32_1 = arith.constant 0 : i32
    return %c0_i32, %c0_i32_0 : i32, i32
  }
  func.func @transform_2(%arg0: i32) -> (i32, i32, i32) {
    %c0_i32 = arith.constant 0 : i32
    %c0_i32_0 = arith.constant 0 : i32
    %c0_i32_1 = arith.constant 0 : i32
    return %arg0, %c0_i32, %c0_i32_0 : i32, i32, i32
  }
  func.func @transform_3(%arg0: i32) -> (i32, i32, i32) {
    %c0_i32 = arith.constant 0 : i32
    %c0_i32_0 = arith.constant 0 : i32
    %c0_i32_1 = arith.constant 0 : i32
    return %arg0, %c0_i32, %c0_i32_0 : i32, i32, i32
  }
}

module attributes {stable_mosaic.version = 11 : i64} {
  func.func @kernel(%arg0: i32, %arg1: memref<2x256x4xf32, #tpu.memory_space<vmem>>, %arg2: memref<1x4xf32, #tpu.memory_space<vmem>>, %arg3: memref<1x4xf32, #tpu.memory_space<vmem>>, %arg4: memref<36x4xf32, #tpu.memory_space<vmem>>, %arg5: memref<2x256x4xf32, #tpu.memory_space<vmem>>, %arg6: memref<2x2x4xf32, #tpu.memory_space<vmem>>, %arg7: memref<640x4xf32, #tpu.memory_space<vmem>>) attributes {dimension_semantics = [#tpu.dimension_semantics<parallel>], iteration_bounds = array<i64: 1>, scalar_prefetch = 0 : i64, scratch_operands = 1 : i64, tpu.core_type = #tpu.core_type<tc>, window_params = [{transform_indices = @transform_0, window_bounds = array<i64: 2, 256, 4>}, {pipeline_mode = #tpu.pipeline_mode<synchronous>, transform_indices = @transform_1, window_bounds = array<i64: 1, 4>}, {pipeline_mode = #tpu.pipeline_mode<synchronous>, transform_indices = @transform_2, window_bounds = array<i64: 1, 4>}, {pipeline_mode = #tpu.pipeline_mode<synchronous>, transform_indices = @transform_3, window_bounds = array<i64: 36, 4>}, {transform_indices = @transform_4, window_bounds = array<i64: 2, 256, 4>}, {transform_indices = @transform_5, window_bounds = array<i64: 2, 2, 4>}]} {
    %0 = tpu.iota {dimensions = array<i32: 0>} : vector<256x1xi32>
    %c16_i32 = arith.constant 16 : i32
    %c0_i32 = arith.constant 0 : i32
    %1 = arith.cmpi eq, %c16_i32, %c0_i32 : i32
    %c1_i32 = arith.constant 1 : i32
    %2 = arith.select %1, %c1_i32, %c16_i32 : i32
    %3 = vector.broadcast %2 : i32 to vector<256x1xi32>
    %4 = arith.remsi %0, %3 : vector<256x1xi32>
    %c0_i32_0 = arith.constant 0 : i32
    %5 = vector.broadcast %c0_i32_0 : i32 to vector<256x1xi32>
    %6 = arith.cmpi ne, %4, %5 : vector<256x1xi32>
    %c0_i32_1 = arith.constant 0 : i32
    %7 = vector.broadcast %c0_i32_1 : i32 to vector<256x1xi32>
    %8 = arith.cmpi slt, %4, %7 : vector<256x1xi32>
    %c0_i32_2 = arith.constant 0 : i32
    %9 = arith.cmpi slt, %2, %c0_i32_2 : i32
    %10 = vector.broadcast %9 : i1 to vector<256x1xi1>
    %11 = vector.broadcast %10 : vector<256x1xi1> to vector<256x1xi1>
    %12 = arith.xori %8, %11 : vector<256x1xi1>
    %13 = arith.andi %12, %6 : vector<256x1xi1>
    %14 = vector.broadcast %2 : i32 to vector<256x1xi32>
    %15 = arith.addi %4, %14 : vector<256x1xi32>
    %16 = arith.select %13, %15, %4 : vector<256x1xi1>, vector<256x1xi32>
    %c0_i32_3 = arith.constant 0 : i32
    %17 = vector.broadcast %c0_i32_3 : i32 to vector<256x1xi32>
    %18 = arith.cmpi sgt, %16, %17 : vector<256x1xi32>
    %c15_i32 = arith.constant 15 : i32
    %19 = vector.broadcast %c15_i32 : i32 to vector<256x1xi32>
    %20 = arith.cmpi slt, %16, %19 : vector<256x1xi32>
    %cst = arith.constant 0.000000e+00 : f32
    %21 = vector.broadcast %cst : f32 to vector<32x4xf32>
    %c0 = arith.constant 0 : index
    %c0_4 = arith.constant 0 : index
    %22 = vector.load %arg7[%c0, %c0_4] : memref<640x4xf32, #tpu.memory_space<vmem>>, vector<32x4xf32>
    tpu.vector_store %arg7[%c0, %c0_4], %21 {strides = array<i32>} : memref<640x4xf32, #tpu.memory_space<vmem>>, vector<32x4xf32>,
    %c288 = arith.constant 288 : index
    %c0_5 = arith.constant 0 : index
    %23 = vector.load %arg7[%c288, %c0_5] : memref<640x4xf32, #tpu.memory_space<vmem>>, vector<32x4xf32>
    tpu.vector_store %arg7[%c288, %c0_5], %21 {strides = array<i32>} : memref<640x4xf32, #tpu.memory_space<vmem>>, vector<32x4xf32>,
    %c320 = arith.constant 320 : index
    %c0_6 = arith.constant 0 : index
    %24 = vector.load %arg7[%c320, %c0_6] : memref<640x4xf32, #tpu.memory_space<vmem>>, vector<32x4xf32>
    tpu.vector_store %arg7[%c320, %c0_6], %21 {strides = array<i32>} : memref<640x4xf32, #tpu.memory_space<vmem>>, vector<32x4xf32>,
    %c608 = arith.constant 608 : index
    %c0_7 = arith.constant 0 : index
    %25 = vector.load %arg7[%c608, %c0_7] : memref<640x4xf32, #tpu.memory_space<vmem>>, vector<32x4xf32>
    tpu.vector_store %arg7[%c608, %c0_7], %21 {strides = array<i32>} : memref<640x4xf32, #tpu.memory_space<vmem>>, vector<32x4xf32>,
    %c0_8 = arith.constant 0 : index
    %c0_9 = arith.constant 0 : index
    %c0_10 = arith.constant 0 : index
    %26 = vector.load %arg1[%c0_8, %c0_9, %c0_10] : memref<2x256x4xf32, #tpu.memory_space<vmem>>, vector<1x256x4xf32>
    %27 = vector.shape_cast %26 : vector<1x256x4xf32> to vector<256x4xf32>
    %c0_11 = arith.constant 0 : index
    %c0_12 = arith.constant 0 : index
    %28 = vector.load %arg2[%c0_11, %c0_12] : memref<1x4xf32, #tpu.memory_space<vmem>>, vector<1x4xf32>
    %29 = vector.broadcast %28 : vector<1x4xf32> to vector<256x4xf32>
    %30 = arith.mulf %27, %29 : vector<256x4xf32>
    %c0_13 = arith.constant 0 : index
    %c0_14 = arith.constant 0 : index
    %31 = vector.load %arg3[%c0_13, %c0_14] : memref<1x4xf32, #tpu.memory_space<vmem>>, vector<1x4xf32>
    %32 = vector.broadcast %31 : vector<1x4xf32> to vector<256x4xf32>
    %33 = arith.addf %30, %32 : vector<256x4xf32>
    %cst_15 = arith.constant 0.000000e+00 : f32
    %34 = vector.broadcast %cst_15 : f32 to vector<256x4xf32>
    %35 = arith.maximumf %33, %34 : vector<256x4xf32>
    %c32 = arith.constant 32 : index
    %c0_16 = arith.constant 0 : index
    %36 = vector.load %arg7[%c32, %c0_16] : memref<640x4xf32, #tpu.memory_space<vmem>>, vector<256x4xf32>
    tpu.vector_store %arg7[%c32, %c0_16], %35 {strides = array<i32>} : memref<640x4xf32, #tpu.memory_space<vmem>>, vector<256x4xf32>,
    %c15 = arith.constant 15 : index
    %c0_17 = arith.constant 0 : index
    %37 = vector.load %arg7[%c15, %c0_17] : memref<640x4xf32, #tpu.memory_space<vmem>>, vector<256x4xf32>
    %cst_18 = arith.constant 0.000000e+00 : f32
    %38 = vector.shape_cast %18 : vector<256x1xi1> to vector<256x1xi1>
    %39 = vector.broadcast %38 : vector<256x1xi1> to vector<256x4xi1>
    %40 = vector.broadcast %cst_18 : f32 to vector<256x4xf32>
    %41 = arith.select %39, %37, %40 : vector<256x4xi1>, vector<256x4xf32>
    %c16 = arith.constant 16 : index
    %c0_19 = arith.constant 0 : index
    %42 = vector.load %arg7[%c16, %c0_19] : memref<640x4xf32, #tpu.memory_space<vmem>>, vector<256x4xf32>
    %c17 = arith.constant 17 : index
    %c0_20 = arith.constant 0 : index
    %43 = vector.load %arg7[%c17, %c0_20] : memref<640x4xf32, #tpu.memory_space<vmem>>, vector<256x4xf32>
    %cst_21 = arith.constant 0.000000e+00 : f32
    %44 = vector.shape_cast %20 : vector<256x1xi1> to vector<256x1xi1>
    %45 = vector.broadcast %44 : vector<256x1xi1> to vector<256x4xi1>
    %46 = vector.broadcast %cst_21 : f32 to vector<256x4xf32>
    %47 = arith.select %45, %43, %46 : vector<256x4xi1>, vector<256x4xf32>
    %c31 = arith.constant 31 : index
    %c0_22 = arith.constant 0 : index
    %48 = vector.load %arg7[%c31, %c0_22] : memref<640x4xf32, #tpu.memory_space<vmem>>, vector<256x4xf32>
    %cst_23 = arith.constant 0.000000e+00 : f32
    %49 = vector.shape_cast %18 : vector<256x1xi1> to vector<256x1xi1>
    %50 = vector.broadcast %49 : vector<256x1xi1> to vector<256x4xi1>
    %51 = vector.broadcast %cst_23 : f32 to vector<256x4xf32>
    %52 = arith.select %50, %48, %51 : vector<256x4xi1>, vector<256x4xf32>
    %c32_24 = arith.constant 32 : index
    %c0_25 = arith.constant 0 : index
    %53 = vector.load %arg7[%c32_24, %c0_25] : memref<640x4xf32, #tpu.memory_space<vmem>>, vector<256x4xf32>
    %c33 = arith.constant 33 : index
    %c0_26 = arith.constant 0 : index
    %54 = vector.load %arg7[%c33, %c0_26] : memref<640x4xf32, #tpu.memory_space<vmem>>, vector<256x4xf32>
    %cst_27 = arith.constant 0.000000e+00 : f32
    %55 = vector.shape_cast %20 : vector<256x1xi1> to vector<256x1xi1>
    %56 = vector.broadcast %55 : vector<256x1xi1> to vector<256x4xi1>
    %57 = vector.broadcast %cst_27 : f32 to vector<256x4xf32>
    %58 = arith.select %56, %54, %57 : vector<256x4xi1>, vector<256x4xf32>
    %c47 = arith.constant 47 : index
    %c0_28 = arith.constant 0 : index
    %59 = vector.load %arg7[%c47, %c0_28] : memref<640x4xf32, #tpu.memory_space<vmem>>, vector<256x4xf32>
    %cst_29 = arith.constant 0.000000e+00 : f32
    %60 = vector.shape_cast %18 : vector<256x1xi1> to vector<256x1xi1>
    %61 = vector.broadcast %60 : vector<256x1xi1> to vector<256x4xi1>
    %62 = vector.broadcast %cst_29 : f32 to vector<256x4xf32>
    %63 = arith.select %61, %59, %62 : vector<256x4xi1>, vector<256x4xf32>
    %c48 = arith.constant 48 : index
    %c0_30 = arith.constant 0 : index
    %64 = vector.load %arg7[%c48, %c0_30] : memref<640x4xf32, #tpu.memory_space<vmem>>, vector<256x4xf32>
    %c49 = arith.constant 49 : index
    %c0_31 = arith.constant 0 : index
    %65 = vector.load %arg7[%c49, %c0_31] : memref<640x4xf32, #tpu.memory_space<vmem>>, vector<256x4xf32>
    %cst_32 = arith.constant 0.000000e+00 : f32
    %66 = vector.shape_cast %20 : vector<256x1xi1> to vector<256x1xi1>
    %67 = vector.broadcast %66 : vector<256x1xi1> to vector<256x4xi1>
    %68 = vector.broadcast %cst_32 : f32 to vector<256x4xf32>
    %69 = arith.select %67, %65, %68 : vector<256x4xi1>, vector<256x4xf32>
    %70 = tpu.concatenate %41, %42, %47, %52, %53, %58, %63, %64, %69 in 1 : vector<256x4xf32>, vector<256x4xf32>, vector<256x4xf32>, vector<256x4xf32>, vector<256x4xf32>, vector<256x4xf32>, vector<256x4xf32>, vector<256x4xf32>, vector<256x4xf32> -> vector<256x36xf32>
    %c0_33 = arith.constant 0 : index
    %c0_34 = arith.constant 0 : index
    %71 = vector.load %arg4[%c0_33, %c0_34] : memref<36x4xf32, #tpu.memory_space<vmem>>, vector<36x4xf32>
    %cst_35 = arith.constant dense<0.000000e+00> : vector<256x4xf32>
    %72 = tpu.matmul %70, %71, %cst_35 {dimension_numbers = #tpu.dot_dimension_numbers<[1], [0], [0], [1], [0, 0, 1, 1], [], []>} : vector<256x36xf32>, vector<36x4xf32>, vector<256x4xf32> -> vector<256x4xf32>
    %c0_36 = arith.constant 0 : index
    %c0_37 = arith.constant 0 : index
    %c0_38 = arith.constant 0 : index
    %73 = vector.load %arg5[%c0_36, %c0_37, %c0_38] : memref<2x256x4xf32, #tpu.memory_space<vmem>>, vector<1x256x4xf32>
    %74 = vector.shape_cast %73 : vector<1x256x4xf32> to vector<256x4xf32>
    %75 = vector.shape_cast %72 : vector<256x4xf32> to vector<1x256x4xf32>
    tpu.vector_store %arg5[%c0_36, %c0_37, %c0_38], %75 {strides = array<i32>} : memref<2x256x4xf32, #tpu.memory_space<vmem>>, vector<1x256x4xf32>,
    %cst_39 = arith.constant dense<0.000000e+00> : vector<4xf32>
    %76 = vector.multi_reduction <add>, %72, %cst_39 [0] : vector<256x4xf32> to vector<4xf32>
    %77 = vector.shape_cast %76 : vector<4xf32> to vector<1x4xf32>
    %cst_40 = arith.constant 3.906250e-03 : f32
    %78 = vector.broadcast %cst_40 : f32 to vector<1x4xf32>
    %79 = arith.mulf %77, %78 : vector<1x4xf32>
    %80 = vector.broadcast %79 : vector<1x4xf32> to vector<256x4xf32>
    %81 = arith.subf %72, %80 : vector<256x4xf32>
    %82 = arith.mulf %81, %81 : vector<256x4xf32>
    %cst_41 = arith.constant dense<0.000000e+00> : vector<4xf32>
    %83 = vector.multi_reduction <add>, %82, %cst_41 [0] : vector<256x4xf32> to vector<4xf32>
    %84 = vector.shape_cast %83 : vector<4xf32> to vector<1x4xf32>
    %85 = tpu.concatenate %77, %84 in 0 : vector<1x4xf32>, vector<1x4xf32> -> vector<2x4xf32>
    %c0_42 = arith.constant 0 : index
    %c0_43 = arith.constant 0 : index
    %c0_44 = arith.constant 0 : index
    %86 = vector.load %arg6[%c0_42, %c0_43, %c0_44] : memref<2x2x4xf32, #tpu.memory_space<vmem>>, vector<1x2x4xf32>
    %87 = vector.shape_cast %86 : vector<1x2x4xf32> to vector<2x4xf32>
    %88 = vector.shape_cast %85 : vector<2x4xf32> to vector<1x2x4xf32>
    tpu.vector_store %arg6[%c0_42, %c0_43, %c0_44], %88 {strides = array<i32>} : memref<2x2x4xf32, #tpu.memory_space<vmem>>, vector<1x2x4xf32>,
    %c1 = arith.constant 1 : index
    %c0_45 = arith.constant 0 : index
    %c0_46 = arith.constant 0 : index
    %89 = vector.load %arg1[%c1, %c0_45, %c0_46] : memref<2x256x4xf32, #tpu.memory_space<vmem>>, vector<1x256x4xf32>
    %90 = vector.shape_cast %89 : vector<1x256x4xf32> to vector<256x4xf32>
    %c0_47 = arith.constant 0 : index
    %c0_48 = arith.constant 0 : index
    %91 = vector.load %arg2[%c0_47, %c0_48] : memref<1x4xf32, #tpu.memory_space<vmem>>, vector<1x4xf32>
    %92 = vector.broadcast %91 : vector<1x4xf32> to vector<256x4xf32>
    %93 = arith.mulf %90, %92 : vector<256x4xf32>
    %c0_49 = arith.constant 0 : index
    %c0_50 = arith.constant 0 : index
    %94 = vector.load %arg3[%c0_49, %c0_50] : memref<1x4xf32, #tpu.memory_space<vmem>>, vector<1x4xf32>
    %95 = vector.broadcast %94 : vector<1x4xf32> to vector<256x4xf32>
    %96 = arith.addf %93, %95 : vector<256x4xf32>
    %cst_51 = arith.constant 0.000000e+00 : f32
    %97 = vector.broadcast %cst_51 : f32 to vector<256x4xf32>
    %98 = arith.maximumf %96, %97 : vector<256x4xf32>
    %c352 = arith.constant 352 : index
    %c0_52 = arith.constant 0 : index
    %99 = vector.load %arg7[%c352, %c0_52] : memref<640x4xf32, #tpu.memory_space<vmem>>, vector<256x4xf32>
    tpu.vector_store %arg7[%c352, %c0_52], %98 {strides = array<i32>} : memref<640x4xf32, #tpu.memory_space<vmem>>, vector<256x4xf32>,
    %c335 = arith.constant 335 : index
    %c0_53 = arith.constant 0 : index
    %100 = vector.load %arg7[%c335, %c0_53] : memref<640x4xf32, #tpu.memory_space<vmem>>, vector<256x4xf32>
    %cst_54 = arith.constant 0.000000e+00 : f32
    %101 = vector.shape_cast %18 : vector<256x1xi1> to vector<256x1xi1>
    %102 = vector.broadcast %101 : vector<256x1xi1> to vector<256x4xi1>
    %103 = vector.broadcast %cst_54 : f32 to vector<256x4xf32>
    %104 = arith.select %102, %100, %103 : vector<256x4xi1>, vector<256x4xf32>
    %c336 = arith.constant 336 : index
    %c0_55 = arith.constant 0 : index
    %105 = vector.load %arg7[%c336, %c0_55] : memref<640x4xf32, #tpu.memory_space<vmem>>, vector<256x4xf32>
    %c337 = arith.constant 337 : index
    %c0_56 = arith.constant 0 : index
    %106 = vector.load %arg7[%c337, %c0_56] : memref<640x4xf32, #tpu.memory_space<vmem>>, vector<256x4xf32>
    %cst_57 = arith.constant 0.000000e+00 : f32
    %107 = vector.shape_cast %20 : vector<256x1xi1> to vector<256x1xi1>
    %108 = vector.broadcast %107 : vector<256x1xi1> to vector<256x4xi1>
    %109 = vector.broadcast %cst_57 : f32 to vector<256x4xf32>
    %110 = arith.select %108, %106, %109 : vector<256x4xi1>, vector<256x4xf32>
    %c351 = arith.constant 351 : index
    %c0_58 = arith.constant 0 : index
    %111 = vector.load %arg7[%c351, %c0_58] : memref<640x4xf32, #tpu.memory_space<vmem>>, vector<256x4xf32>
    %cst_59 = arith.constant 0.000000e+00 : f32
    %112 = vector.shape_cast %18 : vector<256x1xi1> to vector<256x1xi1>
    %113 = vector.broadcast %112 : vector<256x1xi1> to vector<256x4xi1>
    %114 = vector.broadcast %cst_59 : f32 to vector<256x4xf32>
    %115 = arith.select %113, %111, %114 : vector<256x4xi1>, vector<256x4xf32>
    %c352_60 = arith.constant 352 : index
    %c0_61 = arith.constant 0 : index
    %116 = vector.load %arg7[%c352_60, %c0_61] : memref<640x4xf32, #tpu.memory_space<vmem>>, vector<256x4xf32>
    %c353 = arith.constant 353 : index
    %c0_62 = arith.constant 0 : index
    %117 = vector.load %arg7[%c353, %c0_62] : memref<640x4xf32, #tpu.memory_space<vmem>>, vector<256x4xf32>
    %cst_63 = arith.constant 0.000000e+00 : f32
    %118 = vector.shape_cast %20 : vector<256x1xi1> to vector<256x1xi1>
    %119 = vector.broadcast %118 : vector<256x1xi1> to vector<256x4xi1>
    %120 = vector.broadcast %cst_63 : f32 to vector<256x4xf32>
    %121 = arith.select %119, %117, %120 : vector<256x4xi1>, vector<256x4xf32>
    %c367 = arith.constant 367 : index
    %c0_64 = arith.constant 0 : index
    %122 = vector.load %arg7[%c367, %c0_64] : memref<640x4xf32, #tpu.memory_space<vmem>>, vector<256x4xf32>
    %cst_65 = arith.constant 0.000000e+00 : f32
    %123 = vector.shape_cast %18 : vector<256x1xi1> to vector<256x1xi1>
    %124 = vector.broadcast %123 : vector<256x1xi1> to vector<256x4xi1>
    %125 = vector.broadcast %cst_65 : f32 to vector<256x4xf32>
    %126 = arith.select %124, %122, %125 : vector<256x4xi1>, vector<256x4xf32>
    %c368 = arith.constant 368 : index
    %c0_66 = arith.constant 0 : index
    %127 = vector.load %arg7[%c368, %c0_66] : memref<640x4xf32, #tpu.memory_space<vmem>>, vector<256x4xf32>
    %c369 = arith.constant 369 : index
    %c0_67 = arith.constant 0 : index
    %128 = vector.load %arg7[%c369, %c0_67] : memref<640x4xf32, #tpu.memory_space<vmem>>, vector<256x4xf32>
    %cst_68 = arith.constant 0.000000e+00 : f32
    %129 = vector.shape_cast %20 : vector<256x1xi1> to vector<256x1xi1>
    %130 = vector.broadcast %129 : vector<256x1xi1> to vector<256x4xi1>
    %131 = vector.broadcast %cst_68 : f32 to vector<256x4xf32>
    %132 = arith.select %130, %128, %131 : vector<256x4xi1>, vector<256x4xf32>
    %133 = tpu.concatenate %104, %105, %110, %115, %116, %121, %126, %127, %132 in 1 : vector<256x4xf32>, vector<256x4xf32>, vector<256x4xf32>, vector<256x4xf32>, vector<256x4xf32>, vector<256x4xf32>, vector<256x4xf32>, vector<256x4xf32>, vector<256x4xf32> -> vector<256x36xf32>
    %c0_69 = arith.constant 0 : index
    %c0_70 = arith.constant 0 : index
    %134 = vector.load %arg4[%c0_69, %c0_70] : memref<36x4xf32, #tpu.memory_space<vmem>>, vector<36x4xf32>
    %cst_71 = arith.constant dense<0.000000e+00> : vector<256x4xf32>
    %135 = tpu.matmul %133, %134, %cst_71 {dimension_numbers = #tpu.dot_dimension_numbers<[1], [0], [0], [1], [0, 0, 1, 1], [], []>} : vector<256x36xf32>, vector<36x4xf32>, vector<256x4xf32> -> vector<256x4xf32>
    %c1_72 = arith.constant 1 : index
    %c0_73 = arith.constant 0 : index
    %c0_74 = arith.constant 0 : index
    %136 = vector.load %arg5[%c1_72, %c0_73, %c0_74] : memref<2x256x4xf32, #tpu.memory_space<vmem>>, vector<1x256x4xf32>
    %137 = vector.shape_cast %136 : vector<1x256x4xf32> to vector<256x4xf32>
    %138 = vector.shape_cast %135 : vector<256x4xf32> to vector<1x256x4xf32>
    tpu.vector_store %arg5[%c1_72, %c0_73, %c0_74], %138 {strides = array<i32>} : memref<2x256x4xf32, #tpu.memory_space<vmem>>, vector<1x256x4xf32>,
    %cst_75 = arith.constant dense<0.000000e+00> : vector<4xf32>
    %139 = vector.multi_reduction <add>, %135, %cst_75 [0] : vector<256x4xf32> to vector<4xf32>
    %140 = vector.shape_cast %139 : vector<4xf32> to vector<1x4xf32>
    %cst_76 = arith.constant 3.906250e-03 : f32
    %141 = vector.broadcast %cst_76 : f32 to vector<1x4xf32>
    %142 = arith.mulf %140, %141 : vector<1x4xf32>
    %143 = vector.broadcast %142 : vector<1x4xf32> to vector<256x4xf32>
    %144 = arith.subf %135, %143 : vector<256x4xf32>
    %145 = arith.mulf %144, %144 : vector<256x4xf32>
    %cst_77 = arith.constant dense<0.000000e+00> : vector<4xf32>
    %146 = vector.multi_reduction <add>, %145, %cst_77 [0] : vector<256x4xf32> to vector<4xf32>
    %147 = vector.shape_cast %146 : vector<4xf32> to vector<1x4xf32>
    %148 = tpu.concatenate %140, %147 in 0 : vector<1x4xf32>, vector<1x4xf32> -> vector<2x4xf32>
    %c1_78 = arith.constant 1 : index
    %c0_79 = arith.constant 0 : index
    %c0_80 = arith.constant 0 : index
    %149 = vector.load %arg6[%c1_78, %c0_79, %c0_80] : memref<2x2x4xf32, #tpu.memory_space<vmem>>, vector<1x2x4xf32>
    %150 = vector.shape_cast %149 : vector<1x2x4xf32> to vector<2x4xf32>
    %151 = vector.shape_cast %148 : vector<2x4xf32> to vector<1x2x4xf32>
    tpu.vector_store %arg6[%c1_78, %c0_79, %c0_80], %151 {strides = array<i32>} : memref<2x2x4xf32, #tpu.memory_space<vmem>>, vector<1x2x4xf32>,
    return
  }
  func.func @transform_0(%arg0: i32) -> (i32, i32, i32) {
    %c0_i32 = arith.constant 0 : i32
    %c0_i32_0 = arith.constant 0 : i32
    %c0_i32_1 = arith.constant 0 : i32
    return %arg0, %c0_i32, %c0_i32_0 : i32, i32, i32
  }
  func.func @transform_1(%arg0: i32) -> (i32, i32) {
    %c0_i32 = arith.constant 0 : i32
    %c0_i32_0 = arith.constant 0 : i32
    %c0_i32_1 = arith.constant 0 : i32
    return %c0_i32, %c0_i32_0 : i32, i32
  }
  func.func @transform_2(%arg0: i32) -> (i32, i32) {
    %c0_i32 = arith.constant 0 : i32
    %c0_i32_0 = arith.constant 0 : i32
    %c0_i32_1 = arith.constant 0 : i32
    return %c0_i32, %c0_i32_0 : i32, i32
  }
  func.func @transform_3(%arg0: i32) -> (i32, i32) {
    %c0_i32 = arith.constant 0 : i32
    %c0_i32_0 = arith.constant 0 : i32
    %c0_i32_1 = arith.constant 0 : i32
    return %c0_i32, %c0_i32_0 : i32, i32
  }
  func.func @transform_4(%arg0: i32) -> (i32, i32, i32) {
    %c0_i32 = arith.constant 0 : i32
    %c0_i32_0 = arith.constant 0 : i32
    %c0_i32_1 = arith.constant 0 : i32
    return %arg0, %c0_i32, %c0_i32_0 : i32, i32, i32
  }
  func.func @transform_5(%arg0: i32) -> (i32, i32, i32) {
    %c0_i32 = arith.constant 0 : i32
    %c0_i32_0 = arith.constant 0 : i32
    %c0_i32_1 = arith.constant 0 : i32
    return %arg0, %c0_i32, %c0_i32_0 : i32, i32, i32
  }
}

module attributes {stable_mosaic.version = 11 : i64} {
  func.func @_finalize_kernel(%arg0: i32, %arg1: memref<32x64xf32, #tpu.memory_space<vmem>>, %arg2: memref<32x64xf32, #tpu.memory_space<vmem>>, %arg3: memref<1x64xf32, #tpu.memory_space<vmem>>, %arg4: memref<1x64xf32, #tpu.memory_space<vmem>>, %arg5: memref<32x64xf32, #tpu.memory_space<vmem>>) attributes {dimension_semantics = [#tpu.dimension_semantics<parallel>], iteration_bounds = array<i64: 1>, scalar_prefetch = 0 : i64, scratch_operands = 0 : i64, tpu.core_type = #tpu.core_type<tc>, window_params = [{transform_indices = @transform_0, window_bounds = array<i64: 32, 64>}, {transform_indices = @transform_1, window_bounds = array<i64: 32, 64>}, {pipeline_mode = #tpu.pipeline_mode<synchronous>, transform_indices = @transform_2, window_bounds = array<i64: 1, 64>}, {pipeline_mode = #tpu.pipeline_mode<synchronous>, transform_indices = @transform_3, window_bounds = array<i64: 1, 64>}, {transform_indices = @transform_4, window_bounds = array<i64: 32, 64>}]} {
    %c0 = arith.constant 0 : index
    %c0_0 = arith.constant 0 : index
    %0 = vector.load %arg1[%c0, %c0_0] : memref<32x64xf32, #tpu.memory_space<vmem>>, vector<32x64xf32>
    %c0_1 = arith.constant 0 : index
    %c0_2 = arith.constant 0 : index
    %1 = vector.load %arg2[%c0_1, %c0_2] : memref<32x64xf32, #tpu.memory_space<vmem>>, vector<32x64xf32>
    %c0_3 = arith.constant 0 : index
    %c0_4 = arith.constant 0 : index
    %2 = vector.load %arg3[%c0_3, %c0_4] : memref<1x64xf32, #tpu.memory_space<vmem>>, vector<1x64xf32>
    %3 = vector.broadcast %2 : vector<1x64xf32> to vector<32x64xf32>
    %4 = arith.mulf %0, %3 : vector<32x64xf32>
    %c0_5 = arith.constant 0 : index
    %c0_6 = arith.constant 0 : index
    %5 = vector.load %arg4[%c0_5, %c0_6] : memref<1x64xf32, #tpu.memory_space<vmem>>, vector<1x64xf32>
    %6 = vector.broadcast %5 : vector<1x64xf32> to vector<32x64xf32>
    %7 = arith.addf %4, %6 : vector<32x64xf32>
    %8 = arith.addf %7, %1 : vector<32x64xf32>
    %cst = arith.constant 0.000000e+00 : f32
    %9 = vector.broadcast %cst : f32 to vector<32x64xf32>
    %10 = arith.maximumf %8, %9 : vector<32x64xf32>
    %c0_7 = arith.constant 0 : index
    %c0_8 = arith.constant 0 : index
    %11 = vector.load %arg5[%c0_7, %c0_8] : memref<32x64xf32, #tpu.memory_space<vmem>>, vector<32x64xf32>
    tpu.vector_store %arg5[%c0_7, %c0_8], %10 {strides = array<i32>} : memref<32x64xf32, #tpu.memory_space<vmem>>, vector<32x64xf32>,
    return
  }
  func.func @transform_0(%arg0: i32) -> (i32, i32) {
    %c0_i32 = arith.constant 0 : i32
    %c0_i32_0 = arith.constant 0 : i32
    return %arg0, %c0_i32 : i32, i32
  }
  func.func @transform_1(%arg0: i32) -> (i32, i32) {
    %c0_i32 = arith.constant 0 : i32
    %c0_i32_0 = arith.constant 0 : i32
    return %arg0, %c0_i32 : i32, i32
  }
  func.func @transform_2(%arg0: i32) -> (i32, i32) {
    %c0_i32 = arith.constant 0 : i32
    %c0_i32_0 = arith.constant 0 : i32
    %c0_i32_1 = arith.constant 0 : i32
    return %c0_i32, %c0_i32_0 : i32, i32
  }
  func.func @transform_3(%arg0: i32) -> (i32, i32) {
    %c0_i32 = arith.constant 0 : i32
    %c0_i32_0 = arith.constant 0 : i32
    %c0_i32_1 = arith.constant 0 : i32
    return %c0_i32, %c0_i32_0 : i32, i32
  }
  func.func @transform_4(%arg0: i32) -> (i32, i32) {
    %c0_i32 = arith.constant 0 : i32
    %c0_i32_0 = arith.constant 0 : i32
    return %arg0, %c0_i32 : i32, i32
  }
}

</mosaic_0001>

<llo_original>
// kernel: basic_block_forward_nhwc.5
$region0: #{basic_block_forward_nhwc.5}
  #allocation0 [shape = 'u32[]', space=smem, size = 0x4, offset = 0x4, fixed_abs, tag = 'smem constant byte address 0x4 - core index']
  #allocation1 [shape = 'u32[72,128]{1,0:T(1,128)}', space=vmem, size = 0x9000, scoped, tag = 'internal scratch']
  %s0 = inlined_call_operand.vmem [shape: f32[32,64], index: 0, kind: input, shape index: {}]
  %s1 = inlined_call_operand.vmem [shape: f32[32,64], index: 1, kind: input, shape index: {}]
  %s2 = inlined_call_operand.vmem [shape: f32[1,64], index: 2, kind: input, shape index: {}]
  %s3 = inlined_call_operand.vmem [shape: f32[1,64], index: 3, kind: input, shape index: {}]
  %s4 = inlined_call_operand.vmem [shape: f32[32,64], index: 4, kind: output, shape index: {}]
  %s5 = sld [smem:[#allocation0]]
  $region26: #{basic_block_forward_nhwc.5} parent=0
    _
  %s7 = ssub.s32 1, %s5
  %s8 = scalar_select 0, %s7, %s5
  // Predicated region
  $region2: #{basic_block_forward_nhwc.5} parent=0 // pred_check
    _
  $region3: #{basic_block_forward_nhwc.5} parent=0 // pred_check_branch
    %10 = sbr.rel (0) target = $region5
  $region4: #{basic_block_forward_nhwc.5} parent=0 // pred_region
    _
  $region5: #{basic_block_forward_nhwc.5} parent=0 // pred_fallthru
    _
  // Predicated region
  $region6: #{basic_block_forward_nhwc.5} parent=0 // pred_check
    _
  $region7: #{basic_block_forward_nhwc.5} parent=0 // pred_check_branch
    %12 = sbr.rel (0) target = $region9
  $region8: #{basic_block_forward_nhwc.5} parent=0 // pred_region
    _
  $region9: #{basic_block_forward_nhwc.5} parent=0 // pred_fallthru
    _
  // Predicated region
  $region10: #{basic_block_forward_nhwc.5} parent=0 // pred_check
    _
  $region11: #{basic_block_forward_nhwc.5} parent=0 // pred_check_branch
    %14 = sbr.rel (0) target = $region13
  $region12: #{basic_block_forward_nhwc.5} parent=0 // pred_region
    _
  $region13: #{basic_block_forward_nhwc.5} parent=0 // pred_fallthru
    _
  // Predicated region
  $region14: #{basic_block_forward_nhwc.5} parent=0 // pred_check
    _
  $region15: #{basic_block_forward_nhwc.5} parent=0 // pred_check_branch
    %16 = sbr.rel (0) target = $region17
  $region16: #{basic_block_forward_nhwc.5} parent=0 // pred_region
    _
  $region17: #{basic_block_forward_nhwc.5} parent=0 // pred_fallthru
    _
  %v17 = vld [vmem:[%s0] sm:$0xff]
  %v18 = vld [vmem:[%s0 + $0x8] sm:$0xff]
  %v19 = vld [vmem:[%s0 + $0x10] sm:$0xff]
  %v20 = vld [vmem:[%s0 + $0x18] sm:$0xff]
  %v21 = vld [vmem:[%s1] sm:$0xff]
  %v22 = vld [vmem:[%s1 + $0x8] sm:$0xff]
  %v23 = vld [vmem:[%s1 + $0x10] sm:$0xff]
  %v24 = vld [vmem:[%s1 + $0x18] sm:$0xff]
  %v25 = vld [vmem:[%s2] sm:$0x1]
  %v27 = vperm.slane %v25, 0
  %v29 = vmul.f32 %v17, %v27
  %v30 = vmul.f32 %v18, %v27
  %v31 = vmul.f32 %v19, %v27
  %v32 = vmul.f32 %v20, %v27
  %v33 = vld [vmem:[%s3] sm:$0x1]
  %v35 = vperm.slane %v33, 0
  %v37 = vadd.f32 %v29, %v35
  %v38 = vadd.f32 %v30, %v35
  %v39 = vadd.f32 %v31, %v35
  %v40 = vadd.f32 %v32, %v35
  %v41 = vadd.f32 %v37, %v21
  %v42 = vadd.f32 %v38, %v22
  %v43 = vadd.f32 %v39, %v23
  %v44 = vadd.f32 %v40, %v24
  %v45 = vmax.f32 %v41, 0.0
  %v46 = vmax.f32 %v42, 0.0
  %v47 = vmax.f32 %v43, 0.0
  %v48 = vmax.f32 %v44, 0.0
  %vm49 = vcmask 523264
  %50 = vst.msk [vmem:[%s4] sm:$0xff] %vm49, %v45
  %51 = vst.msk [vmem:[%s4 + $0x8] sm:$0xff] %vm49, %v46
  %52 = vst.msk [vmem:[%s4 + $0x10] sm:$0xff] %vm49, %v47
  %53 = vst.msk [vmem:[%s4 + $0x18] sm:$0xff] %vm49, %v48
  // Predicated region
  $region18: #{basic_block_forward_nhwc.5} parent=0 // pred_check
    _
  $region19: #{basic_block_forward_nhwc.5} parent=0 // pred_check_branch
    %55 = sbr.rel (0) target = $region21
  $region20: #{basic_block_forward_nhwc.5} parent=0 // pred_region
    _
  $region21: #{basic_block_forward_nhwc.5} parent=0 // pred_fallthru
    _
  // Predicated region
  $region22: #{basic_block_forward_nhwc.5} parent=0 // pred_check
    _
  $region23: #{basic_block_forward_nhwc.5} parent=0 // pred_check_branch
    %57 = sbr.rel (0) target = $region25
  $region24: #{basic_block_forward_nhwc.5} parent=0 // pred_region
    _
  $region25: #{basic_block_forward_nhwc.5} parent=0 // pred_fallthru
    _

// kernel: basic_block_forward_nhwc.3
$region0: #{basic_block_forward_nhwc.3}
  #allocation0 [shape = 'u32[]', space=smem, size = 0x4, offset = 0x4, fixed_abs, tag = 'smem constant byte address 0x4 - core index']
  #allocation1 [shape = 'u32[72,128]{1,0:T(1,128)}', space=vmem, size = 0x9000, scoped, tag = 'internal scratch']
  #allocation2 [shape = 'f32[640,4]{1,0:T(8,128)}', space=vmem, size = 0x50000, scoped, tag = 'scratch operand']
  %s0 = inlined_call_operand.vmem [shape: f32[2,256,4], index: 0, kind: input, shape index: {}]
  %s1 = inlined_call_operand.vmem [shape: f32[36,4], index: 1, kind: input, shape index: {}]
  %s2 = inlined_call_operand.vmem [shape: f32[2,256,4], index: 2, kind: output, shape index: {0}]
  %s3 = inlined_call_operand.vmem [shape: f32[2,2,4], index: 3, kind: output, shape index: {1}]
  %4 = xla_tuple %s2, %s3
  %s5 = sld [smem:[#allocation0]]
  $region26: #{basic_block_forward_nhwc.3} parent=0
    _
  %s7 = ssub.s32 1, %s5
  %s8 = scalar_select 0, %s7, %s5
  // Predicated region
  $region2: #{basic_block_forward_nhwc.3} parent=0 // pred_check
    _
  $region3: #{basic_block_forward_nhwc.3} parent=0 // pred_check_branch
    %10 = sbr.rel (0) target = $region5
  $region4: #{basic_block_forward_nhwc.3} parent=0 // pred_region
    _
  $region5: #{basic_block_forward_nhwc.3} parent=0 // pred_fallthru
    _
  // Predicated region
  $region6: #{basic_block_forward_nhwc.3} parent=0 // pred_check
    _
  $region7: #{basic_block_forward_nhwc.3} parent=0 // pred_check_branch
    %12 = sbr.rel (0) target = $region9
  $region8: #{basic_block_forward_nhwc.3} parent=0 // pred_region
    _
  $region9: #{basic_block_forward_nhwc.3} parent=0 // pred_fallthru
    _
  %v13 = vlaneseq
  %v14 = vshrl.u32 %v13, 7
  %v15 = vadd.s32 %v14, 8
  %v16 = vadd.s32 %v14, 16
  %v17 = vadd.s32 %v14, 24
  %v18 = vadd.s32 %v14, 32
  %v19 = vadd.s32 %v14, 40
  %v20 = vadd.s32 %v14, 48
  %v21 = vadd.s32 %v14, 56
  %v22 = vadd.s32 %v14, 64
  %v23 = vadd.s32 %v14, 72
  %v24 = vadd.s32 %v14, 80
  %v25 = vadd.s32 %v14, 88
  %v26 = vadd.s32 %v14, 96
  %v27 = vadd.s32 %v14, 104
  %v28 = vadd.s32 %v14, 112
  %v29 = vadd.s32 %v14, 120
  %v30 = vadd.s32 %v14, 128
  %v31 = vadd.s32 %v14, 136
  %v32 = vadd.s32 %v14, 144
  %v33 = vadd.s32 %v14, 152
  %v34 = vadd.s32 %v14, 160
  %v35 = vadd.s32 %v14, 168
  %v36 = vadd.s32 %v14, 176
  %v37 = vadd.s32 %v14, 184
  %v38 = vadd.s32 %v14, 192
  %v39 = vadd.s32 %v14, 200
  %v40 = vadd.s32 %v14, 208
  %v41 = vadd.s32 %v14, 216
  %v42 = vadd.s32 %v14, 224
  %v43 = vadd.s32 %v14, 232
  %v44 = vadd.s32 %v14, 240
  %v45 = vadd.s32 %v14, 248
  %vm46 = vcmp.lt.s32.totalorder %v14, 0
  %v47 = vsub.s32 0, %v14
  %v48 = vsel %vm46, %v47, %v14
  %v49 = vshrl.u32 %v48, 4
  %v50 = vand.u32 %v48, 15
  %v51 = vsub.s32 0, %v50
  %v52 = vsel %vm46, %v51, %v50
  %vm53 = vcmp.lt.s32.totalorder %v15, 0
  %v54 = vsub.s32 0, %v15
  %v55 = vsel %vm53, %v54, %v15
  %v56 = vshrl.u32 %v55, 4
  %v57 = vand.u32 %v55, 15
  %v58 = vsub.s32 0, %v57
  %v59 = vsel %vm53, %v58, %v57
  %vm60 = vcmp.lt.s32.totalorder %v16, 0
  %v61 = vsub.s32 0, %v16
  %v62 = vsel %vm60, %v61, %v16
  %v63 = vshrl.u32 %v62, 4
  %v64 = vand.u32 %v62, 15
  %v65 = vsub.s32 0, %v64
  %v66 = vsel %vm60, %v65, %v64
  %vm67 = vcmp.lt.s32.totalorder %v17, 0
  %v68 = vsub.s32 0, %v17
  %v69 = vsel %vm67, %v68, %v17
  %v70 = vshrl.u32 %v69, 4
  %v71 = vand.u32 %v69, 15
  %v72 = vsub.s32 0, %v71
  %v73 = vsel %vm67, %v72, %v71
  %vm74 = vcmp.lt.s32.totalorder %v18, 0
  %v75 = vsub.s32 0, %v18
  %v76 = vsel %vm74, %v75, %v18
  %v77 = vshrl.u32 %v76, 4
  %v78 = vand.u32 %v76, 15
  %v79 = vsub.s32 0, %v78
  %v80 = vsel %vm74, %v79, %v78
  %vm81 = vcmp.lt.s32.totalorder %v19, 0
  %v82 = vsub.s32 0, %v19
  %v83 = vsel %vm81, %v82, %v19
  %v84 = vshrl.u32 %v83, 4
  %v85 = vand.u32 %v83, 15
  %v86 = vsub.s32 0, %v85
  %v87 = vsel %vm81, %v86, %v85
  %vm88 = vcmp.lt.s32.totalorder %v20, 0
  %v89 = vsub.s32 0, %v20
  %v90 = vsel %vm88, %v89, %v20
  %v91 = vshrl.u32 %v90, 4
  %v92 = vand.u32 %v90, 15
  %v93 = vsub.s32 0, %v92
  %v94 = vsel %vm88, %v93, %v92
  %vm95 = vcmp.lt.s32.totalorder %v21, 0
  %v96 = vsub.s32 0, %v21
  %v97 = vsel %vm95, %v96, %v21
  %v98 = vshrl.u32 %v97, 4
  %v99 = vand.u32 %v97, 15
  %v100 = vsub.s32 0, %v99
  %v101 = vsel %vm95, %v100, %v99
  %vm102 = vcmp.lt.s32.totalorder %v22, 0
  %v103 = vsub.s32 0, %v22
  %v104 = vsel %vm102, %v103, %v22
  %v105 = vshrl.u32 %v104, 4
  %v106 = vand.u32 %v104, 15
  %v107 = vsub.s32 0, %v106
  %v108 = vsel %vm102, %v107, %v106
  %vm109 = vcmp.lt.s32.totalorder %v23, 0
  %v110 = vsub.s32 0, %v23
  %v111 = vsel %vm109, %v110, %v23
  %v112 = vshrl.u32 %v111, 4
  %v113 = vand.u32 %v111, 15
  %v114 = vsub.s32 0, %v113
  %v115 = vsel %vm109, %v114, %v113
  %vm116 = vcmp.lt.s32.totalorder %v24, 0
  %v117 = vsub.s32 0, %v24
  %v118 = vsel %vm116, %v117, %v24
  %v119 = vshrl.u32 %v118, 4
  %v120 = vand.u32 %v118, 15
  %v121 = vsub.s32 0, %v120
  %v122 = vsel %vm116, %v121, %v120
  %vm123 = vcmp.lt.s32.totalorder %v25, 0
  %v124 = vsub.s32 0, %v25
  %v125 = vsel %vm123, %v124, %v25
  %v126 = vshrl.u32 %v125, 4
  %v127 = vand.u32 %v125, 15
  %v128 = vsub.s32 0, %v127
  %v129 = vsel %vm123, %v128, %v127
  %vm130 = vcmp.lt.s32.totalorder %v26, 0
  %v131 = vsub.s32 0, %v26
  %v132 = vsel %vm130, %v131, %v26
  %v133 = vshrl.u32 %v132, 4
  %v134 = vand.u32 %v132, 15
  %v135 = vsub.s32 0, %v134
  %v136 = vsel %vm130, %v135, %v134
  %vm137 = vcmp.lt.s32.totalorder %v27, 0
  %v138 = vsub.s32 0, %v27
  %v139 = vsel %vm137, %v138, %v27
  %v140 = vshrl.u32 %v139, 4
  %v141 = vand.u32 %v139, 15
  %v142 = vsub.s32 0, %v141
  %v143 = vsel %vm137, %v142, %v141
  %vm144 = vcmp.lt.s32.totalorder %v28, 0
  %v145 = vsub.s32 0, %v28
  %v146 = vsel %vm144, %v145, %v28
  %v147 = vshrl.u32 %v146, 4
  %v148 = vand.u32 %v146, 15
  %v149 = vsub.s32 0, %v148
  %v150 = vsel %vm144, %v149, %v148
  %vm151 = vcmp.lt.s32.totalorder %v29, 0
  %v152 = vsub.s32 0, %v29
  %v153 = vsel %vm151, %v152, %v29
  %v154 = vshrl.u32 %v153, 4
  %v155 = vand.u32 %v153, 15
  %v156 = vsub.s32 0, %v155
  %v157 = vsel %vm151, %v156, %v155
  %vm158 = vcmp.lt.s32.totalorder %v30, 0
  %v159 = vsub.s32 0, %v30
  %v160 = vsel %vm158, %v159, %v30
  %v161 = vshrl.u32 %v160, 4
  %v162 = vand.u32 %v160, 15
  %v163 = vsub.s32 0, %v162
  %v164 = vsel %vm158, %v163, %v162
  %vm165 = vcmp.lt.s32.totalorder %v31, 0
  %v166 = vsub.s32 0, %v31
  %v167 = vsel %vm165, %v166, %v31
  %v168 = vshrl.u32 %v167, 4
  %v169 = vand.u32 %v167, 15
  %v170 = vsub.s32 0, %v169
  %v171 = vsel %vm165, %v170, %v169
  %vm172 = vcmp.lt.s32.totalorder %v32, 0
  %v173 = vsub.s32 0, %v32
  %v174 = vsel %vm172, %v173, %v32
  %v175 = vshrl.u32 %v174, 4
  %v176 = vand.u32 %v174, 15
  %v177 = vsub.s32 0, %v176
  %v178 = vsel %vm172, %v177, %v176
  %vm179 = vcmp.lt.s32.totalorder %v33, 0
  %v180 = vsub.s32 0, %v33
  %v181 = vsel %vm179, %v180, %v33
  %v182 = vshrl.u32 %v181, 4
  %v183 = vand.u32 %v181, 15
  %v184 = vsub.s32 0, %v183
  %v185 = vsel %vm179, %v184, %v183
  %vm186 = vcmp.lt.s32.totalorder %v34, 0
  %v187 = vsub.s32 0, %v34
  %v188 = vsel %vm186, %v187, %v34
  %v189 = vshrl.u32 %v188, 4
  %v190 = vand.u32 %v188, 15
  %v191 = vsub.s32 0, %v190
  %v192 = vsel %vm186, %v191, %v190
  %vm193 = vcmp.lt.s32.totalorder %v35, 0
  %v194 = vsub.s32 0, %v35
  %v195 = vsel %vm193, %v194, %v35
  %v196 = vshrl.u32 %v195, 4
  %v197 = vand.u32 %v195, 15
  %v198 = vsub.s32 0, %v197
  %v199 = vsel %vm193, %v198, %v197
  %vm200 = vcmp.lt.s32.totalorder %v36, 0
  %v201 = vsub.s32 0, %v36
  %v202 = vsel %vm200, %v201, %v36
  %v203 = vshrl.u32 %v202, 4
  %v204 = vand.u32 %v202, 15
  %v205 = vsub.s32 0, %v204
  %v206 = vsel %vm200, %v205, %v204
  %vm207 = vcmp.lt.s32.totalorder %v37, 0
  %v208 = vsub.s32 0, %v37
  %v209 = vsel %vm207, %v208, %v37
  %v210 = vshrl.u32 %v209, 4
  %v211 = vand.u32 %v209, 15
  %v212 = vsub.s32 0, %v211
  %v213 = vsel %vm207, %v212, %v211
  %vm214 = vcmp.lt.s32.totalorder %v38, 0
  %v215 = vsub.s32 0, %v38
  %v216 = vsel %vm214, %v215, %v38
  %v217 = vshrl.u32 %v216, 4
  %v218 = vand.u32 %v216, 15
  %v219 = vsub.s32 0, %v218
  %v220 = vsel %vm214, %v219, %v218
  %vm221 = vcmp.lt.s32.totalorder %v39, 0
  %v222 = vsub.s32 0, %v39
  %v223 = vsel %vm221, %v222, %v39
  %v224 = vshrl.u32 %v223, 4
  %v225 = vand.u32 %v223, 15
  %v226 = vsub.s32 0, %v225
  %v227 = vsel %vm221, %v226, %v225
  %vm228 = vcmp.lt.s32.totalorder %v40, 0
  %v229 = vsub.s32 0, %v40
  %v230 = vsel %vm228, %v229, %v40
  %v231 = vshrl.u32 %v230, 4
  %v232 = vand.u32 %v230, 15
  %v233 = vsub.s32 0, %v232
  %v234 = vsel %vm228, %v233, %v232
  %vm235 = vcmp.lt.s32.totalorder %v41, 0
  %v236 = vsub.s32 0, %v41
  %v237 = vsel %vm235, %v236, %v41
  %v238 = vshrl.u32 %v237, 4
  %v239 = vand.u32 %v237, 15
  %v240 = vsub.s32 0, %v239
  %v241 = vsel %vm235, %v240, %v239
  %vm242 = vcmp.lt.s32.totalorder %v42, 0
  %v243 = vsub.s32 0, %v42
  %v244 = vsel %vm242, %v243, %v42
  %v245 = vshrl.u32 %v244, 4
  %v246 = vand.u32 %v244, 15
  %v247 = vsub.s32 0, %v246
  %v248 = vsel %vm242, %v247, %v246
  %vm249 = vcmp.lt.s32.totalorder %v43, 0
  %v250 = vsub.s32 0, %v43
  %v251 = vsel %vm249, %v250, %v43
  %v252 = vshrl.u32 %v251, 4
  %v253 = vand.u32 %v251, 15
  %v254 = vsub.s32 0, %v253
  %v255 = vsel %vm249, %v254, %v253
  %vm256 = vcmp.lt.s32.totalorder %v44, 0
  %v257 = vsub.s32 0, %v44
  %v258 = vsel %vm256, %v257, %v44
  %v259 = vshrl.u32 %v258, 4
  %v260 = vand.u32 %v258, 15
  %v261 = vsub.s32 0, %v260
  %v262 = vsel %vm256, %v261, %v260
  %vm263 = vcmp.lt.s32.totalorder %v45, 0
  %v264 = vsub.s32 0, %v45
  %v265 = vsel %vm263, %v264, %v45
  %v266 = vshrl.u32 %v265, 4
  %v267 = vand.u32 %v265, 15
  %v268 = vsub.s32 0, %v267
  %v269 = vsel %vm263, %v268, %v267
  %vm270 = vcmp.ne.s32.totalorder %v52, 0
  %vm271 = vcmp.ne.s32.totalorder %v59, 0
  %vm272 = vcmp.ne.s32.totalorder %v66, 0
  %vm273 = vcmp.ne.s32.totalorder %v73, 0
  %vm274 = vcmp.ne.s32.totalorder %v80, 0
  %vm275 = vcmp.ne.s32.totalorder %v87, 0
  %vm276 = vcmp.ne.s32.totalorder %v94, 0
  %vm277 = vcmp.ne.s32.totalorder %v101, 0
  %vm278 = vcmp.ne.s32.totalorder %v108, 0
  %vm279 = vcmp.ne.s32.totalorder %v115, 0
  %vm280 = vcmp.ne.s32.totalorder %v122, 0
  %vm281 = vcmp.ne.s32.totalorder %v129, 0
  %vm282 = vcmp.ne.s32.totalorder %v136, 0
  %vm283 = vcmp.ne.s32.totalorder %v143, 0
  %vm284 = vcmp.ne.s32.totalorder %v150, 0
  %vm285 = vcmp.ne.s32.totalorder %v157, 0
  %vm286 = vcmp.ne.s32.totalorder %v164, 0
  %vm287 = vcmp.ne.s32.totalorder %v171, 0
  %vm288 = vcmp.ne.s32.totalorder %v178, 0
  %vm289 = vcmp.ne.s32.totalorder %v185, 0
  %vm290 = vcmp.ne.s32.totalorder %v192, 0
  %vm291 = vcmp.ne.s32.totalorder %v199, 0
  %vm292 = vcmp.ne.s32.totalorder %v206, 0
  %vm293 = vcmp.ne.s32.totalorder %v213, 0
  %vm294 = vcmp.ne.s32.totalorder %v220, 0
  %vm295 = vcmp.ne.s32.totalorder %v227, 0
  %vm296 = vcmp.ne.s32.totalorder %v234, 0
  %vm297 = vcmp.ne.s32.totalorder %v241, 0
  %vm298 = vcmp.ne.s32.totalorder %v248, 0
  %vm299 = vcmp.ne.s32.totalorder %v255, 0
  %vm300 = vcmp.ne.s32.totalorder %v262, 0
  %vm301 = vcmp.ne.s32.totalorder %v269, 0
  %vm302 = vcmp.lt.s32.totalorder %v52, 0
  %vm303 = vcmp.lt.s32.totalorder %v59, 0
  %vm304 = vcmp.lt.s32.totalorder %v66, 0
  %vm305 = vcmp.lt.s32.totalorder %v73, 0
  %vm306 = vcmp.lt.s32.totalorder %v80, 0
  %vm307 = vcmp.lt.s32.totalorder %v87, 0
  %vm308 = vcmp.lt.s32.totalorder %v94, 0
  %vm309 = vcmp.lt.s32.totalorder %v101, 0
  %vm310 = vcmp.lt.s32.totalorder %v108, 0
  %vm311 = vcmp.lt.s32.totalorder %v115, 0
  %vm312 = vcmp.lt.s32.totalorder %v122, 0
  %vm313 = vcmp.lt.s32.totalorder %v129, 0
  %vm314 = vcmp.lt.s32.totalorder %v136, 0
  %vm315 = vcmp.lt.s32.totalorder %v143, 0
  %vm316 = vcmp.lt.s32.totalorder %v150, 0
  %vm317 = vcmp.lt.s32.totalorder %v157, 0
  %vm318 = vcmp.lt.s32.totalorder %v164, 0
  %vm319 = vcmp.lt.s32.totalorder %v171, 0
  %vm320 = vcmp.lt.s32.totalorder %v178, 0
  %vm321 = vcmp.lt.s32.totalorder %v185, 0
  %vm322 = vcmp.lt.s32.totalorder %v192, 0
  %vm323 = vcmp.lt.s32.totalorder %v199, 0
  %vm324 = vcmp.lt.s32.totalorder %v206, 0
  %vm325 = vcmp.lt.s32.totalorder %v213, 0
  %vm326 = vcmp.lt.s32.totalorder %v220, 0
  %vm327 = vcmp.lt.s32.totalorder %v227, 0
  %vm328 = vcmp.lt.s32.totalorder %v234, 0
  %vm329 = vcmp.lt.s32.totalorder %v241, 0
  %vm330 = vcmp.lt.s32.totalorder %v248, 0
  %vm331 = vcmp.lt.s32.totalorder %v255, 0
  %vm332 = vcmp.lt.s32.totalorder %v262, 0
  %vm333 = vcmp.lt.s32.totalorder %v269, 0
  %vm334 = vmand %vm302, %vm270
  %vm335 = vmand %vm303, %vm271
  %vm336 = vmand %vm304, %vm272
  %vm337 = vmand %vm305, %vm273
  %vm338 = vmand %vm306, %vm274
  %vm339 = vmand %vm307, %vm275
  %vm340 = vmand %vm308, %vm276
  %vm341 = vmand %vm309, %vm277
  %vm342 = vmand %vm310, %vm278
  %vm343 = vmand %vm311, %vm279
  %vm344 = vmand %vm312, %vm280
  %vm345 = vmand %vm313, %vm281
  %vm346 = vmand %vm314, %vm282
  %vm347 = vmand %vm315, %vm283
  %vm348 = vmand %vm316, %vm284
  %vm349 = vmand %vm317, %vm285
  %vm350 = vmand %vm318, %vm286
  %vm351 = vmand %vm319, %vm287
  %vm352 = vmand %vm320, %vm288
  %vm353 = vmand %vm321, %vm289
  %vm354 = vmand %vm322, %vm290
  %vm355 = vmand %vm323, %vm291
  %vm356 = vmand %vm324, %vm292
  %vm357 = vmand %vm325, %vm293
  %vm358 = vmand %vm326, %vm294
  %vm359 = vmand %vm327, %vm295
  %vm360 = vmand %vm328, %vm296
  %vm361 = vmand %vm329, %vm297
  %vm362 = vmand %vm330, %vm298
  %vm363 = vmand %vm331, %vm299
  %vm364 = vmand %vm332, %vm300
  %vm365 = vmand %vm333, %vm301
  %v366 = vadd.s32 %v52, 16
  %v367 = vadd.s32 %v59, 16
  %v368 = vadd.s32 %v66, 16
  %v369 = vadd.s32 %v73, 16
  %v370 = vadd.s32 %v80, 16
  %v371 = vadd.s32 %v87, 16
  %v372 = vadd.s32 %v94, 16
  %v373 = vadd.s32 %v101, 16
  %v374 = vadd.s32 %v108, 16
  %v375 = vadd.s32 %v115, 16
  %v376 = vadd.s32 %v122, 16
  %v377 = vadd.s32 %v129, 16
  %v378 = vadd.s32 %v136, 16
  %v379 = vadd.s32 %v143, 16
  %v380 = vadd.s32 %v150, 16
  %v381 = vadd.s32 %v157, 16
  %v382 = vadd.s32 %v164, 16
  %v383 = vadd.s32 %v171, 16
  %v384 = vadd.s32 %v178, 16
  %v385 = vadd.s32 %v185, 16
  %v386 = vadd.s32 %v192, 16
  %v387 = vadd.s32 %v199, 16
  %v388 = vadd.s32 %v206, 16
  %v389 = vadd.s32 %v213, 16
  %v390 = vadd.s32 %v220, 16
  %v391 = vadd.s32 %v227, 16
  %v392 = vadd.s32 %v234, 16
  %v393 = vadd.s32 %v241, 16
  %v394 = vadd.s32 %v248, 16
  %v395 = vadd.s32 %v255, 16
  %v396 = vadd.s32 %v262, 16
  %v397 = vadd.s32 %v269, 16
  %v398 = vsel %vm334, %v366, %v52
  %v399 = vsel %vm335, %v367, %v59
  %v400 = vsel %vm336, %v368, %v66
  %v401 = vsel %vm337, %v369, %v73
  %v402 = vsel %vm338, %v370, %v80
  %v403 = vsel %vm339, %v371, %v87
  %v404 = vsel %vm340, %v372, %v94
  %v405 = vsel %vm341, %v373, %v101
  %v406 = vsel %vm342, %v374, %v108
  %v407 = vsel %vm343, %v375, %v115
  %v408 = vsel %vm344, %v376, %v122
  %v409 = vsel %vm345, %v377, %v129
  %v410 = vsel %vm346, %v378, %v136
  %v411 = vsel %vm347, %v379, %v143
  %v412 = vsel %vm348, %v380, %v150
  %v413 = vsel %vm349, %v381, %v157
  %v414 = vsel %vm350, %v382, %v164
  %v415 = vsel %vm351, %v383, %v171
  %v416 = vsel %vm352, %v384, %v178
  %v417 = vsel %vm353, %v385, %v185
  %v418 = vsel %vm354, %v386, %v192
  %v419 = vsel %vm355, %v387, %v199
  %v420 = vsel %vm356, %v388, %v206
  %v421 = vsel %vm357, %v389, %v213
  %v422 = vsel %vm358, %v390, %v220
  %v423 = vsel %vm359, %v391, %v227
  %v424 = vsel %vm360, %v392, %v234
  %v425 = vsel %vm361, %v393, %v241
  %v426 = vsel %vm362, %v394, %v248
  %v427 = vsel %vm363, %v395, %v255
  %v428 = vsel %vm364, %v396, %v262
  %v429 = vsel %vm365, %v397, %v269
  %vm430 = vcmp.gt.s32.totalorder %v398, 0
  %vm431 = vcmp.gt.s32.totalorder %v399, 0
  %vm432 = vcmp.gt.s32.totalorder %v400, 0
  %vm433 = vcmp.gt.s32.totalorder %v401, 0
  %vm434 = vcmp.gt.s32.totalorder %v402, 0
  %vm435 = vcmp.gt.s32.totalorder %v403, 0
  %vm436 = vcmp.gt.s32.totalorder %v404, 0
  %vm437 = vcmp.gt.s32.totalorder %v405, 0
  %vm438 = vcmp.gt.s32.totalorder %v406, 0
  %vm439 = vcmp.gt.s32.totalorder %v407, 0
  %vm440 = vcmp.gt.s32.totalorder %v408, 0
  %vm441 = vcmp.gt.s32.totalorder %v409, 0
  %vm442 = vcmp.gt.s32.totalorder %v410, 0
  %vm443 = vcmp.gt.s32.totalorder %v411, 0
  %vm444 = vcmp.gt.s32.totalorder %v412, 0
  %vm445 = vcmp.gt.s32.totalorder %v413, 0
  %vm446 = vcmp.gt.s32.totalorder %v414, 0
  %vm447 = vcmp.gt.s32.totalorder %v415, 0
  %vm448 = vcmp.gt.s32.totalorder %v416, 0
  %vm449 = vcmp.gt.s32.totalorder %v417, 0
  %vm450 = vcmp.gt.s32.totalorder %v418, 0
  %vm451 = vcmp.gt.s32.totalorder %v419, 0
  %vm452 = vcmp.gt.s32.totalorder %v420, 0
  %vm453 = vcmp.gt.s32.totalorder %v421, 0
  %vm454 = vcmp.gt.s32.totalorder %v422, 0
  %vm455 = vcmp.gt.s32.totalorder %v423, 0
  %vm456 = vcmp.gt.s32.totalorder %v424, 0
  %vm457 = vcmp.gt.s32.totalorder %v425, 0
  %vm458 = vcmp.gt.s32.totalorder %v426, 0
  %vm459 = vcmp.gt.s32.totalorder %v427, 0
  %vm460 = vcmp.gt.s32.totalorder %v428, 0
  %vm461 = vcmp.gt.s32.totalorder %v429, 0
  %vm462 = vcmp.lt.s32.totalorder %v398, 15
  %vm463 = vcmp.lt.s32.totalorder %v399, 15
  %vm464 = vcmp.lt.s32.totalorder %v400, 15
  %vm465 = vcmp.lt.s32.totalorder %v401, 15
  %vm466 = vcmp.lt.s32.totalorder %v402, 15
  %vm467 = vcmp.lt.s32.totalorder %v403, 15
  %vm468 = vcmp.lt.s32.totalorder %v404, 15
  %vm469 = vcmp.lt.s32.totalorder %v405, 15
  %vm470 = vcmp.lt.s32.totalorder %v406, 15
  %vm471 = vcmp.lt.s32.totalorder %v407, 15
  %vm472 = vcmp.lt.s32.totalorder %v408, 15
  %vm473 = vcmp.lt.s32.totalorder %v409, 15
  %vm474 = vcmp.lt.s32.totalorder %v410, 15
  %vm475 = vcmp.lt.s32.totalorder %v411, 15
  %vm476 = vcmp.lt.s32.totalorder %v412, 15
  %vm477 = vcmp.lt.s32.totalorder %v413, 15
  %vm478 = vcmp.lt.s32.totalorder %v414, 15
  %vm479 = vcmp.lt.s32.totalorder %v415, 15
  %vm480 = vcmp.lt.s32.totalorder %v416, 15
  %vm481 = vcmp.lt.s32.totalorder %v417, 15
  %vm482 = vcmp.lt.s32.totalorder %v418, 15
  %vm483 = vcmp.lt.s32.totalorder %v419, 15
  %vm484 = vcmp.lt.s32.totalorder %v420, 15
  %vm485 = vcmp.lt.s32.totalorder %v421, 15
  %vm486 = vcmp.lt.s32.totalorder %v422, 15
  %vm487 = vcmp.lt.s32.totalorder %v423, 15
  %vm488 = vcmp.lt.s32.totalorder %v424, 15
  %vm489 = vcmp.lt.s32.totalorder %v425, 15
  %vm490 = vcmp.lt.s32.totalorder %v426, 15
  %vm491 = vcmp.lt.s32.totalorder %v427, 15
  %vm492 = vcmp.lt.s32.totalorder %v428, 15
  %vm493 = vcmp.lt.s32.totalorder %v429, 15
  %vm494 = vcmask 31744
  %495 = vst.msk [vmem:[#allocation2] sm:$0xff] %vm494, 0.0
  %496 = vst.msk [vmem:[#allocation2 + $0x8] sm:$0xff] %vm494, 0.0
  %497 = vst.msk [vmem:[#allocation2 + $0x10] sm:$0xff] %vm494, 0.0
  %498 = vst.msk [vmem:[#allocation2 + $0x18] sm:$0xff] %vm494, 0.0
  %499 = vst.msk [vmem:[#allocation2 + $0x120] sm:$0xff] %vm494, 0.0
  %500 = vst.msk [vmem:[#allocation2 + $0x128] sm:$0xff] %vm494, 0.0
  %501 = vst.msk [vmem:[#allocation2 + $0x130] sm:$0xff] %vm494, 0.0
  %502 = vst.msk [vmem:[#allocation2 + $0x138] sm:$0xff] %vm494, 0.0
  %503 = vst.msk [vmem:[#allocation2 + $0x140] sm:$0xff] %vm494, 0.0
  %504 = vst.msk [vmem:[#allocation2 + $0x148] sm:$0xff] %vm494, 0.0
  %505 = vst.msk [vmem:[#allocation2 + $0x150] sm:$0xff] %vm494, 0.0
  %506 = vst.msk [vmem:[#allocation2 + $0x158] sm:$0xff] %vm494, 0.0
  %507 = vst.msk [vmem:[#allocation2 + $0x260] sm:$0xff] %vm494, 0.0
  %508 = vst.msk [vmem:[#allocation2 + $0x268] sm:$0xff] %vm494, 0.0
  %509 = vst.msk [vmem:[#allocation2 + $0x270] sm:$0xff] %vm494, 0.0
  %510 = vst.msk [vmem:[#allocation2 + $0x278] sm:$0xff] %vm494, 0.0
  %v511 = vld [vmem:[%s0] sm:$0xff]
  %v512 = vld [vmem:[%s0 + $0x8] sm:$0xff]
  %v513 = vld [vmem:[%s0 + $0x10] sm:$0xff]
  %v514 = vld [vmem:[%s0 + $0x18] sm:$0xff]
  %v515 = vld [vmem:[%s0 + $0x20] sm:$0xff]
  %v516 = vld [vmem:[%s0 + $0x28] sm:$0xff]
  %v517 = vld [vmem:[%s0 + $0x30] sm:$0xff]
  %v518 = vld [vmem:[%s0 + $0x38] sm:$0xff]
  %v519 = vld [vmem:[%s0 + $0x40] sm:$0xff]
  %v520 = vld [vmem:[%s0 + $0x48] sm:$0xff]
  %v521 = vld [vmem:[%s0 + $0x50] sm:$0xff]
  %v522 = vld [vmem:[%s0 + $0x58] sm:$0xff]
  %v523 = vld [vmem:[%s0 + $0x60] sm:$0xff]
  %v524 = vld [vmem:[%s0 + $0x68] sm:$0xff]
  %v525 = vld [vmem:[%s0 + $0x70] sm:$0xff]
  %v526 = vld [vmem:[%s0 + $0x78] sm:$0xff]
  %v527 = vld [vmem:[%s0 + $0x80] sm:$0xff]
  %v528 = vld [vmem:[%s0 + $0x88] sm:$0xff]
  %v529 = vld [vmem:[%s0 + $0x90] sm:$0xff]
  %v530 = vld [vmem:[%s0 + $0x98] sm:$0xff]
  %v531 = vld [vmem:[%s0 + $0xa0] sm:$0xff]
  %v532 = vld [vmem:[%s0 + $0xa8] sm:$0xff]
  %v533 = vld [vmem:[%s0 + $0xb0] sm:$0xff]
  %v534 = vld [vmem:[%s0 + $0xb8] sm:$0xff]
  %v535 = vld [vmem:[%s0 + $0xc0] sm:$0xff]
  %v536 = vld [vmem:[%s0 + $0xc8] sm:$0xff]
  %v537 = vld [vmem:[%s0 + $0xd0] sm:$0xff]
  %v538 = vld [vmem:[%s0 + $0xd8] sm:$0xff]
  %v539 = vld [vmem:[%s0 + $0xe0] sm:$0xff]
  %v540 = vld [vmem:[%s0 + $0xe8] sm:$0xff]
  %v541 = vld [vmem:[%s0 + $0xf0] sm:$0xff]
  %v542 = vld [vmem:[%s0 + $0xf8] sm:$0xff]
  %543 = vst.msk [vmem:[#allocation2 + $0x20] sm:$0xff] %vm494, %v511
  %544 = vst.msk [vmem:[#allocation2 + $0x28] sm:$0xff] %vm494, %v512
  %545 = vst.msk [vmem:[#allocation2 + $0x30] sm:$0xff] %vm494, %v513
  %546 = vst.msk [vmem:[#allocation2 + $0x38] sm:$0xff] %vm494, %v514
  %547 = vst.msk [vmem:[#allocation2 + $0x40] sm:$0xff] %vm494, %v515
  %548 = vst.msk [vmem:[#allocation2 + $0x48] sm:$0xff] %vm494, %v516
  %549 = vst.msk [vmem:[#allocation2 + $0x50] sm:$0xff] %vm494, %v517
  %550 = vst.msk [vmem:[#allocation2 + $0x58] sm:$0xff] %vm494, %v518
  %551 = vst.msk [vmem:[#allocation2 + $0x60] sm:$0xff] %vm494, %v519
  %552 = vst.msk [vmem:[#allocation2 + $0x68] sm:$0xff] %vm494, %v520
  %553 = vst.msk [vmem:[#allocation2 + $0x70] sm:$0xff] %vm494, %v521
  %554 = vst.msk [vmem:[#allocation2 + $0x78] sm:$0xff] %vm494, %v522
  %555 = vst.msk [vmem:[#allocation2 + $0x80] sm:$0xff] %vm494, %v523
  %556 = vst.msk [vmem:[#allocation2 + $0x88] sm:$0xff] %vm494, %v524
  %557 = vst.msk [vmem:[#allocation2 + $0x90] sm:$0xff] %vm494, %v525
  %558 = vst.msk [vmem:[#allocation2 + $0x98] sm:$0xff] %vm494, %v526
  %559 = vst.msk [vmem:[#allocation2 + $0xa0] sm:$0xff] %vm494, %v527
  %560 = vst.msk [vmem:[#allocation2 + $0xa8] sm:$0xff] %vm494, %v528
  %561 = vst.msk [vmem:[#allocation2 + $0xb0] sm:$0xff] %vm494, %v529
  %562 = vst.msk [vmem:[#allocation2 + $0xb8] sm:$0xff] %vm494, %v530
  %563 = vst.msk [vmem:[#allocation2 + $0xc0] sm:$0xff] %vm494, %v531
  %564 = vst.msk [vmem:[#allocation2 + $0xc8] sm:$0xff] %vm494, %v532
  %565 = vst.msk [vmem:[#allocation2 + $0xd0] sm:$0xff] %vm494, %v533
  %566 = vst.msk [vmem:[#allocation2 + $0xd8] sm:$0xff] %vm494, %v534
  %567 = vst.msk [vmem:[#allocation2 + $0xe0] sm:$0xff] %vm494, %v535
  %568 = vst.msk [vmem:[#allocation2 + $0xe8] sm:$0xff] %vm494, %v536
  %569 = vst.msk [vmem:[#allocation2 + $0xf0] sm:$0xff] %vm494, %v537
  %570 = vst.msk [vmem:[#allocation2 + $0xf8] sm:$0xff] %vm494, %v538
  %571 = vst.msk [vmem:[#allocation2 + $0x100] sm:$0xff] %vm494, %v539
  %572 = vst.msk [vmem:[#allocation2 + $0x108] sm:$0xff] %vm494, %v540
  %573 = vst.msk [vmem:[#allocation2 + $0x110] sm:$0xff] %vm494, %v541
  %574 = vst.msk [vmem:[#allocation2 + $0x118] sm:$0xff] %vm494, %v542
  %v575 = vld [vmem:[#allocation2 + $0xf] sm:$0xff]
  %v576 = vld [vmem:[#allocation2 + $0x17] sm:$0xff]
  %v577 = vld [vmem:[#allocation2 + $0x1f] sm:$0xff]
  %v578 = vld [vmem:[#allocation2 + $0x27] sm:$0xff]
  %v579 = vld [vmem:[#allocation2 + $0x2f] sm:$0xff]
  %v580 = vld [vmem:[#allocation2 + $0x37] sm:$0xff]
  %v581 = vld [vmem:[#allocation2 + $0x3f] sm:$0xff]
  %v582 = vld [vmem:[#allocation2 + $0x47] sm:$0xff]
  %v583 = vld [vmem:[#allocation2 + $0x4f] sm:$0xff]
  %v584 = vld [vmem:[#allocation2 + $0x57] sm:$0xff]
  %v585 = vld [vmem:[#allocation2 + $0x5f] sm:$0xff]
  %v586 = vld [vmem:[#allocation2 + $0x67] sm:$0xff]
  %v587 = vld [vmem:[#allocation2 + $0x6f] sm:$0xff]
  %v588 = vld [vmem:[#allocation2 + $0x77] sm:$0xff]
  %v589 = vld [vmem:[#allocation2 + $0x7f] sm:$0xff]
  %v590 = vld [vmem:[#allocation2 + $0x87] sm:$0xff]
  %v591 = vld [vmem:[#allocation2 + $0x8f] sm:$0xff]
  %v592 = vld [vmem:[#allocation2 + $0x97] sm:$0xff]
  %v593 = vld [vmem:[#allocation2 + $0x9f] sm:$0xff]
  %v594 = vld [vmem:[#allocation2 + $0xa7] sm:$0xff]
  %v595 = vld [vmem:[#allocation2 + $0xaf] sm:$0xff]
  %v596 = vld [vmem:[#allocation2 + $0xb7] sm:$0xff]
  %v597 = vld [vmem:[#allocation2 + $0xbf] sm:$0xff]
  %v598 = vld [vmem:[#allocation2 + $0xc7] sm:$0xff]
  %v599 = vld [vmem:[#allocation2 + $0xcf] sm:$0xff]
  %v600 = vld [vmem:[#allocation2 + $0xd7] sm:$0xff]
  %v601 = vld [vmem:[#allocation2 + $0xdf] sm:$0xff]
  %v602 = vld [vmem:[#allocation2 + $0xe7] sm:$0xff]
  %v603 = vld [vmem:[#allocation2 + $0xef] sm:$0xff]
  %v604 = vld [vmem:[#allocation2 + $0xf7] sm:$0xff]
  %v605 = vld [vmem:[#allocation2 + $0xff] sm:$0xff]
  %v606 = vld [vmem:[#allocation2 + $0x107] sm:$0xff]
  %v607 = vsel %vm430, 1, 0
  %v608 = vsel %vm431, 1, 0
  %v609 = vsel %vm432, 1, 0
  %v610 = vsel %vm433, 1, 0
  %v611 = vsel %vm434, 1, 0
  %v612 = vsel %vm435, 1, 0
  %v613 = vsel %vm436, 1, 0
  %v614 = vsel %vm437, 1, 0
  %v615 = vsel %vm438, 1, 0
  %v616 = vsel %vm439, 1, 0
  %v617 = vsel %vm440, 1, 0
  %v618 = vsel %vm441, 1, 0
  %v619 = vsel %vm442, 1, 0
  %v620 = vsel %vm443, 1, 0
  %v621 = vsel %vm444, 1, 0
  %v622 = vsel %vm445, 1, 0
  %v623 = vsel %vm446, 1, 0
  %v624 = vsel %vm447, 1, 0
  %v625 = vsel %vm448, 1, 0
  %v626 = vsel %vm449, 1, 0
  %v627 = vsel %vm450, 1, 0
  %v628 = vsel %vm451, 1, 0
  %v629 = vsel %vm452, 1, 0
  %v630 = vsel %vm453, 1, 0
  %v631 = vsel %vm454, 1, 0
  %v632 = vsel %vm455, 1, 0
  %v633 = vsel %vm456, 1, 0
  %v634 = vsel %vm457, 1, 0
  %v635 = vsel %vm458, 1, 0
  %v636 = vsel %vm459, 1, 0
  %v637 = vsel %vm460, 1, 0
  %v638 = vsel %vm461, 1, 0
  %vm639 = vcmp.eq.s32.totalorder %v607, 1
  %vm640 = vcmp.eq.s32.totalorder %v608, 1
  %vm641 = vcmp.eq.s32.totalorder %v609, 1
  %vm642 = vcmp.eq.s32.totalorder %v610, 1
  %vm643 = vcmp.eq.s32.totalorder %v611, 1
  %vm644 = vcmp.eq.s32.totalorder %v612, 1
  %vm645 = vcmp.eq.s32.totalorder %v613, 1
  %vm646 = vcmp.eq.s32.totalorder %v614, 1
  %vm647 = vcmp.eq.s32.totalorder %v615, 1
  %vm648 = vcmp.eq.s32.totalorder %v616, 1
  %vm649 = vcmp.eq.s32.totalorder %v617, 1
  %vm650 = vcmp.eq.s32.totalorder %v618, 1
  %vm651 = vcmp.eq.s32.totalorder %v619, 1
  %vm652 = vcmp.eq.s32.totalorder %v620, 1
  %vm653 = vcmp.eq.s32.totalorder %v621, 1
  %vm654 = vcmp.eq.s32.totalorder %v622, 1
  %vm655 = vcmp.eq.s32.totalorder %v623, 1
  %vm656 = vcmp.eq.s32.totalorder %v624, 1
  %vm657 = vcmp.eq.s32.totalorder %v625, 1
  %vm658 = vcmp.eq.s32.totalorder %v626, 1
  %vm659 = vcmp.eq.s32.totalorder %v627, 1
  %vm660 = vcmp.eq.s32.totalorder %v628, 1
  %vm661 = vcmp.eq.s32.totalorder %v629, 1
  %vm662 = vcmp.eq.s32.totalorder %v630, 1
  %vm663 = vcmp.eq.s32.totalorder %v631, 1
  %vm664 = vcmp.eq.s32.totalorder %v632, 1
  %vm665 = vcmp.eq.s32.totalorder %v633, 1
  %vm666 = vcmp.eq.s32.totalorder %v634, 1
  %vm667 = vcmp.eq.s32.totalorder %v635, 1
  %vm668 = vcmp.eq.s32.totalorder %v636, 1
  %vm669 = vcmp.eq.s32.totalorder %v637, 1
  %vm670 = vcmp.eq.s32.totalorder %v638, 1
  %v671 = vsel %vm639, %v575, 0.0
  %v672 = vsel %vm640, %v576, 0.0
  %v673 = vsel %vm641, %v577, 0.0
  %v674 = vsel %vm642, %v578, 0.0
  %v675 = vsel %vm643, %v579, 0.0
  %v676 = vsel %vm644, %v580, 0.0
  %v677 = vsel %vm645, %v581, 0.0
  %v678 = vsel %vm646, %v582, 0.0
  %v679 = vsel %vm647, %v583, 0.0
  %v680 = vsel %vm648, %v584, 0.0
  %v681 = vsel %vm649, %v585, 0.0
  %v682 = vsel %vm650, %v586, 0.0
  %v683 = vsel %vm651, %v587, 0.0
  %v684 = vsel %vm652, %v588, 0.0
  %v685 = vsel %vm653, %v589, 0.0
  %v686 = vsel %vm654, %v590, 0.0
  %v687 = vsel %vm655, %v591, 0.0
  %v688 = vsel %vm656, %v592, 0.0
  %v689 = vsel %vm657, %v593, 0.0
  %v690 = vsel %vm658, %v594, 0.0
  %v691 = vsel %vm659, %v595, 0.0
  %v692 = vsel %vm660, %v596, 0.0
  %v693 = vsel %vm661, %v597, 0.0
  %v694 = vsel %vm662, %v598, 0.0
  %v695 = vsel %vm663, %v599, 0.0
  %v696 = vsel %vm664, %v600, 0.0
  %v697 = vsel %vm665, %v601, 0.0
  %v698 = vsel %vm666, %v602, 0.0
  %v699 = vsel %vm667, %v603, 0.0
  %v700 = vsel %vm668, %v604, 0.0
  %v701 = vsel %vm669, %v605, 0.0
  %v702 = vsel %vm670, %v606, 0.0
  %v703 = vld [vmem:[#allocation2 + $0x10] sm:$0xff]
  %v704 = vld [vmem:[#allocation2 + $0x18] sm:$0xff]
  %v705 = vld [vmem:[#allocation2 + $0x20] sm:$0xff]
  %v706 = vld [vmem:[#allocation2 + $0x28] sm:$0xff]
  %v707 = vld [vmem:[#allocation2 + $0x30] sm:$0xff]
  %v708 = vld [vmem:[#allocation2 + $0x38] sm:$0xff]
  %v709 = vld [vmem:[#allocation2 + $0x40] sm:$0xff]
  %v710 = vld [vmem:[#allocation2 + $0x48] sm:$0xff]
  %v711 = vld [vmem:[#allocation2 + $0x50] sm:$0xff]
  %v712 = vld [vmem:[#allocation2 + $0x58] sm:$0xff]
  %v713 = vld [vmem:[#allocation2 + $0x60] sm:$0xff]
  %v714 = vld [vmem:[#allocation2 + $0x68] sm:$0xff]
  %v715 = vld [vmem:[#allocation2 + $0x70] sm:$0xff]
  %v716 = vld [vmem:[#allocation2 + $0x78] sm:$0xff]
  %v717 = vld [vmem:[#allocation2 + $0x80] sm:$0xff]
  %v718 = vld [vmem:[#allocation2 + $0x88] sm:$0xff]
  %v719 = vld [vmem:[#allocation2 + $0x90] sm:$0xff]
  %v720 = vld [vmem:[#allocation2 + $0x98] sm:$0xff]
  %v721 = vld [vmem:[#allocation2 + $0xa0] sm:$0xff]
  %v722 = vld [vmem:[#allocation2 + $0xa8] sm:$0xff]
  %v723 = vld [vmem:[#allocation2 + $0xb0] sm:$0xff]
  %v724 = vld [vmem:[#allocation2 + $0xb8] sm:$0xff]
  %v725 = vld [vmem:[#allocation2 + $0xc0] sm:$0xff]
  %v726 = vld [vmem:[#allocation2 + $0xc8] sm:$0xff]
  %v727 = vld [vmem:[#allocation2 + $0xd0] sm:$0xff]
  %v728 = vld [vmem:[#allocation2 + $0xd8] sm:$0xff]
  %v729 = vld [vmem:[#allocation2 + $0xe0] sm:$0xff]
  %v730 = vld [vmem:[#allocation2 + $0xe8] sm:$0xff]
  %v731 = vld [vmem:[#allocation2 + $0xf0] sm:$0xff]
  %v732 = vld [vmem:[#allocation2 + $0xf8] sm:$0xff]
  %v733 = vld [vmem:[#allocation2 + $0x100] sm:$0xff]
  %v734 = vld [vmem:[#allocation2 + $0x108] sm:$0xff]
  %v735 = vld [vmem:[#allocation2 + $0x11] sm:$0xff]
  %v736 = vld [vmem:[#allocation2 + $0x19] sm:$0xff]
  %v737 = vld [vmem:[#allocation2 + $0x21] sm:$0xff]
  %v738 = vld [vmem:[#allocation2 + $0x29] sm:$0xff]
  %v739 = vld [vmem:[#allocation2 + $0x31] sm:$0xff]
  %v740 = vld [vmem:[#allocation2 + $0x39] sm:$0xff]
  %v741 = vld [vmem:[#allocation2 + $0x41] sm:$0xff]
  %v742 = vld [vmem:[#allocation2 + $0x49] sm:$0xff]
  %v743 = vld [vmem:[#allocation2 + $0x51] sm:$0xff]
  %v744 = vld [vmem:[#allocation2 + $0x59] sm:$0xff]
  %v745 = vld [vmem:[#allocation2 + $0x61] sm:$0xff]
  %v746 = vld [vmem:[#allocation2 + $0x69] sm:$0xff]
  %v747 = vld [vmem:[#allocation2 + $0x71] sm:$0xff]
  %v748 = vld [vmem:[#allocation2 + $0x79] sm:$0xff]
  %v749 = vld [vmem:[#allocation2 + $0x81] sm:$0xff]
  %v750 = vld [vmem:[#allocation2 + $0x89] sm:$0xff]
  %v751 = vld [vmem:[#allocation2 + $0x91] sm:$0xff]
  %v752 = vld [vmem:[#allocation2 + $0x99] sm:$0xff]
  %v753 = vld [vmem:[#allocation2 + $0xa1] sm:$0xff]
  %v754 = vld [vmem:[#allocation2 + $0xa9] sm:$0xff]
  %v755 = vld [vmem:[#allocation2 + $0xb1] sm:$0xff]
  %v756 = vld [vmem:[#allocation2 + $0xb9] sm:$0xff]
  %v757 = vld [vmem:[#allocation2 + $0xc1] sm:$0xff]
  %v758 = vld [vmem:[#allocation2 + $0xc9] sm:$0xff]
  %v759 = vld [vmem:[#allocation2 + $0xd1] sm:$0xff]
  %v760 = vld [vmem:[#allocation2 + $0xd9] sm:$0xff]
  %v761 = vld [vmem:[#allocation2 + $0xe1] sm:$0xff]
  %v762 = vld [vmem:[#allocation2 + $0xe9] sm:$0xff]
  %v763 = vld [vmem:[#allocation2 + $0xf1] sm:$0xff]
  %v764 = vld [vmem:[#allocation2 + $0xf9] sm:$0xff]
  %v765 = vld [vmem:[#allocation2 + $0x101] sm:$0xff]
  %v766 = vld [vmem:[#allocation2 + $0x109] sm:$0xff]
  %v767 = vsel %vm462, 1, 0
  %v768 = vsel %vm463, 1, 0
  %v769 = vsel %vm464, 1, 0
  %v770 = vsel %vm465, 1, 0
  %v771 = vsel %vm466, 1, 0
  %v772 = vsel %vm467, 1, 0
  %v773 = vsel %vm468, 1, 0
  %v774 = vsel %vm469, 1, 0
  %v775 = vsel %vm470, 1, 0
  %v776 = vsel %vm471, 1, 0
  %v777 = vsel %vm472, 1, 0
  %v778 = vsel %vm473, 1, 0
  %v779 = vsel %vm474, 1, 0
  %v780 = vsel %vm475, 1, 0
  %v781 = vsel %vm476, 1, 0
  %v782 = vsel %vm477, 1, 0
  %v783 = vsel %vm478, 1, 0
  %v784 = vsel %vm479, 1, 0
  %v785 = vsel %vm480, 1, 0
  %v786 = vsel %vm481, 1, 0
  %v787 = vsel %vm482, 1, 0
  %v788 = vsel %vm483, 1, 0
  %v789 = vsel %vm484, 1, 0
  %v790 = vsel %vm485, 1, 0
  %v791 = vsel %vm486, 1, 0
  %v792 = vsel %vm487, 1, 0
  %v793 = vsel %vm488, 1, 0
  %v794 = vsel %vm489, 1, 0
  %v795 = vsel %vm490, 1, 0
  %v796 = vsel %vm491, 1, 0
  %v797 = vsel %vm492, 1, 0
  %v798 = vsel %vm493, 1, 0
  %vm799 = vcmp.eq.s32.totalorder %v767, 1
  %vm800 = vcmp.eq.s32.totalorder %v768, 1
  %vm801 = vcmp.eq.s32.totalorder %v769, 1
  %vm802 = vcmp.eq.s32.totalorder %v770, 1
  %vm803 = vcmp.eq.s32.totalorder %v771, 1
  %vm804 = vcmp.eq.s32.totalorder %v772, 1
  %vm805 = vcmp.eq.s32.totalorder %v773, 1
  %vm806 = vcmp.eq.s32.totalorder %v774, 1
  %vm807 = vcmp.eq.s32.totalorder %v775, 1
  %vm808 = vcmp.eq.s32.totalorder %v776, 1
  %vm809 = vcmp.eq.s32.totalorder %v777, 1
  %vm810 = vcmp.eq.s32.totalorder %v778, 1
  %vm811 = vcmp.eq.s32.totalorder %v779, 1
  %vm812 = vcmp.eq.s32.totalorder %v780, 1
  %vm813 = vcmp.eq.s32.totalorder %v781, 1
  %vm814 = vcmp.eq.s32.totalorder %v782, 1
  %vm815 = vcmp.eq.s32.totalorder %v783, 1
  %vm816 = vcmp.eq.s32.totalorder %v784, 1
  %vm817 = vcmp.eq.s32.totalorder %v785, 1
  %vm818 = vcmp.eq.s32.totalorder %v786, 1
  %vm819 = vcmp.eq.s32.totalorder %v787, 1
  %vm820 = vcmp.eq.s32.totalorder %v788, 1
  %vm821 = vcmp.eq.s32.totalorder %v789, 1
  %vm822 = vcmp.eq.s32.totalorder %v790, 1
  %vm823 = vcmp.eq.s32.totalorder %v791, 1
  %vm824 = vcmp.eq.s32.totalorder %v792, 1
  %vm825 = vcmp.eq.s32.totalorder %v793, 1
  %vm826 = vcmp.eq.s32.totalorder %v794, 1
  %vm827 = vcmp.eq.s32.totalorder %v795, 1
  %vm828 = vcmp.eq.s32.totalorder %v796, 1
  %vm829 = vcmp.eq.s32.totalorder %v797, 1
  %vm830 = vcmp.eq.s32.totalorder %v798, 1
  %v831 = vsel %vm799, %v735, 0.0
  %v832 = vsel %vm800, %v736, 0.0
  %v833 = vsel %vm801, %v737, 0.0
  %v834 = vsel %vm802, %v738, 0.0
  %v835 = vsel %vm803, %v739, 0.0
  %v836 = vsel %vm804, %v740, 0.0
  %v837 = vsel %vm805, %v741, 0.0
  %v838 = vsel %vm806, %v742, 0.0
  %v839 = vsel %vm807, %v743, 0.0
  %v840 = vsel %vm808, %v744, 0.0
  %v841 = vsel %vm809, %v745, 0.0
  %v842 = vsel %vm810, %v746, 0.0
  %v843 = vsel %vm811, %v747, 0.0
  %v844 = vsel %vm812, %v748, 0.0
  %v845 = vsel %vm813, %v749, 0.0
  %v846 = vsel %vm814, %v750, 0.0
  %v847 = vsel %vm815, %v751, 0.0
  %v848 = vsel %vm816, %v752, 0.0
  %v849 = vsel %vm817, %v753, 0.0
  %v850 = vsel %vm818, %v754, 0.0
  %v851 = vsel %vm819, %v755, 0.0
  %v852 = vsel %vm820, %v756, 0.0
  %v853 = vsel %vm821, %v757, 0.0
  %v854 = vsel %vm822, %v758, 0.0
  %v855 = vsel %vm823, %v759, 0.0
  %v856 = vsel %vm824, %v760, 0.0
  %v857 = vsel %vm825, %v761, 0.0
  %v858 = vsel %vm826, %v762, 0.0
  %v859 = vsel %vm827, %v763, 0.0
  %v860 = vsel %vm828, %v764, 0.0
  %v861 = vsel %vm829, %v765, 0.0
  %v862 = vsel %vm830, %v766, 0.0
  %v863 = vld [vmem:[#allocation2 + $0x10f] sm:$0xff]
  %v864 = vld [vmem:[#allocation2 + $0x117] sm:$0xff]
  %v865 = vsel %vm639, %v577, 0.0
  %v866 = vsel %vm640, %v578, 0.0
  %v867 = vsel %vm641, %v579, 0.0
  %v868 = vsel %vm642, %v580, 0.0
  %v869 = vsel %vm643, %v581, 0.0
  %v870 = vsel %vm644, %v582, 0.0
  %v871 = vsel %vm645, %v583, 0.0
  %v872 = vsel %vm646, %v584, 0.0
  %v873 = vsel %vm647, %v585, 0.0
  %v874 = vsel %vm648, %v586, 0.0
  %v875 = vsel %vm649, %v587, 0.0
  %v876 = vsel %vm650, %v588, 0.0
  %v877 = vsel %vm651, %v589, 0.0
  %v878 = vsel %vm652, %v590, 0.0
  %v879 = vsel %vm653, %v591, 0.0
  %v880 = vsel %vm654, %v592, 0.0
  %v881 = vsel %vm655, %v593, 0.0
  %v882 = vsel %vm656, %v594, 0.0
  %v883 = vsel %vm657, %v595, 0.0
  %v884 = vsel %vm658, %v596, 0.0
  %v885 = vsel %vm659, %v597, 0.0
  %v886 = vsel %vm660, %v598, 0.0
  %v887 = vsel %vm661, %v599, 0.0
  %v888 = vsel %vm662, %v600, 0.0
  %v889 = vsel %vm663, %v601, 0.0
  %v890 = vsel %vm664, %v602, 0.0
  %v891 = vsel %vm665, %v603, 0.0
  %v892 = vsel %vm666, %v604, 0.0
  %v893 = vsel %vm667, %v605, 0.0
  %v894 = vsel %vm668, %v606, 0.0
  %v895 = vsel %vm669, %v863, 0.0
  %v896 = vsel %vm670, %v864, 0.0
  %v897 = vld [vmem:[#allocation2 + $0x110] sm:$0xff]
  %v898 = vld [vmem:[#allocation2 + $0x118] sm:$0xff]
  %v899 = vld [vmem:[#allocation2 + $0x111] sm:$0xff]
  %v900 = vld [vmem:[#allocation2 + $0x119] sm:$0xff]
  %v901 = vsel %vm799, %v737, 0.0
  %v902 = vsel %vm800, %v738, 0.0
  %v903 = vsel %vm801, %v739, 0.0
  %v904 = vsel %vm802, %v740, 0.0
  %v905 = vsel %vm803, %v741, 0.0
  %v906 = vsel %vm804, %v742, 0.0
  %v907 = vsel %vm805, %v743, 0.0
  %v908 = vsel %vm806, %v744, 0.0
  %v909 = vsel %vm807, %v745, 0.0
  %v910 = vsel %vm808, %v746, 0.0
  %v911 = vsel %vm809, %v747, 0.0
  %v912 = vsel %vm810, %v748, 0.0
  %v913 = vsel %vm811, %v749, 0.0
  %v914 = vsel %vm812, %v750, 0.0
  %v915 = vsel %vm813, %v751, 0.0
  %v916 = vsel %vm814, %v752, 0.0
  %v917 = vsel %vm815, %v753, 0.0
  %v918 = vsel %vm816, %v754, 0.0
  %v919 = vsel %vm817, %v755, 0.0
  %v920 = vsel %vm818, %v756, 0.0
  %v921 = vsel %vm819, %v757, 0.0
  %v922 = vsel %vm820, %v758, 0.0
  %v923 = vsel %vm821, %v759, 0.0
  %v924 = vsel %vm822, %v760, 0.0
  %v925 = vsel %vm823, %v761, 0.0
  %v926 = vsel %vm824, %v762, 0.0
  %v927 = vsel %vm825, %v763, 0.0
  %v928 = vsel %vm826, %v764, 0.0
  %v929 = vsel %vm827, %v765, 0.0
  %v930 = vsel %vm828, %v766, 0.0
  %v931 = vsel %vm829, %v899, 0.0
  %v932 = vsel %vm830, %v900, 0.0
  %v933 = vld [vmem:[#allocation2 + $0x11f] sm:$0xff]
  %v934 = vld [vmem:[#allocation2 + $0x127] sm:$0xff]
  %v935 = vsel %vm639, %v579, 0.0
  %v936 = vsel %vm640, %v580, 0.0
  %v937 = vsel %vm641, %v581, 0.0
  %v938 = vsel %vm642, %v582, 0.0
  %v939 = vsel %vm643, %v583, 0.0
  %v940 = vsel %vm644, %v584, 0.0
  %v941 = vsel %vm645, %v585, 0.0
  %v942 = vsel %vm646, %v586, 0.0
  %v943 = vsel %vm647, %v587, 0.0
  %v944 = vsel %vm648, %v588, 0.0
  %v945 = vsel %vm649, %v589, 0.0
  %v946 = vsel %vm650, %v590, 0.0
  %v947 = vsel %vm651, %v591, 0.0
  %v948 = vsel %vm652, %v592, 0.0
  %v949 = vsel %vm653, %v593, 0.0
  %v950 = vsel %vm654, %v594, 0.0
  %v951 = vsel %vm655, %v595, 0.0
  %v952 = vsel %vm656, %v596, 0.0
  %v953 = vsel %vm657, %v597, 0.0
  %v954 = vsel %vm658, %v598, 0.0
  %v955 = vsel %vm659, %v599, 0.0
  %v956 = vsel %vm660, %v600, 0.0
  %v957 = vsel %vm661, %v601, 0.0
  %v958 = vsel %vm662, %v602, 0.0
  %v959 = vsel %vm663, %v603, 0.0
  %v960 = vsel %vm664, %v604, 0.0
  %v961 = vsel %vm665, %v605, 0.0
  %v962 = vsel %vm666, %v606, 0.0
  %v963 = vsel %vm667, %v863, 0.0
  %v964 = vsel %vm668, %v864, 0.0
  %v965 = vsel %vm669, %v933, 0.0
  %v966 = vsel %vm670, %v934, 0.0
  %v967 = vld [vmem:[#allocation2 + $0x120] sm:$0xff]
  %v968 = vld [vmem:[#allocation2 + $0x128] sm:$0xff]
  %v969 = vld [vmem:[#allocation2 + $0x121] sm:$0xff]
  %v970 = vld [vmem:[#allocation2 + $0x129] sm:$0xff]
  %v971 = vsel %vm799, %v739, 0.0
  %v972 = vsel %vm800, %v740, 0.0
  %v973 = vsel %vm801, %v741, 0.0
  %v974 = vsel %vm802, %v742, 0.0
  %v975 = vsel %vm803, %v743, 0.0
  %v976 = vsel %vm804, %v744, 0.0
  %v977 = vsel %vm805, %v745, 0.0
  %v978 = vsel %vm806, %v746, 0.0
  %v979 = vsel %vm807, %v747, 0.0
  %v980 = vsel %vm808, %v748, 0.0
  %v981 = vsel %vm809, %v749, 0.0
  %v982 = vsel %vm810, %v750, 0.0
  %v983 = vsel %vm811, %v751, 0.0
  %v984 = vsel %vm812, %v752, 0.0
  %v985 = vsel %vm813, %v753, 0.0
  %v986 = vsel %vm814, %v754, 0.0
  %v987 = vsel %vm815, %v755, 0.0
  %v988 = vsel %vm816, %v756, 0.0
  %v989 = vsel %vm817, %v757, 0.0
  %v990 = vsel %vm818, %v758, 0.0
  %v991 = vsel %vm819, %v759, 0.0
  %v992 = vsel %vm820, %v760, 0.0
  %v993 = vsel %vm821, %v761, 0.0
  %v994 = vsel %vm822, %v762, 0.0
  %v995 = vsel %vm823, %v763, 0.0
  %v996 = vsel %vm824, %v764, 0.0
  %v997 = vsel %vm825, %v765, 0.0
  %v998 = vsel %vm826, %v766, 0.0
  %v999 = vsel %vm827, %v899, 0.0
  %v1000 = vsel %vm828, %v900, 0.0
  %v1001 = vsel %vm829, %v969, 0.0
  %v1002 = vsel %vm830, %v970, 0.0
  %1035 = vrot.lane.b32.xlu0 %v703, 4
  %v1036 = vpop.permute.xlu0 %1035
  %1037 = vrot.lane.b32.xlu0 %v704, 4
  %v1038 = vpop.permute.xlu0 %1037
  %1039 = vrot.lane.b32.xlu0 %v705, 4
  %v1040 = vpop.permute.xlu0 %1039
  %1041 = vrot.lane.b32.xlu0 %v706, 4
  %v1042 = vpop.permute.xlu0 %1041
  %1043 = vrot.lane.b32.xlu0 %v707, 4
  %v1044 = vpop.permute.xlu0 %1043
  %1045 = vrot.lane.b32.xlu0 %v708, 4
  %v1046 = vpop.permute.xlu0 %1045
  %1047 = vrot.lane.b32.xlu0 %v709, 4
  %v1048 = vpop.permute.xlu0 %1047
  %1049 = vrot.lane.b32.xlu0 %v710, 4
  %v1050 = vpop.permute.xlu0 %1049
  %1051 = vrot.lane.b32.xlu0 %v711, 4
  %v1052 = vpop.permute.xlu0 %1051
  %1053 = vrot.lane.b32.xlu0 %v712, 4
  %v1054 = vpop.permute.xlu0 %1053
  %1055 = vrot.lane.b32.xlu0 %v713, 4
  %v1056 = vpop.permute.xlu0 %1055
  %1057 = vrot.lane.b32.xlu0 %v714, 4
  %v1058 = vpop.permute.xlu0 %1057
  %1059 = vrot.lane.b32.xlu0 %v715, 4
  %v1060 = vpop.permute.xlu0 %1059
  %1061 = vrot.lane.b32.xlu0 %v716, 4
  %v1062 = vpop.permute.xlu0 %1061
  %1063 = vrot.lane.b32.xlu0 %v717, 4
  %v1064 = vpop.permute.xlu0 %1063
  %1065 = vrot.lane.b32.xlu0 %v718, 4
  %v1066 = vpop.permute.xlu0 %1065
  %1067 = vrot.lane.b32.xlu0 %v719, 4
  %v1068 = vpop.permute.xlu0 %1067
  %1069 = vrot.lane.b32.xlu0 %v720, 4
  %v1070 = vpop.permute.xlu0 %1069
  %1071 = vrot.lane.b32.xlu0 %v721, 4
  %v1072 = vpop.permute.xlu0 %1071
  %1073 = vrot.lane.b32.xlu0 %v722, 4
  %v1074 = vpop.permute.xlu0 %1073
  %1075 = vrot.lane.b32.xlu0 %v723, 4
  %v1076 = vpop.permute.xlu0 %1075
  %1077 = vrot.lane.b32.xlu0 %v724, 4
  %v1078 = vpop.permute.xlu0 %1077
  %1079 = vrot.lane.b32.xlu0 %v725, 4
  %v1080 = vpop.permute.xlu0 %1079
  %1081 = vrot.lane.b32.xlu0 %v726, 4
  %v1082 = vpop.permute.xlu0 %1081
  %1083 = vrot.lane.b32.xlu0 %v727, 4
  %v1084 = vpop.permute.xlu0 %1083
  %1085 = vrot.lane.b32.xlu0 %v728, 4
  %v1086 = vpop.permute.xlu0 %1085
  %1087 = vrot.lane.b32.xlu0 %v729, 4
  %v1088 = vpop.permute.xlu0 %1087
  %1089 = vrot.lane.b32.xlu0 %v730, 4
  %v1090 = vpop.permute.xlu0 %1089
  %1091 = vrot.lane.b32.xlu0 %v731, 4
  %v1092 = vpop.permute.xlu0 %1091
  %1093 = vrot.lane.b32.xlu0 %v732, 4
  %v1094 = vpop.permute.xlu0 %1093
  %1095 = vrot.lane.b32.xlu0 %v733, 4
  %v1096 = vpop.permute.xlu0 %1095
  %1097 = vrot.lane.b32.xlu0 %v734, 4
  %v1098 = vpop.permute.xlu0 %1097
  %1163 = vrot.lane.b32.xlu0 %v831, 8
  %v1164 = vpop.permute.xlu0 %1163
  %1165 = vrot.lane.b32.xlu0 %v832, 8
  %v1166 = vpop.permute.xlu0 %1165
  %1167 = vrot.lane.b32.xlu0 %v833, 8
  %v1168 = vpop.permute.xlu0 %1167
  %1169 = vrot.lane.b32.xlu0 %v834, 8
  %v1170 = vpop.permute.xlu0 %1169
  %1171 = vrot.lane.b32.xlu0 %v835, 8
  %v1172 = vpop.permute.xlu0 %1171
  %1173 = vrot.lane.b32.xlu0 %v836, 8
  %v1174 = vpop.permute.xlu0 %1173
  %1175 = vrot.lane.b32.xlu0 %v837, 8
  %v1176 = vpop.permute.xlu0 %1175
  %1177 = vrot.lane.b32.xlu0 %v838, 8
  %v1178 = vpop.permute.xlu0 %1177
  %1179 = vrot.lane.b32.xlu0 %v839, 8
  %v1180 = vpop.permute.xlu0 %1179
  %1181 = vrot.lane.b32.xlu0 %v840, 8
  %v1182 = vpop.permute.xlu0 %1181
  %1183 = vrot.lane.b32.xlu0 %v841, 8
  %v1184 = vpop.permute.xlu0 %1183
  %1185 = vrot.lane.b32.xlu0 %v842, 8
  %v1186 = vpop.permute.xlu0 %1185
  %1187 = vrot.lane.b32.xlu0 %v843, 8
  %v1188 = vpop.permute.xlu0 %1187
  %1189 = vrot.lane.b32.xlu0 %v844, 8
  %v1190 = vpop.permute.xlu0 %1189
  %1191 = vrot.lane.b32.xlu0 %v845, 8
  %v1192 = vpop.permute.xlu0 %1191
  %1193 = vrot.lane.b32.xlu0 %v846, 8
  %v1194 = vpop.permute.xlu0 %1193
  %1195 = vrot.lane.b32.xlu0 %v847, 8
  %v1196 = vpop.permute.xlu0 %1195
  %1197 = vrot.lane.b32.xlu0 %v848, 8
  %v1198 = vpop.permute.xlu0 %1197
  %1199 = vrot.lane.b32.xlu0 %v849, 8
  %v1200 = vpop.permute.xlu0 %1199
  %1201 = vrot.lane.b32.xlu0 %v850, 8
  %v1202 = vpop.permute.xlu0 %1201
  %1203 = vrot.lane.b32.xlu0 %v851, 8
  %v1204 = vpop.permute.xlu0 %1203
  %1205 = vrot.lane.b32.xlu0 %v852, 8
  %v1206 = vpop.permute.xlu0 %1205
  %1207 = vrot.lane.b32.xlu0 %v853, 8
  %v1208 = vpop.permute.xlu0 %1207
  %1209 = vrot.lane.b32.xlu0 %v854, 8
  %v1210 = vpop.permute.xlu0 %1209
  %1211 = vrot.lane.b32.xlu0 %v855, 8
  %v1212 = vpop.permute.xlu0 %1211
  %1213 = vrot.lane.b32.xlu0 %v856, 8
  %v1214 = vpop.permute.xlu0 %1213
  %1215 = vrot.lane.b32.xlu0 %v857, 8
  %v1216 = vpop.permute.xlu0 %1215
  %1217 = vrot.lane.b32.xlu0 %v858, 8
  %v1218 = vpop.permute.xlu0 %1217
  %1219 = vrot.lane.b32.xlu0 %v859, 8
  %v1220 = vpop.permute.xlu0 %1219
  %1221 = vrot.lane.b32.xlu0 %v860, 8
  %v1222 = vpop.permute.xlu0 %1221
  %1223 = vrot.lane.b32.xlu0 %v861, 8
  %v1224 = vpop.permute.xlu0 %1223
  %1225 = vrot.lane.b32.xlu0 %v862, 8
  %v1226 = vpop.permute.xlu0 %1225
  %1291 = vrot.lane.b32.xlu0 %v865, 12
  %v1292 = vpop.permute.xlu0 %1291
  %1293 = vrot.lane.b32.xlu0 %v866, 12
  %v1294 = vpop.permute.xlu0 %1293
  %1295 = vrot.lane.b32.xlu0 %v867, 12
  %v1296 = vpop.permute.xlu0 %1295
  %1297 = vrot.lane.b32.xlu0 %v868, 12
  %v1298 = vpop.permute.xlu0 %1297
  %1299 = vrot.lane.b32.xlu0 %v869, 12
  %v1300 = vpop.permute.xlu0 %1299
  %1301 = vrot.lane.b32.xlu0 %v870, 12
  %v1302 = vpop.permute.xlu0 %1301
  %1303 = vrot.lane.b32.xlu0 %v871, 12
  %v1304 = vpop.permute.xlu0 %1303
  %1305 = vrot.lane.b32.xlu0 %v872, 12
  %v1306 = vpop.permute.xlu0 %1305
  %1307 = vrot.lane.b32.xlu0 %v873, 12
  %v1308 = vpop.permute.xlu0 %1307
  %1309 = vrot.lane.b32.xlu0 %v874, 12
  %v1310 = vpop.permute.xlu0 %1309
  %1311 = vrot.lane.b32.xlu0 %v875, 12
  %v1312 = vpop.permute.xlu0 %1311
  %1313 = vrot.lane.b32.xlu0 %v876, 12
  %v1314 = vpop.permute.xlu0 %1313
  %1315 = vrot.lane.b32.xlu0 %v877, 12
  %v1316 = vpop.permute.xlu0 %1315
  %1317 = vrot.lane.b32.xlu0 %v878, 12
  %v1318 = vpop.permute.xlu0 %1317
  %1319 = vrot.lane.b32.xlu0 %v879, 12
  %v1320 = vpop.permute.xlu0 %1319
  %1321 = vrot.lane.b32.xlu0 %v880, 12
  %v1322 = vpop.permute.xlu0 %1321
  %1323 = vrot.lane.b32.xlu0 %v881, 12
  %v1324 = vpop.permute.xlu0 %1323
  %1325 = vrot.lane.b32.xlu0 %v882, 12
  %v1326 = vpop.permute.xlu0 %1325
  %1327 = vrot.lane.b32.xlu0 %v883, 12
  %v1328 = vpop.permute.xlu0 %1327
  %1329 = vrot.lane.b32.xlu0 %v884, 12
  %v1330 = vpop.permute.xlu0 %1329
  %1331 = vrot.lane.b32.xlu0 %v885, 12
  %v1332 = vpop.permute.xlu0 %1331
  %1333 = vrot.lane.b32.xlu0 %v886, 12
  %v1334 = vpop.permute.xlu0 %1333
  %1335 = vrot.lane.b32.xlu0 %v887, 12
  %v1336 = vpop.permute.xlu0 %1335
  %1337 = vrot.lane.b32.xlu0 %v888, 12
  %v1338 = vpop.permute.xlu0 %1337
  %1339 = vrot.lane.b32.xlu0 %v889, 12
  %v1340 = vpop.permute.xlu0 %1339
  %1341 = vrot.lane.b32.xlu0 %v890, 12
  %v1342 = vpop.permute.xlu0 %1341
  %1343 = vrot.lane.b32.xlu0 %v891, 12
  %v1344 = vpop.permute.xlu0 %1343
  %1345 = vrot.lane.b32.xlu0 %v892, 12
  %v1346 = vpop.permute.xlu0 %1345
  %1347 = vrot.lane.b32.xlu0 %v893, 12
  %v1348 = vpop.permute.xlu0 %1347
  %1349 = vrot.lane.b32.xlu0 %v894, 12
  %v1350 = vpop.permute.xlu0 %1349
  %1351 = vrot.lane.b32.xlu0 %v895, 12
  %v1352 = vpop.permute.xlu0 %1351
  %1353 = vrot.lane.b32.xlu0 %v896, 12
  %v1354 = vpop.permute.xlu0 %1353
  %1389 = vrot.lane.b32.xlu0 %v705, 16
  %v1390 = vpop.permute.xlu0 %1389
  %1391 = vrot.lane.b32.xlu0 %v706, 16
  %v1392 = vpop.permute.xlu0 %1391
  %1393 = vrot.lane.b32.xlu0 %v707, 16
  %v1394 = vpop.permute.xlu0 %1393
  %1395 = vrot.lane.b32.xlu0 %v708, 16
  %v1396 = vpop.permute.xlu0 %1395
  %1397 = vrot.lane.b32.xlu0 %v709, 16
  %v1398 = vpop.permute.xlu0 %1397
  %1399 = vrot.lane.b32.xlu0 %v710, 16
  %v1400 = vpop.permute.xlu0 %1399
  %1401 = vrot.lane.b32.xlu0 %v711, 16
  %v1402 = vpop.permute.xlu0 %1401
  %1403 = vrot.lane.b32.xlu0 %v712, 16
  %v1404 = vpop.permute.xlu0 %1403
  %1405 = vrot.lane.b32.xlu0 %v713, 16
  %v1406 = vpop.permute.xlu0 %1405
  %1407 = vrot.lane.b32.xlu0 %v714, 16
  %v1408 = vpop.permute.xlu0 %1407
  %1409 = vrot.lane.b32.xlu0 %v715, 16
  %v1410 = vpop.permute.xlu0 %1409
  %1411 = vrot.lane.b32.xlu0 %v716, 16
  %v1412 = vpop.permute.xlu0 %1411
  %1413 = vrot.lane.b32.xlu0 %v717, 16
  %v1414 = vpop.permute.xlu0 %1413
  %1415 = vrot.lane.b32.xlu0 %v718, 16
  %v1416 = vpop.permute.xlu0 %1415
  %1417 = vrot.lane.b32.xlu0 %v719, 16
  %v1418 = vpop.permute.xlu0 %1417
  %1419 = vrot.lane.b32.xlu0 %v720, 16
  %v1420 = vpop.permute.xlu0 %1419
  %1421 = vrot.lane.b32.xlu0 %v721, 16
  %v1422 = vpop.permute.xlu0 %1421
  %1423 = vrot.lane.b32.xlu0 %v722, 16
  %v1424 = vpop.permute.xlu0 %1423
  %1425 = vrot.lane.b32.xlu0 %v723, 16
  %v1426 = vpop.permute.xlu0 %1425
  %1427 = vrot.lane.b32.xlu0 %v724, 16
  %v1428 = vpop.permute.xlu0 %1427
  %1429 = vrot.lane.b32.xlu0 %v725, 16
  %v1430 = vpop.permute.xlu0 %1429
  %1431 = vrot.lane.b32.xlu0 %v726, 16
  %v1432 = vpop.permute.xlu0 %1431
  %1433 = vrot.lane.b32.xlu0 %v727, 16
  %v1434 = vpop.permute.xlu0 %1433
  %1435 = vrot.lane.b32.xlu0 %v728, 16
  %v1436 = vpop.permute.xlu0 %1435
  %1437 = vrot.lane.b32.xlu0 %v729, 16
  %v1438 = vpop.permute.xlu0 %1437
  %1439 = vrot.lane.b32.xlu0 %v730, 16
  %v1440 = vpop.permute.xlu0 %1439
  %1441 = vrot.lane.b32.xlu0 %v731, 16
  %v1442 = vpop.permute.xlu0 %1441
  %1443 = vrot.lane.b32.xlu0 %v732, 16
  %v1444 = vpop.permute.xlu0 %1443
  %1445 = vrot.lane.b32.xlu0 %v733, 16
  %v1446 = vpop.permute.xlu0 %1445
  %1447 = vrot.lane.b32.xlu0 %v734, 16
  %v1448 = vpop.permute.xlu0 %1447
  %1449 = vrot.lane.b32.xlu0 %v897, 16
  %v1450 = vpop.permute.xlu0 %1449
  %1451 = vrot.lane.b32.xlu0 %v898, 16
  %v1452 = vpop.permute.xlu0 %1451
  %1517 = vrot.lane.b32.xlu0 %v901, 20
  %v1518 = vpop.permute.xlu0 %1517
  %1519 = vrot.lane.b32.xlu0 %v902, 20
  %v1520 = vpop.permute.xlu0 %1519
  %1521 = vrot.lane.b32.xlu0 %v903, 20
  %v1522 = vpop.permute.xlu0 %1521
  %1523 = vrot.lane.b32.xlu0 %v904, 20
  %v1524 = vpop.permute.xlu0 %1523
  %1525 = vrot.lane.b32.xlu0 %v905, 20
  %v1526 = vpop.permute.xlu0 %1525
  %1527 = vrot.lane.b32.xlu0 %v906, 20
  %v1528 = vpop.permute.xlu0 %1527
  %1529 = vrot.lane.b32.xlu0 %v907, 20
  %v1530 = vpop.permute.xlu0 %1529
  %1531 = vrot.lane.b32.xlu0 %v908, 20
  %v1532 = vpop.permute.xlu0 %1531
  %1533 = vrot.lane.b32.xlu0 %v909, 20
  %v1534 = vpop.permute.xlu0 %1533
  %1535 = vrot.lane.b32.xlu0 %v910, 20
  %v1536 = vpop.permute.xlu0 %1535
  %1537 = vrot.lane.b32.xlu0 %v911, 20
  %v1538 = vpop.permute.xlu0 %1537
  %1539 = vrot.lane.b32.xlu0 %v912, 20
  %v1540 = vpop.permute.xlu0 %1539
  %1541 = vrot.lane.b32.xlu0 %v913, 20
  %v1542 = vpop.permute.xlu0 %1541
  %1543 = vrot.lane.b32.xlu0 %v914, 20
  %v1544 = vpop.permute.xlu0 %1543
  %1545 = vrot.lane.b32.xlu0 %v915, 20
  %v1546 = vpop.permute.xlu0 %1545
  %1547 = vrot.lane.b32.xlu0 %v916, 20
  %v1548 = vpop.permute.xlu0 %1547
  %1549 = vrot.lane.b32.xlu0 %v917, 20
  %v1550 = vpop.permute.xlu0 %1549
  %1551 = vrot.lane.b32.xlu0 %v918, 20
  %v1552 = vpop.permute.xlu0 %1551
  %1553 = vrot.lane.b32.xlu0 %v919, 20
  %v1554 = vpop.permute.xlu0 %1553
  %1555 = vrot.lane.b32.xlu0 %v920, 20
  %v1556 = vpop.permute.xlu0 %1555
  %1557 = vrot.lane.b32.xlu0 %v921, 20
  %v1558 = vpop.permute.xlu0 %1557
  %1559 = vrot.lane.b32.xlu0 %v922, 20
  %v1560 = vpop.permute.xlu0 %1559
  %1561 = vrot.lane.b32.xlu0 %v923, 20
  %v1562 = vpop.permute.xlu0 %1561
  %1563 = vrot.lane.b32.xlu0 %v924, 20
  %v1564 = vpop.permute.xlu0 %1563
  %1565 = vrot.lane.b32.xlu0 %v925, 20
  %v1566 = vpop.permute.xlu0 %1565
  %1567 = vrot.lane.b32.xlu0 %v926, 20
  %v1568 = vpop.permute.xlu0 %1567
  %1569 = vrot.lane.b32.xlu0 %v927, 20
  %v1570 = vpop.permute.xlu0 %1569
  %1571 = vrot.lane.b32.xlu0 %v928, 20
  %v1572 = vpop.permute.xlu0 %1571
  %1573 = vrot.lane.b32.xlu0 %v929, 20
  %v1574 = vpop.permute.xlu0 %1573
  %1575 = vrot.lane.b32.xlu0 %v930, 20
  %v1576 = vpop.permute.xlu0 %1575
  %1577 = vrot.lane.b32.xlu0 %v931, 20
  %v1578 = vpop.permute.xlu0 %1577
  %1579 = vrot.lane.b32.xlu0 %v932, 20
  %v1580 = vpop.permute.xlu0 %1579
  %1645 = vrot.lane.b32.xlu0 %v935, 24
  %v1646 = vpop.permute.xlu0 %1645
  %1647 = vrot.lane.b32.xlu0 %v936, 24
  %v1648 = vpop.permute.xlu0 %1647
  %1649 = vrot.lane.b32.xlu0 %v937, 24
  %v1650 = vpop.permute.xlu0 %1649
  %1651 = vrot.lane.b32.xlu0 %v938, 24
  %v1652 = vpop.permute.xlu0 %1651
  %1653 = vrot.lane.b32.xlu0 %v939, 24
  %v1654 = vpop.permute.xlu0 %1653
  %1655 = vrot.lane.b32.xlu0 %v940, 24
  %v1656 = vpop.permute.xlu0 %1655
  %1657 = vrot.lane.b32.xlu0 %v941, 24
  %v1658 = vpop.permute.xlu0 %1657
  %1659 = vrot.lane.b32.xlu0 %v942, 24
  %v1660 = vpop.permute.xlu0 %1659
  %1661 = vrot.lane.b32.xlu0 %v943, 24
  %v1662 = vpop.permute.xlu0 %1661
  %1663 = vrot.lane.b32.xlu0 %v944, 24
  %v1664 = vpop.permute.xlu0 %1663
  %1665 = vrot.lane.b32.xlu0 %v945, 24
  %v1666 = vpop.permute.xlu0 %1665
  %1667 = vrot.lane.b32.xlu0 %v946, 24
  %v1668 = vpop.permute.xlu0 %1667
  %1669 = vrot.lane.b32.xlu0 %v947, 24
  %v1670 = vpop.permute.xlu0 %1669
  %1671 = vrot.lane.b32.xlu0 %v948, 24
  %v1672 = vpop.permute.xlu0 %1671
  %1673 = vrot.lane.b32.xlu0 %v949, 24
  %v1674 = vpop.permute.xlu0 %1673
  %1675 = vrot.lane.b32.xlu0 %v950, 24
  %v1676 = vpop.permute.xlu0 %1675
  %1677 = vrot.lane.b32.xlu0 %v951, 24
  %v1678 = vpop.permute.xlu0 %1677
  %1679 = vrot.lane.b32.xlu0 %v952, 24
  %v1680 = vpop.permute.xlu0 %1679
  %1681 = vrot.lane.b32.xlu0 %v953, 24
  %v1682 = vpop.permute.xlu0 %1681
  %1683 = vrot.lane.b32.xlu0 %v954, 24
  %v1684 = vpop.permute.xlu0 %1683
  %1685 = vrot.lane.b32.xlu0 %v955, 24
  %v1686 = vpop.permute.xlu0 %1685
  %1687 = vrot.lane.b32.xlu0 %v956, 24
  %v1688 = vpop.permute.xlu0 %1687
  %1689 = vrot.lane.b32.xlu0 %v957, 24
  %v1690 = vpop.permute.xlu0 %1689
  %1691 = vrot.lane.b32.xlu0 %v958, 24
  %v1692 = vpop.permute.xlu0 %1691
  %1693 = vrot.lane.b32.xlu0 %v959, 24
  %v1694 = vpop.permute.xlu0 %1693
  %1695 = vrot.lane.b32.xlu0 %v960, 24
  %v1696 = vpop.permute.xlu0 %1695
  %1697 = vrot.lane.b32.xlu0 %v961, 24
  %v1698 = vpop.permute.xlu0 %1697
  %1699 = vrot.lane.b32.xlu0 %v962, 24
  %v1700 = vpop.permute.xlu0 %1699
  %1701 = vrot.lane.b32.xlu0 %v963, 24
  %v1702 = vpop.permute.xlu0 %1701
  %1703 = vrot.lane.b32.xlu0 %v964, 24
  %v1704 = vpop.permute.xlu0 %1703
  %1705 = vrot.lane.b32.xlu0 %v965, 24
  %v1706 = vpop.permute.xlu0 %1705
  %1707 = vrot.lane.b32.xlu0 %v966, 24
  %v1708 = vpop.permute.xlu0 %1707
  %1743 = vrot.lane.b32.xlu0 %v707, 28
  %v1744 = vpop.permute.xlu0 %1743
  %1745 = vrot.lane.b32.xlu0 %v708, 28
  %v1746 = vpop.permute.xlu0 %1745
  %1747 = vrot.lane.b32.xlu0 %v709, 28
  %v1748 = vpop.permute.xlu0 %1747
  %1749 = vrot.lane.b32.xlu0 %v710, 28
  %v1750 = vpop.permute.xlu0 %1749
  %1751 = vrot.lane.b32.xlu0 %v711, 28
  %v1752 = vpop.permute.xlu0 %1751
  %1753 = vrot.lane.b32.xlu0 %v712, 28
  %v1754 = vpop.permute.xlu0 %1753
  %1755 = vrot.lane.b32.xlu0 %v713, 28
  %v1756 = vpop.permute.xlu0 %1755
  %1757 = vrot.lane.b32.xlu0 %v714, 28
  %v1758 = vpop.permute.xlu0 %1757
  %1759 = vrot.lane.b32.xlu0 %v715, 28
  %v1760 = vpop.permute.xlu0 %1759
  %1761 = vrot.lane.b32.xlu0 %v716, 28
  %v1762 = vpop.permute.xlu0 %1761
  %1763 = vrot.lane.b32.xlu0 %v717, 28
  %v1764 = vpop.permute.xlu0 %1763
  %1765 = vrot.lane.b32.xlu0 %v718, 28
  %v1766 = vpop.permute.xlu0 %1765
  %1767 = vrot.lane.b32.xlu0 %v719, 28
  %v1768 = vpop.permute.xlu0 %1767
  %1769 = vrot.lane.b32.xlu0 %v720, 28
  %v1770 = vpop.permute.xlu0 %1769
  %1771 = vrot.lane.b32.xlu0 %v721, 28
  %v1772 = vpop.permute.xlu0 %1771
  %1773 = vrot.lane.b32.xlu0 %v722, 28
  %v1774 = vpop.permute.xlu0 %1773
  %1775 = vrot.lane.b32.xlu0 %v723, 28
  %v1776 = vpop.permute.xlu0 %1775
  %1777 = vrot.lane.b32.xlu0 %v724, 28
  %v1778 = vpop.permute.xlu0 %1777
  %1779 = vrot.lane.b32.xlu0 %v725, 28
  %v1780 = vpop.permute.xlu0 %1779
  %1781 = vrot.lane.b32.xlu0 %v726, 28
  %v1782 = vpop.permute.xlu0 %1781
  %1783 = vrot.lane.b32.xlu0 %v727, 28
  %v1784 = vpop.permute.xlu0 %1783
  %1785 = vrot.lane.b32.xlu0 %v728, 28
  %v1786 = vpop.permute.xlu0 %1785
  %1787 = vrot.lane.b32.xlu0 %v729, 28
  %v1788 = vpop.permute.xlu0 %1787
  %1789 = vrot.lane.b32.xlu0 %v730, 28
  %v1790 = vpop.permute.xlu0 %1789
  %1791 = vrot.lane.b32.xlu0 %v731, 28
  %v1792 = vpop.permute.xlu0 %1791
  %1793 = vrot.lane.b32.xlu0 %v732, 28
  %v1794 = vpop.permute.xlu0 %1793
  %1795 = vrot.lane.b32.xlu0 %v733, 28
  %v1796 = vpop.permute.xlu0 %1795
  %1797 = vrot.lane.b32.xlu0 %v734, 28
  %v1798 = vpop.permute.xlu0 %1797
  %1799 = vrot.lane.b32.xlu0 %v897, 28
  %v1800 = vpop.permute.xlu0 %1799
  %1801 = vrot.lane.b32.xlu0 %v898, 28
  %v1802 = vpop.permute.xlu0 %1801
  %1803 = vrot.lane.b32.xlu0 %v967, 28
  %v1804 = vpop.permute.xlu0 %1803
  %1805 = vrot.lane.b32.xlu0 %v968, 28
  %v1806 = vpop.permute.xlu0 %1805
  %1871 = vrot.lane.b32.xlu0 %v971, 32
  %v1872 = vpop.permute.xlu0 %1871
  %1873 = vrot.lane.b32.xlu0 %v972, 32
  %v1874 = vpop.permute.xlu0 %1873
  %1875 = vrot.lane.b32.xlu0 %v973, 32
  %v1876 = vpop.permute.xlu0 %1875
  %1877 = vrot.lane.b32.xlu0 %v974, 32
  %v1878 = vpop.permute.xlu0 %1877
  %1879 = vrot.lane.b32.xlu0 %v975, 32
  %v1880 = vpop.permute.xlu0 %1879
  %1881 = vrot.lane.b32.xlu0 %v976, 32
  %v1882 = vpop.permute.xlu0 %1881
  %1883 = vrot.lane.b32.xlu0 %v977, 32
  %v1884 = vpop.permute.xlu0 %1883
  %1885 = vrot.lane.b32.xlu0 %v978, 32
  %v1886 = vpop.permute.xlu0 %1885
  %1887 = vrot.lane.b32.xlu0 %v979, 32
  %v1888 = vpop.permute.xlu0 %1887
  %1889 = vrot.lane.b32.xlu0 %v980, 32
  %v1890 = vpop.permute.xlu0 %1889
  %1891 = vrot.lane.b32.xlu0 %v981, 32
  %v1892 = vpop.permute.xlu0 %1891
  %1893 = vrot.lane.b32.xlu0 %v982, 32
  %v1894 = vpop.permute.xlu0 %1893
  %1895 = vrot.lane.b32.xlu0 %v983, 32
  %v1896 = vpop.permute.xlu0 %1895
  %1897 = vrot.lane.b32.xlu0 %v984, 32
  %v1898 = vpop.permute.xlu0 %1897
  %1899 = vrot.lane.b32.xlu0 %v985, 32
  %v1900 = vpop.permute.xlu0 %1899
  %1901 = vrot.lane.b32.xlu0 %v986, 32
  %v1902 = vpop.permute.xlu0 %1901
  %1903 = vrot.lane.b32.xlu0 %v987, 32
  %v1904 = vpop.permute.xlu0 %1903
  %1905 = vrot.lane.b32.xlu0 %v988, 32
  %v1906 = vpop.permute.xlu0 %1905
  %1907 = vrot.lane.b32.xlu0 %v989, 32
  %v1908 = vpop.permute.xlu0 %1907
  %1909 = vrot.lane.b32.xlu0 %v990, 32
  %v1910 = vpop.permute.xlu0 %1909
  %1911 = vrot.lane.b32.xlu0 %v991, 32
  %v1912 = vpop.permute.xlu0 %1911
  %1913 = vrot.lane.b32.xlu0 %v992, 32
  %v1914 = vpop.permute.xlu0 %1913
  %1915 = vrot.lane.b32.xlu0 %v993, 32
  %v1916 = vpop.permute.xlu0 %1915
  %1917 = vrot.lane.b32.xlu0 %v994, 32
  %v1918 = vpop.permute.xlu0 %1917
  %1919 = vrot.lane.b32.xlu0 %v995, 32
  %v1920 = vpop.permute.xlu0 %1919
  %1921 = vrot.lane.b32.xlu0 %v996, 32
  %v1922 = vpop.permute.xlu0 %1921
  %1923 = vrot.lane.b32.xlu0 %v997, 32
  %v1924 = vpop.permute.xlu0 %1923
  %1925 = vrot.lane.b32.xlu0 %v998, 32
  %v1926 = vpop.permute.xlu0 %1925
  %1927 = vrot.lane.b32.xlu0 %v999, 32
  %v1928 = vpop.permute.xlu0 %1927
  %1929 = vrot.lane.b32.xlu0 %v1000, 32
  %v1930 = vpop.permute.xlu0 %1929
  %1931 = vrot.lane.b32.xlu0 %v1001, 32
  %v1932 = vpop.permute.xlu0 %1931
  %1933 = vrot.lane.b32.xlu0 %v1002, 32
  %v1934 = vpop.permute.xlu0 %1933
  %v1967 = vsel %vm494, %v671, %v1036
  %v1968 = vsel %vm494, %v672, %v1038
  %v1969 = vsel %vm494, %v673, %v1040
  %v1970 = vsel %vm494, %v674, %v1042
  %v1971 = vsel %vm494, %v675, %v1044
  %v1972 = vsel %vm494, %v676, %v1046
  %v1973 = vsel %vm494, %v677, %v1048
  %v1974 = vsel %vm494, %v678, %v1050
  %v1975 = vsel %vm494, %v679, %v1052
  %v1976 = vsel %vm494, %v680, %v1054
  %v1977 = vsel %vm494, %v681, %v1056
  %v1978 = vsel %vm494, %v682, %v1058
  %v1979 = vsel %vm494, %v683, %v1060
  %v1980 = vsel %vm494, %v684, %v1062
  %v1981 = vsel %vm494, %v685, %v1064
  %v1982 = vsel %vm494, %v686, %v1066
  %v1983 = vsel %vm494, %v687, %v1068
  %v1984 = vsel %vm494, %v688, %v1070
  %v1985 = vsel %vm494, %v689, %v1072
  %v1986 = vsel %vm494, %v690, %v1074
  %v1987 = vsel %vm494, %v691, %v1076
  %v1988 = vsel %vm494, %v692, %v1078
  %v1989 = vsel %vm494, %v693, %v1080
  %v1990 = vsel %vm494, %v694, %v1082
  %v1991 = vsel %vm494, %v695, %v1084
  %v1992 = vsel %vm494, %v696, %v1086
  %v1993 = vsel %vm494, %v697, %v1088
  %v1994 = vsel %vm494, %v698, %v1090
  %v1995 = vsel %vm494, %v699, %v1092
  %v1996 = vsel %vm494, %v700, %v1094
  %v1997 = vsel %vm494, %v701, %v1096
  %v1998 = vsel %vm494, %v702, %v1098
  %vm1999 = vcmask 64512
  %v2000 = vsel %vm1999, %v1967, %v1164
  %v2001 = vsel %vm1999, %v1968, %v1166
  %v2002 = vsel %vm1999, %v1969, %v1168
  %v2003 = vsel %vm1999, %v1970, %v1170
  %v2004 = vsel %vm1999, %v1971, %v1172
  %v2005 = vsel %vm1999, %v1972, %v1174
  %v2006 = vsel %vm1999, %v1973, %v1176
  %v2007 = vsel %vm1999, %v1974, %v1178
  %v2008 = vsel %vm1999, %v1975, %v1180
  %v2009 = vsel %vm1999, %v1976, %v1182
  %v2010 = vsel %vm1999, %v1977, %v1184
  %v2011 = vsel %vm1999, %v1978, %v1186
  %v2012 = vsel %vm1999, %v1979, %v1188
  %v2013 = vsel %vm1999, %v1980, %v1190
  %v2014 = vsel %vm1999, %v1981, %v1192
  %v2015 = vsel %vm1999, %v1982, %v1194
  %v2016 = vsel %vm1999, %v1983, %v1196
  %v2017 = vsel %vm1999, %v1984, %v1198
  %v2018 = vsel %vm1999, %v1985, %v1200
  %v2019 = vsel %vm1999, %v1986, %v1202
  %v2020 = vsel %vm1999, %v1987, %v1204
  %v2021 = vsel %vm1999, %v1988, %v1206
  %v2022 = vsel %vm1999, %v1989, %v1208
  %v2023 = vsel %vm1999, %v1990, %v1210
  %v2024 = vsel %vm1999, %v1991, %v1212
  %v2025 = vsel %vm1999, %v1992, %v1214
  %v2026 = vsel %vm1999, %v1993, %v1216
  %v2027 = vsel %vm1999, %v1994, %v1218
  %v2028 = vsel %vm1999, %v1995, %v1220
  %v2029 = vsel %vm1999, %v1996, %v1222
  %v2030 = vsel %vm1999, %v1997, %v1224
  %v2031 = vsel %vm1999, %v1998, %v1226
  %vm2032 = vcmask 97280
  %v2033 = vsel %vm2032, %v2000, %v1292
  %v2034 = vsel %vm2032, %v2001, %v1294
  %v2035 = vsel %vm2032, %v2002, %v1296
  %v2036 = vsel %vm2032, %v2003, %v1298
  %v2037 = vsel %vm2032, %v2004, %v1300
  %v2038 = vsel %vm2032, %v2005, %v1302
  %v2039 = vsel %vm2032, %v2006, %v1304
  %v2040 = vsel %vm2032, %v2007, %v1306
  %v2041 = vsel %vm2032, %v2008, %v1308
  %v2042 = vsel %vm2032, %v2009, %v1310
  %v2043 = vsel %vm2032, %v2010, %v1312
  %v2044 = vsel %vm2032, %v2011, %v1314
  %v2045 = vsel %vm2032, %v2012, %v1316
  %v2046 = vsel %vm2032, %v2013, %v1318
  %v2047 = vsel %vm2032, %v2014, %v1320
  %v2048 = vsel %vm2032, %v2015, %v1322
  %v2049 = vsel %vm2032, %v2016, %v1324
  %v2050 = vsel %vm2032, %v2017, %v1326
  %v2051 = vsel %vm2032, %v2018, %v1328
  %v2052 = vsel %vm2032, %v2019, %v1330
  %v2053 = vsel %vm2032, %v2020, %v1332
  %v2054 = vsel %vm2032, %v2021, %v1334
  %v2055 = vsel %vm2032, %v2022, %v1336
  %v2056 = vsel %vm2032, %v2023, %v1338
  %v2057 = vsel %vm2032, %v2024, %v1340
  %v2058 = vsel %vm2032, %v2025, %v1342
  %v2059 = vsel %vm2032, %v2026, %v1344
  %v2060 = vsel %vm2032, %v2027, %v1346
  %v2061 = vsel %vm2032, %v2028, %v1348
  %v2062 = vsel %vm2032, %v2029, %v1350
  %v2063 = vsel %vm2032, %v2030, %v1352
  %v2064 = vsel %vm2032, %v2031, %v1354
  %vm2065 = vcmask 130048
  %v2066 = vsel %vm2065, %v2033, %v1390
  %v2067 = vsel %vm2065, %v2034, %v1392
  %v2068 = vsel %vm2065, %v2035, %v1394
  %v2069 = vsel %vm2065, %v2036, %v1396
  %v2070 = vsel %vm2065, %v2037, %v1398
  %v2071 = vsel %vm2065, %v2038, %v1400
  %v2072 = vsel %vm2065, %v2039, %v1402
  %v2073 = vsel %vm2065, %v2040, %v1404
  %v2074 = vsel %vm2065, %v2041, %v1406
  %v2075 = vsel %vm2065, %v2042, %v1408
  %v2076 = vsel %vm2065, %v2043, %v1410
  %v2077 = vsel %vm2065, %v2044, %v1412
  %v2078 = vsel %vm2065, %v2045, %v1414
  %v2079 = vsel %vm2065, %v2046, %v1416
  %v2080 = vsel %vm2065, %v2047, %v1418
  %v2081 = vsel %vm2065, %v2048, %v1420
  %v2082 = vsel %vm2065, %v2049, %v1422
  %v2083 = vsel %vm2065, %v2050, %v1424
  %v2084 = vsel %vm2065, %v2051, %v1426
  %v2085 = vsel %vm2065, %v2052, %v1428
  %v2086 = vsel %vm2065, %v2053, %v1430
  %v2087 = vsel %vm2065, %v2054, %v1432
  %v2088 = vsel %vm2065, %v2055, %v1434
  %v2089 = vsel %vm2065, %v2056, %v1436
  %v2090 = vsel %vm2065, %v2057, %v1438
  %v2091 = vsel %vm2065, %v2058, %v1440
  %v2092 = vsel %vm2065, %v2059, %v1442
  %v2093 = vsel %vm2065, %v2060, %v1444
  %v2094 = vsel %vm2065, %v2061, %v1446
  %v2095 = vsel %vm2065, %v2062, %v1448
  %v2096 = vsel %vm2065, %v2063, %v1450
  %v2097 = vsel %vm2065, %v2064, %v1452
  %vm2098 = vcmask 162816
  %v2099 = vsel %vm2098, %v2066, %v1518
  %v2100 = vsel %vm2098, %v2067, %v1520
  %v2101 = vsel %vm2098, %v2068, %v1522
  %v2102 = vsel %vm2098, %v2069, %v1524
  %v2103 = vsel %vm2098, %v2070, %v1526
  %v2104 = vsel %vm2098, %v2071, %v1528
  %v2105 = vsel %vm2098, %v2072, %v1530
  %v2106 = vsel %vm2098, %v2073, %v1532
  %v2107 = vsel %vm2098, %v2074, %v1534
  %v2108 = vsel %vm2098, %v2075, %v1536
  %v2109 = vsel %vm2098, %v2076, %v1538
  %v2110 = vsel %vm2098, %v2077, %v1540
  %v2111 = vsel %vm2098, %v2078, %v1542
  %v2112 = vsel %vm2098, %v2079, %v1544
  %v2113 = vsel %vm2098, %v2080, %v1546
  %v2114 = vsel %vm2098, %v2081, %v1548
  %v2115 = vsel %vm2098, %v2082, %v1550
  %v2116 = vsel %vm2098, %v2083, %v1552
  %v2117 = vsel %vm2098, %v2084, %v1554
  %v2118 = vsel %vm2098, %v2085, %v1556
  %v2119 = vsel %vm2098, %v2086, %v1558
  %v2120 = vsel %vm2098, %v2087, %v1560
  %v2121 = vsel %vm2098, %v2088, %v1562
  %v2122 = vsel %vm2098, %v2089, %v1564
  %v2123 = vsel %vm2098, %v2090, %v1566
  %v2124 = vsel %vm2098, %v2091, %v1568
  %v2125 = vsel %vm2098, %v2092, %v1570
  %v2126 = vsel %vm2098, %v2093, %v1572
  %v2127 = vsel %vm2098, %v2094, %v1574
  %v2128 = vsel %vm2098, %v2095, %v1576
  %v2129 = vsel %vm2098, %v2096, %v1578
  %v2130 = vsel %vm2098, %v2097, %v1580
  %vm2131 = vcmask 195584
  %v2132 = vsel %vm2131, %v2099, %v1646
  %v2133 = vsel %vm2131, %v2100, %v1648
  %v2134 = vsel %vm2131, %v2101, %v1650
  %v2135 = vsel %vm2131, %v2102, %v1652
  %v2136 = vsel %vm2131, %v2103, %v1654
  %v2137 = vsel %vm2131, %v2104, %v1656
  %v2138 = vsel %vm2131, %v2105, %v1658
  %v2139 = vsel %vm2131, %v2106, %v1660
  %v2140 = vsel %vm2131, %v2107, %v1662
  %v2141 = vsel %vm2131, %v2108, %v1664
  %v2142 = vsel %vm2131, %v2109, %v1666
  %v2143 = vsel %vm2131, %v2110, %v1668
  %v2144 = vsel %vm2131, %v2111, %v1670
  %v2145 = vsel %vm2131, %v2112, %v1672
  %v2146 = vsel %vm2131, %v2113, %v1674
  %v2147 = vsel %vm2131, %v2114, %v1676
  %v2148 = vsel %vm2131, %v2115, %v1678
  %v2149 = vsel %vm2131, %v2116, %v1680
  %v2150 = vsel %vm2131, %v2117, %v1682
  %v2151 = vsel %vm2131, %v2118, %v1684
  %v2152 = vsel %vm2131, %v2119, %v1686
  %v2153 = vsel %vm2131, %v2120, %v1688
  %v2154 = vsel %vm2131, %v2121, %v1690
  %v2155 = vsel %vm2131, %v2122, %v1692
  %v2156 = vsel %vm2131, %v2123, %v1694
  %v2157 = vsel %vm2131, %v2124, %v1696
  %v2158 = vsel %vm2131, %v2125, %v1698
  %v2159 = vsel %vm2131, %v2126, %v1700
  %v2160 = vsel %vm2131, %v2127, %v1702
  %v2161 = vsel %vm2131, %v2128, %v1704
  %v2162 = vsel %vm2131, %v2129, %v1706
  %v2163 = vsel %vm2131, %v2130, %v1708
  %vm2164 = vcmask 228352
  %v2165 = vsel %vm2164, %v2132, %v1744
  %v2166 = vsel %vm2164, %v2133, %v1746
  %v2167 = vsel %vm2164, %v2134, %v1748
  %v2168 = vsel %vm2164, %v2135, %v1750
  %v2169 = vsel %vm2164, %v2136, %v1752
  %v2170 = vsel %vm2164, %v2137, %v1754
  %v2171 = vsel %vm2164, %v2138, %v1756
  %v2172 = vsel %vm2164, %v2139, %v1758
  %v2173 = vsel %vm2164, %v2140, %v1760
  %v2174 = vsel %vm2164, %v2141, %v1762
  %v2175 = vsel %vm2164, %v2142, %v1764
  %v2176 = vsel %vm2164, %v2143, %v1766
  %v2177 = vsel %vm2164, %v2144, %v1768
  %v2178 = vsel %vm2164, %v2145, %v1770
  %v2179 = vsel %vm2164, %v2146, %v1772
  %v2180 = vsel %vm2164, %v2147, %v1774
  %v2181 = vsel %vm2164, %v2148, %v1776
  %v2182 = vsel %vm2164, %v2149, %v1778
  %v2183 = vsel %vm2164, %v2150, %v1780
  %v2184 = vsel %vm2164, %v2151, %v1782
  %v2185 = vsel %vm2164, %v2152, %v1784
  %v2186 = vsel %vm2164, %v2153, %v1786
  %v2187 = vsel %vm2164, %v2154, %v1788
  %v2188 = vsel %vm2164, %v2155, %v1790
  %v2189 = vsel %vm2164, %v2156, %v1792
  %v2190 = vsel %vm2164, %v2157, %v1794
  %v2191 = vsel %vm2164, %v2158, %v1796
  %v2192 = vsel %vm2164, %v2159, %v1798
  %v2193 = vsel %vm2164, %v2160, %v1800
  %v2194 = vsel %vm2164, %v2161, %v1802
  %v2195 = vsel %vm2164, %v2162, %v1804
  %v2196 = vsel %vm2164, %v2163, %v1806
  %vm2197 = vcmask 261120
  %v2198 = vsel %vm2197, %v2165, %v1872
  %v2199 = vsel %vm2197, %v2166, %v1874
  %v2200 = vsel %vm2197, %v2167, %v1876
  %v2201 = vsel %vm2197, %v2168, %v1878
  %v2202 = vsel %vm2197, %v2169, %v1880
  %v2203 = vsel %vm2197, %v2170, %v1882
  %v2204 = vsel %vm2197, %v2171, %v1884
  %v2205 = vsel %vm2197, %v2172, %v1886
  %v2206 = vsel %vm2197, %v2173, %v1888
  %v2207 = vsel %vm2197, %v2174, %v1890
  %v2208 = vsel %vm2197, %v2175, %v1892
  %v2209 = vsel %vm2197, %v2176, %v1894
  %v2210 = vsel %vm2197, %v2177, %v1896
  %v2211 = vsel %vm2197, %v2178, %v1898
  %v2212 = vsel %vm2197, %v2179, %v1900
  %v2213 = vsel %vm2197, %v2180, %v1902
  %v2214 = vsel %vm2197, %v2181, %v1904
  %v2215 = vsel %vm2197, %v2182, %v1906
  %v2216 = vsel %vm2197, %v2183, %v1908
  %v2217 = vsel %vm2197, %v2184, %v1910
  %v2218 = vsel %vm2197, %v2185, %v1912
  %v2219 = vsel %vm2197, %v2186, %v1914
  %v2220 = vsel %vm2197, %v2187, %v1916
  %v2221 = vsel %vm2197, %v2188, %v1918
  %v2222 = vsel %vm2197, %v2189, %v1920
  %v2223 = vsel %vm2197, %v2190, %v1922
  %v2224 = vsel %vm2197, %v2191, %v1924
  %v2225 = vsel %vm2197, %v2192, %v1926
  %v2226 = vsel %vm2197, %v2193, %v1928
  %v2227 = vsel %vm2197, %v2194, %v1930
  %v2228 = vsel %vm2197, %v2195, %v1932
  %v2229 = vsel %vm2197, %v2196, %v1934
  %v2230 = vld [vmem:[%s1] sm:$0xff]
  %v2231 = vld [vmem:[%s1 + $0x8] sm:$0xff]
  %v2232 = vld [vmem:[%s1 + $0x10] sm:$0xff]
  %v2233 = vld [vmem:[%s1 + $0x18] sm:$0xff]
  %v2234 = vld [vmem:[%s1 + $0x20] sm:$0xf]
  %vm2235 = vcmask 293888
  %v2237 = vsel %vm2235, %v2198, 0
  %v2240 = vsel %vm2235, %v2199, 0
  %v2243 = vsel %vm2235, %v2200, 0
  %v2246 = vsel %vm2235, %v2201, 0
  %v2249 = vsel %vm2235, %v2202, 0
  %v2252 = vsel %vm2235, %v2203, 0
  %v2255 = vsel %vm2235, %v2204, 0
  %v2258 = vsel %vm2235, %v2205, 0
  %v2261 = vsel %vm2235, %v2206, 0
  %v2264 = vsel %vm2235, %v2207, 0
  %v2267 = vsel %vm2235, %v2208, 0
  %v2270 = vsel %vm2235, %v2209, 0
  %v2273 = vsel %vm2235, %v2210, 0
  %v2276 = vsel %vm2235, %v2211, 0
  %v2279 = vsel %vm2235, %v2212, 0
  %v2282 = vsel %vm2235, %v2213, 0
  %v2285 = vsel %vm2235, %v2214, 0
  %v2288 = vsel %vm2235, %v2215, 0
  %v2291 = vsel %vm2235, %v2216, 0
  %v2294 = vsel %vm2235, %v2217, 0
  %v2297 = vsel %vm2235, %v2218, 0
  %v2300 = vsel %vm2235, %v2219, 0
  %v2303 = vsel %vm2235, %v2220, 0
  %v2306 = vsel %vm2235, %v2221, 0
  %v2309 = vsel %vm2235, %v2222, 0
  %v2312 = vsel %vm2235, %v2223, 0
  %v2315 = vsel %vm2235, %v2224, 0
  %v2318 = vsel %vm2235, %v2225, 0
  %v2321 = vsel %vm2235, %v2226, 0
  %v2324 = vsel %vm2235, %v2227, 0
  %v2327 = vsel %vm2235, %v2228, 0
  %v2330 = vsel %vm2235, %v2229, 0
  %vm2332 = vcmask 1043456
  %v2334 = vsel %vm2332, %v2234, 0
  %2336 = vmatpush.msra.mxu0 0.0
  %2337 = vmatpush.msra.mxu0 0.0
  %2338 = vmatpush.msra.mxu0 0.0
  %2339 = vmatpush.msra.mxu0 0.0
  %2340 = vmatpush.msra.mxu0 0.0
  %2341 = vmatpush.msra.mxu0 0.0
  %2342 = vmatpush.msra.mxu0 0.0
  %2343 = vmatpush.msra.mxu0 0.0
  %2344 = vmatpush.msra.mxu0 0.0
  %2345 = vmatpush.msra.mxu0 0.0
  %2346 = vmatpush.msra.mxu0 0.0
  %2347 = vmatpush.msra.mxu0 %v2334
  %2348 = vmatpush.msra.mxu0 %v2233
  %2349 = vmatpush.msra.mxu0 %v2232
  %2350 = vmatpush.msra.mxu0 %v2231
  %2351 = vmatpush.msra.mxu0 %v2230
  %2352 = vmatmul.f32.gmra.mxu0 %v2237
  %v2353 = vpop.f32.mrf.mxu0
  %v2354 = vadd.f32 0.0, %v2353
  %2355 = vmatmul.f32.gmra.mxu0 %v2240
  %v2356 = vpop.f32.mrf.mxu0
  %v2357 = vadd.f32 0.0, %v2356
  %2358 = vmatmul.f32.gmra.mxu0 %v2243
  %v2359 = vpop.f32.mrf.mxu0
  %v2360 = vadd.f32 0.0, %v2359
  %2361 = vmatmul.f32.gmra.mxu0 %v2246
  %v2362 = vpop.f32.mrf.mxu0
  %v2363 = vadd.f32 0.0, %v2362
  %2364 = vmatmul.f32.gmra.mxu0 %v2249
  %v2365 = vpop.f32.mrf.mxu0
  %v2366 = vadd.f32 0.0, %v2365
  %2367 = vmatmul.f32.gmra.mxu0 %v2252
  %v2368 = vpop.f32.mrf.mxu0
  %v2369 = vadd.f32 0.0, %v2368
  %2370 = vmatmul.f32.gmra.mxu0 %v2255
  %v2371 = vpop.f32.mrf.mxu0
  %v2372 = vadd.f32 0.0, %v2371
  %2373 = vmatmul.f32.gmra.mxu0 %v2258
  %v2374 = vpop.f32.mrf.mxu0
  %v2375 = vadd.f32 0.0, %v2374
  %2376 = vmatmul.f32.gmra.mxu0 %v2261
  %v2377 = vpop.f32.mrf.mxu0
  %v2378 = vadd.f32 0.0, %v2377
  %2379 = vmatmul.f32.gmra.mxu0 %v2264
  %v2380 = vpop.f32.mrf.mxu0
  %v2381 = vadd.f32 0.0, %v2380
  %2382 = vmatmul.f32.gmra.mxu0 %v2267
  %v2383 = vpop.f32.mrf.mxu0
  %v2384 = vadd.f32 0.0, %v2383
  %2385 = vmatmul.f32.gmra.mxu0 %v2270
  %v2386 = vpop.f32.mrf.mxu0
  %v2387 = vadd.f32 0.0, %v2386
  %2388 = vmatmul.f32.gmra.mxu0 %v2273
  %v2389 = vpop.f32.mrf.mxu0
  %v2390 = vadd.f32 0.0, %v2389
  %2391 = vmatmul.f32.gmra.mxu0 %v2276
  %v2392 = vpop.f32.mrf.mxu0
  %v2393 = vadd.f32 0.0, %v2392
  %2394 = vmatmul.f32.gmra.mxu0 %v2279
  %v2395 = vpop.f32.mrf.mxu0
  %v2396 = vadd.f32 0.0, %v2395
  %2397 = vmatmul.f32.gmra.mxu0 %v2282
  %v2398 = vpop.f32.mrf.mxu0
  %v2399 = vadd.f32 0.0, %v2398
  %2400 = vmatmul.f32.gmra.mxu0 %v2285
  %v2401 = vpop.f32.mrf.mxu0
  %v2402 = vadd.f32 0.0, %v2401
  %2403 = vmatmul.f32.gmra.mxu0 %v2288
  %v2404 = vpop.f32.mrf.mxu0
  %v2405 = vadd.f32 0.0, %v2404
  %2406 = vmatmul.f32.gmra.mxu0 %v2291
  %v2407 = vpop.f32.mrf.mxu0
  %v2408 = vadd.f32 0.0, %v2407
  %2409 = vmatmul.f32.gmra.mxu0 %v2294
  %v2410 = vpop.f32.mrf.mxu0
  %v2411 = vadd.f32 0.0, %v2410
  %2412 = vmatmul.f32.gmra.mxu0 %v2297
  %v2413 = vpop.f32.mrf.mxu0
  %v2414 = vadd.f32 0.0, %v2413
  %2415 = vmatmul.f32.gmra.mxu0 %v2300
  %v2416 = vpop.f32.mrf.mxu0
  %v2417 = vadd.f32 0.0, %v2416
  %2418 = vmatmul.f32.gmra.mxu0 %v2303
  %v2419 = vpop.f32.mrf.mxu0
  %v2420 = vadd.f32 0.0, %v2419
  %2421 = vmatmul.f32.gmra.mxu0 %v2306
  %v2422 = vpop.f32.mrf.mxu0
  %v2423 = vadd.f32 0.0, %v2422
  %2424 = vmatmul.f32.gmra.mxu0 %v2309
  %v2425 = vpop.f32.mrf.mxu0
  %v2426 = vadd.f32 0.0, %v2425
  %2427 = vmatmul.f32.gmra.mxu0 %v2312
  %v2428 = vpop.f32.mrf.mxu0
  %v2429 = vadd.f32 0.0, %v2428
  %2430 = vmatmul.f32.gmra.mxu0 %v2315
  %v2431 = vpop.f32.mrf.mxu0
  %v2432 = vadd.f32 0.0, %v2431
  %2433 = vmatmul.f32.gmra.mxu0 %v2318
  %v2434 = vpop.f32.mrf.mxu0
  %v2435 = vadd.f32 0.0, %v2434
  %2436 = vmatmul.f32.gmra.mxu0 %v2321
  %v2437 = vpop.f32.mrf.mxu0
  %v2438 = vadd.f32 0.0, %v2437
  %2439 = vmatmul.f32.gmra.mxu0 %v2324
  %v2440 = vpop.f32.mrf.mxu0
  %v2441 = vadd.f32 0.0, %v2440
  %2442 = vmatmul.f32.gmra.mxu0 %v2327
  %v2443 = vpop.f32.mrf.mxu0
  %v2444 = vadd.f32 0.0, %v2443
  %2445 = vmatmul.f32.gmra.mxu0 %v2330
  %v2446 = vpop.f32.mrf.mxu0
  %v2447 = vadd.f32 0.0, %v2446
  %2448 = vdwg.mxu0
  %2449 = vst.msk [vmem:[%s2] sm:$0xff] %vm494, %v2354
  %2450 = vst.msk [vmem:[%s2 + $0x8] sm:$0xff] %vm494, %v2357
  %2451 = vst.msk [vmem:[%s2 + $0x10] sm:$0xff] %vm494, %v2360
  %2452 = vst.msk [vmem:[%s2 + $0x18] sm:$0xff] %vm494, %v2363
  %2453 = vst.msk [vmem:[%s2 + $0x20] sm:$0xff] %vm494, %v2366
  %2454 = vst.msk [vmem:[%s2 + $0x28] sm:$0xff] %vm494, %v2369
  %2455 = vst.msk [vmem:[%s2 + $0x30] sm:$0xff] %vm494, %v2372
  %2456 = vst.msk [vmem:[%s2 + $0x38] sm:$0xff] %vm494, %v2375
  %2457 = vst.msk [vmem:[%s2 + $0x40] sm:$0xff] %vm494, %v2378
  %2458 = vst.msk [vmem:[%s2 + $0x48] sm:$0xff] %vm494, %v2381
  %2459 = vst.msk [vmem:[%s2 + $0x50] sm:$0xff] %vm494, %v2384
  %2460 = vst.msk [vmem:[%s2 + $0x58] sm:$0xff] %vm494, %v2387
  %2461 = vst.msk [vmem:[%s2 + $0x60] sm:$0xff] %vm494, %v2390
  %2462 = vst.msk [vmem:[%s2 + $0x68] sm:$0xff] %vm494, %v2393
  %2463 = vst.msk [vmem:[%s2 + $0x70] sm:$0xff] %vm494, %v2396
  %2464 = vst.msk [vmem:[%s2 + $0x78] sm:$0xff] %vm494, %v2399
  %2465 = vst.msk [vmem:[%s2 + $0x80] sm:$0xff] %vm494, %v2402
  %2466 = vst.msk [vmem:[%s2 + $0x88] sm:$0xff] %vm494, %v2405
  %2467 = vst.msk [vmem:[%s2 + $0x90] sm:$0xff] %vm494, %v2408
  %2468 = vst.msk [vmem:[%s2 + $0x98] sm:$0xff] %vm494, %v2411
  %2469 = vst.msk [vmem:[%s2 + $0xa0] sm:$0xff] %vm494, %v2414
  %2470 = vst.msk [vmem:[%s2 + $0xa8] sm:$0xff] %vm494, %v2417
  %2471 = vst.msk [vmem:[%s2 + $0xb0] sm:$0xff] %vm494, %v2420
  %2472 = vst.msk [vmem:[%s2 + $0xb8] sm:$0xff] %vm494, %v2423
  %2473 = vst.msk [vmem:[%s2 + $0xc0] sm:$0xff] %vm494, %v2426
  %2474 = vst.msk [vmem:[%s2 + $0xc8] sm:$0xff] %vm494, %v2429
  %2475 = vst.msk [vmem:[%s2 + $0xd0] sm:$0xff] %vm494, %v2432
  %2476 = vst.msk [vmem:[%s2 + $0xd8] sm:$0xff] %vm494, %v2435
  %2477 = vst.msk [vmem:[%s2 + $0xe0] sm:$0xff] %vm494, %v2438
  %2478 = vst.msk [vmem:[%s2 + $0xe8] sm:$0xff] %vm494, %v2441
  %2479 = vst.msk [vmem:[%s2 + $0xf0] sm:$0xff] %vm494, %v2444
  %2480 = vst.msk [vmem:[%s2 + $0xf8] sm:$0xff] %vm494, %v2447
  %v2481 = vsel %vm494, %v2354, 0.0
  %v2482 = vsel %vm494, %v2357, 0.0
  %v2483 = vadd.f32 %v2481, %v2482
  %v2484 = vsel %vm494, %v2360, 0.0
  %v2485 = vadd.f32 %v2483, %v2484
  %v2486 = vsel %vm494, %v2363, 0.0
  %v2487 = vadd.f32 %v2485, %v2486
  %v2488 = vsel %vm494, %v2366, 0.0
  %v2489 = vadd.f32 %v2487, %v2488
  %v2490 = vsel %vm494, %v2369, 0.0
  %v2491 = vadd.f32 %v2489, %v2490
  %v2492 = vsel %vm494, %v2372, 0.0
  %v2493 = vadd.f32 %v2491, %v2492
  %v2494 = vsel %vm494, %v2375, 0.0
  %v2495 = vadd.f32 %v2493, %v2494
  %v2496 = vsel %vm494, %v2378, 0.0
  %v2497 = vadd.f32 %v2495, %v2496
  %v2498 = vsel %vm494, %v2381, 0.0
  %v2499 = vadd.f32 %v2497, %v2498
  %v2500 = vsel %vm494, %v2384, 0.0
  %v2501 = vadd.f32 %v2499, %v2500
  %v2502 = vsel %vm494, %v2387, 0.0
  %v2503 = vadd.f32 %v2501, %v2502
  %v2504 = vsel %vm494, %v2390, 0.0
  %v2505 = vadd.f32 %v2503, %v2504
  %v2506 = vsel %vm494, %v2393, 0.0
  %v2507 = vadd.f32 %v2505, %v2506
  %v2508 = vsel %vm494, %v2396, 0.0
  %v2509 = vadd.f32 %v2507, %v2508
  %v2510 = vsel %vm494, %v2399, 0.0
  %v2511 = vadd.f32 %v2509, %v2510
  %v2512 = vsel %vm494, %v2402, 0.0
  %v2513 = vadd.f32 %v2511, %v2512
  %v2514 = vsel %vm494, %v2405, 0.0
  %v2515 = vadd.f32 %v2513, %v2514
  %v2516 = vsel %vm494, %v2408, 0.0
  %v2517 = vadd.f32 %v2515, %v2516
  %v2518 = vsel %vm494, %v2411, 0.0
  %v2519 = vadd.f32 %v2517, %v2518
  %v2520 = vsel %vm494, %v2414, 0.0
  %v2521 = vadd.f32 %v2519, %v2520
  %v2522 = vsel %vm494, %v2417, 0.0
  %v2523 = vadd.f32 %v2521, %v2522
  %v2524 = vsel %vm494, %v2420, 0.0
  %v2525 = vadd.f32 %v2523, %v2524
  %v2526 = vsel %vm494, %v2423, 0.0
  %v2527 = vadd.f32 %v2525, %v2526
  %v2528 = vsel %vm494, %v2426, 0.0
  %v2529 = vadd.f32 %v2527, %v2528
  %v2530 = vsel %vm494, %v2429, 0.0
  %v2531 = vadd.f32 %v2529, %v2530
  %v2532 = vsel %vm494, %v2432, 0.0
  %v2533 = vadd.f32 %v2531, %v2532
  %v2534 = vsel %vm494, %v2435, 0.0
  %v2535 = vadd.f32 %v2533, %v2534
  %v2536 = vsel %vm494, %v2438, 0.0
  %v2537 = vadd.f32 %v2535, %v2536
  %v2538 = vsel %vm494, %v2441, 0.0
  %v2539 = vadd.f32 %v2537, %v2538
  %v2540 = vsel %vm494, %v2444, 0.0
  %v2541 = vadd.f32 %v2539, %v2540
  %v2542 = vsel %vm494, %v2447, 0.0
  %v2543 = vadd.f32 %v2541, %v2542
  %v2544 = vrot.slane %v2543, 4
  %v2545 = vadd.f32 %v2543, %v2544
  %v2546 = vrot.slane %v2545, 2
  %v2547 = vadd.f32 %v2545, %v2546
  %v2548 = vrot.slane %v2547, 1
  %v2549 = vadd.f32 %v2547, %v2548
  %v2550 = vmul.f32 %v2549, 0.00390625
  %v2551 = vsub.f32 %v2354, %v2550
  %v2552 = vsub.f32 %v2357, %v2550
  %v2553 = vsub.f32 %v2360, %v2550
  %v2554 = vsub.f32 %v2363, %v2550
  %v2555 = vsub.f32 %v2366, %v2550
  %v2556 = vsub.f32 %v2369, %v2550
  %v2557 = vsub.f32 %v2372, %v2550
  %v2558 = vsub.f32 %v2375, %v2550
  %v2559 = vsub.f32 %v2378, %v2550
  %v2560 = vsub.f32 %v2381, %v2550
  %v2561 = vsub.f32 %v2384, %v2550
  %v2562 = vsub.f32 %v2387, %v2550
  %v2563 = vsub.f32 %v2390, %v2550
  %v2564 = vsub.f32 %v2393, %v2550
  %v2565 = vsub.f32 %v2396, %v2550
  %v2566 = vsub.f32 %v2399, %v2550
  %v2567 = vsub.f32 %v2402, %v2550
  %v2568 = vsub.f32 %v2405, %v2550
  %v2569 = vsub.f32 %v2408, %v2550
  %v2570 = vsub.f32 %v2411, %v2550
  %v2571 = vsub.f32 %v2414, %v2550
  %v2572 = vsub.f32 %v2417, %v2550
  %v2573 = vsub.f32 %v2420, %v2550
  %v2574 = vsub.f32 %v2423, %v2550
  %v2575 = vsub.f32 %v2426, %v2550
  %v2576 = vsub.f32 %v2429, %v2550
  %v2577 = vsub.f32 %v2432, %v2550
  %v2578 = vsub.f32 %v2435, %v2550
  %v2579 = vsub.f32 %v2438, %v2550
  %v2580 = vsub.f32 %v2441, %v2550
  %v2581 = vsub.f32 %v2444, %v2550
  %v2582 = vsub.f32 %v2447, %v2550
  %v2583 = vmul.f32 %v2551, %v2551
  %v2584 = vmul.f32 %v2552, %v2552
  %v2585 = vmul.f32 %v2553, %v2553
  %v2586 = vmul.f32 %v2554, %v2554
  %v2587 = vmul.f32 %v2555, %v2555
  %v2588 = vmul.f32 %v2556, %v2556
  %v2589 = vmul.f32 %v2557, %v2557
  %v2590 = vmul.f32 %v2558, %v2558
  %v2591 = vmul.f32 %v2559, %v2559
  %v2592 = vmul.f32 %v2560, %v2560
  %v2593 = vmul.f32 %v2561, %v2561
  %v2594 = vmul.f32 %v2562, %v2562
  %v2595 = vmul.f32 %v2563, %v2563
  %v2596 = vmul.f32 %v2564, %v2564
  %v2597 = vmul.f32 %v2565, %v2565
  %v2598 = vmul.f32 %v2566, %v2566
  %v2599 = vmul.f32 %v2567, %v2567
  %v2600 = vmul.f32 %v2568, %v2568
  %v2601 = vmul.f32 %v2569, %v2569
  %v2602 = vmul.f32 %v2570, %v2570
  %v2603 = vmul.f32 %v2571, %v2571
  %v2604 = vmul.f32 %v2572, %v2572
  %v2605 = vmul.f32 %v2573, %v2573
  %v2606 = vmul.f32 %v2574, %v2574
  %v2607 = vmul.f32 %v2575, %v2575
  %v2608 = vmul.f32 %v2576, %v2576
  %v2609 = vmul.f32 %v2577, %v2577
  %v2610 = vmul.f32 %v2578, %v2578
  %v2611 = vmul.f32 %v2579, %v2579
  %v2612 = vmul.f32 %v2580, %v2580
  %v2613 = vmul.f32 %v2581, %v2581
  %v2614 = vmul.f32 %v2582, %v2582
  %v2615 = vsel %vm494, %v2583, 0.0
  %v2616 = vsel %vm494, %v2584, 0.0
  %v2617 = vadd.f32 %v2615, %v2616
  %v2618 = vsel %vm494, %v2585, 0.0
  %v2619 = vadd.f32 %v2617, %v2618
  %v2620 = vsel %vm494, %v2586, 0.0
  %v2621 = vadd.f32 %v2619, %v2620
  %v2622 = vsel %vm494, %v2587, 0.0
  %v2623 = vadd.f32 %v2621, %v2622
  %v2624 = vsel %vm494, %v2588, 0.0
  %v2625 = vadd.f32 %v2623, %v2624
  %v2626 = vsel %vm494, %v2589, 0.0
  %v2627 = vadd.f32 %v2625, %v2626
  %v2628 = vsel %vm494, %v2590, 0.0
  %v2629 = vadd.f32 %v2627, %v2628
  %v2630 = vsel %vm494, %v2591, 0.0
  %v2631 = vadd.f32 %v2629, %v2630
  %v2632 = vsel %vm494, %v2592, 0.0
  %v2633 = vadd.f32 %v2631, %v2632
  %v2634 = vsel %vm494, %v2593, 0.0
  %v2635 = vadd.f32 %v2633, %v2634
  %v2636 = vsel %vm494, %v2594, 0.0
  %v2637 = vadd.f32 %v2635, %v2636
  %v2638 = vsel %vm494, %v2595, 0.0
  %v2639 = vadd.f32 %v2637, %v2638
  %v2640 = vsel %vm494, %v2596, 0.0
  %v2641 = vadd.f32 %v2639, %v2640
  %v2642 = vsel %vm494, %v2597, 0.0
  %v2643 = vadd.f32 %v2641, %v2642
  %v2644 = vsel %vm494, %v2598, 0.0
  %v2645 = vadd.f32 %v2643, %v2644
  %v2646 = vsel %vm494, %v2599, 0.0
  %v2647 = vadd.f32 %v2645, %v2646
  %v2648 = vsel %vm494, %v2600, 0.0
  %v2649 = vadd.f32 %v2647, %v2648
  %v2650 = vsel %vm494, %v2601, 0.0
  %v2651 = vadd.f32 %v2649, %v2650
  %v2652 = vsel %vm494, %v2602, 0.0
  %v2653 = vadd.f32 %v2651, %v2652
  %v2654 = vsel %vm494, %v2603, 0.0
  %v2655 = vadd.f32 %v2653, %v2654
  %v2656 = vsel %vm494, %v2604, 0.0
  %v2657 = vadd.f32 %v2655, %v2656
  %v2658 = vsel %vm494, %v2605, 0.0
  %v2659 = vadd.f32 %v2657, %v2658
  %v2660 = vsel %vm494, %v2606, 0.0
  %v2661 = vadd.f32 %v2659, %v2660
  %v2662 = vsel %vm494, %v2607, 0.0
  %v2663 = vadd.f32 %v2661, %v2662
  %v2664 = vsel %vm494, %v2608, 0.0
  %v2665 = vadd.f32 %v2663, %v2664
  %v2666 = vsel %vm494, %v2609, 0.0
  %v2667 = vadd.f32 %v2665, %v2666
  %v2668 = vsel %vm494, %v2610, 0.0
  %v2669 = vadd.f32 %v2667, %v2668
  %v2670 = vsel %vm494, %v2611, 0.0
  %v2671 = vadd.f32 %v2669, %v2670
  %v2672 = vsel %vm494, %v2612, 0.0
  %v2673 = vadd.f32 %v2671, %v2672
  %v2674 = vsel %vm494, %v2613, 0.0
  %v2675 = vadd.f32 %v2673, %v2674
  %v2676 = vsel %vm494, %v2614, 0.0
  %v2677 = vadd.f32 %v2675, %v2676
  %v2678 = vrot.slane %v2677, 4
  %v2679 = vadd.f32 %v2677, %v2678
  %v2680 = vrot.slane %v2679, 2
  %v2681 = vadd.f32 %v2679, %v2680
  %v2682 = vrot.slane %v2681, 1
  %v2683 = vadd.f32 %v2681, %v2682
  %vm2684 = vcmask 1040384
  %v2685 = vsel %vm2684, %v2549, %v2683
  %vm2686 = vcmask 25600
  %2687 = vst.msk [vmem:[%s3] sm:$0x3] %vm2686, %v2685
  %s2688 = scalar_lea.vmem %s0, 256
  %v2689 = vld [vmem:[%s2688] sm:$0xff]
  %v2690 = vld [vmem:[%s2688 + $0x8] sm:$0xff]
  %v2691 = vld [vmem:[%s2688 + $0x10] sm:$0xff]
  %v2692 = vld [vmem:[%s2688 + $0x18] sm:$0xff]
  %v2693 = vld [vmem:[%s2688 + $0x20] sm:$0xff]
  %v2694 = vld [vmem:[%s2688 + $0x28] sm:$0xff]
  %v2695 = vld [vmem:[%s2688 + $0x30] sm:$0xff]
  %v2696 = vld [vmem:[%s2688 + $0x38] sm:$0xff]
  %v2697 = vld [vmem:[%s2688 + $0x40] sm:$0xff]
  %v2698 = vld [vmem:[%s2688 + $0x48] sm:$0xff]
  %v2699 = vld [vmem:[%s2688 + $0x50] sm:$0xff]
  %v2700 = vld [vmem:[%s2688 + $0x58] sm:$0xff]
  %v2701 = vld [vmem:[%s2688 + $0x60] sm:$0xff]
  %v2702 = vld [vmem:[%s2688 + $0x68] sm:$0xff]
  %v2703 = vld [vmem:[%s2688 + $0x70] sm:$0xff]
  %v2704 = vld [vmem:[%s2688 + $0x78] sm:$0xff]
  %v2705 = vld [vmem:[%s2688 + $0x80] sm:$0xff]
  %v2706 = vld [vmem:[%s2688 + $0x88] sm:$0xff]
  %v2707 = vld [vmem:[%s2688 + $0x90] sm:$0xff]
  %v2708 = vld [vmem:[%s2688 + $0x98] sm:$0xff]
  %v2709 = vld [vmem:[%s2688 + $0xa0] sm:$0xff]
  %v2710 = vld [vmem:[%s2688 + $0xa8] sm:$0xff]
  %v2711 = vld [vmem:[%s2688 + $0xb0] sm:$0xff]
  %v2712 = vld [vmem:[%s2688 + $0xb8] sm:$0xff]
  %v2713 = vld [vmem:[%s2688 + $0xc0] sm:$0xff]
  %v2714 = vld [vmem:[%s2688 + $0xc8] sm:$0xff]
  %v2715 = vld [vmem:[%s2688 + $0xd0] sm:$0xff]
  %v2716 = vld [vmem:[%s2688 + $0xd8] sm:$0xff]
  %v2717 = vld [vmem:[%s2688 + $0xe0] sm:$0xff]
  %v2718 = vld [vmem:[%s2688 + $0xe8] sm:$0xff]
  %v2719 = vld [vmem:[%s2688 + $0xf0] sm:$0xff]
  %v2720 = vld [vmem:[%s2688 + $0xf8] sm:$0xff]
  %2721 = vst.msk [vmem:[#allocation2 + $0x160] sm:$0xff] %vm494, %v2689
  %2722 = vst.msk [vmem:[#allocation2 + $0x168] sm:$0xff] %vm494, %v2690
  %2723 = vst.msk [vmem:[#allocation2 + $0x170] sm:$0xff] %vm494, %v2691
  %2724 = vst.msk [vmem:[#allocation2 + $0x178] sm:$0xff] %vm494, %v2692
  %2725 = vst.msk [vmem:[#allocation2 + $0x180] sm:$0xff] %vm494, %v2693
  %2726 = vst.msk [vmem:[#allocation2 + $0x188] sm:$0xff] %vm494, %v2694
  %2727 = vst.msk [vmem:[#allocation2 + $0x190] sm:$0xff] %vm494, %v2695
  %2728 = vst.msk [vmem:[#allocation2 + $0x198] sm:$0xff] %vm494, %v2696
  %2729 = vst.msk [vmem:[#allocation2 + $0x1a0] sm:$0xff] %vm494, %v2697
  %2730 = vst.msk [vmem:[#allocation2 + $0x1a8] sm:$0xff] %vm494, %v2698
  %2731 = vst.msk [vmem:[#allocation2 + $0x1b0] sm:$0xff] %vm494, %v2699
  %2732 = vst.msk [vmem:[#allocation2 + $0x1b8] sm:$0xff] %vm494, %v2700
  %2733 = vst.msk [vmem:[#allocation2 + $0x1c0] sm:$0xff] %vm494, %v2701
  %2734 = vst.msk [vmem:[#allocation2 + $0x1c8] sm:$0xff] %vm494, %v2702
  %2735 = vst.msk [vmem:[#allocation2 + $0x1d0] sm:$0xff] %vm494, %v2703
  %2736 = vst.msk [vmem:[#allocation2 + $0x1d8] sm:$0xff] %vm494, %v2704
  %2737 = vst.msk [vmem:[#allocation2 + $0x1e0] sm:$0xff] %vm494, %v2705
  %2738 = vst.msk [vmem:[#allocation2 + $0x1e8] sm:$0xff] %vm494, %v2706
  %2739 = vst.msk [vmem:[#allocation2 + $0x1f0] sm:$0xff] %vm494, %v2707
  %2740 = vst.msk [vmem:[#allocation2 + $0x1f8] sm:$0xff] %vm494, %v2708
  %2741 = vst.msk [vmem:[#allocation2 + $0x200] sm:$0xff] %vm494, %v2709
  %2742 = vst.msk [vmem:[#allocation2 + $0x208] sm:$0xff] %vm494, %v2710
  %2743 = vst.msk [vmem:[#allocation2 + $0x210] sm:$0xff] %vm494, %v2711
  %2744 = vst.msk [vmem:[#allocation2 + $0x218] sm:$0xff] %vm494, %v2712
  %2745 = vst.msk [vmem:[#allocation2 + $0x220] sm:$0xff] %vm494, %v2713
  %2746 = vst.msk [vmem:[#allocation2 + $0x228] sm:$0xff] %vm494, %v2714
  %2747 = vst.msk [vmem:[#allocation2 + $0x230] sm:$0xff] %vm494, %v2715
  %2748 = vst.msk [vmem:[#allocation2 + $0x238] sm:$0xff] %vm494, %v2716
  %2749 = vst.msk [vmem:[#allocation2 + $0x240] sm:$0xff] %vm494, %v2717
  %2750 = vst.msk [vmem:[#allocation2 + $0x248] sm:$0xff] %vm494, %v2718
  %2751 = vst.msk [vmem:[#allocation2 + $0x250] sm:$0xff] %vm494, %v2719
  %2752 = vst.msk [vmem:[#allocation2 + $0x258] sm:$0xff] %vm494, %v2720
  %v2753 = vld [vmem:[#allocation2 + $0x14f] sm:$0xff]
  %v2754 = vld [vmem:[#allocation2 + $0x157] sm:$0xff]
  %v2755 = vld [vmem:[#allocation2 + $0x15f] sm:$0xff]
  %v2756 = vld [vmem:[#allocation2 + $0x167] sm:$0xff]
  %v2757 = vld [vmem:[#allocation2 + $0x16f] sm:$0xff]
  %v2758 = vld [vmem:[#allocation2 + $0x177] sm:$0xff]
  %v2759 = vld [vmem:[#allocation2 + $0x17f] sm:$0xff]
  %v2760 = vld [vmem:[#allocation2 + $0x187] sm:$0xff]
  %v2761 = vld [vmem:[#allocation2 + $0x18f] sm:$0xff]
  %v2762 = vld [vmem:[#allocation2 + $0x197] sm:$0xff]
  %v2763 = vld [vmem:[#allocation2 + $0x19f] sm:$0xff]
  %v2764 = vld [vmem:[#allocation2 + $0x1a7] sm:$0xff]
  %v2765 = vld [vmem:[#allocation2 + $0x1af] sm:$0xff]
  %v2766 = vld [vmem:[#allocation2 + $0x1b7] sm:$0xff]
  %v2767 = vld [vmem:[#allocation2 + $0x1bf] sm:$0xff]
  %v2768 = vld [vmem:[#allocation2 + $0x1c7] sm:$0xff]
  %v2769 = vld [vmem:[#allocation2 + $0x1cf] sm:$0xff]
  %v2770 = vld [vmem:[#allocation2 + $0x1d7] sm:$0xff]
  %v2771 = vld [vmem:[#allocation2 + $0x1df] sm:$0xff]
  %v2772 = vld [vmem:[#allocation2 + $0x1e7] sm:$0xff]
  %v2773 = vld [vmem:[#allocation2 + $0x1ef] sm:$0xff]
  %v2774 = vld [vmem:[#allocation2 + $0x1f7] sm:$0xff]
  %v2775 = vld [vmem:[#allocation2 + $0x1ff] sm:$0xff]
  %v2776 = vld [vmem:[#allocation2 + $0x207] sm:$0xff]
  %v2777 = vld [vmem:[#allocation2 + $0x20f] sm:$0xff]
  %v2778 = vld [vmem:[#allocation2 + $0x217] sm:$0xff]
  %v2779 = vld [vmem:[#allocation2 + $0x21f] sm:$0xff]
  %v2780 = vld [vmem:[#allocation2 + $0x227] sm:$0xff]
  %v2781 = vld [vmem:[#allocation2 + $0x22f] sm:$0xff]
  %v2782 = vld [vmem:[#allocation2 + $0x237] sm:$0xff]
  %v2783 = vld [vmem:[#allocation2 + $0x23f] sm:$0xff]
  %v2784 = vld [vmem:[#allocation2 + $0x247] sm:$0xff]
  %v2785 = vsel %vm639, %v2753, 0.0
  %v2786 = vsel %vm640, %v2754, 0.0
  %v2787 = vsel %vm641, %v2755, 0.0
  %v2788 = vsel %vm642, %v2756, 0.0
  %v2789 = vsel %vm643, %v2757, 0.0
  %v2790 = vsel %vm644, %v2758, 0.0
  %v2791 = vsel %vm645, %v2759, 0.0
  %v2792 = vsel %vm646, %v2760, 0.0
  %v2793 = vsel %vm647, %v2761, 0.0
  %v2794 = vsel %vm648, %v2762, 0.0
  %v2795 = vsel %vm649, %v2763, 0.0
  %v2796 = vsel %vm650, %v2764, 0.0
  %v2797 = vsel %vm651, %v2765, 0.0
  %v2798 = vsel %vm652, %v2766, 0.0
  %v2799 = vsel %vm653, %v2767, 0.0
  %v2800 = vsel %vm654, %v2768, 0.0
  %v2801 = vsel %vm655, %v2769, 0.0
  %v2802 = vsel %vm656, %v2770, 0.0
  %v2803 = vsel %vm657, %v2771, 0.0
  %v2804 = vsel %vm658, %v2772, 0.0
  %v2805 = vsel %vm659, %v2773, 0.0
  %v2806 = vsel %vm660, %v2774, 0.0
  %v2807 = vsel %vm661, %v2775, 0.0
  %v2808 = vsel %vm662, %v2776, 0.0
  %v2809 = vsel %vm663, %v2777, 0.0
  %v2810 = vsel %vm664, %v2778, 0.0
  %v2811 = vsel %vm665, %v2779, 0.0
  %v2812 = vsel %vm666, %v2780, 0.0
  %v2813 = vsel %vm667, %v2781, 0.0
  %v2814 = vsel %vm668, %v2782, 0.0
  %v2815 = vsel %vm669, %v2783, 0.0
  %v2816 = vsel %vm670, %v2784, 0.0
  %v2817 = vld [vmem:[#allocation2 + $0x150] sm:$0xff]
  %v2818 = vld [vmem:[#allocation2 + $0x158] sm:$0xff]
  %v2819 = vld [vmem:[#allocation2 + $0x160] sm:$0xff]
  %v2820 = vld [vmem:[#allocation2 + $0x168] sm:$0xff]
  %v2821 = vld [vmem:[#allocation2 + $0x170] sm:$0xff]
  %v2822 = vld [vmem:[#allocation2 + $0x178] sm:$0xff]
  %v2823 = vld [vmem:[#allocation2 + $0x180] sm:$0xff]
  %v2824 = vld [vmem:[#allocation2 + $0x188] sm:$0xff]
  %v2825 = vld [vmem:[#allocation2 + $0x190] sm:$0xff]
  %v2826 = vld [vmem:[#allocation2 + $0x198] sm:$0xff]
  %v2827 = vld [vmem:[#allocation2 + $0x1a0] sm:$0xff]
  %v2828 = vld [vmem:[#allocation2 + $0x1a8] sm:$0xff]
  %v2829 = vld [vmem:[#allocation2 + $0x1b0] sm:$0xff]
  %v2830 = vld [vmem:[#allocation2 + $0x1b8] sm:$0xff]
  %v2831 = vld [vmem:[#allocation2 + $0x1c0] sm:$0xff]
  %v2832 = vld [vmem:[#allocation2 + $0x1c8] sm:$0xff]
  %v2833 = vld [vmem:[#allocation2 + $0x1d0] sm:$0xff]
  %v2834 = vld [vmem:[#allocation2 + $0x1d8] sm:$0xff]
  %v2835 = vld [vmem:[#allocation2 + $0x1e0] sm:$0xff]
  %v2836 = vld [vmem:[#allocation2 + $0x1e8] sm:$0xff]
  %v2837 = vld [vmem:[#allocation2 + $0x1f0] sm:$0xff]
  %v2838 = vld [vmem:[#allocation2 + $0x1f8] sm:$0xff]
  %v2839 = vld [vmem:[#allocation2 + $0x200] sm:$0xff]
  %v2840 = vld [vmem:[#allocation2 + $0x208] sm:$0xff]
  %v2841 = vld [vmem:[#allocation2 + $0x210] sm:$0xff]
  %v2842 = vld [vmem:[#allocation2 + $0x218] sm:$0xff]
  %v2843 = vld [vmem:[#allocation2 + $0x220] sm:$0xff]
  %v2844 = vld [vmem:[#allocation2 + $0x228] sm:$0xff]
  %v2845 = vld [vmem:[#allocation2 + $0x230] sm:$0xff]
  %v2846 = vld [vmem:[#allocation2 + $0x238] sm:$0xff]
  %v2847 = vld [vmem:[#allocation2 + $0x240] sm:$0xff]
  %v2848 = vld [vmem:[#allocation2 + $0x248] sm:$0xff]
  %v2849 = vld [vmem:[#allocation2 + $0x151] sm:$0xff]
  %v2850 = vld [vmem:[#allocation2 + $0x159] sm:$0xff]
  %v2851 = vld [vmem:[#allocation2 + $0x161] sm:$0xff]
  %v2852 = vld [vmem:[#allocation2 + $0x169] sm:$0xff]
  %v2853 = vld [vmem:[#allocation2 + $0x171] sm:$0xff]
  %v2854 = vld [vmem:[#allocation2 + $0x179] sm:$0xff]
  %v2855 = vld [vmem:[#allocation2 + $0x181] sm:$0xff]
  %v2856 = vld [vmem:[#allocation2 + $0x189] sm:$0xff]
  %v2857 = vld [vmem:[#allocation2 + $0x191] sm:$0xff]
  %v2858 = vld [vmem:[#allocation2 + $0x199] sm:$0xff]
  %v2859 = vld [vmem:[#allocation2 + $0x1a1] sm:$0xff]
  %v2860 = vld [vmem:[#allocation2 + $0x1a9] sm:$0xff]
  %v2861 = vld [vmem:[#allocation2 + $0x1b1] sm:$0xff]
  %v2862 = vld [vmem:[#allocation2 + $0x1b9] sm:$0xff]
  %v2863 = vld [vmem:[#allocation2 + $0x1c1] sm:$0xff]
  %v2864 = vld [vmem:[#allocation2 + $0x1c9] sm:$0xff]
  %v2865 = vld [vmem:[#allocation2 + $0x1d1] sm:$0xff]
  %v2866 = vld [vmem:[#allocation2 + $0x1d9] sm:$0xff]
  %v2867 = vld [vmem:[#allocation2 + $0x1e1] sm:$0xff]
  %v2868 = vld [vmem:[#allocation2 + $0x1e9] sm:$0xff]
  %v2869 = vld [vmem:[#allocation2 + $0x1f1] sm:$0xff]
  %v2870 = vld [vmem:[#allocation2 + $0x1f9] sm:$0xff]
  %v2871 = vld [vmem:[#allocation2 + $0x201] sm:$0xff]
  %v2872 = vld [vmem:[#allocation2 + $0x209] sm:$0xff]
  %v2873 = vld [vmem:[#allocation2 + $0x211] sm:$0xff]
  %v2874 = vld [vmem:[#allocation2 + $0x219] sm:$0xff]
  %v2875 = vld [vmem:[#allocation2 + $0x221] sm:$0xff]
  %v2876 = vld [vmem:[#allocation2 + $0x229] sm:$0xff]
  %v2877 = vld [vmem:[#allocation2 + $0x231] sm:$0xff]
  %v2878 = vld [vmem:[#allocation2 + $0x239] sm:$0xff]
  %v2879 = vld [vmem:[#allocation2 + $0x241] sm:$0xff]
  %v2880 = vld [vmem:[#allocation2 + $0x249] sm:$0xff]
  %v2881 = vsel %vm799, %v2849, 0.0
  %v2882 = vsel %vm800, %v2850, 0.0
  %v2883 = vsel %vm801, %v2851, 0.0
  %v2884 = vsel %vm802, %v2852, 0.0
  %v2885 = vsel %vm803, %v2853, 0.0
  %v2886 = vsel %vm804, %v2854, 0.0
  %v2887 = vsel %vm805, %v2855, 0.0
  %v2888 = vsel %vm806, %v2856, 0.0
  %v2889 = vsel %vm807, %v2857, 0.0
  %v2890 = vsel %vm808, %v2858, 0.0
  %v2891 = vsel %vm809, %v2859, 0.0
  %v2892 = vsel %vm810, %v2860, 0.0
  %v2893 = vsel %vm811, %v2861, 0.0
  %v2894 = vsel %vm812, %v2862, 0.0
  %v2895 = vsel %vm813, %v2863, 0.0
  %v2896 = vsel %vm814, %v2864, 0.0
  %v2897 = vsel %vm815, %v2865, 0.0
  %v2898 = vsel %vm816, %v2866, 0.0
  %v2899 = vsel %vm817, %v2867, 0.0
  %v2900 = vsel %vm818, %v2868, 0.0
  %v2901 = vsel %vm819, %v2869, 0.0
  %v2902 = vsel %vm820, %v2870, 0.0
  %v2903 = vsel %vm821, %v2871, 0.0
  %v2904 = vsel %vm822, %v2872, 0.0
  %v2905 = vsel %vm823, %v2873, 0.0
  %v2906 = vsel %vm824, %v2874, 0.0
  %v2907 = vsel %vm825, %v2875, 0.0
  %v2908 = vsel %vm826, %v2876, 0.0
  %v2909 = vsel %vm827, %v2877, 0.0
  %v2910 = vsel %vm828, %v2878, 0.0
  %v2911 = vsel %vm829, %v2879, 0.0
  %v2912 = vsel %vm830, %v2880, 0.0
  %v2913 = vld [vmem:[#allocation2 + $0x24f] sm:$0xff]
  %v2914 = vld [vmem:[#allocation2 + $0x257] sm:$0xff]
  %v2915 = vsel %vm639, %v2755, 0.0
  %v2916 = vsel %vm640, %v2756, 0.0
  %v2917 = vsel %vm641, %v2757, 0.0
  %v2918 = vsel %vm642, %v2758, 0.0
  %v2919 = vsel %vm643, %v2759, 0.0
  %v2920 = vsel %vm644, %v2760, 0.0
  %v2921 = vsel %vm645, %v2761, 0.0
  %v2922 = vsel %vm646, %v2762, 0.0
  %v2923 = vsel %vm647, %v2763, 0.0
  %v2924 = vsel %vm648, %v2764, 0.0
  %v2925 = vsel %vm649, %v2765, 0.0
  %v2926 = vsel %vm650, %v2766, 0.0
  %v2927 = vsel %vm651, %v2767, 0.0
  %v2928 = vsel %vm652, %v2768, 0.0
  %v2929 = vsel %vm653, %v2769, 0.0
  %v2930 = vsel %vm654, %v2770, 0.0
  %v2931 = vsel %vm655, %v2771, 0.0
  %v2932 = vsel %vm656, %v2772, 0.0
  %v2933 = vsel %vm657, %v2773, 0.0
  %v2934 = vsel %vm658, %v2774, 0.0
  %v2935 = vsel %vm659, %v2775, 0.0
  %v2936 = vsel %vm660, %v2776, 0.0
  %v2937 = vsel %vm661, %v2777, 0.0
  %v2938 = vsel %vm662, %v2778, 0.0
  %v2939 = vsel %vm663, %v2779, 0.0
  %v2940 = vsel %vm664, %v2780, 0.0
  %v2941 = vsel %vm665, %v2781, 0.0
  %v2942 = vsel %vm666, %v2782, 0.0
  %v2943 = vsel %vm667, %v2783, 0.0
  %v2944 = vsel %vm668, %v2784, 0.0
  %v2945 = vsel %vm669, %v2913, 0.0
  %v2946 = vsel %vm670, %v2914, 0.0
  %v2947 = vld [vmem:[#allocation2 + $0x250] sm:$0xff]
  %v2948 = vld [vmem:[#allocation2 + $0x258] sm:$0xff]
  %v2949 = vld [vmem:[#allocation2 + $0x251] sm:$0xff]
  %v2950 = vld [vmem:[#allocation2 + $0x259] sm:$0xff]
  %v2951 = vsel %vm799, %v2851, 0.0
  %v2952 = vsel %vm800, %v2852, 0.0
  %v2953 = vsel %vm801, %v2853, 0.0
  %v2954 = vsel %vm802, %v2854, 0.0
  %v2955 = vsel %vm803, %v2855, 0.0
  %v2956 = vsel %vm804, %v2856, 0.0
  %v2957 = vsel %vm805, %v2857, 0.0
  %v2958 = vsel %vm806, %v2858, 0.0
  %v2959 = vsel %vm807, %v2859, 0.0
  %v2960 = vsel %vm808, %v2860, 0.0
  %v2961 = vsel %vm809, %v2861, 0.0
  %v2962 = vsel %vm810, %v2862, 0.0
  %v2963 = vsel %vm811, %v2863, 0.0
  %v2964 = vsel %vm812, %v2864, 0.0
  %v2965 = vsel %vm813, %v2865, 0.0
  %v2966 = vsel %vm814, %v2866, 0.0
  %v2967 = vsel %vm815, %v2867, 0.0
  %v2968 = vsel %vm816, %v2868, 0.0
  %v2969 = vsel %vm817, %v2869, 0.0
  %v2970 = vsel %vm818, %v2870, 0.0
  %v2971 = vsel %vm819, %v2871, 0.0
  %v2972 = vsel %vm820, %v2872, 0.0
  %v2973 = vsel %vm821, %v2873, 0.0
  %v2974 = vsel %vm822, %v2874, 0.0
  %v2975 = vsel %vm823, %v2875, 0.0
  %v2976 = vsel %vm824, %v2876, 0.0
  %v2977 = vsel %vm825, %v2877, 0.0
  %v2978 = vsel %vm826, %v2878, 0.0
  %v2979 = vsel %vm827, %v2879, 0.0
  %v2980 = vsel %vm828, %v2880, 0.0
  %v2981 = vsel %vm829, %v2949, 0.0
  %v2982 = vsel %vm830, %v2950, 0.0
  %v2983 = vld [vmem:[#allocation2 + $0x25f] sm:$0xff]
  %v2984 = vld [vmem:[#allocation2 + $0x267] sm:$0xff]
  %v2985 = vsel %vm639, %v2757, 0.0
  %v2986 = vsel %vm640, %v2758, 0.0
  %v2987 = vsel %vm641, %v2759, 0.0
  %v2988 = vsel %vm642, %v2760, 0.0
  %v2989 = vsel %vm643, %v2761, 0.0
  %v2990 = vsel %vm644, %v2762, 0.0
  %v2991 = vsel %vm645, %v2763, 0.0
  %v2992 = vsel %vm646, %v2764, 0.0
  %v2993 = vsel %vm647, %v2765, 0.0
  %v2994 = vsel %vm648, %v2766, 0.0
  %v2995 = vsel %vm649, %v2767, 0.0
  %v2996 = vsel %vm650, %v2768, 0.0
  %v2997 = vsel %vm651, %v2769, 0.0
  %v2998 = vsel %vm652, %v2770, 0.0
  %v2999 = vsel %vm653, %v2771, 0.0
  %v3000 = vsel %vm654, %v2772, 0.0
  %v3001 = vsel %vm655, %v2773, 0.0
  %v3002 = vsel %vm656, %v2774, 0.0
  %v3003 = vsel %vm657, %v2775, 0.0
  %v3004 = vsel %vm658, %v2776, 0.0
  %v3005 = vsel %vm659, %v2777, 0.0
  %v3006 = vsel %vm660, %v2778, 0.0
  %v3007 = vsel %vm661, %v2779, 0.0
  %v3008 = vsel %vm662, %v2780, 0.0
  %v3009 = vsel %vm663, %v2781, 0.0
  %v3010 = vsel %vm664, %v2782, 0.0
  %v3011 = vsel %vm665, %v2783, 0.0
  %v3012 = vsel %vm666, %v2784, 0.0
  %v3013 = vsel %vm667, %v2913, 0.0
  %v3014 = vsel %vm668, %v2914, 0.0
  %v3015 = vsel %vm669, %v2983, 0.0
  %v3016 = vsel %vm670, %v2984, 0.0
  %v3017 = vld [vmem:[#allocation2 + $0x260] sm:$0xff]
  %v3018 = vld [vmem:[#allocation2 + $0x268] sm:$0xff]
  %v3019 = vld [vmem:[#allocation2 + $0x261] sm:$0xff]
  %v3020 = vld [vmem:[#allocation2 + $0x269] sm:$0xff]
  %v3021 = vsel %vm799, %v2853, 0.0
  %v3022 = vsel %vm800, %v2854, 0.0
  %v3023 = vsel %vm801, %v2855, 0.0
  %v3024 = vsel %vm802, %v2856, 0.0
  %v3025 = vsel %vm803, %v2857, 0.0
  %v3026 = vsel %vm804, %v2858, 0.0
  %v3027 = vsel %vm805, %v2859, 0.0
  %v3028 = vsel %vm806, %v2860, 0.0
  %v3029 = vsel %vm807, %v2861, 0.0
  %v3030 = vsel %vm808, %v2862, 0.0
  %v3031 = vsel %vm809, %v2863, 0.0
  %v3032 = vsel %vm810, %v2864, 0.0
  %v3033 = vsel %vm811, %v2865, 0.0
  %v3034 = vsel %vm812, %v2866, 0.0
  %v3035 = vsel %vm813, %v2867, 0.0
  %v3036 = vsel %vm814, %v2868, 0.0
  %v3037 = vsel %vm815, %v2869, 0.0
  %v3038 = vsel %vm816, %v2870, 0.0
  %v3039 = vsel %vm817, %v2871, 0.0
  %v3040 = vsel %vm818, %v2872, 0.0
  %v3041 = vsel %vm819, %v2873, 0.0
  %v3042 = vsel %vm820, %v2874, 0.0
  %v3043 = vsel %vm821, %v2875, 0.0
  %v3044 = vsel %vm822, %v2876, 0.0
  %v3045 = vsel %vm823, %v2877, 0.0
  %v3046 = vsel %vm824, %v2878, 0.0
  %v3047 = vsel %vm825, %v2879, 0.0
  %v3048 = vsel %vm826, %v2880, 0.0
  %v3049 = vsel %vm827, %v2949, 0.0
  %v3050 = vsel %vm828, %v2950, 0.0
  %v3051 = vsel %vm829, %v3019, 0.0
  %v3052 = vsel %vm830, %v3020, 0.0
  %3085 = vrot.lane.b32.xlu0 %v2817, 4
  %v3086 = vpop.permute.xlu0 %3085
  %3087 = vrot.lane.b32.xlu0 %v2818, 4
  %v3088 = vpop.permute.xlu0 %3087
  %3089 = vrot.lane.b32.xlu0 %v2819, 4
  %v3090 = vpop.permute.xlu0 %3089
  %3091 = vrot.lane.b32.xlu0 %v2820, 4
  %v3092 = vpop.permute.xlu0 %3091
  %3093 = vrot.lane.b32.xlu0 %v2821, 4
  %v3094 = vpop.permute.xlu0 %3093
  %3095 = vrot.lane.b32.xlu0 %v2822, 4
  %v3096 = vpop.permute.xlu0 %3095
  %3097 = vrot.lane.b32.xlu0 %v2823, 4
  %v3098 = vpop.permute.xlu0 %3097
  %3099 = vrot.lane.b32.xlu0 %v2824, 4
  %v3100 = vpop.permute.xlu0 %3099
  %3101 = vrot.lane.b32.xlu0 %v2825, 4
  %v3102 = vpop.permute.xlu0 %3101
  %3103 = vrot.lane.b32.xlu0 %v2826, 4
  %v3104 = vpop.permute.xlu0 %3103
  %3105 = vrot.lane.b32.xlu0 %v2827, 4
  %v3106 = vpop.permute.xlu0 %3105
  %3107 = vrot.lane.b32.xlu0 %v2828, 4
  %v3108 = vpop.permute.xlu0 %3107
  %3109 = vrot.lane.b32.xlu0 %v2829, 4
  %v3110 = vpop.permute.xlu0 %3109
  %3111 = vrot.lane.b32.xlu0 %v2830, 4
  %v3112 = vpop.permute.xlu0 %3111
  %3113 = vrot.lane.b32.xlu0 %v2831, 4
  %v3114 = vpop.permute.xlu0 %3113
  %3115 = vrot.lane.b32.xlu0 %v2832, 4
  %v3116 = vpop.permute.xlu0 %3115
  %3117 = vrot.lane.b32.xlu0 %v2833, 4
  %v3118 = vpop.permute.xlu0 %3117
  %3119 = vrot.lane.b32.xlu0 %v2834, 4
  %v3120 = vpop.permute.xlu0 %3119
  %3121 = vrot.lane.b32.xlu0 %v2835, 4
  %v3122 = vpop.permute.xlu0 %3121
  %3123 = vrot.lane.b32.xlu0 %v2836, 4
  %v3124 = vpop.permute.xlu0 %3123
  %3125 = vrot.lane.b32.xlu0 %v2837, 4
  %v3126 = vpop.permute.xlu0 %3125
  %3127 = vrot.lane.b32.xlu0 %v2838, 4
  %v3128 = vpop.permute.xlu0 %3127
  %3129 = vrot.lane.b32.xlu0 %v2839, 4
  %v3130 = vpop.permute.xlu0 %3129
  %3131 = vrot.lane.b32.xlu0 %v2840, 4
  %v3132 = vpop.permute.xlu0 %3131
  %3133 = vrot.lane.b32.xlu0 %v2841, 4
  %v3134 = vpop.permute.xlu0 %3133
  %3135 = vrot.lane.b32.xlu0 %v2842, 4
  %v3136 = vpop.permute.xlu0 %3135
  %3137 = vrot.lane.b32.xlu0 %v2843, 4
  %v3138 = vpop.permute.xlu0 %3137
  %3139 = vrot.lane.b32.xlu0 %v2844, 4
  %v3140 = vpop.permute.xlu0 %3139
  %3141 = vrot.lane.b32.xlu0 %v2845, 4
  %v3142 = vpop.permute.xlu0 %3141
  %3143 = vrot.lane.b32.xlu0 %v2846, 4
  %v3144 = vpop.permute.xlu0 %3143
  %3145 = vrot.lane.b32.xlu0 %v2847, 4
  %v3146 = vpop.permute.xlu0 %3145
  %3147 = vrot.lane.b32.xlu0 %v2848, 4
  %v3148 = vpop.permute.xlu0 %3147
  %3213 = vrot.lane.b32.xlu0 %v2881, 8
  %v3214 = vpop.permute.xlu0 %3213
  %3215 = vrot.lane.b32.xlu0 %v2882, 8
  %v3216 = vpop.permute.xlu0 %3215
  %3217 = vrot.lane.b32.xlu0 %v2883, 8
  %v3218 = vpop.permute.xlu0 %3217
  %3219 = vrot.lane.b32.xlu0 %v2884, 8
  %v3220 = vpop.permute.xlu0 %3219
  %3221 = vrot.lane.b32.xlu0 %v2885, 8
  %v3222 = vpop.permute.xlu0 %3221
  %3223 = vrot.lane.b32.xlu0 %v2886, 8
  %v3224 = vpop.permute.xlu0 %3223
  %3225 = vrot.lane.b32.xlu0 %v2887, 8
  %v3226 = vpop.permute.xlu0 %3225
  %3227 = vrot.lane.b32.xlu0 %v2888, 8
  %v3228 = vpop.permute.xlu0 %3227
  %3229 = vrot.lane.b32.xlu0 %v2889, 8
  %v3230 = vpop.permute.xlu0 %3229
  %3231 = vrot.lane.b32.xlu0 %v2890, 8
  %v3232 = vpop.permute.xlu0 %3231
  %3233 = vrot.lane.b32.xlu0 %v2891, 8
  %v3234 = vpop.permute.xlu0 %3233
  %3235 = vrot.lane.b32.xlu0 %v2892, 8
  %v3236 = vpop.permute.xlu0 %3235
  %3237 = vrot.lane.b32.xlu0 %v2893, 8
  %v3238 = vpop.permute.xlu0 %3237
  %3239 = vrot.lane.b32.xlu0 %v2894, 8
  %v3240 = vpop.permute.xlu0 %3239
  %3241 = vrot.lane.b32.xlu0 %v2895, 8
  %v3242 = vpop.permute.xlu0 %3241
  %3243 = vrot.lane.b32.xlu0 %v2896, 8
  %v3244 = vpop.permute.xlu0 %3243
  %3245 = vrot.lane.b32.xlu0 %v2897, 8
  %v3246 = vpop.permute.xlu0 %3245
  %3247 = vrot.lane.b32.xlu0 %v2898, 8
  %v3248 = vpop.permute.xlu0 %3247
  %3249 = vrot.lane.b32.xlu0 %v2899, 8
  %v3250 = vpop.permute.xlu0 %3249
  %3251 = vrot.lane.b32.xlu0 %v2900, 8
  %v3252 = vpop.permute.xlu0 %3251
  %3253 = vrot.lane.b32.xlu0 %v2901, 8
  %v3254 = vpop.permute.xlu0 %3253
  %3255 = vrot.lane.b32.xlu0 %v2902, 8
  %v3256 = vpop.permute.xlu0 %3255
  %3257 = vrot.lane.b32.xlu0 %v2903, 8
  %v3258 = vpop.permute.xlu0 %3257
  %3259 = vrot.lane.b32.xlu0 %v2904, 8
  %v3260 = vpop.permute.xlu0 %3259
  %3261 = vrot.lane.b32.xlu0 %v2905, 8
  %v3262 = vpop.permute.xlu0 %3261
  %3263 = vrot.lane.b32.xlu0 %v2906, 8
  %v3264 = vpop.permute.xlu0 %3263
  %3265 = vrot.lane.b32.xlu0 %v2907, 8
  %v3266 = vpop.permute.xlu0 %3265
  %3267 = vrot.lane.b32.xlu0 %v2908, 8
  %v3268 = vpop.permute.xlu0 %3267
  %3269 = vrot.lane.b32.xlu0 %v2909, 8
  %v3270 = vpop.permute.xlu0 %3269
  %3271 = vrot.lane.b32.xlu0 %v2910, 8
  %v3272 = vpop.permute.xlu0 %3271
  %3273 = vrot.lane.b32.xlu0 %v2911, 8
  %v3274 = vpop.permute.xlu0 %3273
  %3275 = vrot.lane.b32.xlu0 %v2912, 8
  %v3276 = vpop.permute.xlu0 %3275
  %3341 = vrot.lane.b32.xlu0 %v2915, 12
  %v3342 = vpop.permute.xlu0 %3341
  %3343 = vrot.lane.b32.xlu0 %v2916, 12
  %v3344 = vpop.permute.xlu0 %3343
  %3345 = vrot.lane.b32.xlu0 %v2917, 12
  %v3346 = vpop.permute.xlu0 %3345
  %3347 = vrot.lane.b32.xlu0 %v2918, 12
  %v3348 = vpop.permute.xlu0 %3347
  %3349 = vrot.lane.b32.xlu0 %v2919, 12
  %v3350 = vpop.permute.xlu0 %3349
  %3351 = vrot.lane.b32.xlu0 %v2920, 12
  %v3352 = vpop.permute.xlu0 %3351
  %3353 = vrot.lane.b32.xlu0 %v2921, 12
  %v3354 = vpop.permute.xlu0 %3353
  %3355 = vrot.lane.b32.xlu0 %v2922, 12
  %v3356 = vpop.permute.xlu0 %3355
  %3357 = vrot.lane.b32.xlu0 %v2923, 12
  %v3358 = vpop.permute.xlu0 %3357
  %3359 = vrot.lane.b32.xlu0 %v2924, 12
  %v3360 = vpop.permute.xlu0 %3359
  %3361 = vrot.lane.b32.xlu0 %v2925, 12
  %v3362 = vpop.permute.xlu0 %3361
  %3363 = vrot.lane.b32.xlu0 %v2926, 12
  %v3364 = vpop.permute.xlu0 %3363
  %3365 = vrot.lane.b32.xlu0 %v2927, 12
  %v3366 = vpop.permute.xlu0 %3365
  %3367 = vrot.lane.b32.xlu0 %v2928, 12
  %v3368 = vpop.permute.xlu0 %3367
  %3369 = vrot.lane.b32.xlu0 %v2929, 12
  %v3370 = vpop.permute.xlu0 %3369
  %3371 = vrot.lane.b32.xlu0 %v2930, 12
  %v3372 = vpop.permute.xlu0 %3371
  %3373 = vrot.lane.b32.xlu0 %v2931, 12
  %v3374 = vpop.permute.xlu0 %3373
  %3375 = vrot.lane.b32.xlu0 %v2932, 12
  %v3376 = vpop.permute.xlu0 %3375
  %3377 = vrot.lane.b32.xlu0 %v2933, 12
  %v3378 = vpop.permute.xlu0 %3377
  %3379 = vrot.lane.b32.xlu0 %v2934, 12
  %v3380 = vpop.permute.xlu0 %3379
  %3381 = vrot.lane.b32.xlu0 %v2935, 12
  %v3382 = vpop.permute.xlu0 %3381
  %3383 = vrot.lane.b32.xlu0 %v2936, 12
  %v3384 = vpop.permute.xlu0 %3383
  %3385 = vrot.lane.b32.xlu0 %v2937, 12
  %v3386 = vpop.permute.xlu0 %3385
  %3387 = vrot.lane.b32.xlu0 %v2938, 12
  %v3388 = vpop.permute.xlu0 %3387
  %3389 = vrot.lane.b32.xlu0 %v2939, 12
  %v3390 = vpop.permute.xlu0 %3389
  %3391 = vrot.lane.b32.xlu0 %v2940, 12
  %v3392 = vpop.permute.xlu0 %3391
  %3393 = vrot.lane.b32.xlu0 %v2941, 12
  %v3394 = vpop.permute.xlu0 %3393
  %3395 = vrot.lane.b32.xlu0 %v2942, 12
  %v3396 = vpop.permute.xlu0 %3395
  %3397 = vrot.lane.b32.xlu0 %v2943, 12
  %v3398 = vpop.permute.xlu0 %3397
  %3399 = vrot.lane.b32.xlu0 %v2944, 12
  %v3400 = vpop.permute.xlu0 %3399
  %3401 = vrot.lane.b32.xlu0 %v2945, 12
  %v3402 = vpop.permute.xlu0 %3401
  %3403 = vrot.lane.b32.xlu0 %v2946, 12
  %v3404 = vpop.permute.xlu0 %3403
  %3439 = vrot.lane.b32.xlu0 %v2819, 16
  %v3440 = vpop.permute.xlu0 %3439
  %3441 = vrot.lane.b32.xlu0 %v2820, 16
  %v3442 = vpop.permute.xlu0 %3441
  %3443 = vrot.lane.b32.xlu0 %v2821, 16
  %v3444 = vpop.permute.xlu0 %3443
  %3445 = vrot.lane.b32.xlu0 %v2822, 16
  %v3446 = vpop.permute.xlu0 %3445
  %3447 = vrot.lane.b32.xlu0 %v2823, 16
  %v3448 = vpop.permute.xlu0 %3447
  %3449 = vrot.lane.b32.xlu0 %v2824, 16
  %v3450 = vpop.permute.xlu0 %3449
  %3451 = vrot.lane.b32.xlu0 %v2825, 16
  %v3452 = vpop.permute.xlu0 %3451
  %3453 = vrot.lane.b32.xlu0 %v2826, 16
  %v3454 = vpop.permute.xlu0 %3453
  %3455 = vrot.lane.b32.xlu0 %v2827, 16
  %v3456 = vpop.permute.xlu0 %3455
  %3457 = vrot.lane.b32.xlu0 %v2828, 16
  %v3458 = vpop.permute.xlu0 %3457
  %3459 = vrot.lane.b32.xlu0 %v2829, 16
  %v3460 = vpop.permute.xlu0 %3459
  %3461 = vrot.lane.b32.xlu0 %v2830, 16
  %v3462 = vpop.permute.xlu0 %3461
  %3463 = vrot.lane.b32.xlu0 %v2831, 16
  %v3464 = vpop.permute.xlu0 %3463
  %3465 = vrot.lane.b32.xlu0 %v2832, 16
  %v3466 = vpop.permute.xlu0 %3465
  %3467 = vrot.lane.b32.xlu0 %v2833, 16
  %v3468 = vpop.permute.xlu0 %3467
  %3469 = vrot.lane.b32.xlu0 %v2834, 16
  %v3470 = vpop.permute.xlu0 %3469
  %3471 = vrot.lane.b32.xlu0 %v2835, 16
  %v3472 = vpop.permute.xlu0 %3471
  %3473 = vrot.lane.b32.xlu0 %v2836, 16
  %v3474 = vpop.permute.xlu0 %3473
  %3475 = vrot.lane.b32.xlu0 %v2837, 16
  %v3476 = vpop.permute.xlu0 %3475
  %3477 = vrot.lane.b32.xlu0 %v2838, 16
  %v3478 = vpop.permute.xlu0 %3477
  %3479 = vrot.lane.b32.xlu0 %v2839, 16
  %v3480 = vpop.permute.xlu0 %3479
  %3481 = vrot.lane.b32.xlu0 %v2840, 16
  %v3482 = vpop.permute.xlu0 %3481
  %3483 = vrot.lane.b32.xlu0 %v2841, 16
  %v3484 = vpop.permute.xlu0 %3483
  %3485 = vrot.lane.b32.xlu0 %v2842, 16
  %v3486 = vpop.permute.xlu0 %3485
  %3487 = vrot.lane.b32.xlu0 %v2843, 16
  %v3488 = vpop.permute.xlu0 %3487
  %3489 = vrot.lane.b32.xlu0 %v2844, 16
  %v3490 = vpop.permute.xlu0 %3489
  %3491 = vrot.lane.b32.xlu0 %v2845, 16
  %v3492 = vpop.permute.xlu0 %3491
  %3493 = vrot.lane.b32.xlu0 %v2846, 16
  %v3494 = vpop.permute.xlu0 %3493
  %3495 = vrot.lane.b32.xlu0 %v2847, 16
  %v3496 = vpop.permute.xlu0 %3495
  %3497 = vrot.lane.b32.xlu0 %v2848, 16
  %v3498 = vpop.permute.xlu0 %3497
  %3499 = vrot.lane.b32.xlu0 %v2947, 16
  %v3500 = vpop.permute.xlu0 %3499
  %3501 = vrot.lane.b32.xlu0 %v2948, 16
  %v3502 = vpop.permute.xlu0 %3501
  %3567 = vrot.lane.b32.xlu0 %v2951, 20
  %v3568 = vpop.permute.xlu0 %3567
  %3569 = vrot.lane.b32.xlu0 %v2952, 20
  %v3570 = vpop.permute.xlu0 %3569
  %3571 = vrot.lane.b32.xlu0 %v2953, 20
  %v3572 = vpop.permute.xlu0 %3571
  %3573 = vrot.lane.b32.xlu0 %v2954, 20
  %v3574 = vpop.permute.xlu0 %3573
  %3575 = vrot.lane.b32.xlu0 %v2955, 20
  %v3576 = vpop.permute.xlu0 %3575
  %3577 = vrot.lane.b32.xlu0 %v2956, 20
  %v3578 = vpop.permute.xlu0 %3577
  %3579 = vrot.lane.b32.xlu0 %v2957, 20
  %v3580 = vpop.permute.xlu0 %3579
  %3581 = vrot.lane.b32.xlu0 %v2958, 20
  %v3582 = vpop.permute.xlu0 %3581
  %3583 = vrot.lane.b32.xlu0 %v2959, 20
  %v3584 = vpop.permute.xlu0 %3583
  %3585 = vrot.lane.b32.xlu0 %v2960, 20
  %v3586 = vpop.permute.xlu0 %3585
  %3587 = vrot.lane.b32.xlu0 %v2961, 20
  %v3588 = vpop.permute.xlu0 %3587
  %3589 = vrot.lane.b32.xlu0 %v2962, 20
  %v3590 = vpop.permute.xlu0 %3589
  %3591 = vrot.lane.b32.xlu0 %v2963, 20
  %v3592 = vpop.permute.xlu0 %3591
  %3593 = vrot.lane.b32.xlu0 %v2964, 20
  %v3594 = vpop.permute.xlu0 %3593
  %3595 = vrot.lane.b32.xlu0 %v2965, 20
  %v3596 = vpop.permute.xlu0 %3595
  %3597 = vrot.lane.b32.xlu0 %v2966, 20
  %v3598 = vpop.permute.xlu0 %3597
  %3599 = vrot.lane.b32.xlu0 %v2967, 20
  %v3600 = vpop.permute.xlu0 %3599
  %3601 = vrot.lane.b32.xlu0 %v2968, 20
  %v3602 = vpop.permute.xlu0 %3601
  %3603 = vrot.lane.b32.xlu0 %v2969, 20
  %v3604 = vpop.permute.xlu0 %3603
  %3605 = vrot.lane.b32.xlu0 %v2970, 20
  %v3606 = vpop.permute.xlu0 %3605
  %3607 = vrot.lane.b32.xlu0 %v2971, 20
  %v3608 = vpop.permute.xlu0 %3607
  %3609 = vrot.lane.b32.xlu0 %v2972, 20
  %v3610 = vpop.permute.xlu0 %3609
  %3611 = vrot.lane.b32.xlu0 %v2973, 20
  %v3612 = vpop.permute.xlu0 %3611
  %3613 = vrot.lane.b32.xlu0 %v2974, 20
  %v3614 = vpop.permute.xlu0 %3613
  %3615 = vrot.lane.b32.xlu0 %v2975, 20
  %v3616 = vpop.permute.xlu0 %3615
  %3617 = vrot.lane.b32.xlu0 %v2976, 20
  %v3618 = vpop.permute.xlu0 %3617
  %3619 = vrot.lane.b32.xlu0 %v2977, 20
  %v3620 = vpop.permute.xlu0 %3619
  %3621 = vrot.lane.b32.xlu0 %v2978, 20
  %v3622 = vpop.permute.xlu0 %3621
  %3623 = vrot.lane.b32.xlu0 %v2979, 20
  %v3624 = vpop.permute.xlu0 %3623
  %3625 = vrot.lane.b32.xlu0 %v2980, 20
  %v3626 = vpop.permute.xlu0 %3625
  %3627 = vrot.lane.b32.xlu0 %v2981, 20
  %v3628 = vpop.permute.xlu0 %3627
  %3629 = vrot.lane.b32.xlu0 %v2982, 20
  %v3630 = vpop.permute.xlu0 %3629
  %3695 = vrot.lane.b32.xlu0 %v2985, 24
  %v3696 = vpop.permute.xlu0 %3695
  %3697 = vrot.lane.b32.xlu0 %v2986, 24
  %v3698 = vpop.permute.xlu0 %3697
  %3699 = vrot.lane.b32.xlu0 %v2987, 24
  %v3700 = vpop.permute.xlu0 %3699
  %3701 = vrot.lane.b32.xlu0 %v2988, 24
  %v3702 = vpop.permute.xlu0 %3701
  %3703 = vrot.lane.b32.xlu0 %v2989, 24
  %v3704 = vpop.permute.xlu0 %3703
  %3705 = vrot.lane.b32.xlu0 %v2990, 24
  %v3706 = vpop.permute.xlu0 %3705
  %3707 = vrot.lane.b32.xlu0 %v2991, 24
  %v3708 = vpop.permute.xlu0 %3707
  %3709 = vrot.lane.b32.xlu0 %v2992, 24
  %v3710 = vpop.permute.xlu0 %3709
  %3711 = vrot.lane.b32.xlu0 %v2993, 24
  %v3712 = vpop.permute.xlu0 %3711
  %3713 = vrot.lane.b32.xlu0 %v2994, 24
  %v3714 = vpop.permute.xlu0 %3713
  %3715 = vrot.lane.b32.xlu0 %v2995, 24
  %v3716 = vpop.permute.xlu0 %3715
  %3717 = vrot.lane.b32.xlu0 %v2996, 24
  %v3718 = vpop.permute.xlu0 %3717
  %3719 = vrot.lane.b32.xlu0 %v2997, 24
  %v3720 = vpop.permute.xlu0 %3719
  %3721 = vrot.lane.b32.xlu0 %v2998, 24
  %v3722 = vpop.permute.xlu0 %3721
  %3723 = vrot.lane.b32.xlu0 %v2999, 24
  %v3724 = vpop.permute.xlu0 %3723
  %3725 = vrot.lane.b32.xlu0 %v3000, 24
  %v3726 = vpop.permute.xlu0 %3725
  %3727 = vrot.lane.b32.xlu0 %v3001, 24
  %v3728 = vpop.permute.xlu0 %3727
  %3729 = vrot.lane.b32.xlu0 %v3002, 24
  %v3730 = vpop.permute.xlu0 %3729
  %3731 = vrot.lane.b32.xlu0 %v3003, 24
  %v3732 = vpop.permute.xlu0 %3731
  %3733 = vrot.lane.b32.xlu0 %v3004, 24
  %v3734 = vpop.permute.xlu0 %3733
  %3735 = vrot.lane.b32.xlu0 %v3005, 24
  %v3736 = vpop.permute.xlu0 %3735
  %3737 = vrot.lane.b32.xlu0 %v3006, 24
  %v3738 = vpop.permute.xlu0 %3737
  %3739 = vrot.lane.b32.xlu0 %v3007, 24
  %v3740 = vpop.permute.xlu0 %3739
  %3741 = vrot.lane.b32.xlu0 %v3008, 24
  %v3742 = vpop.permute.xlu0 %3741
  %3743 = vrot.lane.b32.xlu0 %v3009, 24
  %v3744 = vpop.permute.xlu0 %3743
  %3745 = vrot.lane.b32.xlu0 %v3010, 24
  %v3746 = vpop.permute.xlu0 %3745
  %3747 = vrot.lane.b32.xlu0 %v3011, 24
  %v3748 = vpop.permute.xlu0 %3747
  %3749 = vrot.lane.b32.xlu0 %v3012, 24
  %v3750 = vpop.permute.xlu0 %3749
  %3751 = vrot.lane.b32.xlu0 %v3013, 24
  %v3752 = vpop.permute.xlu0 %3751
  %3753 = vrot.lane.b32.xlu0 %v3014, 24
  %v3754 = vpop.permute.xlu0 %3753
  %3755 = vrot.lane.b32.xlu0 %v3015, 24
  %v3756 = vpop.permute.xlu0 %3755
  %3757 = vrot.lane.b32.xlu0 %v3016, 24
  %v3758 = vpop.permute.xlu0 %3757
  %3793 = vrot.lane.b32.xlu0 %v2821, 28
  %v3794 = vpop.permute.xlu0 %3793
  %3795 = vrot.lane.b32.xlu0 %v2822, 28
  %v3796 = vpop.permute.xlu0 %3795
  %3797 = vrot.lane.b32.xlu0 %v2823, 28
  %v3798 = vpop.permute.xlu0 %3797
  %3799 = vrot.lane.b32.xlu0 %v2824, 28
  %v3800 = vpop.permute.xlu0 %3799
  %3801 = vrot.lane.b32.xlu0 %v2825, 28
  %v3802 = vpop.permute.xlu0 %3801
  %3803 = vrot.lane.b32.xlu0 %v2826, 28
  %v3804 = vpop.permute.xlu0 %3803
  %3805 = vrot.lane.b32.xlu0 %v2827, 28
  %v3806 = vpop.permute.xlu0 %3805
  %3807 = vrot.lane.b32.xlu0 %v2828, 28
  %v3808 = vpop.permute.xlu0 %3807
  %3809 = vrot.lane.b32.xlu0 %v2829, 28
  %v3810 = vpop.permute.xlu0 %3809
  %3811 = vrot.lane.b32.xlu0 %v2830, 28
  %v3812 = vpop.permute.xlu0 %3811
  %3813 = vrot.lane.b32.xlu0 %v2831, 28
  %v3814 = vpop.permute.xlu0 %3813
  %3815 = vrot.lane.b32.xlu0 %v2832, 28
  %v3816 = vpop.permute.xlu0 %3815
  %3817 = vrot.lane.b32.xlu0 %v2833, 28
  %v3818 = vpop.permute.xlu0 %3817
  %3819 = vrot.lane.b32.xlu0 %v2834, 28
  %v3820 = vpop.permute.xlu0 %3819
  %3821 = vrot.lane.b32.xlu0 %v2835, 28
  %v3822 = vpop.permute.xlu0 %3821
  %3823 = vrot.lane.b32.xlu0 %v2836, 28
  %v3824 = vpop.permute.xlu0 %3823
  %3825 = vrot.lane.b32.xlu0 %v2837, 28
  %v3826 = vpop.permute.xlu0 %3825
  %3827 = vrot.lane.b32.xlu0 %v2838, 28
  %v3828 = vpop.permute.xlu0 %3827
  %3829 = vrot.lane.b32.xlu0 %v2839, 28
  %v3830 = vpop.permute.xlu0 %3829
  %3831 = vrot.lane.b32.xlu0 %v2840, 28
  %v3832 = vpop.permute.xlu0 %3831
  %3833 = vrot.lane.b32.xlu0 %v2841, 28
  %v3834 = vpop.permute.xlu0 %3833
  %3835 = vrot.lane.b32.xlu0 %v2842, 28
  %v3836 = vpop.permute.xlu0 %3835
  %3837 = vrot.lane.b32.xlu0 %v2843, 28
  %v3838 = vpop.permute.xlu0 %3837
  %3839 = vrot.lane.b32.xlu0 %v2844, 28
  %v3840 = vpop.permute.xlu0 %3839
  %3841 = vrot.lane.b32.xlu0 %v2845, 28
  %v3842 = vpop.permute.xlu0 %3841
  %3843 = vrot.lane.b32.xlu0 %v2846, 28
  %v3844 = vpop.permute.xlu0 %3843
  %3845 = vrot.lane.b32.xlu0 %v2847, 28
  %v3846 = vpop.permute.xlu0 %3845
  %3847 = vrot.lane.b32.xlu0 %v2848, 28
  %v3848 = vpop.permute.xlu0 %3847
  %3849 = vrot.lane.b32.xlu0 %v2947, 28
  %v3850 = vpop.permute.xlu0 %3849
  %3851 = vrot.lane.b32.xlu0 %v2948, 28
  %v3852 = vpop.permute.xlu0 %3851
  %3853 = vrot.lane.b32.xlu0 %v3017, 28
  %v3854 = vpop.permute.xlu0 %3853
  %3855 = vrot.lane.b32.xlu0 %v3018, 28
  %v3856 = vpop.permute.xlu0 %3855
  %3921 = vrot.lane.b32.xlu0 %v3021, 32
  %v3922 = vpop.permute.xlu0 %3921
  %3923 = vrot.lane.b32.xlu0 %v3022, 32
  %v3924 = vpop.permute.xlu0 %3923
  %3925 = vrot.lane.b32.xlu0 %v3023, 32
  %v3926 = vpop.permute.xlu0 %3925
  %3927 = vrot.lane.b32.xlu0 %v3024, 32
  %v3928 = vpop.permute.xlu0 %3927
  %3929 = vrot.lane.b32.xlu0 %v3025, 32
  %v3930 = vpop.permute.xlu0 %3929
  %3931 = vrot.lane.b32.xlu0 %v3026, 32
  %v3932 = vpop.permute.xlu0 %3931
  %3933 = vrot.lane.b32.xlu0 %v3027, 32
  %v3934 = vpop.permute.xlu0 %3933
  %3935 = vrot.lane.b32.xlu0 %v3028, 32
  %v3936 = vpop.permute.xlu0 %3935
  %3937 = vrot.lane.b32.xlu0 %v3029, 32
  %v3938 = vpop.permute.xlu0 %3937
  %3939 = vrot.lane.b32.xlu0 %v3030, 32
  %v3940 = vpop.permute.xlu0 %3939
  %3941 = vrot.lane.b32.xlu0 %v3031, 32
  %v3942 = vpop.permute.xlu0 %3941
  %3943 = vrot.lane.b32.xlu0 %v3032, 32
  %v3944 = vpop.permute.xlu0 %3943
  %3945 = vrot.lane.b32.xlu0 %v3033, 32
  %v3946 = vpop.permute.xlu0 %3945
  %3947 = vrot.lane.b32.xlu0 %v3034, 32
  %v3948 = vpop.permute.xlu0 %3947
  %3949 = vrot.lane.b32.xlu0 %v3035, 32
  %v3950 = vpop.permute.xlu0 %3949
  %3951 = vrot.lane.b32.xlu0 %v3036, 32
  %v3952 = vpop.permute.xlu0 %3951
  %3953 = vrot.lane.b32.xlu0 %v3037, 32
  %v3954 = vpop.permute.xlu0 %3953
  %3955 = vrot.lane.b32.xlu0 %v3038, 32
  %v3956 = vpop.permute.xlu0 %3955
  %3957 = vrot.lane.b32.xlu0 %v3039, 32
  %v3958 = vpop.permute.xlu0 %3957
  %3959 = vrot.lane.b32.xlu0 %v3040, 32
  %v3960 = vpop.permute.xlu0 %3959
  %3961 = vrot.lane.b32.xlu0 %v3041, 32
  %v3962 = vpop.permute.xlu0 %3961
  %3963 = vrot.lane.b32.xlu0 %v3042, 32
  %v3964 = vpop.permute.xlu0 %3963
  %3965 = vrot.lane.b32.xlu0 %v3043, 32
  %v3966 = vpop.permute.xlu0 %3965
  %3967 = vrot.lane.b32.xlu0 %v3044, 32
  %v3968 = vpop.permute.xlu0 %3967
  %3969 = vrot.lane.b32.xlu0 %v3045, 32
  %v3970 = vpop.permute.xlu0 %3969
  %3971 = vrot.lane.b32.xlu0 %v3046, 32
  %v3972 = vpop.permute.xlu0 %3971
  %3973 = vrot.lane.b32.xlu0 %v3047, 32
  %v3974 = vpop.permute.xlu0 %3973
  %3975 = vrot.lane.b32.xlu0 %v3048, 32
  %v3976 = vpop.permute.xlu0 %3975
  %3977 = vrot.lane.b32.xlu0 %v3049, 32
  %v3978 = vpop.permute.xlu0 %3977
  %3979 = vrot.lane.b32.xlu0 %v3050, 32
  %v3980 = vpop.permute.xlu0 %3979
  %3981 = vrot.lane.b32.xlu0 %v3051, 32
  %v3982 = vpop.permute.xlu0 %3981
  %3983 = vrot.lane.b32.xlu0 %v3052, 32
  %v3984 = vpop.permute.xlu0 %3983
  %v4017 = vsel %vm494, %v2785, %v3086
  %v4018 = vsel %vm494, %v2786, %v3088
  %v4019 = vsel %vm494, %v2787, %v3090
  %v4020 = vsel %vm494, %v2788, %v3092
  %v4021 = vsel %vm494, %v2789, %v3094
  %v4022 = vsel %vm494, %v2790, %v3096
  %v4023 = vsel %vm494, %v2791, %v3098
  %v4024 = vsel %vm494, %v2792, %v3100
  %v4025 = vsel %vm494, %v2793, %v3102
  %v4026 = vsel %vm494, %v2794, %v3104
  %v4027 = vsel %vm494, %v2795, %v3106
  %v4028 = vsel %vm494, %v2796, %v3108
  %v4029 = vsel %vm494, %v2797, %v3110
  %v4030 = vsel %vm494, %v2798, %v3112
  %v4031 = vsel %vm494, %v2799, %v3114
  %v4032 = vsel %vm494, %v2800, %v3116
  %v4033 = vsel %vm494, %v2801, %v3118
  %v4034 = vsel %vm494, %v2802, %v3120
  %v4035 = vsel %vm494, %v2803, %v3122
  %v4036 = vsel %vm494, %v2804, %v3124
  %v4037 = vsel %vm494, %v2805, %v3126
  %v4038 = vsel %vm494, %v2806, %v3128
  %v4039 = vsel %vm494, %v2807, %v3130
  %v4040 = vsel %vm494, %v2808, %v3132
  %v4041 = vsel %vm494, %v2809, %v3134
  %v4042 = vsel %vm494, %v2810, %v3136
  %v4043 = vsel %vm494, %v2811, %v3138
  %v4044 = vsel %vm494, %v2812, %v3140
  %v4045 = vsel %vm494, %v2813, %v3142
  %v4046 = vsel %vm494, %v2814, %v3144
  %v4047 = vsel %vm494, %v2815, %v3146
  %v4048 = vsel %vm494, %v2816, %v3148
  %v4049 = vsel %vm1999, %v4017, %v3214
  %v4050 = vsel %vm1999, %v4018, %v3216
  %v4051 = vsel %vm1999, %v4019, %v3218
  %v4052 = vsel %vm1999, %v4020, %v3220
  %v4053 = vsel %vm1999, %v4021, %v3222
  %v4054 = vsel %vm1999, %v4022, %v3224
  %v4055 = vsel %vm1999, %v4023, %v3226
  %v4056 = vsel %vm1999, %v4024, %v3228
  %v4057 = vsel %vm1999, %v4025, %v3230
  %v4058 = vsel %vm1999, %v4026, %v3232
  %v4059 = vsel %vm1999, %v4027, %v3234
  %v4060 = vsel %vm1999, %v4028, %v3236
  %v4061 = vsel %vm1999, %v4029, %v3238
  %v4062 = vsel %vm1999, %v4030, %v3240
  %v4063 = vsel %vm1999, %v4031, %v3242
  %v4064 = vsel %vm1999, %v4032, %v3244
  %v4065 = vsel %vm1999, %v4033, %v3246
  %v4066 = vsel %vm1999, %v4034, %v3248
  %v4067 = vsel %vm1999, %v4035, %v3250
  %v4068 = vsel %vm1999, %v4036, %v3252
  %v4069 = vsel %vm1999, %v4037, %v3254
  %v4070 = vsel %vm1999, %v4038, %v3256
  %v4071 = vsel %vm1999, %v4039, %v3258
  %v4072 = vsel %vm1999, %v4040, %v3260
  %v4073 = vsel %vm1999, %v4041, %v3262
  %v4074 = vsel %vm1999, %v4042, %v3264
  %v4075 = vsel %vm1999, %v4043, %v3266
  %v4076 = vsel %vm1999, %v4044, %v3268
  %v4077 = vsel %vm1999, %v4045, %v3270
  %v4078 = vsel %vm1999, %v4046, %v3272
  %v4079 = vsel %vm1999, %v4047, %v3274
  %v4080 = vsel %vm1999, %v4048, %v3276
  %v4081 = vsel %vm2032, %v4049, %v3342
  %v4082 = vsel %vm2032, %v4050, %v3344
  %v4083 = vsel %vm2032, %v4051, %v3346
  %v4084 = vsel %vm2032, %v4052, %v3348
  %v4085 = vsel %vm2032, %v4053, %v3350
  %v4086 = vsel %vm2032, %v4054, %v3352
  %v4087 = vsel %vm2032, %v4055, %v3354
  %v4088 = vsel %vm2032, %v4056, %v3356
  %v4089 = vsel %vm2032, %v4057, %v3358
  %v4090 = vsel %vm2032, %v4058, %v3360
  %v4091 = vsel %vm2032, %v4059, %v3362
  %v4092 = vsel %vm2032, %v4060, %v3364
  %v4093 = vsel %vm2032, %v4061, %v3366
  %v4094 = vsel %vm2032, %v4062, %v3368
  %v4095 = vsel %vm2032, %v4063, %v3370
  %v4096 = vsel %vm2032, %v4064, %v3372
  %v4097 = vsel %vm2032, %v4065, %v3374
  %v4098 = vsel %vm2032, %v4066, %v3376
  %v4099 = vsel %vm2032, %v4067, %v3378
  %v4100 = vsel %vm2032, %v4068, %v3380
  %v4101 = vsel %vm2032, %v4069, %v3382
  %v4102 = vsel %vm2032, %v4070, %v3384
  %v4103 = vsel %vm2032, %v4071, %v3386
  %v4104 = vsel %vm2032, %v4072, %v3388
  %v4105 = vsel %vm2032, %v4073, %v3390
  %v4106 = vsel %vm2032, %v4074, %v3392
  %v4107 = vsel %vm2032, %v4075, %v3394
  %v4108 = vsel %vm2032, %v4076, %v3396
  %v4109 = vsel %vm2032, %v4077, %v3398
  %v4110 = vsel %vm2032, %v4078, %v3400
  %v4111 = vsel %vm2032, %v4079, %v3402
  %v4112 = vsel %vm2032, %v4080, %v3404
  %v4113 = vsel %vm2065, %v4081, %v3440
  %v4114 = vsel %vm2065, %v4082, %v3442
  %v4115 = vsel %vm2065, %v4083, %v3444
  %v4116 = vsel %vm2065, %v4084, %v3446
  %v4117 = vsel %vm2065, %v4085, %v3448
  %v4118 = vsel %vm2065, %v4086, %v3450
  %v4119 = vsel %vm2065, %v4087, %v3452
  %v4120 = vsel %vm2065, %v4088, %v3454
  %v4121 = vsel %vm2065, %v4089, %v3456
  %v4122 = vsel %vm2065, %v4090, %v3458
  %v4123 = vsel %vm2065, %v4091, %v3460
  %v4124 = vsel %vm2065, %v4092, %v3462
  %v4125 = vsel %vm2065, %v4093, %v3464
  %v4126 = vsel %vm2065, %v4094, %v3466
  %v4127 = vsel %vm2065, %v4095, %v3468
  %v4128 = vsel %vm2065, %v4096, %v3470
  %v4129 = vsel %vm2065, %v4097, %v3472
  %v4130 = vsel %vm2065, %v4098, %v3474
  %v4131 = vsel %vm2065, %v4099, %v3476
  %v4132 = vsel %vm2065, %v4100, %v3478
  %v4133 = vsel %vm2065, %v4101, %v3480
  %v4134 = vsel %vm2065, %v4102, %v3482
  %v4135 = vsel %vm2065, %v4103, %v3484
  %v4136 = vsel %vm2065, %v4104, %v3486
  %v4137 = vsel %vm2065, %v4105, %v3488
  %v4138 = vsel %vm2065, %v4106, %v3490
  %v4139 = vsel %vm2065, %v4107, %v3492
  %v4140 = vsel %vm2065, %v4108, %v3494
  %v4141 = vsel %vm2065, %v4109, %v3496
  %v4142 = vsel %vm2065, %v4110, %v3498
  %v4143 = vsel %vm2065, %v4111, %v3500
  %v4144 = vsel %vm2065, %v4112, %v3502
  %v4145 = vsel %vm2098, %v4113, %v3568
  %v4146 = vsel %vm2098, %v4114, %v3570
  %v4147 = vsel %vm2098, %v4115, %v3572
  %v4148 = vsel %vm2098, %v4116, %v3574
  %v4149 = vsel %vm2098, %v4117, %v3576
  %v4150 = vsel %vm2098, %v4118, %v3578
  %v4151 = vsel %vm2098, %v4119, %v3580
  %v4152 = vsel %vm2098, %v4120, %v3582
  %v4153 = vsel %vm2098, %v4121, %v3584
  %v4154 = vsel %vm2098, %v4122, %v3586
  %v4155 = vsel %vm2098, %v4123, %v3588
  %v4156 = vsel %vm2098, %v4124, %v3590
  %v4157 = vsel %vm2098, %v4125, %v3592
  %v4158 = vsel %vm2098, %v4126, %v3594
  %v4159 = vsel %vm2098, %v4127, %v3596
  %v4160 = vsel %vm2098, %v4128, %v3598
  %v4161 = vsel %vm2098, %v4129, %v3600
  %v4162 = vsel %vm2098, %v4130, %v3602
  %v4163 = vsel %vm2098, %v4131, %v3604
  %v4164 = vsel %vm2098, %v4132, %v3606
  %v4165 = vsel %vm2098, %v4133, %v3608
  %v4166 = vsel %vm2098, %v4134, %v3610
  %v4167 = vsel %vm2098, %v4135, %v3612
  %v4168 = vsel %vm2098, %v4136, %v3614
  %v4169 = vsel %vm2098, %v4137, %v3616
  %v4170 = vsel %vm2098, %v4138, %v3618
  %v4171 = vsel %vm2098, %v4139, %v3620
  %v4172 = vsel %vm2098, %v4140, %v3622
  %v4173 = vsel %vm2098, %v4141, %v3624
  %v4174 = vsel %vm2098, %v4142, %v3626
  %v4175 = vsel %vm2098, %v4143, %v3628
  %v4176 = vsel %vm2098, %v4144, %v3630
  %v4177 = vsel %vm2131, %v4145, %v3696
  %v4178 = vsel %vm2131, %v4146, %v3698
  %v4179 = vsel %vm2131, %v4147, %v3700
  %v4180 = vsel %vm2131, %v4148, %v3702
  %v4181 = vsel %vm2131, %v4149, %v3704
  %v4182 = vsel %vm2131, %v4150, %v3706
  %v4183 = vsel %vm2131, %v4151, %v3708
  %v4184 = vsel %vm2131, %v4152, %v3710
  %v4185 = vsel %vm2131, %v4153, %v3712
  %v4186 = vsel %vm2131, %v4154, %v3714
  %v4187 = vsel %vm2131, %v4155, %v3716
  %v4188 = vsel %vm2131, %v4156, %v3718
  %v4189 = vsel %vm2131, %v4157, %v3720
  %v4190 = vsel %vm2131, %v4158, %v3722
  %v4191 = vsel %vm2131, %v4159, %v3724
  %v4192 = vsel %vm2131, %v4160, %v3726
  %v4193 = vsel %vm2131, %v4161, %v3728
  %v4194 = vsel %vm2131, %v4162, %v3730
  %v4195 = vsel %vm2131, %v4163, %v3732
  %v4196 = vsel %vm2131, %v4164, %v3734
  %v4197 = vsel %vm2131, %v4165, %v3736
  %v4198 = vsel %vm2131, %v4166, %v3738
  %v4199 = vsel %vm2131, %v4167, %v3740
  %v4200 = vsel %vm2131, %v4168, %v3742
  %v4201 = vsel %vm2131, %v4169, %v3744
  %v4202 = vsel %vm2131, %v4170, %v3746
  %v4203 = vsel %vm2131, %v4171, %v3748
  %v4204 = vsel %vm2131, %v4172, %v3750
  %v4205 = vsel %vm2131, %v4173, %v3752
  %v4206 = vsel %vm2131, %v4174, %v3754
  %v4207 = vsel %vm2131, %v4175, %v3756
  %v4208 = vsel %vm2131, %v4176, %v3758
  %v4209 = vsel %vm2164, %v4177, %v3794
  %v4210 = vsel %vm2164, %v4178, %v3796
  %v4211 = vsel %vm2164, %v4179, %v3798
  %v4212 = vsel %vm2164, %v4180, %v3800
  %v4213 = vsel %vm2164, %v4181, %v3802
  %v4214 = vsel %vm2164, %v4182, %v3804
  %v4215 = vsel %vm2164, %v4183, %v3806
  %v4216 = vsel %vm2164, %v4184, %v3808
  %v4217 = vsel %vm2164, %v4185, %v3810
  %v4218 = vsel %vm2164, %v4186, %v3812
  %v4219 = vsel %vm2164, %v4187, %v3814
  %v4220 = vsel %vm2164, %v4188, %v3816
  %v4221 = vsel %vm2164, %v4189, %v3818
  %v4222 = vsel %vm2164, %v4190, %v3820
  %v4223 = vsel %vm2164, %v4191, %v3822
  %v4224 = vsel %vm2164, %v4192, %v3824
  %v4225 = vsel %vm2164, %v4193, %v3826
  %v4226 = vsel %vm2164, %v4194, %v3828
  %v4227 = vsel %vm2164, %v4195, %v3830
  %v4228 = vsel %vm2164, %v4196, %v3832
  %v4229 = vsel %vm2164, %v4197, %v3834
  %v4230 = vsel %vm2164, %v4198, %v3836
  %v4231 = vsel %vm2164, %v4199, %v3838
  %v4232 = vsel %vm2164, %v4200, %v3840
  %v4233 = vsel %vm2164, %v4201, %v3842
  %v4234 = vsel %vm2164, %v4202, %v3844
  %v4235 = vsel %vm2164, %v4203, %v3846
  %v4236 = vsel %vm2164, %v4204, %v3848
  %v4237 = vsel %vm2164, %v4205, %v3850
  %v4238 = vsel %vm2164, %v4206, %v3852
  %v4239 = vsel %vm2164, %v4207, %v3854
  %v4240 = vsel %vm2164, %v4208, %v3856
  %v4241 = vsel %vm2197, %v4209, %v3922
  %v4242 = vsel %vm2197, %v4210, %v3924
  %v4243 = vsel %vm2197, %v4211, %v3926
  %v4244 = vsel %vm2197, %v4212, %v3928
  %v4245 = vsel %vm2197, %v4213, %v3930
  %v4246 = vsel %vm2197, %v4214, %v3932
  %v4247 = vsel %vm2197, %v4215, %v3934
  %v4248 = vsel %vm2197, %v4216, %v3936
  %v4249 = vsel %vm2197, %v4217, %v3938
  %v4250 = vsel %vm2197, %v4218, %v3940
  %v4251 = vsel %vm2197, %v4219, %v3942
  %v4252 = vsel %vm2197, %v4220, %v3944
  %v4253 = vsel %vm2197, %v4221, %v3946
  %v4254 = vsel %vm2197, %v4222, %v3948
  %v4255 = vsel %vm2197, %v4223, %v3950
  %v4256 = vsel %vm2197, %v4224, %v3952
  %v4257 = vsel %vm2197, %v4225, %v3954
  %v4258 = vsel %vm2197, %v4226, %v3956
  %v4259 = vsel %vm2197, %v4227, %v3958
  %v4260 = vsel %vm2197, %v4228, %v3960
  %v4261 = vsel %vm2197, %v4229, %v3962
  %v4262 = vsel %vm2197, %v4230, %v3964
  %v4263 = vsel %vm2197, %v4231, %v3966
  %v4264 = vsel %vm2197, %v4232, %v3968
  %v4265 = vsel %vm2197, %v4233, %v3970
  %v4266 = vsel %vm2197, %v4234, %v3972
  %v4267 = vsel %vm2197, %v4235, %v3974
  %v4268 = vsel %vm2197, %v4236, %v3976
  %v4269 = vsel %vm2197, %v4237, %v3978
  %v4270 = vsel %vm2197, %v4238, %v3980
  %v4271 = vsel %vm2197, %v4239, %v3982
  %v4272 = vsel %vm2197, %v4240, %v3984
  %v4273 = vld [vmem:[%s1] sm:$0xff]
  %v4274 = vld [vmem:[%s1 + $0x8] sm:$0xff]
  %v4275 = vld [vmem:[%s1 + $0x10] sm:$0xff]
  %v4276 = vld [vmem:[%s1 + $0x18] sm:$0xff]
  %v4277 = vld [vmem:[%s1 + $0x20] sm:$0xf]
  %v4279 = vsel %vm2235, %v4241, 0
  %v4282 = vsel %vm2235, %v4242, 0
  %v4285 = vsel %vm2235, %v4243, 0
  %v4288 = vsel %vm2235, %v4244, 0
  %v4291 = vsel %vm2235, %v4245, 0
  %v4294 = vsel %vm2235, %v4246, 0
  %v4297 = vsel %vm2235, %v4247, 0
  %v4300 = vsel %vm2235, %v4248, 0
  %v4303 = vsel %vm2235, %v4249, 0
  %v4306 = vsel %vm2235, %v4250, 0
  %v4309 = vsel %vm2235, %v4251, 0
  %v4312 = vsel %vm2235, %v4252, 0
  %v4315 = vsel %vm2235, %v4253, 0
  %v4318 = vsel %vm2235, %v4254, 0
  %v4321 = vsel %vm2235, %v4255, 0
  %v4324 = vsel %vm2235, %v4256, 0
  %v4327 = vsel %vm2235, %v4257, 0
  %v4330 = vsel %vm2235, %v4258, 0
  %v4333 = vsel %vm2235, %v4259, 0
  %v4336 = vsel %vm2235, %v4260, 0
  %v4339 = vsel %vm2235, %v4261, 0
  %v4342 = vsel %vm2235, %v4262, 0
  %v4345 = vsel %vm2235, %v4263, 0
  %v4348 = vsel %vm2235, %v4264, 0
  %v4351 = vsel %vm2235, %v4265, 0
  %v4354 = vsel %vm2235, %v4266, 0
  %v4357 = vsel %vm2235, %v4267, 0
  %v4360 = vsel %vm2235, %v4268, 0
  %v4363 = vsel %vm2235, %v4269, 0
  %v4366 = vsel %vm2235, %v4270, 0
  %v4369 = vsel %vm2235, %v4271, 0
  %v4372 = vsel %vm2235, %v4272, 0
  %v4375 = vsel %vm2332, %v4277, 0
  %4377 = vmatpush.msra.mxu0 0.0
  %4378 = vmatpush.msra.mxu0 0.0
  %4379 = vmatpush.msra.mxu0 0.0
  %4380 = vmatpush.msra.mxu0 0.0
  %4381 = vmatpush.msra.mxu0 0.0
  %4382 = vmatpush.msra.mxu0 0.0
  %4383 = vmatpush.msra.mxu0 0.0
  %4384 = vmatpush.msra.mxu0 0.0
  %4385 = vmatpush.msra.mxu0 0.0
  %4386 = vmatpush.msra.mxu0 0.0
  %4387 = vmatpush.msra.mxu0 0.0
  %4388 = vmatpush.msra.mxu0 %v4375
  %4389 = vmatpush.msra.mxu0 %v4276
  %4390 = vmatpush.msra.mxu0 %v4275
  %4391 = vmatpush.msra.mxu0 %v4274
  %4392 = vmatpush.msra.mxu0 %v4273
  %4393 = vmatmul.f32.gmra.mxu0 %v4279
  %v4394 = vpop.f32.mrf.mxu0
  %v4395 = vadd.f32 0.0, %v4394
  %4396 = vmatmul.f32.gmra.mxu0 %v4282
  %v4397 = vpop.f32.mrf.mxu0
  %v4398 = vadd.f32 0.0, %v4397
  %4399 = vmatmul.f32.gmra.mxu0 %v4285
  %v4400 = vpop.f32.mrf.mxu0
  %v4401 = vadd.f32 0.0, %v4400
  %4402 = vmatmul.f32.gmra.mxu0 %v4288
  %v4403 = vpop.f32.mrf.mxu0
  %v4404 = vadd.f32 0.0, %v4403
  %4405 = vmatmul.f32.gmra.mxu0 %v4291
  %v4406 = vpop.f32.mrf.mxu0
  %v4407 = vadd.f32 0.0, %v4406
  %4408 = vmatmul.f32.gmra.mxu0 %v4294
  %v4409 = vpop.f32.mrf.mxu0
  %v4410 = vadd.f32 0.0, %v4409
  %4411 = vmatmul.f32.gmra.mxu0 %v4297
  %v4412 = vpop.f32.mrf.mxu0
  %v4413 = vadd.f32 0.0, %v4412
  %4414 = vmatmul.f32.gmra.mxu0 %v4300
  %v4415 = vpop.f32.mrf.mxu0
  %v4416 = vadd.f32 0.0, %v4415
  %4417 = vmatmul.f32.gmra.mxu0 %v4303
  %v4418 = vpop.f32.mrf.mxu0
  %v4419 = vadd.f32 0.0, %v4418
  %4420 = vmatmul.f32.gmra.mxu0 %v4306
  %v4421 = vpop.f32.mrf.mxu0
  %v4422 = vadd.f32 0.0, %v4421
  %4423 = vmatmul.f32.gmra.mxu0 %v4309
  %v4424 = vpop.f32.mrf.mxu0
  %v4425 = vadd.f32 0.0, %v4424
  %4426 = vmatmul.f32.gmra.mxu0 %v4312
  %v4427 = vpop.f32.mrf.mxu0
  %v4428 = vadd.f32 0.0, %v4427
  %4429 = vmatmul.f32.gmra.mxu0 %v4315
  %v4430 = vpop.f32.mrf.mxu0
  %v4431 = vadd.f32 0.0, %v4430
  %4432 = vmatmul.f32.gmra.mxu0 %v4318
  %v4433 = vpop.f32.mrf.mxu0
  %v4434 = vadd.f32 0.0, %v4433
  %4435 = vmatmul.f32.gmra.mxu0 %v4321
  %v4436 = vpop.f32.mrf.mxu0
  %v4437 = vadd.f32 0.0, %v4436
  %4438 = vmatmul.f32.gmra.mxu0 %v4324
  %v4439 = vpop.f32.mrf.mxu0
  %v4440 = vadd.f32 0.0, %v4439
  %4441 = vmatmul.f32.gmra.mxu0 %v4327
  %v4442 = vpop.f32.mrf.mxu0
  %v4443 = vadd.f32 0.0, %v4442
  %4444 = vmatmul.f32.gmra.mxu0 %v4330
  %v4445 = vpop.f32.mrf.mxu0
  %v4446 = vadd.f32 0.0, %v4445
  %4447 = vmatmul.f32.gmra.mxu0 %v4333
  %v4448 = vpop.f32.mrf.mxu0
  %v4449 = vadd.f32 0.0, %v4448
  %4450 = vmatmul.f32.gmra.mxu0 %v4336
  %v4451 = vpop.f32.mrf.mxu0
  %v4452 = vadd.f32 0.0, %v4451
  %4453 = vmatmul.f32.gmra.mxu0 %v4339
  %v4454 = vpop.f32.mrf.mxu0
  %v4455 = vadd.f32 0.0, %v4454
  %4456 = vmatmul.f32.gmra.mxu0 %v4342
  %v4457 = vpop.f32.mrf.mxu0
  %v4458 = vadd.f32 0.0, %v4457
  %4459 = vmatmul.f32.gmra.mxu0 %v4345
  %v4460 = vpop.f32.mrf.mxu0
  %v4461 = vadd.f32 0.0, %v4460
  %4462 = vmatmul.f32.gmra.mxu0 %v4348
  %v4463 = vpop.f32.mrf.mxu0
  %v4464 = vadd.f32 0.0, %v4463
  %4465 = vmatmul.f32.gmra.mxu0 %v4351
  %v4466 = vpop.f32.mrf.mxu0
  %v4467 = vadd.f32 0.0, %v4466
  %4468 = vmatmul.f32.gmra.mxu0 %v4354
  %v4469 = vpop.f32.mrf.mxu0
  %v4470 = vadd.f32 0.0, %v4469
  %4471 = vmatmul.f32.gmra.mxu0 %v4357
  %v4472 = vpop.f32.mrf.mxu0
  %v4473 = vadd.f32 0.0, %v4472
  %4474 = vmatmul.f32.gmra.mxu0 %v4360
  %v4475 = vpop.f32.mrf.mxu0
  %v4476 = vadd.f32 0.0, %v4475
  %4477 = vmatmul.f32.gmra.mxu0 %v4363
  %v4478 = vpop.f32.mrf.mxu0
  %v4479 = vadd.f32 0.0, %v4478
  %4480 = vmatmul.f32.gmra.mxu0 %v4366
  %v4481 = vpop.f32.mrf.mxu0
  %v4482 = vadd.f32 0.0, %v4481
  %4483 = vmatmul.f32.gmra.mxu0 %v4369
  %v4484 = vpop.f32.mrf.mxu0
  %v4485 = vadd.f32 0.0, %v4484
  %4486 = vmatmul.f32.gmra.mxu0 %v4372
  %v4487 = vpop.f32.mrf.mxu0
  %v4488 = vadd.f32 0.0, %v4487
  %4489 = vdwg.mxu0
  %s4490 = scalar_lea.vmem %s2, 256
  %4491 = vst.msk [vmem:[%s4490] sm:$0xff] %vm494, %v4395
  %4492 = vst.msk [vmem:[%s4490 + $0x8] sm:$0xff] %vm494, %v4398
  %4493 = vst.msk [vmem:[%s4490 + $0x10] sm:$0xff] %vm494, %v4401
  %4494 = vst.msk [vmem:[%s4490 + $0x18] sm:$0xff] %vm494, %v4404
  %4495 = vst.msk [vmem:[%s4490 + $0x20] sm:$0xff] %vm494, %v4407
  %4496 = vst.msk [vmem:[%s4490 + $0x28] sm:$0xff] %vm494, %v4410
  %4497 = vst.msk [vmem:[%s4490 + $0x30] sm:$0xff] %vm494, %v4413
  %4498 = vst.msk [vmem:[%s4490 + $0x38] sm:$0xff] %vm494, %v4416
  %4499 = vst.msk [vmem:[%s4490 + $0x40] sm:$0xff] %vm494, %v4419
  %4500 = vst.msk [vmem:[%s4490 + $0x48] sm:$0xff] %vm494, %v4422
  %4501 = vst.msk [vmem:[%s4490 + $0x50] sm:$0xff] %vm494, %v4425
  %4502 = vst.msk [vmem:[%s4490 + $0x58] sm:$0xff] %vm494, %v4428
  %4503 = vst.msk [vmem:[%s4490 + $0x60] sm:$0xff] %vm494, %v4431
  %4504 = vst.msk [vmem:[%s4490 + $0x68] sm:$0xff] %vm494, %v4434
  %4505 = vst.msk [vmem:[%s4490 + $0x70] sm:$0xff] %vm494, %v4437
  %4506 = vst.msk [vmem:[%s4490 + $0x78] sm:$0xff] %vm494, %v4440
  %4507 = vst.msk [vmem:[%s4490 + $0x80] sm:$0xff] %vm494, %v4443
  %4508 = vst.msk [vmem:[%s4490 + $0x88] sm:$0xff] %vm494, %v4446
  %4509 = vst.msk [vmem:[%s4490 + $0x90] sm:$0xff] %vm494, %v4449
  %4510 = vst.msk [vmem:[%s4490 + $0x98] sm:$0xff] %vm494, %v4452
  %4511 = vst.msk [vmem:[%s4490 + $0xa0] sm:$0xff] %vm494, %v4455
  %4512 = vst.msk [vmem:[%s4490 + $0xa8] sm:$0xff] %vm494, %v4458
  %4513 = vst.msk [vmem:[%s4490 + $0xb0] sm:$0xff] %vm494, %v4461
  %4514 = vst.msk [vmem:[%s4490 + $0xb8] sm:$0xff] %vm494, %v4464
  %4515 = vst.msk [vmem:[%s4490 + $0xc0] sm:$0xff] %vm494, %v4467
  %4516 = vst.msk [vmem:[%s4490 + $0xc8] sm:$0xff] %vm494, %v4470
  %4517 = vst.msk [vmem:[%s4490 + $0xd0] sm:$0xff] %vm494, %v4473
  %4518 = vst.msk [vmem:[%s4490 + $0xd8] sm:$0xff] %vm494, %v4476
  %4519 = vst.msk [vmem:[%s4490 + $0xe0] sm:$0xff] %vm494, %v4479
  %4520 = vst.msk [vmem:[%s4490 + $0xe8] sm:$0xff] %vm494, %v4482
  %4521 = vst.msk [vmem:[%s4490 + $0xf0] sm:$0xff] %vm494, %v4485
  %4522 = vst.msk [vmem:[%s4490 + $0xf8] sm:$0xff] %vm494, %v4488
  %v4523 = vsel %vm494, %v4395, 0.0
  %v4524 = vsel %vm494, %v4398, 0.0
  %v4525 = vadd.f32 %v4523, %v4524
  %v4526 = vsel %vm494, %v4401, 0.0
  %v4527 = vadd.f32 %v4525, %v4526
  %v4528 = vsel %vm494, %v4404, 0.0
  %v4529 = vadd.f32 %v4527, %v4528
  %v4530 = vsel %vm494, %v4407, 0.0
  %v4531 = vadd.f32 %v4529, %v4530
  %v4532 = vsel %vm494, %v4410, 0.0
  %v4533 = vadd.f32 %v4531, %v4532
  %v4534 = vsel %vm494, %v4413, 0.0
  %v4535 = vadd.f32 %v4533, %v4534
  %v4536 = vsel %vm494, %v4416, 0.0
  %v4537 = vadd.f32 %v4535, %v4536
  %v4538 = vsel %vm494, %v4419, 0.0
  %v4539 = vadd.f32 %v4537, %v4538
  %v4540 = vsel %vm494, %v4422, 0.0
  %v4541 = vadd.f32 %v4539, %v4540
  %v4542 = vsel %vm494, %v4425, 0.0
  %v4543 = vadd.f32 %v4541, %v4542
  %v4544 = vsel %vm494, %v4428, 0.0
  %v4545 = vadd.f32 %v4543, %v4544
  %v4546 = vsel %vm494, %v4431, 0.0
  %v4547 = vadd.f32 %v4545, %v4546
  %v4548 = vsel %vm494, %v4434, 0.0
  %v4549 = vadd.f32 %v4547, %v4548
  %v4550 = vsel %vm494, %v4437, 0.0
  %v4551 = vadd.f32 %v4549, %v4550
  %v4552 = vsel %vm494, %v4440, 0.0
  %v4553 = vadd.f32 %v4551, %v4552
  %v4554 = vsel %vm494, %v4443, 0.0
  %v4555 = vadd.f32 %v4553, %v4554
  %v4556 = vsel %vm494, %v4446, 0.0
  %v4557 = vadd.f32 %v4555, %v4556
  %v4558 = vsel %vm494, %v4449, 0.0
  %v4559 = vadd.f32 %v4557, %v4558
  %v4560 = vsel %vm494, %v4452, 0.0
  %v4561 = vadd.f32 %v4559, %v4560
  %v4562 = vsel %vm494, %v4455, 0.0
  %v4563 = vadd.f32 %v4561, %v4562
  %v4564 = vsel %vm494, %v4458, 0.0
  %v4565 = vadd.f32 %v4563, %v4564
  %v4566 = vsel %vm494, %v4461, 0.0
  %v4567 = vadd.f32 %v4565, %v4566
  %v4568 = vsel %vm494, %v4464, 0.0
  %v4569 = vadd.f32 %v4567, %v4568
  %v4570 = vsel %vm494, %v4467, 0.0
  %v4571 = vadd.f32 %v4569, %v4570
  %v4572 = vsel %vm494, %v4470, 0.0
  %v4573 = vadd.f32 %v4571, %v4572
  %v4574 = vsel %vm494, %v4473, 0.0
  %v4575 = vadd.f32 %v4573, %v4574
  %v4576 = vsel %vm494, %v4476, 0.0
  %v4577 = vadd.f32 %v4575, %v4576
  %v4578 = vsel %vm494, %v4479, 0.0
  %v4579 = vadd.f32 %v4577, %v4578
  %v4580 = vsel %vm494, %v4482, 0.0
  %v4581 = vadd.f32 %v4579, %v4580
  %v4582 = vsel %vm494, %v4485, 0.0
  %v4583 = vadd.f32 %v4581, %v4582
  %v4584 = vsel %vm494, %v4488, 0.0
  %v4585 = vadd.f32 %v4583, %v4584
  %v4586 = vrot.slane %v4585, 4
  %v4587 = vadd.f32 %v4585, %v4586
  %v4588 = vrot.slane %v4587, 2
  %v4589 = vadd.f32 %v4587, %v4588
  %v4590 = vrot.slane %v4589, 1
  %v4591 = vadd.f32 %v4589, %v4590
  %v4592 = vmul.f32 %v4591, 0.00390625
  %v4593 = vsub.f32 %v4395, %v4592
  %v4594 = vsub.f32 %v4398, %v4592
  %v4595 = vsub.f32 %v4401, %v4592
  %v4596 = vsub.f32 %v4404, %v4592
  %v4597 = vsub.f32 %v4407, %v4592
  %v4598 = vsub.f32 %v4410, %v4592
  %v4599 = vsub.f32 %v4413, %v4592
  %v4600 = vsub.f32 %v4416, %v4592
  %v4601 = vsub.f32 %v4419, %v4592
  %v4602 = vsub.f32 %v4422, %v4592
  %v4603 = vsub.f32 %v4425, %v4592
  %v4604 = vsub.f32 %v4428, %v4592
  %v4605 = vsub.f32 %v4431, %v4592
  %v4606 = vsub.f32 %v4434, %v4592
  %v4607 = vsub.f32 %v4437, %v4592
  %v4608 = vsub.f32 %v4440, %v4592
  %v4609 = vsub.f32 %v4443, %v4592
  %v4610 = vsub.f32 %v4446, %v4592
  %v4611 = vsub.f32 %v4449, %v4592
  %v4612 = vsub.f32 %v4452, %v4592
  %v4613 = vsub.f32 %v4455, %v4592
  %v4614 = vsub.f32 %v4458, %v4592
  %v4615 = vsub.f32 %v4461, %v4592
  %v4616 = vsub.f32 %v4464, %v4592
  %v4617 = vsub.f32 %v4467, %v4592
  %v4618 = vsub.f32 %v4470, %v4592
  %v4619 = vsub.f32 %v4473, %v4592
  %v4620 = vsub.f32 %v4476, %v4592
  %v4621 = vsub.f32 %v4479, %v4592
  %v4622 = vsub.f32 %v4482, %v4592
  %v4623 = vsub.f32 %v4485, %v4592
  %v4624 = vsub.f32 %v4488, %v4592
  %v4625 = vmul.f32 %v4593, %v4593
  %v4626 = vmul.f32 %v4594, %v4594
  %v4627 = vmul.f32 %v4595, %v4595
  %v4628 = vmul.f32 %v4596, %v4596
  %v4629 = vmul.f32 %v4597, %v4597
  %v4630 = vmul.f32 %v4598, %v4598
  %v4631 = vmul.f32 %v4599, %v4599
  %v4632 = vmul.f32 %v4600, %v4600
  %v4633 = vmul.f32 %v4601, %v4601
  %v4634 = vmul.f32 %v4602, %v4602
  %v4635 = vmul.f32 %v4603, %v4603
  %v4636 = vmul.f32 %v4604, %v4604
  %v4637 = vmul.f32 %v4605, %v4605
  %v4638 = vmul.f32 %v4606, %v4606
  %v4639 = vmul.f32 %v4607, %v4607
  %v4640 = vmul.f32 %v4608, %v4608
  %v4641 = vmul.f32 %v4609, %v4609
  %v4642 = vmul.f32 %v4610, %v4610
  %v4643 = vmul.f32 %v4611, %v4611
  %v4644 = vmul.f32 %v4612, %v4612
  %v4645 = vmul.f32 %v4613, %v4613
  %v4646 = vmul.f32 %v4614, %v4614
  %v4647 = vmul.f32 %v4615, %v4615
  %v4648 = vmul.f32 %v4616, %v4616
  %v4649 = vmul.f32 %v4617, %v4617
  %v4650 = vmul.f32 %v4618, %v4618
  %v4651 = vmul.f32 %v4619, %v4619
  %v4652 = vmul.f32 %v4620, %v4620
  %v4653 = vmul.f32 %v4621, %v4621
  %v4654 = vmul.f32 %v4622, %v4622
  %v4655 = vmul.f32 %v4623, %v4623
  %v4656 = vmul.f32 %v4624, %v4624
  %v4657 = vsel %vm494, %v4625, 0.0
  %v4658 = vsel %vm494, %v4626, 0.0
  %v4659 = vadd.f32 %v4657, %v4658
  %v4660 = vsel %vm494, %v4627, 0.0
  %v4661 = vadd.f32 %v4659, %v4660
  %v4662 = vsel %vm494, %v4628, 0.0
  %v4663 = vadd.f32 %v4661, %v4662
  %v4664 = vsel %vm494, %v4629, 0.0
  %v4665 = vadd.f32 %v4663, %v4664
  %v4666 = vsel %vm494, %v4630, 0.0
  %v4667 = vadd.f32 %v4665, %v4666
  %v4668 = vsel %vm494, %v4631, 0.0
  %v4669 = vadd.f32 %v4667, %v4668
  %v4670 = vsel %vm494, %v4632, 0.0
  %v4671 = vadd.f32 %v4669, %v4670
  %v4672 = vsel %vm494, %v4633, 0.0
  %v4673 = vadd.f32 %v4671, %v4672
  %v4674 = vsel %vm494, %v4634, 0.0
  %v4675 = vadd.f32 %v4673, %v4674
  %v4676 = vsel %vm494, %v4635, 0.0
  %v4677 = vadd.f32 %v4675, %v4676
  %v4678 = vsel %vm494, %v4636, 0.0
  %v4679 = vadd.f32 %v4677, %v4678
  %v4680 = vsel %vm494, %v4637, 0.0
  %v4681 = vadd.f32 %v4679, %v4680
  %v4682 = vsel %vm494, %v4638, 0.0
  %v4683 = vadd.f32 %v4681, %v4682
  %v4684 = vsel %vm494, %v4639, 0.0
  %v4685 = vadd.f32 %v4683, %v4684
  %v4686 = vsel %vm494, %v4640, 0.0
  %v4687 = vadd.f32 %v4685, %v4686
  %v4688 = vsel %vm494, %v4641, 0.0
  %v4689 = vadd.f32 %v4687, %v4688
  %v4690 = vsel %vm494, %v4642, 0.0
  %v4691 = vadd.f32 %v4689, %v4690
  %v4692 = vsel %vm494, %v4643, 0.0
  %v4693 = vadd.f32 %v4691, %v4692
  %v4694 = vsel %vm494, %v4644, 0.0
  %v4695 = vadd.f32 %v4693, %v4694
  %v4696 = vsel %vm494, %v4645, 0.0
  %v4697 = vadd.f32 %v4695, %v4696
  %v4698 = vsel %vm494, %v4646, 0.0
  %v4699 = vadd.f32 %v4697, %v4698
  %v4700 = vsel %vm494, %v4647, 0.0
  %v4701 = vadd.f32 %v4699, %v4700
  %v4702 = vsel %vm494, %v4648, 0.0
  %v4703 = vadd.f32 %v4701, %v4702
  %v4704 = vsel %vm494, %v4649, 0.0
  %v4705 = vadd.f32 %v4703, %v4704
  %v4706 = vsel %vm494, %v4650, 0.0
  %v4707 = vadd.f32 %v4705, %v4706
  %v4708 = vsel %vm494, %v4651, 0.0
  %v4709 = vadd.f32 %v4707, %v4708
  %v4710 = vsel %vm494, %v4652, 0.0
  %v4711 = vadd.f32 %v4709, %v4710
  %v4712 = vsel %vm494, %v4653, 0.0
  %v4713 = vadd.f32 %v4711, %v4712
  %v4714 = vsel %vm494, %v4654, 0.0
  %v4715 = vadd.f32 %v4713, %v4714
  %v4716 = vsel %vm494, %v4655, 0.0
  %v4717 = vadd.f32 %v4715, %v4716
  %v4718 = vsel %vm494, %v4656, 0.0
  %v4719 = vadd.f32 %v4717, %v4718
  %v4720 = vrot.slane %v4719, 4
  %v4721 = vadd.f32 %v4719, %v4720
  %v4722 = vrot.slane %v4721, 2
  %v4723 = vadd.f32 %v4721, %v4722
  %v4724 = vrot.slane %v4723, 1
  %v4725 = vadd.f32 %v4723, %v4724
  %v4726 = vsel %vm2684, %v4591, %v4725
  %s4727 = scalar_lea.vmem %s3, 2
  %4728 = vst.msk [vmem:[%s4727] sm:$0x3] %vm2686, %v4726
  // Predicated region
  $region10: #{basic_block_forward_nhwc.3} parent=0 // pred_check
    _
  $region11: #{basic_block_forward_nhwc.3} parent=0 // pred_check_branch
    %4730 = sbr.rel (0) target = $region13
  $region12: #{basic_block_forward_nhwc.3} parent=0 // pred_region
    _
  $region13: #{basic_block_forward_nhwc.3} parent=0 // pred_fallthru
    _
  // Predicated region
  $region14: #{basic_block_forward_nhwc.3} parent=0 // pred_check
    _
  $region15: #{basic_block_forward_nhwc.3} parent=0 // pred_check_branch
    %4732 = sbr.rel (0) target = $region17
  $region16: #{basic_block_forward_nhwc.3} parent=0 // pred_region
    _
  $region17: #{basic_block_forward_nhwc.3} parent=0 // pred_fallthru
    _
  // Predicated region
  $region18: #{basic_block_forward_nhwc.3} parent=0 // pred_check
    _
  $region19: #{basic_block_forward_nhwc.3} parent=0 // pred_check_branch
    %4734 = sbr.rel (0) target = $region21
  $region20: #{basic_block_forward_nhwc.3} parent=0 // pred_region
    _
  $region21: #{basic_block_forward_nhwc.3} parent=0 // pred_fallthru
    _
  // Predicated region
  $region22: #{basic_block_forward_nhwc.3} parent=0 // pred_check
    _
  $region23: #{basic_block_forward_nhwc.3} parent=0 // pred_check_branch
    %4736 = sbr.rel (0) target = $region25
  $region24: #{basic_block_forward_nhwc.3} parent=0 // pred_region
    _
  $region25: #{basic_block_forward_nhwc.3} parent=0 // pred_fallthru
    _

// kernel: basic_block_forward_nhwc.4
$region0: #{basic_block_forward_nhwc.4}
  #allocation0 [shape = 'u32[]', space=smem, size = 0x4, offset = 0x4, fixed_abs, tag = 'smem constant byte address 0x4 - core index']
  #allocation1 [shape = 'u32[72,128]{1,0:T(1,128)}', space=vmem, size = 0x9000, scoped, tag = 'internal scratch']
  #allocation2 [shape = 'f32[640,4]{1,0:T(8,128)}', space=vmem, size = 0x50000, scoped, tag = 'scratch operand']
  %s0 = inlined_call_operand.vmem [shape: f32[2,256,4], index: 0, kind: input, shape index: {}]
  %s1 = inlined_call_operand.vmem [shape: f32[1,4], index: 1, kind: input, shape index: {}]
  %s2 = inlined_call_operand.vmem [shape: f32[1,4], index: 2, kind: input, shape index: {}]
  %s3 = inlined_call_operand.vmem [shape: f32[36,4], index: 3, kind: input, shape index: {}]
  %s4 = inlined_call_operand.vmem [shape: f32[2,256,4], index: 4, kind: output, shape index: {0}]
  %s5 = inlined_call_operand.vmem [shape: f32[2,2,4], index: 5, kind: output, shape index: {1}]
  %6 = xla_tuple %s4, %s5
  %s7 = sld [smem:[#allocation0]]
  $region34: #{basic_block_forward_nhwc.4} parent=0
    _
  %s9 = ssub.s32 1, %s7
  %s10 = scalar_select 0, %s9, %s7
  // Predicated region
  $region2: #{basic_block_forward_nhwc.4} parent=0 // pred_check
    _
  $region3: #{basic_block_forward_nhwc.4} parent=0 // pred_check_branch
    %12 = sbr.rel (0) target = $region5
  $region4: #{basic_block_forward_nhwc.4} parent=0 // pred_region
    _
  $region5: #{basic_block_forward_nhwc.4} parent=0 // pred_fallthru
    _
  // Predicated region
  $region6: #{basic_block_forward_nhwc.4} parent=0 // pred_check
    _
  $region7: #{basic_block_forward_nhwc.4} parent=0 // pred_check_branch
    %14 = sbr.rel (0) target = $region9
  $region8: #{basic_block_forward_nhwc.4} parent=0 // pred_region
    _
  $region9: #{basic_block_forward_nhwc.4} parent=0 // pred_fallthru
    _
  // Predicated region
  $region10: #{basic_block_forward_nhwc.4} parent=0 // pred_check
    _
  $region11: #{basic_block_forward_nhwc.4} parent=0 // pred_check_branch
    %16 = sbr.rel (0) target = $region13
  $region12: #{basic_block_forward_nhwc.4} parent=0 // pred_region
    _
  $region13: #{basic_block_forward_nhwc.4} parent=0 // pred_fallthru
    _
  // Predicated region
  $region14: #{basic_block_forward_nhwc.4} parent=0 // pred_check
    _
  $region15: #{basic_block_forward_nhwc.4} parent=0 // pred_check_branch
    %18 = sbr.rel (0) target = $region17
  $region16: #{basic_block_forward_nhwc.4} parent=0 // pred_region
    _
  $region17: #{basic_block_forward_nhwc.4} parent=0 // pred_fallthru
    _
  %v19 = vlaneseq
  %v20 = vshrl.u32 %v19, 7
  %v21 = vadd.s32 %v20, 8
  %v22 = vadd.s32 %v20, 16
  %v23 = vadd.s32 %v20, 24
  %v24 = vadd.s32 %v20, 32
  %v25 = vadd.s32 %v20, 40
  %v26 = vadd.s32 %v20, 48
  %v27 = vadd.s32 %v20, 56
  %v28 = vadd.s32 %v20, 64
  %v29 = vadd.s32 %v20, 72
  %v30 = vadd.s32 %v20, 80
  %v31 = vadd.s32 %v20, 88
  %v32 = vadd.s32 %v20, 96
  %v33 = vadd.s32 %v20, 104
  %v34 = vadd.s32 %v20, 112
  %v35 = vadd.s32 %v20, 120
  %v36 = vadd.s32 %v20, 128
  %v37 = vadd.s32 %v20, 136
  %v38 = vadd.s32 %v20, 144
  %v39 = vadd.s32 %v20, 152
  %v40 = vadd.s32 %v20, 160
  %v41 = vadd.s32 %v20, 168
  %v42 = vadd.s32 %v20, 176
  %v43 = vadd.s32 %v20, 184
  %v44 = vadd.s32 %v20, 192
  %v45 = vadd.s32 %v20, 200
  %v46 = vadd.s32 %v20, 208
  %v47 = vadd.s32 %v20, 216
  %v48 = vadd.s32 %v20, 224
  %v49 = vadd.s32 %v20, 232
  %v50 = vadd.s32 %v20, 240
  %v51 = vadd.s32 %v20, 248
  %vm52 = vcmp.lt.s32.totalorder %v20, 0
  %v53 = vsub.s32 0, %v20
  %v54 = vsel %vm52, %v53, %v20
  %v55 = vshrl.u32 %v54, 4
  %v56 = vand.u32 %v54, 15
  %v57 = vsub.s32 0, %v56
  %v58 = vsel %vm52, %v57, %v56
  %vm59 = vcmp.lt.s32.totalorder %v21, 0
  %v60 = vsub.s32 0, %v21
  %v61 = vsel %vm59, %v60, %v21
  %v62 = vshrl.u32 %v61, 4
  %v63 = vand.u32 %v61, 15
  %v64 = vsub.s32 0, %v63
  %v65 = vsel %vm59, %v64, %v63
  %vm66 = vcmp.lt.s32.totalorder %v22, 0
  %v67 = vsub.s32 0, %v22
  %v68 = vsel %vm66, %v67, %v22
  %v69 = vshrl.u32 %v68, 4
  %v70 = vand.u32 %v68, 15
  %v71 = vsub.s32 0, %v70
  %v72 = vsel %vm66, %v71, %v70
  %vm73 = vcmp.lt.s32.totalorder %v23, 0
  %v74 = vsub.s32 0, %v23
  %v75 = vsel %vm73, %v74, %v23
  %v76 = vshrl.u32 %v75, 4
  %v77 = vand.u32 %v75, 15
  %v78 = vsub.s32 0, %v77
  %v79 = vsel %vm73, %v78, %v77
  %vm80 = vcmp.lt.s32.totalorder %v24, 0
  %v81 = vsub.s32 0, %v24
  %v82 = vsel %vm80, %v81, %v24
  %v83 = vshrl.u32 %v82, 4
  %v84 = vand.u32 %v82, 15
  %v85 = vsub.s32 0, %v84
  %v86 = vsel %vm80, %v85, %v84
  %vm87 = vcmp.lt.s32.totalorder %v25, 0
  %v88 = vsub.s32 0, %v25
  %v89 = vsel %vm87, %v88, %v25
  %v90 = vshrl.u32 %v89, 4
  %v91 = vand.u32 %v89, 15
  %v92 = vsub.s32 0, %v91
  %v93 = vsel %vm87, %v92, %v91
  %vm94 = vcmp.lt.s32.totalorder %v26, 0
  %v95 = vsub.s32 0, %v26
  %v96 = vsel %vm94, %v95, %v26
  %v97 = vshrl.u32 %v96, 4
  %v98 = vand.u32 %v96, 15
  %v99 = vsub.s32 0, %v98
  %v100 = vsel %vm94, %v99, %v98
  %vm101 = vcmp.lt.s32.totalorder %v27, 0
  %v102 = vsub.s32 0, %v27
  %v103 = vsel %vm101, %v102, %v27
  %v104 = vshrl.u32 %v103, 4
  %v105 = vand.u32 %v103, 15
  %v106 = vsub.s32 0, %v105
  %v107 = vsel %vm101, %v106, %v105
  %vm108 = vcmp.lt.s32.totalorder %v28, 0
  %v109 = vsub.s32 0, %v28
  %v110 = vsel %vm108, %v109, %v28
  %v111 = vshrl.u32 %v110, 4
  %v112 = vand.u32 %v110, 15
  %v113 = vsub.s32 0, %v112
  %v114 = vsel %vm108, %v113, %v112
  %vm115 = vcmp.lt.s32.totalorder %v29, 0
  %v116 = vsub.s32 0, %v29
  %v117 = vsel %vm115, %v116, %v29
  %v118 = vshrl.u32 %v117, 4
  %v119 = vand.u32 %v117, 15
  %v120 = vsub.s32 0, %v119
  %v121 = vsel %vm115, %v120, %v119
  %vm122 = vcmp.lt.s32.totalorder %v30, 0
  %v123 = vsub.s32 0, %v30
  %v124 = vsel %vm122, %v123, %v30
  %v125 = vshrl.u32 %v124, 4
  %v126 = vand.u32 %v124, 15
  %v127 = vsub.s32 0, %v126
  %v128 = vsel %vm122, %v127, %v126
  %vm129 = vcmp.lt.s32.totalorder %v31, 0
  %v130 = vsub.s32 0, %v31
  %v131 = vsel %vm129, %v130, %v31
  %v132 = vshrl.u32 %v131, 4
  %v133 = vand.u32 %v131, 15
  %v134 = vsub.s32 0, %v133
  %v135 = vsel %vm129, %v134, %v133
  %vm136 = vcmp.lt.s32.totalorder %v32, 0
  %v137 = vsub.s32 0, %v32
  %v138 = vsel %vm136, %v137, %v32
  %v139 = vshrl.u32 %v138, 4
  %v140 = vand.u32 %v138, 15
  %v141 = vsub.s32 0, %v140
  %v142 = vsel %vm136, %v141, %v140
  %vm143 = vcmp.lt.s32.totalorder %v33, 0
  %v144 = vsub.s32 0, %v33
  %v145 = vsel %vm143, %v144, %v33
  %v146 = vshrl.u32 %v145, 4
  %v147 = vand.u32 %v145, 15
  %v148 = vsub.s32 0, %v147
  %v149 = vsel %vm143, %v148, %v147
  %vm150 = vcmp.lt.s32.totalorder %v34, 0
  %v151 = vsub.s32 0, %v34
  %v152 = vsel %vm150, %v151, %v34
  %v153 = vshrl.u32 %v152, 4
  %v154 = vand.u32 %v152, 15
  %v155 = vsub.s32 0, %v154
  %v156 = vsel %vm150, %v155, %v154
  %vm157 = vcmp.lt.s32.totalorder %v35, 0
  %v158 = vsub.s32 0, %v35
  %v159 = vsel %vm157, %v158, %v35
  %v160 = vshrl.u32 %v159, 4
  %v161 = vand.u32 %v159, 15
  %v162 = vsub.s32 0, %v161
  %v163 = vsel %vm157, %v162, %v161
  %vm164 = vcmp.lt.s32.totalorder %v36, 0
  %v165 = vsub.s32 0, %v36
  %v166 = vsel %vm164, %v165, %v36
  %v167 = vshrl.u32 %v166, 4
  %v168 = vand.u32 %v166, 15
  %v169 = vsub.s32 0, %v168
  %v170 = vsel %vm164, %v169, %v168
  %vm171 = vcmp.lt.s32.totalorder %v37, 0
  %v172 = vsub.s32 0, %v37
  %v173 = vsel %vm171, %v172, %v37
  %v174 = vshrl.u32 %v173, 4
  %v175 = vand.u32 %v173, 15
  %v176 = vsub.s32 0, %v175
  %v177 = vsel %vm171, %v176, %v175
  %vm178 = vcmp.lt.s32.totalorder %v38, 0
  %v179 = vsub.s32 0, %v38
  %v180 = vsel %vm178, %v179, %v38
  %v181 = vshrl.u32 %v180, 4
  %v182 = vand.u32 %v180, 15
  %v183 = vsub.s32 0, %v182
  %v184 = vsel %vm178, %v183, %v182
  %vm185 = vcmp.lt.s32.totalorder %v39, 0
  %v186 = vsub.s32 0, %v39
  %v187 = vsel %vm185, %v186, %v39
  %v188 = vshrl.u32 %v187, 4
  %v189 = vand.u32 %v187, 15
  %v190 = vsub.s32 0, %v189
  %v191 = vsel %vm185, %v190, %v189
  %vm192 = vcmp.lt.s32.totalorder %v40, 0
  %v193 = vsub.s32 0, %v40
  %v194 = vsel %vm192, %v193, %v40
  %v195 = vshrl.u32 %v194, 4
  %v196 = vand.u32 %v194, 15
  %v197 = vsub.s32 0, %v196
  %v198 = vsel %vm192, %v197, %v196
  %vm199 = vcmp.lt.s32.totalorder %v41, 0
  %v200 = vsub.s32 0, %v41
  %v201 = vsel %vm199, %v200, %v41
  %v202 = vshrl.u32 %v201, 4
  %v203 = vand.u32 %v201, 15
  %v204 = vsub.s32 0, %v203
  %v205 = vsel %vm199, %v204, %v203
  %vm206 = vcmp.lt.s32.totalorder %v42, 0
  %v207 = vsub.s32 0, %v42
  %v208 = vsel %vm206, %v207, %v42
  %v209 = vshrl.u32 %v208, 4
  %v210 = vand.u32 %v208, 15
  %v211 = vsub.s32 0, %v210
  %v212 = vsel %vm206, %v211, %v210
  %vm213 = vcmp.lt.s32.totalorder %v43, 0
  %v214 = vsub.s32 0, %v43
  %v215 = vsel %vm213, %v214, %v43
  %v216 = vshrl.u32 %v215, 4
  %v217 = vand.u32 %v215, 15
  %v218 = vsub.s32 0, %v217
  %v219 = vsel %vm213, %v218, %v217
  %vm220 = vcmp.lt.s32.totalorder %v44, 0
  %v221 = vsub.s32 0, %v44
  %v222 = vsel %vm220, %v221, %v44
  %v223 = vshrl.u32 %v222, 4
  %v224 = vand.u32 %v222, 15
  %v225 = vsub.s32 0, %v224
  %v226 = vsel %vm220, %v225, %v224
  %vm227 = vcmp.lt.s32.totalorder %v45, 0
  %v228 = vsub.s32 0, %v45
  %v229 = vsel %vm227, %v228, %v45
  %v230 = vshrl.u32 %v229, 4
  %v231 = vand.u32 %v229, 15
  %v232 = vsub.s32 0, %v231
  %v233 = vsel %vm227, %v232, %v231
  %vm234 = vcmp.lt.s32.totalorder %v46, 0
  %v235 = vsub.s32 0, %v46
  %v236 = vsel %vm234, %v235, %v46
  %v237 = vshrl.u32 %v236, 4
  %v238 = vand.u32 %v236, 15
  %v239 = vsub.s32 0, %v238
  %v240 = vsel %vm234, %v239, %v238
  %vm241 = vcmp.lt.s32.totalorder %v47, 0
  %v242 = vsub.s32 0, %v47
  %v243 = vsel %vm241, %v242, %v47
  %v244 = vshrl.u32 %v243, 4
  %v245 = vand.u32 %v243, 15
  %v246 = vsub.s32 0, %v245
  %v247 = vsel %vm241, %v246, %v245
  %vm248 = vcmp.lt.s32.totalorder %v48, 0
  %v249 = vsub.s32 0, %v48
  %v250 = vsel %vm248, %v249, %v48
  %v251 = vshrl.u32 %v250, 4
  %v252 = vand.u32 %v250, 15
  %v253 = vsub.s32 0, %v252
  %v254 = vsel %vm248, %v253, %v252
  %vm255 = vcmp.lt.s32.totalorder %v49, 0
  %v256 = vsub.s32 0, %v49
  %v257 = vsel %vm255, %v256, %v49
  %v258 = vshrl.u32 %v257, 4
  %v259 = vand.u32 %v257, 15
  %v260 = vsub.s32 0, %v259
  %v261 = vsel %vm255, %v260, %v259
  %vm262 = vcmp.lt.s32.totalorder %v50, 0
  %v263 = vsub.s32 0, %v50
  %v264 = vsel %vm262, %v263, %v50
  %v265 = vshrl.u32 %v264, 4
  %v266 = vand.u32 %v264, 15
  %v267 = vsub.s32 0, %v266
  %v268 = vsel %vm262, %v267, %v266
  %vm269 = vcmp.lt.s32.totalorder %v51, 0
  %v270 = vsub.s32 0, %v51
  %v271 = vsel %vm269, %v270, %v51
  %v272 = vshrl.u32 %v271, 4
  %v273 = vand.u32 %v271, 15
  %v274 = vsub.s32 0, %v273
  %v275 = vsel %vm269, %v274, %v273
  %vm276 = vcmp.ne.s32.totalorder %v58, 0
  %vm277 = vcmp.ne.s32.totalorder %v65, 0
  %vm278 = vcmp.ne.s32.totalorder %v72, 0
  %vm279 = vcmp.ne.s32.totalorder %v79, 0
  %vm280 = vcmp.ne.s32.totalorder %v86, 0
  %vm281 = vcmp.ne.s32.totalorder %v93, 0
  %vm282 = vcmp.ne.s32.totalorder %v100, 0
  %vm283 = vcmp.ne.s32.totalorder %v107, 0
  %vm284 = vcmp.ne.s32.totalorder %v114, 0
  %vm285 = vcmp.ne.s32.totalorder %v121, 0
  %vm286 = vcmp.ne.s32.totalorder %v128, 0
  %vm287 = vcmp.ne.s32.totalorder %v135, 0
  %vm288 = vcmp.ne.s32.totalorder %v142, 0
  %vm289 = vcmp.ne.s32.totalorder %v149, 0
  %vm290 = vcmp.ne.s32.totalorder %v156, 0
  %vm291 = vcmp.ne.s32.totalorder %v163, 0
  %vm292 = vcmp.ne.s32.totalorder %v170, 0
  %vm293 = vcmp.ne.s32.totalorder %v177, 0
  %vm294 = vcmp.ne.s32.totalorder %v184, 0
  %vm295 = vcmp.ne.s32.totalorder %v191, 0
  %vm296 = vcmp.ne.s32.totalorder %v198, 0
  %vm297 = vcmp.ne.s32.totalorder %v205, 0
  %vm298 = vcmp.ne.s32.totalorder %v212, 0
  %vm299 = vcmp.ne.s32.totalorder %v219, 0
  %vm300 = vcmp.ne.s32.totalorder %v226, 0
  %vm301 = vcmp.ne.s32.totalorder %v233, 0
  %vm302 = vcmp.ne.s32.totalorder %v240, 0
  %vm303 = vcmp.ne.s32.totalorder %v247, 0
  %vm304 = vcmp.ne.s32.totalorder %v254, 0
  %vm305 = vcmp.ne.s32.totalorder %v261, 0
  %vm306 = vcmp.ne.s32.totalorder %v268, 0
  %vm307 = vcmp.ne.s32.totalorder %v275, 0
  %vm308 = vcmp.lt.s32.totalorder %v58, 0
  %vm309 = vcmp.lt.s32.totalorder %v65, 0
  %vm310 = vcmp.lt.s32.totalorder %v72, 0
  %vm311 = vcmp.lt.s32.totalorder %v79, 0
  %vm312 = vcmp.lt.s32.totalorder %v86, 0
  %vm313 = vcmp.lt.s32.totalorder %v93, 0
  %vm314 = vcmp.lt.s32.totalorder %v100, 0
  %vm315 = vcmp.lt.s32.totalorder %v107, 0
  %vm316 = vcmp.lt.s32.totalorder %v114, 0
  %vm317 = vcmp.lt.s32.totalorder %v121, 0
  %vm318 = vcmp.lt.s32.totalorder %v128, 0
  %vm319 = vcmp.lt.s32.totalorder %v135, 0
  %vm320 = vcmp.lt.s32.totalorder %v142, 0
  %vm321 = vcmp.lt.s32.totalorder %v149, 0
  %vm322 = vcmp.lt.s32.totalorder %v156, 0
  %vm323 = vcmp.lt.s32.totalorder %v163, 0
  %vm324 = vcmp.lt.s32.totalorder %v170, 0
  %vm325 = vcmp.lt.s32.totalorder %v177, 0
  %vm326 = vcmp.lt.s32.totalorder %v184, 0
  %vm327 = vcmp.lt.s32.totalorder %v191, 0
  %vm328 = vcmp.lt.s32.totalorder %v198, 0
  %vm329 = vcmp.lt.s32.totalorder %v205, 0
  %vm330 = vcmp.lt.s32.totalorder %v212, 0
  %vm331 = vcmp.lt.s32.totalorder %v219, 0
  %vm332 = vcmp.lt.s32.totalorder %v226, 0
  %vm333 = vcmp.lt.s32.totalorder %v233, 0
  %vm334 = vcmp.lt.s32.totalorder %v240, 0
  %vm335 = vcmp.lt.s32.totalorder %v247, 0
  %vm336 = vcmp.lt.s32.totalorder %v254, 0
  %vm337 = vcmp.lt.s32.totalorder %v261, 0
  %vm338 = vcmp.lt.s32.totalorder %v268, 0
  %vm339 = vcmp.lt.s32.totalorder %v275, 0
  %vm340 = vmand %vm308, %vm276
  %vm341 = vmand %vm309, %vm277
  %vm342 = vmand %vm310, %vm278
  %vm343 = vmand %vm311, %vm279
  %vm344 = vmand %vm312, %vm280
  %vm345 = vmand %vm313, %vm281
  %vm346 = vmand %vm314, %vm282
  %vm347 = vmand %vm315, %vm283
  %vm348 = vmand %vm316, %vm284
  %vm349 = vmand %vm317, %vm285
  %vm350 = vmand %vm318, %vm286
  %vm351 = vmand %vm319, %vm287
  %vm352 = vmand %vm320, %vm288
  %vm353 = vmand %vm321, %vm289
  %vm354 = vmand %vm322, %vm290
  %vm355 = vmand %vm323, %vm291
  %vm356 = vmand %vm324, %vm292
  %vm357 = vmand %vm325, %vm293
  %vm358 = vmand %vm326, %vm294
  %vm359 = vmand %vm327, %vm295
  %vm360 = vmand %vm328, %vm296
  %vm361 = vmand %vm329, %vm297
  %vm362 = vmand %vm330, %vm298
  %vm363 = vmand %vm331, %vm299
  %vm364 = vmand %vm332, %vm300
  %vm365 = vmand %vm333, %vm301
  %vm366 = vmand %vm334, %vm302
  %vm367 = vmand %vm335, %vm303
  %vm368 = vmand %vm336, %vm304
  %vm369 = vmand %vm337, %vm305
  %vm370 = vmand %vm338, %vm306
  %vm371 = vmand %vm339, %vm307
  %v372 = vadd.s32 %v58, 16
  %v373 = vadd.s32 %v65, 16
  %v374 = vadd.s32 %v72, 16
  %v375 = vadd.s32 %v79, 16
  %v376 = vadd.s32 %v86, 16
  %v377 = vadd.s32 %v93, 16
  %v378 = vadd.s32 %v100, 16
  %v379 = vadd.s32 %v107, 16
  %v380 = vadd.s32 %v114, 16
  %v381 = vadd.s32 %v121, 16
  %v382 = vadd.s32 %v128, 16
  %v383 = vadd.s32 %v135, 16
  %v384 = vadd.s32 %v142, 16
  %v385 = vadd.s32 %v149, 16
  %v386 = vadd.s32 %v156, 16
  %v387 = vadd.s32 %v163, 16
  %v388 = vadd.s32 %v170, 16
  %v389 = vadd.s32 %v177, 16
  %v390 = vadd.s32 %v184, 16
  %v391 = vadd.s32 %v191, 16
  %v392 = vadd.s32 %v198, 16
  %v393 = vadd.s32 %v205, 16
  %v394 = vadd.s32 %v212, 16
  %v395 = vadd.s32 %v219, 16
  %v396 = vadd.s32 %v226, 16
  %v397 = vadd.s32 %v233, 16
  %v398 = vadd.s32 %v240, 16
  %v399 = vadd.s32 %v247, 16
  %v400 = vadd.s32 %v254, 16
  %v401 = vadd.s32 %v261, 16
  %v402 = vadd.s32 %v268, 16
  %v403 = vadd.s32 %v275, 16
  %v404 = vsel %vm340, %v372, %v58
  %v405 = vsel %vm341, %v373, %v65
  %v406 = vsel %vm342, %v374, %v72
  %v407 = vsel %vm343, %v375, %v79
  %v408 = vsel %vm344, %v376, %v86
  %v409 = vsel %vm345, %v377, %v93
  %v410 = vsel %vm346, %v378, %v100
  %v411 = vsel %vm347, %v379, %v107
  %v412 = vsel %vm348, %v380, %v114
  %v413 = vsel %vm349, %v381, %v121
  %v414 = vsel %vm350, %v382, %v128
  %v415 = vsel %vm351, %v383, %v135
  %v416 = vsel %vm352, %v384, %v142
  %v417 = vsel %vm353, %v385, %v149
  %v418 = vsel %vm354, %v386, %v156
  %v419 = vsel %vm355, %v387, %v163
  %v420 = vsel %vm356, %v388, %v170
  %v421 = vsel %vm357, %v389, %v177
  %v422 = vsel %vm358, %v390, %v184
  %v423 = vsel %vm359, %v391, %v191
  %v424 = vsel %vm360, %v392, %v198
  %v425 = vsel %vm361, %v393, %v205
  %v426 = vsel %vm362, %v394, %v212
  %v427 = vsel %vm363, %v395, %v219
  %v428 = vsel %vm364, %v396, %v226
  %v429 = vsel %vm365, %v397, %v233
  %v430 = vsel %vm366, %v398, %v240
  %v431 = vsel %vm367, %v399, %v247
  %v432 = vsel %vm368, %v400, %v254
  %v433 = vsel %vm369, %v401, %v261
  %v434 = vsel %vm370, %v402, %v268
  %v435 = vsel %vm371, %v403, %v275
  %vm436 = vcmp.gt.s32.totalorder %v404, 0
  %vm437 = vcmp.gt.s32.totalorder %v405, 0
  %vm438 = vcmp.gt.s32.totalorder %v406, 0
  %vm439 = vcmp.gt.s32.totalorder %v407, 0
  %vm440 = vcmp.gt.s32.totalorder %v408, 0
  %vm441 = vcmp.gt.s32.totalorder %v409, 0
  %vm442 = vcmp.gt.s32.totalorder %v410, 0
  %vm443 = vcmp.gt.s32.totalorder %v411, 0
  %vm444 = vcmp.gt.s32.totalorder %v412, 0
  %vm445 = vcmp.gt.s32.totalorder %v413, 0
  %vm446 = vcmp.gt.s32.totalorder %v414, 0
  %vm447 = vcmp.gt.s32.totalorder %v415, 0
  %vm448 = vcmp.gt.s32.totalorder %v416, 0
  %vm449 = vcmp.gt.s32.totalorder %v417, 0
  %vm450 = vcmp.gt.s32.totalorder %v418, 0
  %vm451 = vcmp.gt.s32.totalorder %v419, 0
  %vm452 = vcmp.gt.s32.totalorder %v420, 0
  %vm453 = vcmp.gt.s32.totalorder %v421, 0
  %vm454 = vcmp.gt.s32.totalorder %v422, 0
  %vm455 = vcmp.gt.s32.totalorder %v423, 0
  %vm456 = vcmp.gt.s32.totalorder %v424, 0
  %vm457 = vcmp.gt.s32.totalorder %v425, 0
  %vm458 = vcmp.gt.s32.totalorder %v426, 0
  %vm459 = vcmp.gt.s32.totalorder %v427, 0
  %vm460 = vcmp.gt.s32.totalorder %v428, 0
  %vm461 = vcmp.gt.s32.totalorder %v429, 0
  %vm462 = vcmp.gt.s32.totalorder %v430, 0
  %vm463 = vcmp.gt.s32.totalorder %v431, 0
  %vm464 = vcmp.gt.s32.totalorder %v432, 0
  %vm465 = vcmp.gt.s32.totalorder %v433, 0
  %vm466 = vcmp.gt.s32.totalorder %v434, 0
  %vm467 = vcmp.gt.s32.totalorder %v435, 0
  %vm468 = vcmp.lt.s32.totalorder %v404, 15
  %vm469 = vcmp.lt.s32.totalorder %v405, 15
  %vm470 = vcmp.lt.s32.totalorder %v406, 15
  %vm471 = vcmp.lt.s32.totalorder %v407, 15
  %vm472 = vcmp.lt.s32.totalorder %v408, 15
  %vm473 = vcmp.lt.s32.totalorder %v409, 15
  %vm474 = vcmp.lt.s32.totalorder %v410, 15
  %vm475 = vcmp.lt.s32.totalorder %v411, 15
  %vm476 = vcmp.lt.s32.totalorder %v412, 15
  %vm477 = vcmp.lt.s32.totalorder %v413, 15
  %vm478 = vcmp.lt.s32.totalorder %v414, 15
  %vm479 = vcmp.lt.s32.totalorder %v415, 15
  %vm480 = vcmp.lt.s32.totalorder %v416, 15
  %vm481 = vcmp.lt.s32.totalorder %v417, 15
  %vm482 = vcmp.lt.s32.totalorder %v418, 15
  %vm483 = vcmp.lt.s32.totalorder %v419, 15
  %vm484 = vcmp.lt.s32.totalorder %v420, 15
  %vm485 = vcmp.lt.s32.totalorder %v421, 15
  %vm486 = vcmp.lt.s32.totalorder %v422, 15
  %vm487 = vcmp.lt.s32.totalorder %v423, 15
  %vm488 = vcmp.lt.s32.totalorder %v424, 15
  %vm489 = vcmp.lt.s32.totalorder %v425, 15
  %vm490 = vcmp.lt.s32.totalorder %v426, 15
  %vm491 = vcmp.lt.s32.totalorder %v427, 15
  %vm492 = vcmp.lt.s32.totalorder %v428, 15
  %vm493 = vcmp.lt.s32.totalorder %v429, 15
  %vm494 = vcmp.lt.s32.totalorder %v430, 15
  %vm495 = vcmp.lt.s32.totalorder %v431, 15
  %vm496 = vcmp.lt.s32.totalorder %v432, 15
  %vm497 = vcmp.lt.s32.totalorder %v433, 15
  %vm498 = vcmp.lt.s32.totalorder %v434, 15
  %vm499 = vcmp.lt.s32.totalorder %v435, 15
  %vm500 = vcmask 31744
  %501 = vst.msk [vmem:[#allocation2] sm:$0xff] %vm500, 0.0
  %502 = vst.msk [vmem:[#allocation2 + $0x8] sm:$0xff] %vm500, 0.0
  %503 = vst.msk [vmem:[#allocation2 + $0x10] sm:$0xff] %vm500, 0.0
  %504 = vst.msk [vmem:[#allocation2 + $0x18] sm:$0xff] %vm500, 0.0
  %505 = vst.msk [vmem:[#allocation2 + $0x120] sm:$0xff] %vm500, 0.0
  %506 = vst.msk [vmem:[#allocation2 + $0x128] sm:$0xff] %vm500, 0.0
  %507 = vst.msk [vmem:[#allocation2 + $0x130] sm:$0xff] %vm500, 0.0
  %508 = vst.msk [vmem:[#allocation2 + $0x138] sm:$0xff] %vm500, 0.0
  %509 = vst.msk [vmem:[#allocation2 + $0x140] sm:$0xff] %vm500, 0.0
  %510 = vst.msk [vmem:[#allocation2 + $0x148] sm:$0xff] %vm500, 0.0
  %511 = vst.msk [vmem:[#allocation2 + $0x150] sm:$0xff] %vm500, 0.0
  %512 = vst.msk [vmem:[#allocation2 + $0x158] sm:$0xff] %vm500, 0.0
  %513 = vst.msk [vmem:[#allocation2 + $0x260] sm:$0xff] %vm500, 0.0
  %514 = vst.msk [vmem:[#allocation2 + $0x268] sm:$0xff] %vm500, 0.0
  %515 = vst.msk [vmem:[#allocation2 + $0x270] sm:$0xff] %vm500, 0.0
  %516 = vst.msk [vmem:[#allocation2 + $0x278] sm:$0xff] %vm500, 0.0
  %v517 = vld [vmem:[%s0] sm:$0xff]
  %v518 = vld [vmem:[%s0 + $0x8] sm:$0xff]
  %v519 = vld [vmem:[%s0 + $0x10] sm:$0xff]
  %v520 = vld [vmem:[%s0 + $0x18] sm:$0xff]
  %v521 = vld [vmem:[%s0 + $0x20] sm:$0xff]
  %v522 = vld [vmem:[%s0 + $0x28] sm:$0xff]
  %v523 = vld [vmem:[%s0 + $0x30] sm:$0xff]
  %v524 = vld [vmem:[%s0 + $0x38] sm:$0xff]
  %v525 = vld [vmem:[%s0 + $0x40] sm:$0xff]
  %v526 = vld [vmem:[%s0 + $0x48] sm:$0xff]
  %v527 = vld [vmem:[%s0 + $0x50] sm:$0xff]
  %v528 = vld [vmem:[%s0 + $0x58] sm:$0xff]
  %v529 = vld [vmem:[%s0 + $0x60] sm:$0xff]
  %v530 = vld [vmem:[%s0 + $0x68] sm:$0xff]
  %v531 = vld [vmem:[%s0 + $0x70] sm:$0xff]
  %v532 = vld [vmem:[%s0 + $0x78] sm:$0xff]
  %v533 = vld [vmem:[%s0 + $0x80] sm:$0xff]
  %v534 = vld [vmem:[%s0 + $0x88] sm:$0xff]
  %v535 = vld [vmem:[%s0 + $0x90] sm:$0xff]
  %v536 = vld [vmem:[%s0 + $0x98] sm:$0xff]
  %v537 = vld [vmem:[%s0 + $0xa0] sm:$0xff]
  %v538 = vld [vmem:[%s0 + $0xa8] sm:$0xff]
  %v539 = vld [vmem:[%s0 + $0xb0] sm:$0xff]
  %v540 = vld [vmem:[%s0 + $0xb8] sm:$0xff]
  %v541 = vld [vmem:[%s0 + $0xc0] sm:$0xff]
  %v542 = vld [vmem:[%s0 + $0xc8] sm:$0xff]
  %v543 = vld [vmem:[%s0 + $0xd0] sm:$0xff]
  %v544 = vld [vmem:[%s0 + $0xd8] sm:$0xff]
  %v545 = vld [vmem:[%s0 + $0xe0] sm:$0xff]
  %v546 = vld [vmem:[%s0 + $0xe8] sm:$0xff]
  %v547 = vld [vmem:[%s0 + $0xf0] sm:$0xff]
  %v548 = vld [vmem:[%s0 + $0xf8] sm:$0xff]
  %v549 = vld [vmem:[%s1] sm:$0x1]
  %v551 = vperm.slane %v549, 0
  %v553 = vmul.f32 %v517, %v551
  %v554 = vmul.f32 %v518, %v551
  %v555 = vmul.f32 %v519, %v551
  %v556 = vmul.f32 %v520, %v551
  %v557 = vmul.f32 %v521, %v551
  %v558 = vmul.f32 %v522, %v551
  %v559 = vmul.f32 %v523, %v551
  %v560 = vmul.f32 %v524, %v551
  %v561 = vmul.f32 %v525, %v551
  %v562 = vmul.f32 %v526, %v551
  %v563 = vmul.f32 %v527, %v551
  %v564 = vmul.f32 %v528, %v551
  %v565 = vmul.f32 %v529, %v551
  %v566 = vmul.f32 %v530, %v551
  %v567 = vmul.f32 %v531, %v551
  %v568 = vmul.f32 %v532, %v551
  %v569 = vmul.f32 %v533, %v551
  %v570 = vmul.f32 %v534, %v551
  %v571 = vmul.f32 %v535, %v551
  %v572 = vmul.f32 %v536, %v551
  %v573 = vmul.f32 %v537, %v551
  %v574 = vmul.f32 %v538, %v551
  %v575 = vmul.f32 %v539, %v551
  %v576 = vmul.f32 %v540, %v551
  %v577 = vmul.f32 %v541, %v551
  %v578 = vmul.f32 %v542, %v551
  %v579 = vmul.f32 %v543, %v551
  %v580 = vmul.f32 %v544, %v551
  %v581 = vmul.f32 %v545, %v551
  %v582 = vmul.f32 %v546, %v551
  %v583 = vmul.f32 %v547, %v551
  %v584 = vmul.f32 %v548, %v551
  %v585 = vld [vmem:[%s2] sm:$0x1]
  %v587 = vperm.slane %v585, 0
  %v589 = vadd.f32 %v553, %v587
  %v590 = vadd.f32 %v554, %v587
  %v591 = vadd.f32 %v555, %v587
  %v592 = vadd.f32 %v556, %v587
  %v593 = vadd.f32 %v557, %v587
  %v594 = vadd.f32 %v558, %v587
  %v595 = vadd.f32 %v559, %v587
  %v596 = vadd.f32 %v560, %v587
  %v597 = vadd.f32 %v561, %v587
  %v598 = vadd.f32 %v562, %v587
  %v599 = vadd.f32 %v563, %v587
  %v600 = vadd.f32 %v564, %v587
  %v601 = vadd.f32 %v565, %v587
  %v602 = vadd.f32 %v566, %v587
  %v603 = vadd.f32 %v567, %v587
  %v604 = vadd.f32 %v568, %v587
  %v605 = vadd.f32 %v569, %v587
  %v606 = vadd.f32 %v570, %v587
  %v607 = vadd.f32 %v571, %v587
  %v608 = vadd.f32 %v572, %v587
  %v609 = vadd.f32 %v573, %v587
  %v610 = vadd.f32 %v574, %v587
  %v611 = vadd.f32 %v575, %v587
  %v612 = vadd.f32 %v576, %v587
  %v613 = vadd.f32 %v577, %v587
  %v614 = vadd.f32 %v578, %v587
  %v615 = vadd.f32 %v579, %v587
  %v616 = vadd.f32 %v580, %v587
  %v617 = vadd.f32 %v581, %v587
  %v618 = vadd.f32 %v582, %v587
  %v619 = vadd.f32 %v583, %v587
  %v620 = vadd.f32 %v584, %v587
  %v621 = vmax.f32 %v589, 0.0
  %v622 = vmax.f32 %v590, 0.0
  %v623 = vmax.f32 %v591, 0.0
  %v624 = vmax.f32 %v592, 0.0
  %v625 = vmax.f32 %v593, 0.0
  %v626 = vmax.f32 %v594, 0.0
  %v627 = vmax.f32 %v595, 0.0
  %v628 = vmax.f32 %v596, 0.0
  %v629 = vmax.f32 %v597, 0.0
  %v630 = vmax.f32 %v598, 0.0
  %v631 = vmax.f32 %v599, 0.0
  %v632 = vmax.f32 %v600, 0.0
  %v633 = vmax.f32 %v601, 0.0
  %v634 = vmax.f32 %v602, 0.0
  %v635 = vmax.f32 %v603, 0.0
  %v636 = vmax.f32 %v604, 0.0
  %v637 = vmax.f32 %v605, 0.0
  %v638 = vmax.f32 %v606, 0.0
  %v639 = vmax.f32 %v607, 0.0
  %v640 = vmax.f32 %v608, 0.0
  %v641 = vmax.f32 %v609, 0.0
  %v642 = vmax.f32 %v610, 0.0
  %v643 = vmax.f32 %v611, 0.0
  %v644 = vmax.f32 %v612, 0.0
  %v645 = vmax.f32 %v613, 0.0
  %v646 = vmax.f32 %v614, 0.0
  %v647 = vmax.f32 %v615, 0.0
  %v648 = vmax.f32 %v616, 0.0
  %v649 = vmax.f32 %v617, 0.0
  %v650 = vmax.f32 %v618, 0.0
  %v651 = vmax.f32 %v619, 0.0
  %v652 = vmax.f32 %v620, 0.0
  %653 = vst.msk [vmem:[#allocation2 + $0x20] sm:$0xff] %vm500, %v621
  %654 = vst.msk [vmem:[#allocation2 + $0x28] sm:$0xff] %vm500, %v622
  %655 = vst.msk [vmem:[#allocation2 + $0x30] sm:$0xff] %vm500, %v623
  %656 = vst.msk [vmem:[#allocation2 + $0x38] sm:$0xff] %vm500, %v624
  %657 = vst.msk [vmem:[#allocation2 + $0x40] sm:$0xff] %vm500, %v625
  %658 = vst.msk [vmem:[#allocation2 + $0x48] sm:$0xff] %vm500, %v626
  %659 = vst.msk [vmem:[#allocation2 + $0x50] sm:$0xff] %vm500, %v627
  %660 = vst.msk [vmem:[#allocation2 + $0x58] sm:$0xff] %vm500, %v628
  %661 = vst.msk [vmem:[#allocation2 + $0x60] sm:$0xff] %vm500, %v629
  %662 = vst.msk [vmem:[#allocation2 + $0x68] sm:$0xff] %vm500, %v630
  %663 = vst.msk [vmem:[#allocation2 + $0x70] sm:$0xff] %vm500, %v631
  %664 = vst.msk [vmem:[#allocation2 + $0x78] sm:$0xff] %vm500, %v632
  %665 = vst.msk [vmem:[#allocation2 + $0x80] sm:$0xff] %vm500, %v633
  %666 = vst.msk [vmem:[#allocation2 + $0x88] sm:$0xff] %vm500, %v634
  %667 = vst.msk [vmem:[#allocation2 + $0x90] sm:$0xff] %vm500, %v635
  %668 = vst.msk [vmem:[#allocation2 + $0x98] sm:$0xff] %vm500, %v636
  %669 = vst.msk [vmem:[#allocation2 + $0xa0] sm:$0xff] %vm500, %v637
  %670 = vst.msk [vmem:[#allocation2 + $0xa8] sm:$0xff] %vm500, %v638
  %671 = vst.msk [vmem:[#allocation2 + $0xb0] sm:$0xff] %vm500, %v639
  %672 = vst.msk [vmem:[#allocation2 + $0xb8] sm:$0xff] %vm500, %v640
  %673 = vst.msk [vmem:[#allocation2 + $0xc0] sm:$0xff] %vm500, %v641
  %674 = vst.msk [vmem:[#allocation2 + $0xc8] sm:$0xff] %vm500, %v642
  %675 = vst.msk [vmem:[#allocation2 + $0xd0] sm:$0xff] %vm500, %v643
  %676 = vst.msk [vmem:[#allocation2 + $0xd8] sm:$0xff] %vm500, %v644
  %677 = vst.msk [vmem:[#allocation2 + $0xe0] sm:$0xff] %vm500, %v645
  %678 = vst.msk [vmem:[#allocation2 + $0xe8] sm:$0xff] %vm500, %v646
  %679 = vst.msk [vmem:[#allocation2 + $0xf0] sm:$0xff] %vm500, %v647
  %680 = vst.msk [vmem:[#allocation2 + $0xf8] sm:$0xff] %vm500, %v648
  %681 = vst.msk [vmem:[#allocation2 + $0x100] sm:$0xff] %vm500, %v649
  %682 = vst.msk [vmem:[#allocation2 + $0x108] sm:$0xff] %vm500, %v650
  %683 = vst.msk [vmem:[#allocation2 + $0x110] sm:$0xff] %vm500, %v651
  %684 = vst.msk [vmem:[#allocation2 + $0x118] sm:$0xff] %vm500, %v652
  %v685 = vld [vmem:[#allocation2 + $0xf] sm:$0xff]
  %v686 = vld [vmem:[#allocation2 + $0x17] sm:$0xff]
  %v687 = vld [vmem:[#allocation2 + $0x1f] sm:$0xff]
  %v688 = vld [vmem:[#allocation2 + $0x27] sm:$0xff]
  %v689 = vld [vmem:[#allocation2 + $0x2f] sm:$0xff]
  %v690 = vld [vmem:[#allocation2 + $0x37] sm:$0xff]
  %v691 = vld [vmem:[#allocation2 + $0x3f] sm:$0xff]
  %v692 = vld [vmem:[#allocation2 + $0x47] sm:$0xff]
  %v693 = vld [vmem:[#allocation2 + $0x4f] sm:$0xff]
  %v694 = vld [vmem:[#allocation2 + $0x57] sm:$0xff]
  %v695 = vld [vmem:[#allocation2 + $0x5f] sm:$0xff]
  %v696 = vld [vmem:[#allocation2 + $0x67] sm:$0xff]
  %v697 = vld [vmem:[#allocation2 + $0x6f] sm:$0xff]
  %v698 = vld [vmem:[#allocation2 + $0x77] sm:$0xff]
  %v699 = vld [vmem:[#allocation2 + $0x7f] sm:$0xff]
  %v700 = vld [vmem:[#allocation2 + $0x87] sm:$0xff]
  %v701 = vld [vmem:[#allocation2 + $0x8f] sm:$0xff]
  %v702 = vld [vmem:[#allocation2 + $0x97] sm:$0xff]
  %v703 = vld [vmem:[#allocation2 + $0x9f] sm:$0xff]
  %v704 = vld [vmem:[#allocation2 + $0xa7] sm:$0xff]
  %v705 = vld [vmem:[#allocation2 + $0xaf] sm:$0xff]
  %v706 = vld [vmem:[#allocation2 + $0xb7] sm:$0xff]
  %v707 = vld [vmem:[#allocation2 + $0xbf] sm:$0xff]
  %v708 = vld [vmem:[#allocation2 + $0xc7] sm:$0xff]
  %v709 = vld [vmem:[#allocation2 + $0xcf] sm:$0xff]
  %v710 = vld [vmem:[#allocation2 + $0xd7] sm:$0xff]
  %v711 = vld [vmem:[#allocation2 + $0xdf] sm:$0xff]
  %v712 = vld [vmem:[#allocation2 + $0xe7] sm:$0xff]
  %v713 = vld [vmem:[#allocation2 + $0xef] sm:$0xff]
  %v714 = vld [vmem:[#allocation2 + $0xf7] sm:$0xff]
  %v715 = vld [vmem:[#allocation2 + $0xff] sm:$0xff]
  %v716 = vld [vmem:[#allocation2 + $0x107] sm:$0xff]
  %v717 = vsel %vm436, 1, 0
  %v718 = vsel %vm437, 1, 0
  %v719 = vsel %vm438, 1, 0
  %v720 = vsel %vm439, 1, 0
  %v721 = vsel %vm440, 1, 0
  %v722 = vsel %vm441, 1, 0
  %v723 = vsel %vm442, 1, 0
  %v724 = vsel %vm443, 1, 0
  %v725 = vsel %vm444, 1, 0
  %v726 = vsel %vm445, 1, 0
  %v727 = vsel %vm446, 1, 0
  %v728 = vsel %vm447, 1, 0
  %v729 = vsel %vm448, 1, 0
  %v730 = vsel %vm449, 1, 0
  %v731 = vsel %vm450, 1, 0
  %v732 = vsel %vm451, 1, 0
  %v733 = vsel %vm452, 1, 0
  %v734 = vsel %vm453, 1, 0
  %v735 = vsel %vm454, 1, 0
  %v736 = vsel %vm455, 1, 0
  %v737 = vsel %vm456, 1, 0
  %v738 = vsel %vm457, 1, 0
  %v739 = vsel %vm458, 1, 0
  %v740 = vsel %vm459, 1, 0
  %v741 = vsel %vm460, 1, 0
  %v742 = vsel %vm461, 1, 0
  %v743 = vsel %vm462, 1, 0
  %v744 = vsel %vm463, 1, 0
  %v745 = vsel %vm464, 1, 0
  %v746 = vsel %vm465, 1, 0
  %v747 = vsel %vm466, 1, 0
  %v748 = vsel %vm467, 1, 0
  %vm749 = vcmp.eq.s32.totalorder %v717, 1
  %vm750 = vcmp.eq.s32.totalorder %v718, 1
  %vm751 = vcmp.eq.s32.totalorder %v719, 1
  %vm752 = vcmp.eq.s32.totalorder %v720, 1
  %vm753 = vcmp.eq.s32.totalorder %v721, 1
  %vm754 = vcmp.eq.s32.totalorder %v722, 1
  %vm755 = vcmp.eq.s32.totalorder %v723, 1
  %vm756 = vcmp.eq.s32.totalorder %v724, 1
  %vm757 = vcmp.eq.s32.totalorder %v725, 1
  %vm758 = vcmp.eq.s32.totalorder %v726, 1
  %vm759 = vcmp.eq.s32.totalorder %v727, 1
  %vm760 = vcmp.eq.s32.totalorder %v728, 1
  %vm761 = vcmp.eq.s32.totalorder %v729, 1
  %vm762 = vcmp.eq.s32.totalorder %v730, 1
  %vm763 = vcmp.eq.s32.totalorder %v731, 1
  %vm764 = vcmp.eq.s32.totalorder %v732, 1
  %vm765 = vcmp.eq.s32.totalorder %v733, 1
  %vm766 = vcmp.eq.s32.totalorder %v734, 1
  %vm767 = vcmp.eq.s32.totalorder %v735, 1
  %vm768 = vcmp.eq.s32.totalorder %v736, 1
  %vm769 = vcmp.eq.s32.totalorder %v737, 1
  %vm770 = vcmp.eq.s32.totalorder %v738, 1
  %vm771 = vcmp.eq.s32.totalorder %v739, 1
  %vm772 = vcmp.eq.s32.totalorder %v740, 1
  %vm773 = vcmp.eq.s32.totalorder %v741, 1
  %vm774 = vcmp.eq.s32.totalorder %v742, 1
  %vm775 = vcmp.eq.s32.totalorder %v743, 1
  %vm776 = vcmp.eq.s32.totalorder %v744, 1
  %vm777 = vcmp.eq.s32.totalorder %v745, 1
  %vm778 = vcmp.eq.s32.totalorder %v746, 1
  %vm779 = vcmp.eq.s32.totalorder %v747, 1
  %vm780 = vcmp.eq.s32.totalorder %v748, 1
  %v781 = vsel %vm749, %v685, 0.0
  %v782 = vsel %vm750, %v686, 0.0
  %v783 = vsel %vm751, %v687, 0.0
  %v784 = vsel %vm752, %v688, 0.0
  %v785 = vsel %vm753, %v689, 0.0
  %v786 = vsel %vm754, %v690, 0.0
  %v787 = vsel %vm755, %v691, 0.0
  %v788 = vsel %vm756, %v692, 0.0
  %v789 = vsel %vm757, %v693, 0.0
  %v790 = vsel %vm758, %v694, 0.0
  %v791 = vsel %vm759, %v695, 0.0
  %v792 = vsel %vm760, %v696, 0.0
  %v793 = vsel %vm761, %v697, 0.0
  %v794 = vsel %vm762, %v698, 0.0
  %v795 = vsel %vm763, %v699, 0.0
  %v796 = vsel %vm764, %v700, 0.0
  %v797 = vsel %vm765, %v701, 0.0
  %v798 = vsel %vm766, %v702, 0.0
  %v799 = vsel %vm767, %v703, 0.0
  %v800 = vsel %vm768, %v704, 0.0
  %v801 = vsel %vm769, %v705, 0.0
  %v802 = vsel %vm770, %v706, 0.0
  %v803 = vsel %vm771, %v707, 0.0
  %v804 = vsel %vm772, %v708, 0.0
  %v805 = vsel %vm773, %v709, 0.0
  %v806 = vsel %vm774, %v710, 0.0
  %v807 = vsel %vm775, %v711, 0.0
  %v808 = vsel %vm776, %v712, 0.0
  %v809 = vsel %vm777, %v713, 0.0
  %v810 = vsel %vm778, %v714, 0.0
  %v811 = vsel %vm779, %v715, 0.0
  %v812 = vsel %vm780, %v716, 0.0
  %v813 = vld [vmem:[#allocation2 + $0x10] sm:$0xff]
  %v814 = vld [vmem:[#allocation2 + $0x18] sm:$0xff]
  %v815 = vld [vmem:[#allocation2 + $0x20] sm:$0xff]
  %v816 = vld [vmem:[#allocation2 + $0x28] sm:$0xff]
  %v817 = vld [vmem:[#allocation2 + $0x30] sm:$0xff]
  %v818 = vld [vmem:[#allocation2 + $0x38] sm:$0xff]
  %v819 = vld [vmem:[#allocation2 + $0x40] sm:$0xff]
  %v820 = vld [vmem:[#allocation2 + $0x48] sm:$0xff]
  %v821 = vld [vmem:[#allocation2 + $0x50] sm:$0xff]
  %v822 = vld [vmem:[#allocation2 + $0x58] sm:$0xff]
  %v823 = vld [vmem:[#allocation2 + $0x60] sm:$0xff]
  %v824 = vld [vmem:[#allocation2 + $0x68] sm:$0xff]
  %v825 = vld [vmem:[#allocation2 + $0x70] sm:$0xff]
  %v826 = vld [vmem:[#allocation2 + $0x78] sm:$0xff]
  %v827 = vld [vmem:[#allocation2 + $0x80] sm:$0xff]
  %v828 = vld [vmem:[#allocation2 + $0x88] sm:$0xff]
  %v829 = vld [vmem:[#allocation2 + $0x90] sm:$0xff]
  %v830 = vld [vmem:[#allocation2 + $0x98] sm:$0xff]
  %v831 = vld [vmem:[#allocation2 + $0xa0] sm:$0xff]
  %v832 = vld [vmem:[#allocation2 + $0xa8] sm:$0xff]
  %v833 = vld [vmem:[#allocation2 + $0xb0] sm:$0xff]
  %v834 = vld [vmem:[#allocation2 + $0xb8] sm:$0xff]
  %v835 = vld [vmem:[#allocation2 + $0xc0] sm:$0xff]
  %v836 = vld [vmem:[#allocation2 + $0xc8] sm:$0xff]
  %v837 = vld [vmem:[#allocation2 + $0xd0] sm:$0xff]
  %v838 = vld [vmem:[#allocation2 + $0xd8] sm:$0xff]
  %v839 = vld [vmem:[#allocation2 + $0xe0] sm:$0xff]
  %v840 = vld [vmem:[#allocation2 + $0xe8] sm:$0xff]
  %v841 = vld [vmem:[#allocation2 + $0xf0] sm:$0xff]
  %v842 = vld [vmem:[#allocation2 + $0xf8] sm:$0xff]
  %v843 = vld [vmem:[#allocation2 + $0x100] sm:$0xff]
  %v844 = vld [vmem:[#allocation2 + $0x108] sm:$0xff]
  %v845 = vld [vmem:[#allocation2 + $0x11] sm:$0xff]
  %v846 = vld [vmem:[#allocation2 + $0x19] sm:$0xff]
  %v847 = vld [vmem:[#allocation2 + $0x21] sm:$0xff]
  %v848 = vld [vmem:[#allocation2 + $0x29] sm:$0xff]
  %v849 = vld [vmem:[#allocation2 + $0x31] sm:$0xff]
  %v850 = vld [vmem:[#allocation2 + $0x39] sm:$0xff]
  %v851 = vld [vmem:[#allocation2 + $0x41] sm:$0xff]
  %v852 = vld [vmem:[#allocation2 + $0x49] sm:$0xff]
  %v853 = vld [vmem:[#allocation2 + $0x51] sm:$0xff]
  %v854 = vld [vmem:[#allocation2 + $0x59] sm:$0xff]
  %v855 = vld [vmem:[#allocation2 + $0x61] sm:$0xff]
  %v856 = vld [vmem:[#allocation2 + $0x69] sm:$0xff]
  %v857 = vld [vmem:[#allocation2 + $0x71] sm:$0xff]
  %v858 = vld [vmem:[#allocation2 + $0x79] sm:$0xff]
  %v859 = vld [vmem:[#allocation2 + $0x81] sm:$0xff]
  %v860 = vld [vmem:[#allocation2 + $0x89] sm:$0xff]
  %v861 = vld [vmem:[#allocation2 + $0x91] sm:$0xff]
  %v862 = vld [vmem:[#allocation2 + $0x99] sm:$0xff]
  %v863 = vld [vmem:[#allocation2 + $0xa1] sm:$0xff]
  %v864 = vld [vmem:[#allocation2 + $0xa9] sm:$0xff]
  %v865 = vld [vmem:[#allocation2 + $0xb1] sm:$0xff]
  %v866 = vld [vmem:[#allocation2 + $0xb9] sm:$0xff]
  %v867 = vld [vmem:[#allocation2 + $0xc1] sm:$0xff]
  %v868 = vld [vmem:[#allocation2 + $0xc9] sm:$0xff]
  %v869 = vld [vmem:[#allocation2 + $0xd1] sm:$0xff]
  %v870 = vld [vmem:[#allocation2 + $0xd9] sm:$0xff]
  %v871 = vld [vmem:[#allocation2 + $0xe1] sm:$0xff]
  %v872 = vld [vmem:[#allocation2 + $0xe9] sm:$0xff]
  %v873 = vld [vmem:[#allocation2 + $0xf1] sm:$0xff]
  %v874 = vld [vmem:[#allocation2 + $0xf9] sm:$0xff]
  %v875 = vld [vmem:[#allocation2 + $0x101] sm:$0xff]
  %v876 = vld [vmem:[#allocation2 + $0x109] sm:$0xff]
  %v877 = vsel %vm468, 1, 0
  %v878 = vsel %vm469, 1, 0
  %v879 = vsel %vm470, 1, 0
  %v880 = vsel %vm471, 1, 0
  %v881 = vsel %vm472, 1, 0
  %v882 = vsel %vm473, 1, 0
  %v883 = vsel %vm474, 1, 0
  %v884 = vsel %vm475, 1, 0
  %v885 = vsel %vm476, 1, 0
  %v886 = vsel %vm477, 1, 0
  %v887 = vsel %vm478, 1, 0
  %v888 = vsel %vm479, 1, 0
  %v889 = vsel %vm480, 1, 0
  %v890 = vsel %vm481, 1, 0
  %v891 = vsel %vm482, 1, 0
  %v892 = vsel %vm483, 1, 0
  %v893 = vsel %vm484, 1, 0
  %v894 = vsel %vm485, 1, 0
  %v895 = vsel %vm486, 1, 0
  %v896 = vsel %vm487, 1, 0
  %v897 = vsel %vm488, 1, 0
  %v898 = vsel %vm489, 1, 0
  %v899 = vsel %vm490, 1, 0
  %v900 = vsel %vm491, 1, 0
  %v901 = vsel %vm492, 1, 0
  %v902 = vsel %vm493, 1, 0
  %v903 = vsel %vm494, 1, 0
  %v904 = vsel %vm495, 1, 0
  %v905 = vsel %vm496, 1, 0
  %v906 = vsel %vm497, 1, 0
  %v907 = vsel %vm498, 1, 0
  %v908 = vsel %vm499, 1, 0
  %vm909 = vcmp.eq.s32.totalorder %v877, 1
  %vm910 = vcmp.eq.s32.totalorder %v878, 1
  %vm911 = vcmp.eq.s32.totalorder %v879, 1
  %vm912 = vcmp.eq.s32.totalorder %v880, 1
  %vm913 = vcmp.eq.s32.totalorder %v881, 1
  %vm914 = vcmp.eq.s32.totalorder %v882, 1
  %vm915 = vcmp.eq.s32.totalorder %v883, 1
  %vm916 = vcmp.eq.s32.totalorder %v884, 1
  %vm917 = vcmp.eq.s32.totalorder %v885, 1
  %vm918 = vcmp.eq.s32.totalorder %v886, 1
  %vm919 = vcmp.eq.s32.totalorder %v887, 1
  %vm920 = vcmp.eq.s32.totalorder %v888, 1
  %vm921 = vcmp.eq.s32.totalorder %v889, 1
  %vm922 = vcmp.eq.s32.totalorder %v890, 1
  %vm923 = vcmp.eq.s32.totalorder %v891, 1
  %vm924 = vcmp.eq.s32.totalorder %v892, 1
  %vm925 = vcmp.eq.s32.totalorder %v893, 1
  %vm926 = vcmp.eq.s32.totalorder %v894, 1
  %vm927 = vcmp.eq.s32.totalorder %v895, 1
  %vm928 = vcmp.eq.s32.totalorder %v896, 1
  %vm929 = vcmp.eq.s32.totalorder %v897, 1
  %vm930 = vcmp.eq.s32.totalorder %v898, 1
  %vm931 = vcmp.eq.s32.totalorder %v899, 1
  %vm932 = vcmp.eq.s32.totalorder %v900, 1
  %vm933 = vcmp.eq.s32.totalorder %v901, 1
  %vm934 = vcmp.eq.s32.totalorder %v902, 1
  %vm935 = vcmp.eq.s32.totalorder %v903, 1
  %vm936 = vcmp.eq.s32.totalorder %v904, 1
  %vm937 = vcmp.eq.s32.totalorder %v905, 1
  %vm938 = vcmp.eq.s32.totalorder %v906, 1
  %vm939 = vcmp.eq.s32.totalorder %v907, 1
  %vm940 = vcmp.eq.s32.totalorder %v908, 1
  %v941 = vsel %vm909, %v845, 0.0
  %v942 = vsel %vm910, %v846, 0.0
  %v943 = vsel %vm911, %v847, 0.0
  %v944 = vsel %vm912, %v848, 0.0
  %v945 = vsel %vm913, %v849, 0.0
  %v946 = vsel %vm914, %v850, 0.0
  %v947 = vsel %vm915, %v851, 0.0
  %v948 = vsel %vm916, %v852, 0.0
  %v949 = vsel %vm917, %v853, 0.0
  %v950 = vsel %vm918, %v854, 0.0
  %v951 = vsel %vm919, %v855, 0.0
  %v952 = vsel %vm920, %v856, 0.0
  %v953 = vsel %vm921, %v857, 0.0
  %v954 = vsel %vm922, %v858, 0.0
  %v955 = vsel %vm923, %v859, 0.0
  %v956 = vsel %vm924, %v860, 0.0
  %v957 = vsel %vm925, %v861, 0.0
  %v958 = vsel %vm926, %v862, 0.0
  %v959 = vsel %vm927, %v863, 0.0
  %v960 = vsel %vm928, %v864, 0.0
  %v961 = vsel %vm929, %v865, 0.0
  %v962 = vsel %vm930, %v866, 0.0
  %v963 = vsel %vm931, %v867, 0.0
  %v964 = vsel %vm932, %v868, 0.0
  %v965 = vsel %vm933, %v869, 0.0
  %v966 = vsel %vm934, %v870, 0.0
  %v967 = vsel %vm935, %v871, 0.0
  %v968 = vsel %vm936, %v872, 0.0
  %v969 = vsel %vm937, %v873, 0.0
  %v970 = vsel %vm938, %v874, 0.0
  %v971 = vsel %vm939, %v875, 0.0
  %v972 = vsel %vm940, %v876, 0.0
  %v973 = vld [vmem:[#allocation2 + $0x10f] sm:$0xff]
  %v974 = vld [vmem:[#allocation2 + $0x117] sm:$0xff]
  %v975 = vsel %vm749, %v687, 0.0
  %v976 = vsel %vm750, %v688, 0.0
  %v977 = vsel %vm751, %v689, 0.0
  %v978 = vsel %vm752, %v690, 0.0
  %v979 = vsel %vm753, %v691, 0.0
  %v980 = vsel %vm754, %v692, 0.0
  %v981 = vsel %vm755, %v693, 0.0
  %v982 = vsel %vm756, %v694, 0.0
  %v983 = vsel %vm757, %v695, 0.0
  %v984 = vsel %vm758, %v696, 0.0
  %v985 = vsel %vm759, %v697, 0.0
  %v986 = vsel %vm760, %v698, 0.0
  %v987 = vsel %vm761, %v699, 0.0
  %v988 = vsel %vm762, %v700, 0.0
  %v989 = vsel %vm763, %v701, 0.0
  %v990 = vsel %vm764, %v702, 0.0
  %v991 = vsel %vm765, %v703, 0.0
  %v992 = vsel %vm766, %v704, 0.0
  %v993 = vsel %vm767, %v705, 0.0
  %v994 = vsel %vm768, %v706, 0.0
  %v995 = vsel %vm769, %v707, 0.0
  %v996 = vsel %vm770, %v708, 0.0
  %v997 = vsel %vm771, %v709, 0.0
  %v998 = vsel %vm772, %v710, 0.0
  %v999 = vsel %vm773, %v711, 0.0
  %v1000 = vsel %vm774, %v712, 0.0
  %v1001 = vsel %vm775, %v713, 0.0
  %v1002 = vsel %vm776, %v714, 0.0
  %v1003 = vsel %vm777, %v715, 0.0
  %v1004 = vsel %vm778, %v716, 0.0
  %v1005 = vsel %vm779, %v973, 0.0
  %v1006 = vsel %vm780, %v974, 0.0
  %v1007 = vld [vmem:[#allocation2 + $0x110] sm:$0xff]
  %v1008 = vld [vmem:[#allocation2 + $0x118] sm:$0xff]
  %v1009 = vld [vmem:[#allocation2 + $0x111] sm:$0xff]
  %v1010 = vld [vmem:[#allocation2 + $0x119] sm:$0xff]
  %v1011 = vsel %vm909, %v847, 0.0
  %v1012 = vsel %vm910, %v848, 0.0
  %v1013 = vsel %vm911, %v849, 0.0
  %v1014 = vsel %vm912, %v850, 0.0
  %v1015 = vsel %vm913, %v851, 0.0
  %v1016 = vsel %vm914, %v852, 0.0
  %v1017 = vsel %vm915, %v853, 0.0
  %v1018 = vsel %vm916, %v854, 0.0
  %v1019 = vsel %vm917, %v855, 0.0
  %v1020 = vsel %vm918, %v856, 0.0
  %v1021 = vsel %vm919, %v857, 0.0
  %v1022 = vsel %vm920, %v858, 0.0
  %v1023 = vsel %vm921, %v859, 0.0
  %v1024 = vsel %vm922, %v860, 0.0
  %v1025 = vsel %vm923, %v861, 0.0
  %v1026 = vsel %vm924, %v862, 0.0
  %v1027 = vsel %vm925, %v863, 0.0
  %v1028 = vsel %vm926, %v864, 0.0
  %v1029 = vsel %vm927, %v865, 0.0
  %v1030 = vsel %vm928, %v866, 0.0
  %v1031 = vsel %vm929, %v867, 0.0
  %v1032 = vsel %vm930, %v868, 0.0
  %v1033 = vsel %vm931, %v869, 0.0
  %v1034 = vsel %vm932, %v870, 0.0
  %v1035 = vsel %vm933, %v871, 0.0
  %v1036 = vsel %vm934, %v872, 0.0
  %v1037 = vsel %vm935, %v873, 0.0
  %v1038 = vsel %vm936, %v874, 0.0
  %v1039 = vsel %vm937, %v875, 0.0
  %v1040 = vsel %vm938, %v876, 0.0
  %v1041 = vsel %vm939, %v1009, 0.0
  %v1042 = vsel %vm940, %v1010, 0.0
  %v1043 = vld [vmem:[#allocation2 + $0x11f] sm:$0xff]
  %v1044 = vld [vmem:[#allocation2 + $0x127] sm:$0xff]
  %v1045 = vsel %vm749, %v689, 0.0
  %v1046 = vsel %vm750, %v690, 0.0
  %v1047 = vsel %vm751, %v691, 0.0
  %v1048 = vsel %vm752, %v692, 0.0
  %v1049 = vsel %vm753, %v693, 0.0
  %v1050 = vsel %vm754, %v694, 0.0
  %v1051 = vsel %vm755, %v695, 0.0
  %v1052 = vsel %vm756, %v696, 0.0
  %v1053 = vsel %vm757, %v697, 0.0
  %v1054 = vsel %vm758, %v698, 0.0
  %v1055 = vsel %vm759, %v699, 0.0
  %v1056 = vsel %vm760, %v700, 0.0
  %v1057 = vsel %vm761, %v701, 0.0
  %v1058 = vsel %vm762, %v702, 0.0
  %v1059 = vsel %vm763, %v703, 0.0
  %v1060 = vsel %vm764, %v704, 0.0
  %v1061 = vsel %vm765, %v705, 0.0
  %v1062 = vsel %vm766, %v706, 0.0
  %v1063 = vsel %vm767, %v707, 0.0
  %v1064 = vsel %vm768, %v708, 0.0
  %v1065 = vsel %vm769, %v709, 0.0
  %v1066 = vsel %vm770, %v710, 0.0
  %v1067 = vsel %vm771, %v711, 0.0
  %v1068 = vsel %vm772, %v712, 0.0
  %v1069 = vsel %vm773, %v713, 0.0
  %v1070 = vsel %vm774, %v714, 0.0
  %v1071 = vsel %vm775, %v715, 0.0
  %v1072 = vsel %vm776, %v716, 0.0
  %v1073 = vsel %vm777, %v973, 0.0
  %v1074 = vsel %vm778, %v974, 0.0
  %v1075 = vsel %vm779, %v1043, 0.0
  %v1076 = vsel %vm780, %v1044, 0.0
  %v1077 = vld [vmem:[#allocation2 + $0x120] sm:$0xff]
  %v1078 = vld [vmem:[#allocation2 + $0x128] sm:$0xff]
  %v1079 = vld [vmem:[#allocation2 + $0x121] sm:$0xff]
  %v1080 = vld [vmem:[#allocation2 + $0x129] sm:$0xff]
  %v1081 = vsel %vm909, %v849, 0.0
  %v1082 = vsel %vm910, %v850, 0.0
  %v1083 = vsel %vm911, %v851, 0.0
  %v1084 = vsel %vm912, %v852, 0.0
  %v1085 = vsel %vm913, %v853, 0.0
  %v1086 = vsel %vm914, %v854, 0.0
  %v1087 = vsel %vm915, %v855, 0.0
  %v1088 = vsel %vm916, %v856, 0.0
  %v1089 = vsel %vm917, %v857, 0.0
  %v1090 = vsel %vm918, %v858, 0.0
  %v1091 = vsel %vm919, %v859, 0.0
  %v1092 = vsel %vm920, %v860, 0.0
  %v1093 = vsel %vm921, %v861, 0.0
  %v1094 = vsel %vm922, %v862, 0.0
  %v1095 = vsel %vm923, %v863, 0.0
  %v1096 = vsel %vm924, %v864, 0.0
  %v1097 = vsel %vm925, %v865, 0.0
  %v1098 = vsel %vm926, %v866, 0.0
  %v1099 = vsel %vm927, %v867, 0.0
  %v1100 = vsel %vm928, %v868, 0.0
  %v1101 = vsel %vm929, %v869, 0.0
  %v1102 = vsel %vm930, %v870, 0.0
  %v1103 = vsel %vm931, %v871, 0.0
  %v1104 = vsel %vm932, %v872, 0.0
  %v1105 = vsel %vm933, %v873, 0.0
  %v1106 = vsel %vm934, %v874, 0.0
  %v1107 = vsel %vm935, %v875, 0.0
  %v1108 = vsel %vm936, %v876, 0.0
  %v1109 = vsel %vm937, %v1009, 0.0
  %v1110 = vsel %vm938, %v1010, 0.0
  %v1111 = vsel %vm939, %v1079, 0.0
  %v1112 = vsel %vm940, %v1080, 0.0
  %1145 = vrot.lane.b32.xlu0 %v813, 4
  %v1146 = vpop.permute.xlu0 %1145
  %1147 = vrot.lane.b32.xlu0 %v814, 4
  %v1148 = vpop.permute.xlu0 %1147
  %1149 = vrot.lane.b32.xlu0 %v815, 4
  %v1150 = vpop.permute.xlu0 %1149
  %1151 = vrot.lane.b32.xlu0 %v816, 4
  %v1152 = vpop.permute.xlu0 %1151
  %1153 = vrot.lane.b32.xlu0 %v817, 4
  %v1154 = vpop.permute.xlu0 %1153
  %1155 = vrot.lane.b32.xlu0 %v818, 4
  %v1156 = vpop.permute.xlu0 %1155
  %1157 = vrot.lane.b32.xlu0 %v819, 4
  %v1158 = vpop.permute.xlu0 %1157
  %1159 = vrot.lane.b32.xlu0 %v820, 4
  %v1160 = vpop.permute.xlu0 %1159
  %1161 = vrot.lane.b32.xlu0 %v821, 4
  %v1162 = vpop.permute.xlu0 %1161
  %1163 = vrot.lane.b32.xlu0 %v822, 4
  %v1164 = vpop.permute.xlu0 %1163
  %1165 = vrot.lane.b32.xlu0 %v823, 4
  %v1166 = vpop.permute.xlu0 %1165
  %1167 = vrot.lane.b32.xlu0 %v824, 4
  %v1168 = vpop.permute.xlu0 %1167
  %1169 = vrot.lane.b32.xlu0 %v825, 4
  %v1170 = vpop.permute.xlu0 %1169
  %1171 = vrot.lane.b32.xlu0 %v826, 4
  %v1172 = vpop.permute.xlu0 %1171
  %1173 = vrot.lane.b32.xlu0 %v827, 4
  %v1174 = vpop.permute.xlu0 %1173
  %1175 = vrot.lane.b32.xlu0 %v828, 4
  %v1176 = vpop.permute.xlu0 %1175
  %1177 = vrot.lane.b32.xlu0 %v829, 4
  %v1178 = vpop.permute.xlu0 %1177
  %1179 = vrot.lane.b32.xlu0 %v830, 4
  %v1180 = vpop.permute.xlu0 %1179
  %1181 = vrot.lane.b32.xlu0 %v831, 4
  %v1182 = vpop.permute.xlu0 %1181
  %1183 = vrot.lane.b32.xlu0 %v832, 4
  %v1184 = vpop.permute.xlu0 %1183
  %1185 = vrot.lane.b32.xlu0 %v833, 4
  %v1186 = vpop.permute.xlu0 %1185
  %1187 = vrot.lane.b32.xlu0 %v834, 4
  %v1188 = vpop.permute.xlu0 %1187
  %1189 = vrot.lane.b32.xlu0 %v835, 4
  %v1190 = vpop.permute.xlu0 %1189
  %1191 = vrot.lane.b32.xlu0 %v836, 4
  %v1192 = vpop.permute.xlu0 %1191
  %1193 = vrot.lane.b32.xlu0 %v837, 4
  %v1194 = vpop.permute.xlu0 %1193
  %1195 = vrot.lane.b32.xlu0 %v838, 4
  %v1196 = vpop.permute.xlu0 %1195
  %1197 = vrot.lane.b32.xlu0 %v839, 4
  %v1198 = vpop.permute.xlu0 %1197
  %1199 = vrot.lane.b32.xlu0 %v840, 4
  %v1200 = vpop.permute.xlu0 %1199
  %1201 = vrot.lane.b32.xlu0 %v841, 4
  %v1202 = vpop.permute.xlu0 %1201
  %1203 = vrot.lane.b32.xlu0 %v842, 4
  %v1204 = vpop.permute.xlu0 %1203
  %1205 = vrot.lane.b32.xlu0 %v843, 4
  %v1206 = vpop.permute.xlu0 %1205
  %1207 = vrot.lane.b32.xlu0 %v844, 4
  %v1208 = vpop.permute.xlu0 %1207
  %1273 = vrot.lane.b32.xlu0 %v941, 8
  %v1274 = vpop.permute.xlu0 %1273
  %1275 = vrot.lane.b32.xlu0 %v942, 8
  %v1276 = vpop.permute.xlu0 %1275
  %1277 = vrot.lane.b32.xlu0 %v943, 8
  %v1278 = vpop.permute.xlu0 %1277
  %1279 = vrot.lane.b32.xlu0 %v944, 8
  %v1280 = vpop.permute.xlu0 %1279
  %1281 = vrot.lane.b32.xlu0 %v945, 8
  %v1282 = vpop.permute.xlu0 %1281
  %1283 = vrot.lane.b32.xlu0 %v946, 8
  %v1284 = vpop.permute.xlu0 %1283
  %1285 = vrot.lane.b32.xlu0 %v947, 8
  %v1286 = vpop.permute.xlu0 %1285
  %1287 = vrot.lane.b32.xlu0 %v948, 8
  %v1288 = vpop.permute.xlu0 %1287
  %1289 = vrot.lane.b32.xlu0 %v949, 8
  %v1290 = vpop.permute.xlu0 %1289
  %1291 = vrot.lane.b32.xlu0 %v950, 8
  %v1292 = vpop.permute.xlu0 %1291
  %1293 = vrot.lane.b32.xlu0 %v951, 8
  %v1294 = vpop.permute.xlu0 %1293
  %1295 = vrot.lane.b32.xlu0 %v952, 8
  %v1296 = vpop.permute.xlu0 %1295
  %1297 = vrot.lane.b32.xlu0 %v953, 8
  %v1298 = vpop.permute.xlu0 %1297
  %1299 = vrot.lane.b32.xlu0 %v954, 8
  %v1300 = vpop.permute.xlu0 %1299
  %1301 = vrot.lane.b32.xlu0 %v955, 8
  %v1302 = vpop.permute.xlu0 %1301
  %1303 = vrot.lane.b32.xlu0 %v956, 8
  %v1304 = vpop.permute.xlu0 %1303
  %1305 = vrot.lane.b32.xlu0 %v957, 8
  %v1306 = vpop.permute.xlu0 %1305
  %1307 = vrot.lane.b32.xlu0 %v958, 8
  %v1308 = vpop.permute.xlu0 %1307
  %1309 = vrot.lane.b32.xlu0 %v959, 8
  %v1310 = vpop.permute.xlu0 %1309
  %1311 = vrot.lane.b32.xlu0 %v960, 8
  %v1312 = vpop.permute.xlu0 %1311
  %1313 = vrot.lane.b32.xlu0 %v961, 8
  %v1314 = vpop.permute.xlu0 %1313
  %1315 = vrot.lane.b32.xlu0 %v962, 8
  %v1316 = vpop.permute.xlu0 %1315
  %1317 = vrot.lane.b32.xlu0 %v963, 8
  %v1318 = vpop.permute.xlu0 %1317
  %1319 = vrot.lane.b32.xlu0 %v964, 8
  %v1320 = vpop.permute.xlu0 %1319
  %1321 = vrot.lane.b32.xlu0 %v965, 8
  %v1322 = vpop.permute.xlu0 %1321
  %1323 = vrot.lane.b32.xlu0 %v966, 8
  %v1324 = vpop.permute.xlu0 %1323
  %1325 = vrot.lane.b32.xlu0 %v967, 8
  %v1326 = vpop.permute.xlu0 %1325
  %1327 = vrot.lane.b32.xlu0 %v968, 8
  %v1328 = vpop.permute.xlu0 %1327
  %1329 = vrot.lane.b32.xlu0 %v969, 8
  %v1330 = vpop.permute.xlu0 %1329
  %1331 = vrot.lane.b32.xlu0 %v970, 8
  %v1332 = vpop.permute.xlu0 %1331
  %1333 = vrot.lane.b32.xlu0 %v971, 8
  %v1334 = vpop.permute.xlu0 %1333
  %1335 = vrot.lane.b32.xlu0 %v972, 8
  %v1336 = vpop.permute.xlu0 %1335
  %1401 = vrot.lane.b32.xlu0 %v975, 12
  %v1402 = vpop.permute.xlu0 %1401
  %1403 = vrot.lane.b32.xlu0 %v976, 12
  %v1404 = vpop.permute.xlu0 %1403
  %1405 = vrot.lane.b32.xlu0 %v977, 12
  %v1406 = vpop.permute.xlu0 %1405
  %1407 = vrot.lane.b32.xlu0 %v978, 12
  %v1408 = vpop.permute.xlu0 %1407
  %1409 = vrot.lane.b32.xlu0 %v979, 12
  %v1410 = vpop.permute.xlu0 %1409
  %1411 = vrot.lane.b32.xlu0 %v980, 12
  %v1412 = vpop.permute.xlu0 %1411
  %1413 = vrot.lane.b32.xlu0 %v981, 12
  %v1414 = vpop.permute.xlu0 %1413
  %1415 = vrot.lane.b32.xlu0 %v982, 12
  %v1416 = vpop.permute.xlu0 %1415
  %1417 = vrot.lane.b32.xlu0 %v983, 12
  %v1418 = vpop.permute.xlu0 %1417
  %1419 = vrot.lane.b32.xlu0 %v984, 12
  %v1420 = vpop.permute.xlu0 %1419
  %1421 = vrot.lane.b32.xlu0 %v985, 12
  %v1422 = vpop.permute.xlu0 %1421
  %1423 = vrot.lane.b32.xlu0 %v986, 12
  %v1424 = vpop.permute.xlu0 %1423
  %1425 = vrot.lane.b32.xlu0 %v987, 12
  %v1426 = vpop.permute.xlu0 %1425
  %1427 = vrot.lane.b32.xlu0 %v988, 12
  %v1428 = vpop.permute.xlu0 %1427
  %1429 = vrot.lane.b32.xlu0 %v989, 12
  %v1430 = vpop.permute.xlu0 %1429
  %1431 = vrot.lane.b32.xlu0 %v990, 12
  %v1432 = vpop.permute.xlu0 %1431
  %1433 = vrot.lane.b32.xlu0 %v991, 12
  %v1434 = vpop.permute.xlu0 %1433
  %1435 = vrot.lane.b32.xlu0 %v992, 12
  %v1436 = vpop.permute.xlu0 %1435
  %1437 = vrot.lane.b32.xlu0 %v993, 12
  %v1438 = vpop.permute.xlu0 %1437
  %1439 = vrot.lane.b32.xlu0 %v994, 12
  %v1440 = vpop.permute.xlu0 %1439
  %1441 = vrot.lane.b32.xlu0 %v995, 12
  %v1442 = vpop.permute.xlu0 %1441
  %1443 = vrot.lane.b32.xlu0 %v996, 12
  %v1444 = vpop.permute.xlu0 %1443
  %1445 = vrot.lane.b32.xlu0 %v997, 12
  %v1446 = vpop.permute.xlu0 %1445
  %1447 = vrot.lane.b32.xlu0 %v998, 12
  %v1448 = vpop.permute.xlu0 %1447
  %1449 = vrot.lane.b32.xlu0 %v999, 12
  %v1450 = vpop.permute.xlu0 %1449
  %1451 = vrot.lane.b32.xlu0 %v1000, 12
  %v1452 = vpop.permute.xlu0 %1451
  %1453 = vrot.lane.b32.xlu0 %v1001, 12
  %v1454 = vpop.permute.xlu0 %1453
  %1455 = vrot.lane.b32.xlu0 %v1002, 12
  %v1456 = vpop.permute.xlu0 %1455
  %1457 = vrot.lane.b32.xlu0 %v1003, 12
  %v1458 = vpop.permute.xlu0 %1457
  %1459 = vrot.lane.b32.xlu0 %v1004, 12
  %v1460 = vpop.permute.xlu0 %1459
  %1461 = vrot.lane.b32.xlu0 %v1005, 12
  %v1462 = vpop.permute.xlu0 %1461
  %1463 = vrot.lane.b32.xlu0 %v1006, 12
  %v1464 = vpop.permute.xlu0 %1463
  %1499 = vrot.lane.b32.xlu0 %v815, 16
  %v1500 = vpop.permute.xlu0 %1499
  %1501 = vrot.lane.b32.xlu0 %v816, 16
  %v1502 = vpop.permute.xlu0 %1501
  %1503 = vrot.lane.b32.xlu0 %v817, 16
  %v1504 = vpop.permute.xlu0 %1503
  %1505 = vrot.lane.b32.xlu0 %v818, 16
  %v1506 = vpop.permute.xlu0 %1505
  %1507 = vrot.lane.b32.xlu0 %v819, 16
  %v1508 = vpop.permute.xlu0 %1507
  %1509 = vrot.lane.b32.xlu0 %v820, 16
  %v1510 = vpop.permute.xlu0 %1509
  %1511 = vrot.lane.b32.xlu0 %v821, 16
  %v1512 = vpop.permute.xlu0 %1511
  %1513 = vrot.lane.b32.xlu0 %v822, 16
  %v1514 = vpop.permute.xlu0 %1513
  %1515 = vrot.lane.b32.xlu0 %v823, 16
  %v1516 = vpop.permute.xlu0 %1515
  %1517 = vrot.lane.b32.xlu0 %v824, 16
  %v1518 = vpop.permute.xlu0 %1517
  %1519 = vrot.lane.b32.xlu0 %v825, 16
  %v1520 = vpop.permute.xlu0 %1519
  %1521 = vrot.lane.b32.xlu0 %v826, 16
  %v1522 = vpop.permute.xlu0 %1521
  %1523 = vrot.lane.b32.xlu0 %v827, 16
  %v1524 = vpop.permute.xlu0 %1523
  %1525 = vrot.lane.b32.xlu0 %v828, 16
  %v1526 = vpop.permute.xlu0 %1525
  %1527 = vrot.lane.b32.xlu0 %v829, 16
  %v1528 = vpop.permute.xlu0 %1527
  %1529 = vrot.lane.b32.xlu0 %v830, 16
  %v1530 = vpop.permute.xlu0 %1529
  %1531 = vrot.lane.b32.xlu0 %v831, 16
  %v1532 = vpop.permute.xlu0 %1531
  %1533 = vrot.lane.b32.xlu0 %v832, 16
  %v1534 = vpop.permute.xlu0 %1533
  %1535 = vrot.lane.b32.xlu0 %v833, 16
  %v1536 = vpop.permute.xlu0 %1535
  %1537 = vrot.lane.b32.xlu0 %v834, 16
  %v1538 = vpop.permute.xlu0 %1537
  %1539 = vrot.lane.b32.xlu0 %v835, 16
  %v1540 = vpop.permute.xlu0 %1539
  %1541 = vrot.lane.b32.xlu0 %v836, 16
  %v1542 = vpop.permute.xlu0 %1541
  %1543 = vrot.lane.b32.xlu0 %v837, 16
  %v1544 = vpop.permute.xlu0 %1543
  %1545 = vrot.lane.b32.xlu0 %v838, 16
  %v1546 = vpop.permute.xlu0 %1545
  %1547 = vrot.lane.b32.xlu0 %v839, 16
  %v1548 = vpop.permute.xlu0 %1547
  %1549 = vrot.lane.b32.xlu0 %v840, 16
  %v1550 = vpop.permute.xlu0 %1549
  %1551 = vrot.lane.b32.xlu0 %v841, 16
  %v1552 = vpop.permute.xlu0 %1551
  %1553 = vrot.lane.b32.xlu0 %v842, 16
  %v1554 = vpop.permute.xlu0 %1553
  %1555 = vrot.lane.b32.xlu0 %v843, 16
  %v1556 = vpop.permute.xlu0 %1555
  %1557 = vrot.lane.b32.xlu0 %v844, 16
  %v1558 = vpop.permute.xlu0 %1557
  %1559 = vrot.lane.b32.xlu0 %v1007, 16
  %v1560 = vpop.permute.xlu0 %1559
  %1561 = vrot.lane.b32.xlu0 %v1008, 16
  %v1562 = vpop.permute.xlu0 %1561
  %1627 = vrot.lane.b32.xlu0 %v1011, 20
  %v1628 = vpop.permute.xlu0 %1627
  %1629 = vrot.lane.b32.xlu0 %v1012, 20
  %v1630 = vpop.permute.xlu0 %1629
  %1631 = vrot.lane.b32.xlu0 %v1013, 20
  %v1632 = vpop.permute.xlu0 %1631
  %1633 = vrot.lane.b32.xlu0 %v1014, 20
  %v1634 = vpop.permute.xlu0 %1633
  %1635 = vrot.lane.b32.xlu0 %v1015, 20
  %v1636 = vpop.permute.xlu0 %1635
  %1637 = vrot.lane.b32.xlu0 %v1016, 20
  %v1638 = vpop.permute.xlu0 %1637
  %1639 = vrot.lane.b32.xlu0 %v1017, 20
  %v1640 = vpop.permute.xlu0 %1639
  %1641 = vrot.lane.b32.xlu0 %v1018, 20
  %v1642 = vpop.permute.xlu0 %1641
  %1643 = vrot.lane.b32.xlu0 %v1019, 20
  %v1644 = vpop.permute.xlu0 %1643
  %1645 = vrot.lane.b32.xlu0 %v1020, 20
  %v1646 = vpop.permute.xlu0 %1645
  %1647 = vrot.lane.b32.xlu0 %v1021, 20
  %v1648 = vpop.permute.xlu0 %1647
  %1649 = vrot.lane.b32.xlu0 %v1022, 20
  %v1650 = vpop.permute.xlu0 %1649
  %1651 = vrot.lane.b32.xlu0 %v1023, 20
  %v1652 = vpop.permute.xlu0 %1651
  %1653 = vrot.lane.b32.xlu0 %v1024, 20
  %v1654 = vpop.permute.xlu0 %1653
  %1655 = vrot.lane.b32.xlu0 %v1025, 20
  %v1656 = vpop.permute.xlu0 %1655
  %1657 = vrot.lane.b32.xlu0 %v1026, 20
  %v1658 = vpop.permute.xlu0 %1657
  %1659 = vrot.lane.b32.xlu0 %v1027, 20
  %v1660 = vpop.permute.xlu0 %1659
  %1661 = vrot.lane.b32.xlu0 %v1028, 20
  %v1662 = vpop.permute.xlu0 %1661
  %1663 = vrot.lane.b32.xlu0 %v1029, 20
  %v1664 = vpop.permute.xlu0 %1663
  %1665 = vrot.lane.b32.xlu0 %v1030, 20
  %v1666 = vpop.permute.xlu0 %1665
  %1667 = vrot.lane.b32.xlu0 %v1031, 20
  %v1668 = vpop.permute.xlu0 %1667
  %1669 = vrot.lane.b32.xlu0 %v1032, 20
  %v1670 = vpop.permute.xlu0 %1669
  %1671 = vrot.lane.b32.xlu0 %v1033, 20
  %v1672 = vpop.permute.xlu0 %1671
  %1673 = vrot.lane.b32.xlu0 %v1034, 20
  %v1674 = vpop.permute.xlu0 %1673
  %1675 = vrot.lane.b32.xlu0 %v1035, 20
  %v1676 = vpop.permute.xlu0 %1675
  %1677 = vrot.lane.b32.xlu0 %v1036, 20
  %v1678 = vpop.permute.xlu0 %1677
  %1679 = vrot.lane.b32.xlu0 %v1037, 20
  %v1680 = vpop.permute.xlu0 %1679
  %1681 = vrot.lane.b32.xlu0 %v1038, 20
  %v1682 = vpop.permute.xlu0 %1681
  %1683 = vrot.lane.b32.xlu0 %v1039, 20
  %v1684 = vpop.permute.xlu0 %1683
  %1685 = vrot.lane.b32.xlu0 %v1040, 20
  %v1686 = vpop.permute.xlu0 %1685
  %1687 = vrot.lane.b32.xlu0 %v1041, 20
  %v1688 = vpop.permute.xlu0 %1687
  %1689 = vrot.lane.b32.xlu0 %v1042, 20
  %v1690 = vpop.permute.xlu0 %1689
  %1755 = vrot.lane.b32.xlu0 %v1045, 24
  %v1756 = vpop.permute.xlu0 %1755
  %1757 = vrot.lane.b32.xlu0 %v1046, 24
  %v1758 = vpop.permute.xlu0 %1757
  %1759 = vrot.lane.b32.xlu0 %v1047, 24
  %v1760 = vpop.permute.xlu0 %1759
  %1761 = vrot.lane.b32.xlu0 %v1048, 24
  %v1762 = vpop.permute.xlu0 %1761
  %1763 = vrot.lane.b32.xlu0 %v1049, 24
  %v1764 = vpop.permute.xlu0 %1763
  %1765 = vrot.lane.b32.xlu0 %v1050, 24
  %v1766 = vpop.permute.xlu0 %1765
  %1767 = vrot.lane.b32.xlu0 %v1051, 24
  %v1768 = vpop.permute.xlu0 %1767
  %1769 = vrot.lane.b32.xlu0 %v1052, 24
  %v1770 = vpop.permute.xlu0 %1769
  %1771 = vrot.lane.b32.xlu0 %v1053, 24
  %v1772 = vpop.permute.xlu0 %1771
  %1773 = vrot.lane.b32.xlu0 %v1054, 24
  %v1774 = vpop.permute.xlu0 %1773
  %1775 = vrot.lane.b32.xlu0 %v1055, 24
  %v1776 = vpop.permute.xlu0 %1775
  %1777 = vrot.lane.b32.xlu0 %v1056, 24
  %v1778 = vpop.permute.xlu0 %1777
  %1779 = vrot.lane.b32.xlu0 %v1057, 24
  %v1780 = vpop.permute.xlu0 %1779
  %1781 = vrot.lane.b32.xlu0 %v1058, 24
  %v1782 = vpop.permute.xlu0 %1781
  %1783 = vrot.lane.b32.xlu0 %v1059, 24
  %v1784 = vpop.permute.xlu0 %1783
  %1785 = vrot.lane.b32.xlu0 %v1060, 24
  %v1786 = vpop.permute.xlu0 %1785
  %1787 = vrot.lane.b32.xlu0 %v1061, 24
  %v1788 = vpop.permute.xlu0 %1787
  %1789 = vrot.lane.b32.xlu0 %v1062, 24
  %v1790 = vpop.permute.xlu0 %1789
  %1791 = vrot.lane.b32.xlu0 %v1063, 24
  %v1792 = vpop.permute.xlu0 %1791
  %1793 = vrot.lane.b32.xlu0 %v1064, 24
  %v1794 = vpop.permute.xlu0 %1793
  %1795 = vrot.lane.b32.xlu0 %v1065, 24
  %v1796 = vpop.permute.xlu0 %1795
  %1797 = vrot.lane.b32.xlu0 %v1066, 24
  %v1798 = vpop.permute.xlu0 %1797
  %1799 = vrot.lane.b32.xlu0 %v1067, 24
  %v1800 = vpop.permute.xlu0 %1799
  %1801 = vrot.lane.b32.xlu0 %v1068, 24
  %v1802 = vpop.permute.xlu0 %1801
  %1803 = vrot.lane.b32.xlu0 %v1069, 24
  %v1804 = vpop.permute.xlu0 %1803
  %1805 = vrot.lane.b32.xlu0 %v1070, 24
  %v1806 = vpop.permute.xlu0 %1805
  %1807 = vrot.lane.b32.xlu0 %v1071, 24
  %v1808 = vpop.permute.xlu0 %1807
  %1809 = vrot.lane.b32.xlu0 %v1072, 24
  %v1810 = vpop.permute.xlu0 %1809
  %1811 = vrot.lane.b32.xlu0 %v1073, 24
  %v1812 = vpop.permute.xlu0 %1811
  %1813 = vrot.lane.b32.xlu0 %v1074, 24
  %v1814 = vpop.permute.xlu0 %1813
  %1815 = vrot.lane.b32.xlu0 %v1075, 24
  %v1816 = vpop.permute.xlu0 %1815
  %1817 = vrot.lane.b32.xlu0 %v1076, 24
  %v1818 = vpop.permute.xlu0 %1817
  %1853 = vrot.lane.b32.xlu0 %v817, 28
  %v1854 = vpop.permute.xlu0 %1853
  %1855 = vrot.lane.b32.xlu0 %v818, 28
  %v1856 = vpop.permute.xlu0 %1855
  %1857 = vrot.lane.b32.xlu0 %v819, 28
  %v1858 = vpop.permute.xlu0 %1857
  %1859 = vrot.lane.b32.xlu0 %v820, 28
  %v1860 = vpop.permute.xlu0 %1859
  %1861 = vrot.lane.b32.xlu0 %v821, 28
  %v1862 = vpop.permute.xlu0 %1861
  %1863 = vrot.lane.b32.xlu0 %v822, 28
  %v1864 = vpop.permute.xlu0 %1863
  %1865 = vrot.lane.b32.xlu0 %v823, 28
  %v1866 = vpop.permute.xlu0 %1865
  %1867 = vrot.lane.b32.xlu0 %v824, 28
  %v1868 = vpop.permute.xlu0 %1867
  %1869 = vrot.lane.b32.xlu0 %v825, 28
  %v1870 = vpop.permute.xlu0 %1869
  %1871 = vrot.lane.b32.xlu0 %v826, 28
  %v1872 = vpop.permute.xlu0 %1871
  %1873 = vrot.lane.b32.xlu0 %v827, 28
  %v1874 = vpop.permute.xlu0 %1873
  %1875 = vrot.lane.b32.xlu0 %v828, 28
  %v1876 = vpop.permute.xlu0 %1875
  %1877 = vrot.lane.b32.xlu0 %v829, 28
  %v1878 = vpop.permute.xlu0 %1877
  %1879 = vrot.lane.b32.xlu0 %v830, 28
  %v1880 = vpop.permute.xlu0 %1879
  %1881 = vrot.lane.b32.xlu0 %v831, 28
  %v1882 = vpop.permute.xlu0 %1881
  %1883 = vrot.lane.b32.xlu0 %v832, 28
  %v1884 = vpop.permute.xlu0 %1883
  %1885 = vrot.lane.b32.xlu0 %v833, 28
  %v1886 = vpop.permute.xlu0 %1885
  %1887 = vrot.lane.b32.xlu0 %v834, 28
  %v1888 = vpop.permute.xlu0 %1887
  %1889 = vrot.lane.b32.xlu0 %v835, 28
  %v1890 = vpop.permute.xlu0 %1889
  %1891 = vrot.lane.b32.xlu0 %v836, 28
  %v1892 = vpop.permute.xlu0 %1891
  %1893 = vrot.lane.b32.xlu0 %v837, 28
  %v1894 = vpop.permute.xlu0 %1893
  %1895 = vrot.lane.b32.xlu0 %v838, 28
  %v1896 = vpop.permute.xlu0 %1895
  %1897 = vrot.lane.b32.xlu0 %v839, 28
  %v1898 = vpop.permute.xlu0 %1897
  %1899 = vrot.lane.b32.xlu0 %v840, 28
  %v1900 = vpop.permute.xlu0 %1899
  %1901 = vrot.lane.b32.xlu0 %v841, 28
  %v1902 = vpop.permute.xlu0 %1901
  %1903 = vrot.lane.b32.xlu0 %v842, 28
  %v1904 = vpop.permute.xlu0 %1903
  %1905 = vrot.lane.b32.xlu0 %v843, 28
  %v1906 = vpop.permute.xlu0 %1905
  %1907 = vrot.lane.b32.xlu0 %v844, 28
  %v1908 = vpop.permute.xlu0 %1907
  %1909 = vrot.lane.b32.xlu0 %v1007, 28
  %v1910 = vpop.permute.xlu0 %1909
  %1911 = vrot.lane.b32.xlu0 %v1008, 28
  %v1912 = vpop.permute.xlu0 %1911
  %1913 = vrot.lane.b32.xlu0 %v1077, 28
  %v1914 = vpop.permute.xlu0 %1913
  %1915 = vrot.lane.b32.xlu0 %v1078, 28
  %v1916 = vpop.permute.xlu0 %1915
  %1981 = vrot.lane.b32.xlu0 %v1081, 32
  %v1982 = vpop.permute.xlu0 %1981
  %1983 = vrot.lane.b32.xlu0 %v1082, 32
  %v1984 = vpop.permute.xlu0 %1983
  %1985 = vrot.lane.b32.xlu0 %v1083, 32
  %v1986 = vpop.permute.xlu0 %1985
  %1987 = vrot.lane.b32.xlu0 %v1084, 32
  %v1988 = vpop.permute.xlu0 %1987
  %1989 = vrot.lane.b32.xlu0 %v1085, 32
  %v1990 = vpop.permute.xlu0 %1989
  %1991 = vrot.lane.b32.xlu0 %v1086, 32
  %v1992 = vpop.permute.xlu0 %1991
  %1993 = vrot.lane.b32.xlu0 %v1087, 32
  %v1994 = vpop.permute.xlu0 %1993
  %1995 = vrot.lane.b32.xlu0 %v1088, 32
  %v1996 = vpop.permute.xlu0 %1995
  %1997 = vrot.lane.b32.xlu0 %v1089, 32
  %v1998 = vpop.permute.xlu0 %1997
  %1999 = vrot.lane.b32.xlu0 %v1090, 32
  %v2000 = vpop.permute.xlu0 %1999
  %2001 = vrot.lane.b32.xlu0 %v1091, 32
  %v2002 = vpop.permute.xlu0 %2001
  %2003 = vrot.lane.b32.xlu0 %v1092, 32
  %v2004 = vpop.permute.xlu0 %2003
  %2005 = vrot.lane.b32.xlu0 %v1093, 32
  %v2006 = vpop.permute.xlu0 %2005
  %2007 = vrot.lane.b32.xlu0 %v1094, 32
  %v2008 = vpop.permute.xlu0 %2007
  %2009 = vrot.lane.b32.xlu0 %v1095, 32
  %v2010 = vpop.permute.xlu0 %2009
  %2011 = vrot.lane.b32.xlu0 %v1096, 32
  %v2012 = vpop.permute.xlu0 %2011
  %2013 = vrot.lane.b32.xlu0 %v1097, 32
  %v2014 = vpop.permute.xlu0 %2013
  %2015 = vrot.lane.b32.xlu0 %v1098, 32
  %v2016 = vpop.permute.xlu0 %2015
  %2017 = vrot.lane.b32.xlu0 %v1099, 32
  %v2018 = vpop.permute.xlu0 %2017
  %2019 = vrot.lane.b32.xlu0 %v1100, 32
  %v2020 = vpop.permute.xlu0 %2019
  %2021 = vrot.lane.b32.xlu0 %v1101, 32
  %v2022 = vpop.permute.xlu0 %2021
  %2023 = vrot.lane.b32.xlu0 %v1102, 32
  %v2024 = vpop.permute.xlu0 %2023
  %2025 = vrot.lane.b32.xlu0 %v1103, 32
  %v2026 = vpop.permute.xlu0 %2025
  %2027 = vrot.lane.b32.xlu0 %v1104, 32
  %v2028 = vpop.permute.xlu0 %2027
  %2029 = vrot.lane.b32.xlu0 %v1105, 32
  %v2030 = vpop.permute.xlu0 %2029
  %2031 = vrot.lane.b32.xlu0 %v1106, 32
  %v2032 = vpop.permute.xlu0 %2031
  %2033 = vrot.lane.b32.xlu0 %v1107, 32
  %v2034 = vpop.permute.xlu0 %2033
  %2035 = vrot.lane.b32.xlu0 %v1108, 32
  %v2036 = vpop.permute.xlu0 %2035
  %2037 = vrot.lane.b32.xlu0 %v1109, 32
  %v2038 = vpop.permute.xlu0 %2037
  %2039 = vrot.lane.b32.xlu0 %v1110, 32
  %v2040 = vpop.permute.xlu0 %2039
  %2041 = vrot.lane.b32.xlu0 %v1111, 32
  %v2042 = vpop.permute.xlu0 %2041
  %2043 = vrot.lane.b32.xlu0 %v1112, 32
  %v2044 = vpop.permute.xlu0 %2043
  %v2077 = vsel %vm500, %v781, %v1146
  %v2078 = vsel %vm500, %v782, %v1148
  %v2079 = vsel %vm500, %v783, %v1150
  %v2080 = vsel %vm500, %v784, %v1152
  %v2081 = vsel %vm500, %v785, %v1154
  %v2082 = vsel %vm500, %v786, %v1156
  %v2083 = vsel %vm500, %v787, %v1158
  %v2084 = vsel %vm500, %v788, %v1160
  %v2085 = vsel %vm500, %v789, %v1162
  %v2086 = vsel %vm500, %v790, %v1164
  %v2087 = vsel %vm500, %v791, %v1166
  %v2088 = vsel %vm500, %v792, %v1168
  %v2089 = vsel %vm500, %v793, %v1170
  %v2090 = vsel %vm500, %v794, %v1172
  %v2091 = vsel %vm500, %v795, %v1174
  %v2092 = vsel %vm500, %v796, %v1176
  %v2093 = vsel %vm500, %v797, %v1178
  %v2094 = vsel %vm500, %v798, %v1180
  %v2095 = vsel %vm500, %v799, %v1182
  %v2096 = vsel %vm500, %v800, %v1184
  %v2097 = vsel %vm500, %v801, %v1186
  %v2098 = vsel %vm500, %v802, %v1188
  %v2099 = vsel %vm500, %v803, %v1190
  %v2100 = vsel %vm500, %v804, %v1192
  %v2101 = vsel %vm500, %v805, %v1194
  %v2102 = vsel %vm500, %v806, %v1196
  %v2103 = vsel %vm500, %v807, %v1198
  %v2104 = vsel %vm500, %v808, %v1200
  %v2105 = vsel %vm500, %v809, %v1202
  %v2106 = vsel %vm500, %v810, %v1204
  %v2107 = vsel %vm500, %v811, %v1206
  %v2108 = vsel %vm500, %v812, %v1208
  %vm2109 = vcmask 64512
  %v2110 = vsel %vm2109, %v2077, %v1274
  %v2111 = vsel %vm2109, %v2078, %v1276
  %v2112 = vsel %vm2109, %v2079, %v1278
  %v2113 = vsel %vm2109, %v2080, %v1280
  %v2114 = vsel %vm2109, %v2081, %v1282
  %v2115 = vsel %vm2109, %v2082, %v1284
  %v2116 = vsel %vm2109, %v2083, %v1286
  %v2117 = vsel %vm2109, %v2084, %v1288
  %v2118 = vsel %vm2109, %v2085, %v1290
  %v2119 = vsel %vm2109, %v2086, %v1292
  %v2120 = vsel %vm2109, %v2087, %v1294
  %v2121 = vsel %vm2109, %v2088, %v1296
  %v2122 = vsel %vm2109, %v2089, %v1298
  %v2123 = vsel %vm2109, %v2090, %v1300
  %v2124 = vsel %vm2109, %v2091, %v1302
  %v2125 = vsel %vm2109, %v2092, %v1304
  %v2126 = vsel %vm2109, %v2093, %v1306
  %v2127 = vsel %vm2109, %v2094, %v1308
  %v2128 = vsel %vm2109, %v2095, %v1310
  %v2129 = vsel %vm2109, %v2096, %v1312
  %v2130 = vsel %vm2109, %v2097, %v1314
  %v2131 = vsel %vm2109, %v2098, %v1316
  %v2132 = vsel %vm2109, %v2099, %v1318
  %v2133 = vsel %vm2109, %v2100, %v1320
  %v2134 = vsel %vm2109, %v2101, %v1322
  %v2135 = vsel %vm2109, %v2102, %v1324
  %v2136 = vsel %vm2109, %v2103, %v1326
  %v2137 = vsel %vm2109, %v2104, %v1328
  %v2138 = vsel %vm2109, %v2105, %v1330
  %v2139 = vsel %vm2109, %v2106, %v1332
  %v2140 = vsel %vm2109, %v2107, %v1334
  %v2141 = vsel %vm2109, %v2108, %v1336
  %vm2142 = vcmask 97280
  %v2143 = vsel %vm2142, %v2110, %v1402
  %v2144 = vsel %vm2142, %v2111, %v1404
  %v2145 = vsel %vm2142, %v2112, %v1406
  %v2146 = vsel %vm2142, %v2113, %v1408
  %v2147 = vsel %vm2142, %v2114, %v1410
  %v2148 = vsel %vm2142, %v2115, %v1412
  %v2149 = vsel %vm2142, %v2116, %v1414
  %v2150 = vsel %vm2142, %v2117, %v1416
  %v2151 = vsel %vm2142, %v2118, %v1418
  %v2152 = vsel %vm2142, %v2119, %v1420
  %v2153 = vsel %vm2142, %v2120, %v1422
  %v2154 = vsel %vm2142, %v2121, %v1424
  %v2155 = vsel %vm2142, %v2122, %v1426
  %v2156 = vsel %vm2142, %v2123, %v1428
  %v2157 = vsel %vm2142, %v2124, %v1430
  %v2158 = vsel %vm2142, %v2125, %v1432
  %v2159 = vsel %vm2142, %v2126, %v1434
  %v2160 = vsel %vm2142, %v2127, %v1436
  %v2161 = vsel %vm2142, %v2128, %v1438
  %v2162 = vsel %vm2142, %v2129, %v1440
  %v2163 = vsel %vm2142, %v2130, %v1442
  %v2164 = vsel %vm2142, %v2131, %v1444
  %v2165 = vsel %vm2142, %v2132, %v1446
  %v2166 = vsel %vm2142, %v2133, %v1448
  %v2167 = vsel %vm2142, %v2134, %v1450
  %v2168 = vsel %vm2142, %v2135, %v1452
  %v2169 = vsel %vm2142, %v2136, %v1454
  %v2170 = vsel %vm2142, %v2137, %v1456
  %v2171 = vsel %vm2142, %v2138, %v1458
  %v2172 = vsel %vm2142, %v2139, %v1460
  %v2173 = vsel %vm2142, %v2140, %v1462
  %v2174 = vsel %vm2142, %v2141, %v1464
  %vm2175 = vcmask 130048
  %v2176 = vsel %vm2175, %v2143, %v1500
  %v2177 = vsel %vm2175, %v2144, %v1502
  %v2178 = vsel %vm2175, %v2145, %v1504
  %v2179 = vsel %vm2175, %v2146, %v1506
  %v2180 = vsel %vm2175, %v2147, %v1508
  %v2181 = vsel %vm2175, %v2148, %v1510
  %v2182 = vsel %vm2175, %v2149, %v1512
  %v2183 = vsel %vm2175, %v2150, %v1514
  %v2184 = vsel %vm2175, %v2151, %v1516
  %v2185 = vsel %vm2175, %v2152, %v1518
  %v2186 = vsel %vm2175, %v2153, %v1520
  %v2187 = vsel %vm2175, %v2154, %v1522
  %v2188 = vsel %vm2175, %v2155, %v1524
  %v2189 = vsel %vm2175, %v2156, %v1526
  %v2190 = vsel %vm2175, %v2157, %v1528
  %v2191 = vsel %vm2175, %v2158, %v1530
  %v2192 = vsel %vm2175, %v2159, %v1532
  %v2193 = vsel %vm2175, %v2160, %v1534
  %v2194 = vsel %vm2175, %v2161, %v1536
  %v2195 = vsel %vm2175, %v2162, %v1538
  %v2196 = vsel %vm2175, %v2163, %v1540
  %v2197 = vsel %vm2175, %v2164, %v1542
  %v2198 = vsel %vm2175, %v2165, %v1544
  %v2199 = vsel %vm2175, %v2166, %v1546
  %v2200 = vsel %vm2175, %v2167, %v1548
  %v2201 = vsel %vm2175, %v2168, %v1550
  %v2202 = vsel %vm2175, %v2169, %v1552
  %v2203 = vsel %vm2175, %v2170, %v1554
  %v2204 = vsel %vm2175, %v2171, %v1556
  %v2205 = vsel %vm2175, %v2172, %v1558
  %v2206 = vsel %vm2175, %v2173, %v1560
  %v2207 = vsel %vm2175, %v2174, %v1562
  %vm2208 = vcmask 162816
  %v2209 = vsel %vm2208, %v2176, %v1628
  %v2210 = vsel %vm2208, %v2177, %v1630
  %v2211 = vsel %vm2208, %v2178, %v1632
  %v2212 = vsel %vm2208, %v2179, %v1634
  %v2213 = vsel %vm2208, %v2180, %v1636
  %v2214 = vsel %vm2208, %v2181, %v1638
  %v2215 = vsel %vm2208, %v2182, %v1640
  %v2216 = vsel %vm2208, %v2183, %v1642
  %v2217 = vsel %vm2208, %v2184, %v1644
  %v2218 = vsel %vm2208, %v2185, %v1646
  %v2219 = vsel %vm2208, %v2186, %v1648
  %v2220 = vsel %vm2208, %v2187, %v1650
  %v2221 = vsel %vm2208, %v2188, %v1652
  %v2222 = vsel %vm2208, %v2189, %v1654
  %v2223 = vsel %vm2208, %v2190, %v1656
  %v2224 = vsel %vm2208, %v2191, %v1658
  %v2225 = vsel %vm2208, %v2192, %v1660
  %v2226 = vsel %vm2208, %v2193, %v1662
  %v2227 = vsel %vm2208, %v2194, %v1664
  %v2228 = vsel %vm2208, %v2195, %v1666
  %v2229 = vsel %vm2208, %v2196, %v1668
  %v2230 = vsel %vm2208, %v2197, %v1670
  %v2231 = vsel %vm2208, %v2198, %v1672
  %v2232 = vsel %vm2208, %v2199, %v1674
  %v2233 = vsel %vm2208, %v2200, %v1676
  %v2234 = vsel %vm2208, %v2201, %v1678
  %v2235 = vsel %vm2208, %v2202, %v1680
  %v2236 = vsel %vm2208, %v2203, %v1682
  %v2237 = vsel %vm2208, %v2204, %v1684
  %v2238 = vsel %vm2208, %v2205, %v1686
  %v2239 = vsel %vm2208, %v2206, %v1688
  %v2240 = vsel %vm2208, %v2207, %v1690
  %vm2241 = vcmask 195584
  %v2242 = vsel %vm2241, %v2209, %v1756
  %v2243 = vsel %vm2241, %v2210, %v1758
  %v2244 = vsel %vm2241, %v2211, %v1760
  %v2245 = vsel %vm2241, %v2212, %v1762
  %v2246 = vsel %vm2241, %v2213, %v1764
  %v2247 = vsel %vm2241, %v2214, %v1766
  %v2248 = vsel %vm2241, %v2215, %v1768
  %v2249 = vsel %vm2241, %v2216, %v1770
  %v2250 = vsel %vm2241, %v2217, %v1772
  %v2251 = vsel %vm2241, %v2218, %v1774
  %v2252 = vsel %vm2241, %v2219, %v1776
  %v2253 = vsel %vm2241, %v2220, %v1778
  %v2254 = vsel %vm2241, %v2221, %v1780
  %v2255 = vsel %vm2241, %v2222, %v1782
  %v2256 = vsel %vm2241, %v2223, %v1784
  %v2257 = vsel %vm2241, %v2224, %v1786
  %v2258 = vsel %vm2241, %v2225, %v1788
  %v2259 = vsel %vm2241, %v2226, %v1790
  %v2260 = vsel %vm2241, %v2227, %v1792
  %v2261 = vsel %vm2241, %v2228, %v1794
  %v2262 = vsel %vm2241, %v2229, %v1796
  %v2263 = vsel %vm2241, %v2230, %v1798
  %v2264 = vsel %vm2241, %v2231, %v1800
  %v2265 = vsel %vm2241, %v2232, %v1802
  %v2266 = vsel %vm2241, %v2233, %v1804
  %v2267 = vsel %vm2241, %v2234, %v1806
  %v2268 = vsel %vm2241, %v2235, %v1808
  %v2269 = vsel %vm2241, %v2236, %v1810
  %v2270 = vsel %vm2241, %v2237, %v1812
  %v2271 = vsel %vm2241, %v2238, %v1814
  %v2272 = vsel %vm2241, %v2239, %v1816
  %v2273 = vsel %vm2241, %v2240, %v1818
  %vm2274 = vcmask 228352
  %v2275 = vsel %vm2274, %v2242, %v1854
  %v2276 = vsel %vm2274, %v2243, %v1856
  %v2277 = vsel %vm2274, %v2244, %v1858
  %v2278 = vsel %vm2274, %v2245, %v1860
  %v2279 = vsel %vm2274, %v2246, %v1862
  %v2280 = vsel %vm2274, %v2247, %v1864
  %v2281 = vsel %vm2274, %v2248, %v1866
  %v2282 = vsel %vm2274, %v2249, %v1868
  %v2283 = vsel %vm2274, %v2250, %v1870
  %v2284 = vsel %vm2274, %v2251, %v1872
  %v2285 = vsel %vm2274, %v2252, %v1874
  %v2286 = vsel %vm2274, %v2253, %v1876
  %v2287 = vsel %vm2274, %v2254, %v1878
  %v2288 = vsel %vm2274, %v2255, %v1880
  %v2289 = vsel %vm2274, %v2256, %v1882
  %v2290 = vsel %vm2274, %v2257, %v1884
  %v2291 = vsel %vm2274, %v2258, %v1886
  %v2292 = vsel %vm2274, %v2259, %v1888
  %v2293 = vsel %vm2274, %v2260, %v1890
  %v2294 = vsel %vm2274, %v2261, %v1892
  %v2295 = vsel %vm2274, %v2262, %v1894
  %v2296 = vsel %vm2274, %v2263, %v1896
  %v2297 = vsel %vm2274, %v2264, %v1898
  %v2298 = vsel %vm2274, %v2265, %v1900
  %v2299 = vsel %vm2274, %v2266, %v1902
  %v2300 = vsel %vm2274, %v2267, %v1904
  %v2301 = vsel %vm2274, %v2268, %v1906
  %v2302 = vsel %vm2274, %v2269, %v1908
  %v2303 = vsel %vm2274, %v2270, %v1910
  %v2304 = vsel %vm2274, %v2271, %v1912
  %v2305 = vsel %vm2274, %v2272, %v1914
  %v2306 = vsel %vm2274, %v2273, %v1916
  %vm2307 = vcmask 261120
  %v2308 = vsel %vm2307, %v2275, %v1982
  %v2309 = vsel %vm2307, %v2276, %v1984
  %v2310 = vsel %vm2307, %v2277, %v1986
  %v2311 = vsel %vm2307, %v2278, %v1988
  %v2312 = vsel %vm2307, %v2279, %v1990
  %v2313 = vsel %vm2307, %v2280, %v1992
  %v2314 = vsel %vm2307, %v2281, %v1994
  %v2315 = vsel %vm2307, %v2282, %v1996
  %v2316 = vsel %vm2307, %v2283, %v1998
  %v2317 = vsel %vm2307, %v2284, %v2000
  %v2318 = vsel %vm2307, %v2285, %v2002
  %v2319 = vsel %vm2307, %v2286, %v2004
  %v2320 = vsel %vm2307, %v2287, %v2006
  %v2321 = vsel %vm2307, %v2288, %v2008
  %v2322 = vsel %vm2307, %v2289, %v2010
  %v2323 = vsel %vm2307, %v2290, %v2012
  %v2324 = vsel %vm2307, %v2291, %v2014
  %v2325 = vsel %vm2307, %v2292, %v2016
  %v2326 = vsel %vm2307, %v2293, %v2018
  %v2327 = vsel %vm2307, %v2294, %v2020
  %v2328 = vsel %vm2307, %v2295, %v2022
  %v2329 = vsel %vm2307, %v2296, %v2024
  %v2330 = vsel %vm2307, %v2297, %v2026
  %v2331 = vsel %vm2307, %v2298, %v2028
  %v2332 = vsel %vm2307, %v2299, %v2030
  %v2333 = vsel %vm2307, %v2300, %v2032
  %v2334 = vsel %vm2307, %v2301, %v2034
  %v2335 = vsel %vm2307, %v2302, %v2036
  %v2336 = vsel %vm2307, %v2303, %v2038
  %v2337 = vsel %vm2307, %v2304, %v2040
  %v2338 = vsel %vm2307, %v2305, %v2042
  %v2339 = vsel %vm2307, %v2306, %v2044
  %v2340 = vld [vmem:[%s3] sm:$0xff]
  %v2341 = vld [vmem:[%s3 + $0x8] sm:$0xff]
  %v2342 = vld [vmem:[%s3 + $0x10] sm:$0xff]
  %v2343 = vld [vmem:[%s3 + $0x18] sm:$0xff]
  %v2344 = vld [vmem:[%s3 + $0x20] sm:$0xf]
  %vm2345 = vcmask 293888
  %v2347 = vsel %vm2345, %v2308, 0
  %v2350 = vsel %vm2345, %v2309, 0
  %v2353 = vsel %vm2345, %v2310, 0
  %v2356 = vsel %vm2345, %v2311, 0
  %v2359 = vsel %vm2345, %v2312, 0
  %v2362 = vsel %vm2345, %v2313, 0
  %v2365 = vsel %vm2345, %v2314, 0
  %v2368 = vsel %vm2345, %v2315, 0
  %v2371 = vsel %vm2345, %v2316, 0
  %v2374 = vsel %vm2345, %v2317, 0
  %v2377 = vsel %vm2345, %v2318, 0
  %v2380 = vsel %vm2345, %v2319, 0
  %v2383 = vsel %vm2345, %v2320, 0
  %v2386 = vsel %vm2345, %v2321, 0
  %v2389 = vsel %vm2345, %v2322, 0
  %v2392 = vsel %vm2345, %v2323, 0
  %v2395 = vsel %vm2345, %v2324, 0
  %v2398 = vsel %vm2345, %v2325, 0
  %v2401 = vsel %vm2345, %v2326, 0
  %v2404 = vsel %vm2345, %v2327, 0
  %v2407 = vsel %vm2345, %v2328, 0
  %v2410 = vsel %vm2345, %v2329, 0
  %v2413 = vsel %vm2345, %v2330, 0
  %v2416 = vsel %vm2345, %v2331, 0
  %v2419 = vsel %vm2345, %v2332, 0
  %v2422 = vsel %vm2345, %v2333, 0
  %v2425 = vsel %vm2345, %v2334, 0
  %v2428 = vsel %vm2345, %v2335, 0
  %v2431 = vsel %vm2345, %v2336, 0
  %v2434 = vsel %vm2345, %v2337, 0
  %v2437 = vsel %vm2345, %v2338, 0
  %v2440 = vsel %vm2345, %v2339, 0
  %vm2442 = vcmask 1043456
  %v2444 = vsel %vm2442, %v2344, 0
  %2446 = vmatpush.msra.mxu0 0.0
  %2447 = vmatpush.msra.mxu0 0.0
  %2448 = vmatpush.msra.mxu0 0.0
  %2449 = vmatpush.msra.mxu0 0.0
  %2450 = vmatpush.msra.mxu0 0.0
  %2451 = vmatpush.msra.mxu0 0.0
  %2452 = vmatpush.msra.mxu0 0.0
  %2453 = vmatpush.msra.mxu0 0.0
  %2454 = vmatpush.msra.mxu0 0.0
  %2455 = vmatpush.msra.mxu0 0.0
  %2456 = vmatpush.msra.mxu0 0.0
  %2457 = vmatpush.msra.mxu0 %v2444
  %2458 = vmatpush.msra.mxu0 %v2343
  %2459 = vmatpush.msra.mxu0 %v2342
  %2460 = vmatpush.msra.mxu0 %v2341
  %2461 = vmatpush.msra.mxu0 %v2340
  %2462 = vmatmul.f32.gmra.mxu0 %v2347
  %v2463 = vpop.f32.mrf.mxu0
  %v2464 = vadd.f32 0.0, %v2463
  %2465 = vmatmul.f32.gmra.mxu0 %v2350
  %v2466 = vpop.f32.mrf.mxu0
  %v2467 = vadd.f32 0.0, %v2466
  %2468 = vmatmul.f32.gmra.mxu0 %v2353
  %v2469 = vpop.f32.mrf.mxu0
  %v2470 = vadd.f32 0.0, %v2469
  %2471 = vmatmul.f32.gmra.mxu0 %v2356
  %v2472 = vpop.f32.mrf.mxu0
  %v2473 = vadd.f32 0.0, %v2472
  %2474 = vmatmul.f32.gmra.mxu0 %v2359
  %v2475 = vpop.f32.mrf.mxu0
  %v2476 = vadd.f32 0.0, %v2475
  %2477 = vmatmul.f32.gmra.mxu0 %v2362
  %v2478 = vpop.f32.mrf.mxu0
  %v2479 = vadd.f32 0.0, %v2478
  %2480 = vmatmul.f32.gmra.mxu0 %v2365
  %v2481 = vpop.f32.mrf.mxu0
  %v2482 = vadd.f32 0.0, %v2481
  %2483 = vmatmul.f32.gmra.mxu0 %v2368
  %v2484 = vpop.f32.mrf.mxu0
  %v2485 = vadd.f32 0.0, %v2484
  %2486 = vmatmul.f32.gmra.mxu0 %v2371
  %v2487 = vpop.f32.mrf.mxu0
  %v2488 = vadd.f32 0.0, %v2487
  %2489 = vmatmul.f32.gmra.mxu0 %v2374
  %v2490 = vpop.f32.mrf.mxu0
  %v2491 = vadd.f32 0.0, %v2490
  %2492 = vmatmul.f32.gmra.mxu0 %v2377
  %v2493 = vpop.f32.mrf.mxu0
  %v2494 = vadd.f32 0.0, %v2493
  %2495 = vmatmul.f32.gmra.mxu0 %v2380
  %v2496 = vpop.f32.mrf.mxu0
  %v2497 = vadd.f32 0.0, %v2496
  %2498 = vmatmul.f32.gmra.mxu0 %v2383
  %v2499 = vpop.f32.mrf.mxu0
  %v2500 = vadd.f32 0.0, %v2499
  %2501 = vmatmul.f32.gmra.mxu0 %v2386
  %v2502 = vpop.f32.mrf.mxu0
  %v2503 = vadd.f32 0.0, %v2502
  %2504 = vmatmul.f32.gmra.mxu0 %v2389
  %v2505 = vpop.f32.mrf.mxu0
  %v2506 = vadd.f32 0.0, %v2505
  %2507 = vmatmul.f32.gmra.mxu0 %v2392
  %v2508 = vpop.f32.mrf.mxu0
  %v2509 = vadd.f32 0.0, %v2508
  %2510 = vmatmul.f32.gmra.mxu0 %v2395
  %v2511 = vpop.f32.mrf.mxu0
  %v2512 = vadd.f32 0.0, %v2511
  %2513 = vmatmul.f32.gmra.mxu0 %v2398
  %v2514 = vpop.f32.mrf.mxu0
  %v2515 = vadd.f32 0.0, %v2514
  %2516 = vmatmul.f32.gmra.mxu0 %v2401
  %v2517 = vpop.f32.mrf.mxu0
  %v2518 = vadd.f32 0.0, %v2517
  %2519 = vmatmul.f32.gmra.mxu0 %v2404
  %v2520 = vpop.f32.mrf.mxu0
  %v2521 = vadd.f32 0.0, %v2520
  %2522 = vmatmul.f32.gmra.mxu0 %v2407
  %v2523 = vpop.f32.mrf.mxu0
  %v2524 = vadd.f32 0.0, %v2523
  %2525 = vmatmul.f32.gmra.mxu0 %v2410
  %v2526 = vpop.f32.mrf.mxu0
  %v2527 = vadd.f32 0.0, %v2526
  %2528 = vmatmul.f32.gmra.mxu0 %v2413
  %v2529 = vpop.f32.mrf.mxu0
  %v2530 = vadd.f32 0.0, %v2529
  %2531 = vmatmul.f32.gmra.mxu0 %v2416
  %v2532 = vpop.f32.mrf.mxu0
  %v2533 = vadd.f32 0.0, %v2532
  %2534 = vmatmul.f32.gmra.mxu0 %v2419
  %v2535 = vpop.f32.mrf.mxu0
  %v2536 = vadd.f32 0.0, %v2535
  %2537 = vmatmul.f32.gmra.mxu0 %v2422
  %v2538 = vpop.f32.mrf.mxu0
  %v2539 = vadd.f32 0.0, %v2538
  %2540 = vmatmul.f32.gmra.mxu0 %v2425
  %v2541 = vpop.f32.mrf.mxu0
  %v2542 = vadd.f32 0.0, %v2541
  %2543 = vmatmul.f32.gmra.mxu0 %v2428
  %v2544 = vpop.f32.mrf.mxu0
  %v2545 = vadd.f32 0.0, %v2544
  %2546 = vmatmul.f32.gmra.mxu0 %v2431
  %v2547 = vpop.f32.mrf.mxu0
  %v2548 = vadd.f32 0.0, %v2547
  %2549 = vmatmul.f32.gmra.mxu0 %v2434
  %v2550 = vpop.f32.mrf.mxu0
  %v2551 = vadd.f32 0.0, %v2550
  %2552 = vmatmul.f32.gmra.mxu0 %v2437
  %v2553 = vpop.f32.mrf.mxu0
  %v2554 = vadd.f32 0.0, %v2553
  %2555 = vmatmul.f32.gmra.mxu0 %v2440
  %v2556 = vpop.f32.mrf.mxu0
  %v2557 = vadd.f32 0.0, %v2556
  %2558 = vdwg.mxu0
  %2559 = vst.msk [vmem:[%s4] sm:$0xff] %vm500, %v2464
  %2560 = vst.msk [vmem:[%s4 + $0x8] sm:$0xff] %vm500, %v2467
  %2561 = vst.msk [vmem:[%s4 + $0x10] sm:$0xff] %vm500, %v2470
  %2562 = vst.msk [vmem:[%s4 + $0x18] sm:$0xff] %vm500, %v2473
  %2563 = vst.msk [vmem:[%s4 + $0x20] sm:$0xff] %vm500, %v2476
  %2564 = vst.msk [vmem:[%s4 + $0x28] sm:$0xff] %vm500, %v2479
  %2565 = vst.msk [vmem:[%s4 + $0x30] sm:$0xff] %vm500, %v2482
  %2566 = vst.msk [vmem:[%s4 + $0x38] sm:$0xff] %vm500, %v2485
  %2567 = vst.msk [vmem:[%s4 + $0x40] sm:$0xff] %vm500, %v2488
  %2568 = vst.msk [vmem:[%s4 + $0x48] sm:$0xff] %vm500, %v2491
  %2569 = vst.msk [vmem:[%s4 + $0x50] sm:$0xff] %vm500, %v2494
  %2570 = vst.msk [vmem:[%s4 + $0x58] sm:$0xff] %vm500, %v2497
  %2571 = vst.msk [vmem:[%s4 + $0x60] sm:$0xff] %vm500, %v2500
  %2572 = vst.msk [vmem:[%s4 + $0x68] sm:$0xff] %vm500, %v2503
  %2573 = vst.msk [vmem:[%s4 + $0x70] sm:$0xff] %vm500, %v2506
  %2574 = vst.msk [vmem:[%s4 + $0x78] sm:$0xff] %vm500, %v2509
  %2575 = vst.msk [vmem:[%s4 + $0x80] sm:$0xff] %vm500, %v2512
  %2576 = vst.msk [vmem:[%s4 + $0x88] sm:$0xff] %vm500, %v2515
  %2577 = vst.msk [vmem:[%s4 + $0x90] sm:$0xff] %vm500, %v2518
  %2578 = vst.msk [vmem:[%s4 + $0x98] sm:$0xff] %vm500, %v2521
  %2579 = vst.msk [vmem:[%s4 + $0xa0] sm:$0xff] %vm500, %v2524
  %2580 = vst.msk [vmem:[%s4 + $0xa8] sm:$0xff] %vm500, %v2527
  %2581 = vst.msk [vmem:[%s4 + $0xb0] sm:$0xff] %vm500, %v2530
  %2582 = vst.msk [vmem:[%s4 + $0xb8] sm:$0xff] %vm500, %v2533
  %2583 = vst.msk [vmem:[%s4 + $0xc0] sm:$0xff] %vm500, %v2536
  %2584 = vst.msk [vmem:[%s4 + $0xc8] sm:$0xff] %vm500, %v2539
  %2585 = vst.msk [vmem:[%s4 + $0xd0] sm:$0xff] %vm500, %v2542
  %2586 = vst.msk [vmem:[%s4 + $0xd8] sm:$0xff] %vm500, %v2545
  %2587 = vst.msk [vmem:[%s4 + $0xe0] sm:$0xff] %vm500, %v2548
  %2588 = vst.msk [vmem:[%s4 + $0xe8] sm:$0xff] %vm500, %v2551
  %2589 = vst.msk [vmem:[%s4 + $0xf0] sm:$0xff] %vm500, %v2554
  %2590 = vst.msk [vmem:[%s4 + $0xf8] sm:$0xff] %vm500, %v2557
  %v2591 = vsel %vm500, %v2464, 0.0
  %v2592 = vsel %vm500, %v2467, 0.0
  %v2593 = vadd.f32 %v2591, %v2592
  %v2594 = vsel %vm500, %v2470, 0.0
  %v2595 = vadd.f32 %v2593, %v2594
  %v2596 = vsel %vm500, %v2473, 0.0
  %v2597 = vadd.f32 %v2595, %v2596
  %v2598 = vsel %vm500, %v2476, 0.0
  %v2599 = vadd.f32 %v2597, %v2598
  %v2600 = vsel %vm500, %v2479, 0.0
  %v2601 = vadd.f32 %v2599, %v2600
  %v2602 = vsel %vm500, %v2482, 0.0
  %v2603 = vadd.f32 %v2601, %v2602
  %v2604 = vsel %vm500, %v2485, 0.0
  %v2605 = vadd.f32 %v2603, %v2604
  %v2606 = vsel %vm500, %v2488, 0.0
  %v2607 = vadd.f32 %v2605, %v2606
  %v2608 = vsel %vm500, %v2491, 0.0
  %v2609 = vadd.f32 %v2607, %v2608
  %v2610 = vsel %vm500, %v2494, 0.0
  %v2611 = vadd.f32 %v2609, %v2610
  %v2612 = vsel %vm500, %v2497, 0.0
  %v2613 = vadd.f32 %v2611, %v2612
  %v2614 = vsel %vm500, %v2500, 0.0
  %v2615 = vadd.f32 %v2613, %v2614
  %v2616 = vsel %vm500, %v2503, 0.0
  %v2617 = vadd.f32 %v2615, %v2616
  %v2618 = vsel %vm500, %v2506, 0.0
  %v2619 = vadd.f32 %v2617, %v2618
  %v2620 = vsel %vm500, %v2509, 0.0
  %v2621 = vadd.f32 %v2619, %v2620
  %v2622 = vsel %vm500, %v2512, 0.0
  %v2623 = vadd.f32 %v2621, %v2622
  %v2624 = vsel %vm500, %v2515, 0.0
  %v2625 = vadd.f32 %v2623, %v2624
  %v2626 = vsel %vm500, %v2518, 0.0
  %v2627 = vadd.f32 %v2625, %v2626
  %v2628 = vsel %vm500, %v2521, 0.0
  %v2629 = vadd.f32 %v2627, %v2628
  %v2630 = vsel %vm500, %v2524, 0.0
  %v2631 = vadd.f32 %v2629, %v2630
  %v2632 = vsel %vm500, %v2527, 0.0
  %v2633 = vadd.f32 %v2631, %v2632
  %v2634 = vsel %vm500, %v2530, 0.0
  %v2635 = vadd.f32 %v2633, %v2634
  %v2636 = vsel %vm500, %v2533, 0.0
  %v2637 = vadd.f32 %v2635, %v2636
  %v2638 = vsel %vm500, %v2536, 0.0
  %v2639 = vadd.f32 %v2637, %v2638
  %v2640 = vsel %vm500, %v2539, 0.0
  %v2641 = vadd.f32 %v2639, %v2640
  %v2642 = vsel %vm500, %v2542, 0.0
  %v2643 = vadd.f32 %v2641, %v2642
  %v2644 = vsel %vm500, %v2545, 0.0
  %v2645 = vadd.f32 %v2643, %v2644
  %v2646 = vsel %vm500, %v2548, 0.0
  %v2647 = vadd.f32 %v2645, %v2646
  %v2648 = vsel %vm500, %v2551, 0.0
  %v2649 = vadd.f32 %v2647, %v2648
  %v2650 = vsel %vm500, %v2554, 0.0
  %v2651 = vadd.f32 %v2649, %v2650
  %v2652 = vsel %vm500, %v2557, 0.0
  %v2653 = vadd.f32 %v2651, %v2652
  %v2654 = vrot.slane %v2653, 4
  %v2655 = vadd.f32 %v2653, %v2654
  %v2656 = vrot.slane %v2655, 2
  %v2657 = vadd.f32 %v2655, %v2656
  %v2658 = vrot.slane %v2657, 1
  %v2659 = vadd.f32 %v2657, %v2658
  %v2660 = vmul.f32 %v2659, 0.00390625
  %v2661 = vsub.f32 %v2464, %v2660
  %v2662 = vsub.f32 %v2467, %v2660
  %v2663 = vsub.f32 %v2470, %v2660
  %v2664 = vsub.f32 %v2473, %v2660
  %v2665 = vsub.f32 %v2476, %v2660
  %v2666 = vsub.f32 %v2479, %v2660
  %v2667 = vsub.f32 %v2482, %v2660
  %v2668 = vsub.f32 %v2485, %v2660
  %v2669 = vsub.f32 %v2488, %v2660
  %v2670 = vsub.f32 %v2491, %v2660
  %v2671 = vsub.f32 %v2494, %v2660
  %v2672 = vsub.f32 %v2497, %v2660
  %v2673 = vsub.f32 %v2500, %v2660
  %v2674 = vsub.f32 %v2503, %v2660
  %v2675 = vsub.f32 %v2506, %v2660
  %v2676 = vsub.f32 %v2509, %v2660
  %v2677 = vsub.f32 %v2512, %v2660
  %v2678 = vsub.f32 %v2515, %v2660
  %v2679 = vsub.f32 %v2518, %v2660
  %v2680 = vsub.f32 %v2521, %v2660
  %v2681 = vsub.f32 %v2524, %v2660
  %v2682 = vsub.f32 %v2527, %v2660
  %v2683 = vsub.f32 %v2530, %v2660
  %v2684 = vsub.f32 %v2533, %v2660
  %v2685 = vsub.f32 %v2536, %v2660
  %v2686 = vsub.f32 %v2539, %v2660
  %v2687 = vsub.f32 %v2542, %v2660
  %v2688 = vsub.f32 %v2545, %v2660
  %v2689 = vsub.f32 %v2548, %v2660
  %v2690 = vsub.f32 %v2551, %v2660
  %v2691 = vsub.f32 %v2554, %v2660
  %v2692 = vsub.f32 %v2557, %v2660
  %v2693 = vmul.f32 %v2661, %v2661
  %v2694 = vmul.f32 %v2662, %v2662
  %v2695 = vmul.f32 %v2663, %v2663
  %v2696 = vmul.f32 %v2664, %v2664
  %v2697 = vmul.f32 %v2665, %v2665
  %v2698 = vmul.f32 %v2666, %v2666
  %v2699 = vmul.f32 %v2667, %v2667
  %v2700 = vmul.f32 %v2668, %v2668
  %v2701 = vmul.f32 %v2669, %v2669
  %v2702 = vmul.f32 %v2670, %v2670
  %v2703 = vmul.f32 %v2671, %v2671
  %v2704 = vmul.f32 %v2672, %v2672
  %v2705 = vmul.f32 %v2673, %v2673
  %v2706 = vmul.f32 %v2674, %v2674
  %v2707 = vmul.f32 %v2675, %v2675
  %v2708 = vmul.f32 %v2676, %v2676
  %v2709 = vmul.f32 %v2677, %v2677
  %v2710 = vmul.f32 %v2678, %v2678
  %v2711 = vmul.f32 %v2679, %v2679
  %v2712 = vmul.f32 %v2680, %v2680
  %v2713 = vmul.f32 %v2681, %v2681
  %v2714 = vmul.f32 %v2682, %v2682
  %v2715 = vmul.f32 %v2683, %v2683
  %v2716 = vmul.f32 %v2684, %v2684
  %v2717 = vmul.f32 %v2685, %v2685
  %v2718 = vmul.f32 %v2686, %v2686
  %v2719 = vmul.f32 %v2687, %v2687
  %v2720 = vmul.f32 %v2688, %v2688
  %v2721 = vmul.f32 %v2689, %v2689
  %v2722 = vmul.f32 %v2690, %v2690
  %v2723 = vmul.f32 %v2691, %v2691
  %v2724 = vmul.f32 %v2692, %v2692
  %v2725 = vsel %vm500, %v2693, 0.0
  %v2726 = vsel %vm500, %v2694, 0.0
  %v2727 = vadd.f32 %v2725, %v2726
  %v2728 = vsel %vm500, %v2695, 0.0
  %v2729 = vadd.f32 %v2727, %v2728
  %v2730 = vsel %vm500, %v2696, 0.0
  %v2731 = vadd.f32 %v2729, %v2730
  %v2732 = vsel %vm500, %v2697, 0.0
  %v2733 = vadd.f32 %v2731, %v2732
  %v2734 = vsel %vm500, %v2698, 0.0
  %v2735 = vadd.f32 %v2733, %v2734
  %v2736 = vsel %vm500, %v2699, 0.0
  %v2737 = vadd.f32 %v2735, %v2736
  %v2738 = vsel %vm500, %v2700, 0.0
  %v2739 = vadd.f32 %v2737, %v2738
  %v2740 = vsel %vm500, %v2701, 0.0
  %v2741 = vadd.f32 %v2739, %v2740
  %v2742 = vsel %vm500, %v2702, 0.0
  %v2743 = vadd.f32 %v2741, %v2742
  %v2744 = vsel %vm500, %v2703, 0.0
  %v2745 = vadd.f32 %v2743, %v2744
  %v2746 = vsel %vm500, %v2704, 0.0
  %v2747 = vadd.f32 %v2745, %v2746
  %v2748 = vsel %vm500, %v2705, 0.0
  %v2749 = vadd.f32 %v2747, %v2748
  %v2750 = vsel %vm500, %v2706, 0.0
  %v2751 = vadd.f32 %v2749, %v2750
  %v2752 = vsel %vm500, %v2707, 0.0
  %v2753 = vadd.f32 %v2751, %v2752
  %v2754 = vsel %vm500, %v2708, 0.0
  %v2755 = vadd.f32 %v2753, %v2754
  %v2756 = vsel %vm500, %v2709, 0.0
  %v2757 = vadd.f32 %v2755, %v2756
  %v2758 = vsel %vm500, %v2710, 0.0
  %v2759 = vadd.f32 %v2757, %v2758
  %v2760 = vsel %vm500, %v2711, 0.0
  %v2761 = vadd.f32 %v2759, %v2760
  %v2762 = vsel %vm500, %v2712, 0.0
  %v2763 = vadd.f32 %v2761, %v2762
  %v2764 = vsel %vm500, %v2713, 0.0
  %v2765 = vadd.f32 %v2763, %v2764
  %v2766 = vsel %vm500, %v2714, 0.0
  %v2767 = vadd.f32 %v2765, %v2766
  %v2768 = vsel %vm500, %v2715, 0.0
  %v2769 = vadd.f32 %v2767, %v2768
  %v2770 = vsel %vm500, %v2716, 0.0
  %v2771 = vadd.f32 %v2769, %v2770
  %v2772 = vsel %vm500, %v2717, 0.0
  %v2773 = vadd.f32 %v2771, %v2772
  %v2774 = vsel %vm500, %v2718, 0.0
  %v2775 = vadd.f32 %v2773, %v2774
  %v2776 = vsel %vm500, %v2719, 0.0
  %v2777 = vadd.f32 %v2775, %v2776
  %v2778 = vsel %vm500, %v2720, 0.0
  %v2779 = vadd.f32 %v2777, %v2778
  %v2780 = vsel %vm500, %v2721, 0.0
  %v2781 = vadd.f32 %v2779, %v2780
  %v2782 = vsel %vm500, %v2722, 0.0
  %v2783 = vadd.f32 %v2781, %v2782
  %v2784 = vsel %vm500, %v2723, 0.0
  %v2785 = vadd.f32 %v2783, %v2784
  %v2786 = vsel %vm500, %v2724, 0.0
  %v2787 = vadd.f32 %v2785, %v2786
  %v2788 = vrot.slane %v2787, 4
  %v2789 = vadd.f32 %v2787, %v2788
  %v2790 = vrot.slane %v2789, 2
  %v2791 = vadd.f32 %v2789, %v2790
  %v2792 = vrot.slane %v2791, 1
  %v2793 = vadd.f32 %v2791, %v2792
  %vm2794 = vcmask 1040384
  %v2795 = vsel %vm2794, %v2659, %v2793
  %vm2796 = vcmask 25600
  %2797 = vst.msk [vmem:[%s5] sm:$0x3] %vm2796, %v2795
  %s2798 = scalar_lea.vmem %s0, 256
  %v2799 = vld [vmem:[%s2798] sm:$0xff]
  %v2800 = vld [vmem:[%s2798 + $0x8] sm:$0xff]
  %v2801 = vld [vmem:[%s2798 + $0x10] sm:$0xff]
  %v2802 = vld [vmem:[%s2798 + $0x18] sm:$0xff]
  %v2803 = vld [vmem:[%s2798 + $0x20] sm:$0xff]
  %v2804 = vld [vmem:[%s2798 + $0x28] sm:$0xff]
  %v2805 = vld [vmem:[%s2798 + $0x30] sm:$0xff]
  %v2806 = vld [vmem:[%s2798 + $0x38] sm:$0xff]
  %v2807 = vld [vmem:[%s2798 + $0x40] sm:$0xff]
  %v2808 = vld [vmem:[%s2798 + $0x48] sm:$0xff]
  %v2809 = vld [vmem:[%s2798 + $0x50] sm:$0xff]
  %v2810 = vld [vmem:[%s2798 + $0x58] sm:$0xff]
  %v2811 = vld [vmem:[%s2798 + $0x60] sm:$0xff]
  %v2812 = vld [vmem:[%s2798 + $0x68] sm:$0xff]
  %v2813 = vld [vmem:[%s2798 + $0x70] sm:$0xff]
  %v2814 = vld [vmem:[%s2798 + $0x78] sm:$0xff]
  %v2815 = vld [vmem:[%s2798 + $0x80] sm:$0xff]
  %v2816 = vld [vmem:[%s2798 + $0x88] sm:$0xff]
  %v2817 = vld [vmem:[%s2798 + $0x90] sm:$0xff]
  %v2818 = vld [vmem:[%s2798 + $0x98] sm:$0xff]
  %v2819 = vld [vmem:[%s2798 + $0xa0] sm:$0xff]
  %v2820 = vld [vmem:[%s2798 + $0xa8] sm:$0xff]
  %v2821 = vld [vmem:[%s2798 + $0xb0] sm:$0xff]
  %v2822 = vld [vmem:[%s2798 + $0xb8] sm:$0xff]
  %v2823 = vld [vmem:[%s2798 + $0xc0] sm:$0xff]
  %v2824 = vld [vmem:[%s2798 + $0xc8] sm:$0xff]
  %v2825 = vld [vmem:[%s2798 + $0xd0] sm:$0xff]
  %v2826 = vld [vmem:[%s2798 + $0xd8] sm:$0xff]
  %v2827 = vld [vmem:[%s2798 + $0xe0] sm:$0xff]
  %v2828 = vld [vmem:[%s2798 + $0xe8] sm:$0xff]
  %v2829 = vld [vmem:[%s2798 + $0xf0] sm:$0xff]
  %v2830 = vld [vmem:[%s2798 + $0xf8] sm:$0xff]
  %v2831 = vld [vmem:[%s1] sm:$0x1]
  %v2833 = vperm.slane %v2831, 0
  %v2835 = vmul.f32 %v2799, %v2833
  %v2836 = vmul.f32 %v2800, %v2833
  %v2837 = vmul.f32 %v2801, %v2833
  %v2838 = vmul.f32 %v2802, %v2833
  %v2839 = vmul.f32 %v2803, %v2833
  %v2840 = vmul.f32 %v2804, %v2833
  %v2841 = vmul.f32 %v2805, %v2833
  %v2842 = vmul.f32 %v2806, %v2833
  %v2843 = vmul.f32 %v2807, %v2833
  %v2844 = vmul.f32 %v2808, %v2833
  %v2845 = vmul.f32 %v2809, %v2833
  %v2846 = vmul.f32 %v2810, %v2833
  %v2847 = vmul.f32 %v2811, %v2833
  %v2848 = vmul.f32 %v2812, %v2833
  %v2849 = vmul.f32 %v2813, %v2833
  %v2850 = vmul.f32 %v2814, %v2833
  %v2851 = vmul.f32 %v2815, %v2833
  %v2852 = vmul.f32 %v2816, %v2833
  %v2853 = vmul.f32 %v2817, %v2833
  %v2854 = vmul.f32 %v2818, %v2833
  %v2855 = vmul.f32 %v2819, %v2833
  %v2856 = vmul.f32 %v2820, %v2833
  %v2857 = vmul.f32 %v2821, %v2833
  %v2858 = vmul.f32 %v2822, %v2833
  %v2859 = vmul.f32 %v2823, %v2833
  %v2860 = vmul.f32 %v2824, %v2833
  %v2861 = vmul.f32 %v2825, %v2833
  %v2862 = vmul.f32 %v2826, %v2833
  %v2863 = vmul.f32 %v2827, %v2833
  %v2864 = vmul.f32 %v2828, %v2833
  %v2865 = vmul.f32 %v2829, %v2833
  %v2866 = vmul.f32 %v2830, %v2833
  %v2867 = vld [vmem:[%s2] sm:$0x1]
  %v2869 = vperm.slane %v2867, 0
  %v2871 = vadd.f32 %v2835, %v2869
  %v2872 = vadd.f32 %v2836, %v2869
  %v2873 = vadd.f32 %v2837, %v2869
  %v2874 = vadd.f32 %v2838, %v2869
  %v2875 = vadd.f32 %v2839, %v2869
  %v2876 = vadd.f32 %v2840, %v2869
  %v2877 = vadd.f32 %v2841, %v2869
  %v2878 = vadd.f32 %v2842, %v2869
  %v2879 = vadd.f32 %v2843, %v2869
  %v2880 = vadd.f32 %v2844, %v2869
  %v2881 = vadd.f32 %v2845, %v2869
  %v2882 = vadd.f32 %v2846, %v2869
  %v2883 = vadd.f32 %v2847, %v2869
  %v2884 = vadd.f32 %v2848, %v2869
  %v2885 = vadd.f32 %v2849, %v2869
  %v2886 = vadd.f32 %v2850, %v2869
  %v2887 = vadd.f32 %v2851, %v2869
  %v2888 = vadd.f32 %v2852, %v2869
  %v2889 = vadd.f32 %v2853, %v2869
  %v2890 = vadd.f32 %v2854, %v2869
  %v2891 = vadd.f32 %v2855, %v2869
  %v2892 = vadd.f32 %v2856, %v2869
  %v2893 = vadd.f32 %v2857, %v2869
  %v2894 = vadd.f32 %v2858, %v2869
  %v2895 = vadd.f32 %v2859, %v2869
  %v2896 = vadd.f32 %v2860, %v2869
  %v2897 = vadd.f32 %v2861, %v2869
  %v2898 = vadd.f32 %v2862, %v2869
  %v2899 = vadd.f32 %v2863, %v2869
  %v2900 = vadd.f32 %v2864, %v2869
  %v2901 = vadd.f32 %v2865, %v2869
  %v2902 = vadd.f32 %v2866, %v2869
  %v2903 = vmax.f32 %v2871, 0.0
  %v2904 = vmax.f32 %v2872, 0.0
  %v2905 = vmax.f32 %v2873, 0.0
  %v2906 = vmax.f32 %v2874, 0.0
  %v2907 = vmax.f32 %v2875, 0.0
  %v2908 = vmax.f32 %v2876, 0.0
  %v2909 = vmax.f32 %v2877, 0.0
  %v2910 = vmax.f32 %v2878, 0.0
  %v2911 = vmax.f32 %v2879, 0.0
  %v2912 = vmax.f32 %v2880, 0.0
  %v2913 = vmax.f32 %v2881, 0.0
  %v2914 = vmax.f32 %v2882, 0.0
  %v2915 = vmax.f32 %v2883, 0.0
  %v2916 = vmax.f32 %v2884, 0.0
  %v2917 = vmax.f32 %v2885, 0.0
  %v2918 = vmax.f32 %v2886, 0.0
  %v2919 = vmax.f32 %v2887, 0.0
  %v2920 = vmax.f32 %v2888, 0.0
  %v2921 = vmax.f32 %v2889, 0.0
  %v2922 = vmax.f32 %v2890, 0.0
  %v2923 = vmax.f32 %v2891, 0.0
  %v2924 = vmax.f32 %v2892, 0.0
  %v2925 = vmax.f32 %v2893, 0.0
  %v2926 = vmax.f32 %v2894, 0.0
  %v2927 = vmax.f32 %v2895, 0.0
  %v2928 = vmax.f32 %v2896, 0.0
  %v2929 = vmax.f32 %v2897, 0.0
  %v2930 = vmax.f32 %v2898, 0.0
  %v2931 = vmax.f32 %v2899, 0.0
  %v2932 = vmax.f32 %v2900, 0.0
  %v2933 = vmax.f32 %v2901, 0.0
  %v2934 = vmax.f32 %v2902, 0.0
  %2935 = vst.msk [vmem:[#allocation2 + $0x160] sm:$0xff] %vm500, %v2903
  %2936 = vst.msk [vmem:[#allocation2 + $0x168] sm:$0xff] %vm500, %v2904
  %2937 = vst.msk [vmem:[#allocation2 + $0x170] sm:$0xff] %vm500, %v2905
  %2938 = vst.msk [vmem:[#allocation2 + $0x178] sm:$0xff] %vm500, %v2906
  %2939 = vst.msk [vmem:[#allocation2 + $0x180] sm:$0xff] %vm500, %v2907
  %2940 = vst.msk [vmem:[#allocation2 + $0x188] sm:$0xff] %vm500, %v2908
  %2941 = vst.msk [vmem:[#allocation2 + $0x190] sm:$0xff] %vm500, %v2909
  %2942 = vst.msk [vmem:[#allocation2 + $0x198] sm:$0xff] %vm500, %v2910
  %2943 = vst.msk [vmem:[#allocation2 + $0x1a0] sm:$0xff] %vm500, %v2911
  %2944 = vst.msk [vmem:[#allocation2 + $0x1a8] sm:$0xff] %vm500, %v2912
  %2945 = vst.msk [vmem:[#allocation2 + $0x1b0] sm:$0xff] %vm500, %v2913
  %2946 = vst.msk [vmem:[#allocation2 + $0x1b8] sm:$0xff] %vm500, %v2914
  %2947 = vst.msk [vmem:[#allocation2 + $0x1c0] sm:$0xff] %vm500, %v2915
  %2948 = vst.msk [vmem:[#allocation2 + $0x1c8] sm:$0xff] %vm500, %v2916
  %2949 = vst.msk [vmem:[#allocation2 + $0x1d0] sm:$0xff] %vm500, %v2917
  %2950 = vst.msk [vmem:[#allocation2 + $0x1d8] sm:$0xff] %vm500, %v2918
  %2951 = vst.msk [vmem:[#allocation2 + $0x1e0] sm:$0xff] %vm500, %v2919
  %2952 = vst.msk [vmem:[#allocation2 + $0x1e8] sm:$0xff] %vm500, %v2920
  %2953 = vst.msk [vmem:[#allocation2 + $0x1f0] sm:$0xff] %vm500, %v2921
  %2954 = vst.msk [vmem:[#allocation2 + $0x1f8] sm:$0xff] %vm500, %v2922
  %2955 = vst.msk [vmem:[#allocation2 + $0x200] sm:$0xff] %vm500, %v2923
  %2956 = vst.msk [vmem:[#allocation2 + $0x208] sm:$0xff] %vm500, %v2924
  %2957 = vst.msk [vmem:[#allocation2 + $0x210] sm:$0xff] %vm500, %v2925
  %2958 = vst.msk [vmem:[#allocation2 + $0x218] sm:$0xff] %vm500, %v2926
  %2959 = vst.msk [vmem:[#allocation2 + $0x220] sm:$0xff] %vm500, %v2927
  %2960 = vst.msk [vmem:[#allocation2 + $0x228] sm:$0xff] %vm500, %v2928
  %2961 = vst.msk [vmem:[#allocation2 + $0x230] sm:$0xff] %vm500, %v2929
  %2962 = vst.msk [vmem:[#allocation2 + $0x238] sm:$0xff] %vm500, %v2930
  %2963 = vst.msk [vmem:[#allocation2 + $0x240] sm:$0xff] %vm500, %v2931
  %2964 = vst.msk [vmem:[#allocation2 + $0x248] sm:$0xff] %vm500, %v2932
  %2965 = vst.msk [vmem:[#allocation2 + $0x250] sm:$0xff] %vm500, %v2933
  %2966 = vst.msk [vmem:[#allocation2 + $0x258] sm:$0xff] %vm500, %v2934
  %v2967 = vld [vmem:[#allocation2 + $0x14f] sm:$0xff]
  %v2968 = vld [vmem:[#allocation2 + $0x157] sm:$0xff]
  %v2969 = vld [vmem:[#allocation2 + $0x15f] sm:$0xff]
  %v2970 = vld [vmem:[#allocation2 + $0x167] sm:$0xff]
  %v2971 = vld [vmem:[#allocation2 + $0x16f] sm:$0xff]
  %v2972 = vld [vmem:[#allocation2 + $0x177] sm:$0xff]
  %v2973 = vld [vmem:[#allocation2 + $0x17f] sm:$0xff]
  %v2974 = vld [vmem:[#allocation2 + $0x187] sm:$0xff]
  %v2975 = vld [vmem:[#allocation2 + $0x18f] sm:$0xff]
  %v2976 = vld [vmem:[#allocation2 + $0x197] sm:$0xff]
  %v2977 = vld [vmem:[#allocation2 + $0x19f] sm:$0xff]
  %v2978 = vld [vmem:[#allocation2 + $0x1a7] sm:$0xff]
  %v2979 = vld [vmem:[#allocation2 + $0x1af] sm:$0xff]
  %v2980 = vld [vmem:[#allocation2 + $0x1b7] sm:$0xff]
  %v2981 = vld [vmem:[#allocation2 + $0x1bf] sm:$0xff]
  %v2982 = vld [vmem:[#allocation2 + $0x1c7] sm:$0xff]
  %v2983 = vld [vmem:[#allocation2 + $0x1cf] sm:$0xff]
  %v2984 = vld [vmem:[#allocation2 + $0x1d7] sm:$0xff]
  %v2985 = vld [vmem:[#allocation2 + $0x1df] sm:$0xff]
  %v2986 = vld [vmem:[#allocation2 + $0x1e7] sm:$0xff]
  %v2987 = vld [vmem:[#allocation2 + $0x1ef] sm:$0xff]
  %v2988 = vld [vmem:[#allocation2 + $0x1f7] sm:$0xff]
  %v2989 = vld [vmem:[#allocation2 + $0x1ff] sm:$0xff]
  %v2990 = vld [vmem:[#allocation2 + $0x207] sm:$0xff]
  %v2991 = vld [vmem:[#allocation2 + $0x20f] sm:$0xff]
  %v2992 = vld [vmem:[#allocation2 + $0x217] sm:$0xff]
  %v2993 = vld [vmem:[#allocation2 + $0x21f] sm:$0xff]
  %v2994 = vld [vmem:[#allocation2 + $0x227] sm:$0xff]
  %v2995 = vld [vmem:[#allocation2 + $0x22f] sm:$0xff]
  %v2996 = vld [vmem:[#allocation2 + $0x237] sm:$0xff]
  %v2997 = vld [vmem:[#allocation2 + $0x23f] sm:$0xff]
  %v2998 = vld [vmem:[#allocation2 + $0x247] sm:$0xff]
  %v2999 = vsel %vm749, %v2967, 0.0
  %v3000 = vsel %vm750, %v2968, 0.0
  %v3001 = vsel %vm751, %v2969, 0.0
  %v3002 = vsel %vm752, %v2970, 0.0
  %v3003 = vsel %vm753, %v2971, 0.0
  %v3004 = vsel %vm754, %v2972, 0.0
  %v3005 = vsel %vm755, %v2973, 0.0
  %v3006 = vsel %vm756, %v2974, 0.0
  %v3007 = vsel %vm757, %v2975, 0.0
  %v3008 = vsel %vm758, %v2976, 0.0
  %v3009 = vsel %vm759, %v2977, 0.0
  %v3010 = vsel %vm760, %v2978, 0.0
  %v3011 = vsel %vm761, %v2979, 0.0
  %v3012 = vsel %vm762, %v2980, 0.0
  %v3013 = vsel %vm763, %v2981, 0.0
  %v3014 = vsel %vm764, %v2982, 0.0
  %v3015 = vsel %vm765, %v2983, 0.0
  %v3016 = vsel %vm766, %v2984, 0.0
  %v3017 = vsel %vm767, %v2985, 0.0
  %v3018 = vsel %vm768, %v2986, 0.0
  %v3019 = vsel %vm769, %v2987, 0.0
  %v3020 = vsel %vm770, %v2988, 0.0
  %v3021 = vsel %vm771, %v2989, 0.0
  %v3022 = vsel %vm772, %v2990, 0.0
  %v3023 = vsel %vm773, %v2991, 0.0
  %v3024 = vsel %vm774, %v2992, 0.0
  %v3025 = vsel %vm775, %v2993, 0.0
  %v3026 = vsel %vm776, %v2994, 0.0
  %v3027 = vsel %vm777, %v2995, 0.0
  %v3028 = vsel %vm778, %v2996, 0.0
  %v3029 = vsel %vm779, %v2997, 0.0
  %v3030 = vsel %vm780, %v2998, 0.0
  %v3031 = vld [vmem:[#allocation2 + $0x150] sm:$0xff]
  %v3032 = vld [vmem:[#allocation2 + $0x158] sm:$0xff]
  %v3033 = vld [vmem:[#allocation2 + $0x160] sm:$0xff]
  %v3034 = vld [vmem:[#allocation2 + $0x168] sm:$0xff]
  %v3035 = vld [vmem:[#allocation2 + $0x170] sm:$0xff]
  %v3036 = vld [vmem:[#allocation2 + $0x178] sm:$0xff]
  %v3037 = vld [vmem:[#allocation2 + $0x180] sm:$0xff]
  %v3038 = vld [vmem:[#allocation2 + $0x188] sm:$0xff]
  %v3039 = vld [vmem:[#allocation2 + $0x190] sm:$0xff]
  %v3040 = vld [vmem:[#allocation2 + $0x198] sm:$0xff]
  %v3041 = vld [vmem:[#allocation2 + $0x1a0] sm:$0xff]
  %v3042 = vld [vmem:[#allocation2 + $0x1a8] sm:$0xff]
  %v3043 = vld [vmem:[#allocation2 + $0x1b0] sm:$0xff]
  %v3044 = vld [vmem:[#allocation2 + $0x1b8] sm:$0xff]
  %v3045 = vld [vmem:[#allocation2 + $0x1c0] sm:$0xff]
  %v3046 = vld [vmem:[#allocation2 + $0x1c8] sm:$0xff]
  %v3047 = vld [vmem:[#allocation2 + $0x1d0] sm:$0xff]
  %v3048 = vld [vmem:[#allocation2 + $0x1d8] sm:$0xff]
  %v3049 = vld [vmem:[#allocation2 + $0x1e0] sm:$0xff]
  %v3050 = vld [vmem:[#allocation2 + $0x1e8] sm:$0xff]
  %v3051 = vld [vmem:[#allocation2 + $0x1f0] sm:$0xff]
  %v3052 = vld [vmem:[#allocation2 + $0x1f8] sm:$0xff]
  %v3053 = vld [vmem:[#allocation2 + $0x200] sm:$0xff]
  %v3054 = vld [vmem:[#allocation2 + $0x208] sm:$0xff]
  %v3055 = vld [vmem:[#allocation2 + $0x210] sm:$0xff]
  %v3056 = vld [vmem:[#allocation2 + $0x218] sm:$0xff]
  %v3057 = vld [vmem:[#allocation2 + $0x220] sm:$0xff]
  %v3058 = vld [vmem:[#allocation2 + $0x228] sm:$0xff]
  %v3059 = vld [vmem:[#allocation2 + $0x230] sm:$0xff]
  %v3060 = vld [vmem:[#allocation2 + $0x238] sm:$0xff]
  %v3061 = vld [vmem:[#allocation2 + $0x240] sm:$0xff]
  %v3062 = vld [vmem:[#allocation2 + $0x248] sm:$0xff]
  %v3063 = vld [vmem:[#allocation2 + $0x151] sm:$0xff]
  %v3064 = vld [vmem:[#allocation2 + $0x159] sm:$0xff]
  %v3065 = vld [vmem:[#allocation2 + $0x161] sm:$0xff]
  %v3066 = vld [vmem:[#allocation2 + $0x169] sm:$0xff]
  %v3067 = vld [vmem:[#allocation2 + $0x171] sm:$0xff]
  %v3068 = vld [vmem:[#allocation2 + $0x179] sm:$0xff]
  %v3069 = vld [vmem:[#allocation2 + $0x181] sm:$0xff]
  %v3070 = vld [vmem:[#allocation2 + $0x189] sm:$0xff]
  %v3071 = vld [vmem:[#allocation2 + $0x191] sm:$0xff]
  %v3072 = vld [vmem:[#allocation2 + $0x199] sm:$0xff]
  %v3073 = vld [vmem:[#allocation2 + $0x1a1] sm:$0xff]
  %v3074 = vld [vmem:[#allocation2 + $0x1a9] sm:$0xff]
  %v3075 = vld [vmem:[#allocation2 + $0x1b1] sm:$0xff]
  %v3076 = vld [vmem:[#allocation2 + $0x1b9] sm:$0xff]
  %v3077 = vld [vmem:[#allocation2 + $0x1c1] sm:$0xff]
  %v3078 = vld [vmem:[#allocation2 + $0x1c9] sm:$0xff]
  %v3079 = vld [vmem:[#allocation2 + $0x1d1] sm:$0xff]
  %v3080 = vld [vmem:[#allocation2 + $0x1d9] sm:$0xff]
  %v3081 = vld [vmem:[#allocation2 + $0x1e1] sm:$0xff]
  %v3082 = vld [vmem:[#allocation2 + $0x1e9] sm:$0xff]
  %v3083 = vld [vmem:[#allocation2 + $0x1f1] sm:$0xff]
  %v3084 = vld [vmem:[#allocation2 + $0x1f9] sm:$0xff]
  %v3085 = vld [vmem:[#allocation2 + $0x201] sm:$0xff]
  %v3086 = vld [vmem:[#allocation2 + $0x209] sm:$0xff]
  %v3087 = vld [vmem:[#allocation2 + $0x211] sm:$0xff]
  %v3088 = vld [vmem:[#allocation2 + $0x219] sm:$0xff]
  %v3089 = vld [vmem:[#allocation2 + $0x221] sm:$0xff]
  %v3090 = vld [vmem:[#allocation2 + $0x229] sm:$0xff]
  %v3091 = vld [vmem:[#allocation2 + $0x231] sm:$0xff]
  %v3092 = vld [vmem:[#allocation2 + $0x239] sm:$0xff]
  %v3093 = vld [vmem:[#allocation2 + $0x241] sm:$0xff]
  %v3094 = vld [vmem:[#allocation2 + $0x249] sm:$0xff]
  %v3095 = vsel %vm909, %v3063, 0.0
  %v3096 = vsel %vm910, %v3064, 0.0
  %v3097 = vsel %vm911, %v3065, 0.0
  %v3098 = vsel %vm912, %v3066, 0.0
  %v3099 = vsel %vm913, %v3067, 0.0
  %v3100 = vsel %vm914, %v3068, 0.0
  %v3101 = vsel %vm915, %v3069, 0.0
  %v3102 = vsel %vm916, %v3070, 0.0
  %v3103 = vsel %vm917, %v3071, 0.0
  %v3104 = vsel %vm918, %v3072, 0.0
  %v3105 = vsel %vm919, %v3073, 0.0
  %v3106 = vsel %vm920, %v3074, 0.0
  %v3107 = vsel %vm921, %v3075, 0.0
  %v3108 = vsel %vm922, %v3076, 0.0
  %v3109 = vsel %vm923, %v3077, 0.0
  %v3110 = vsel %vm924, %v3078, 0.0
  %v3111 = vsel %vm925, %v3079, 0.0
  %v3112 = vsel %vm926, %v3080, 0.0
  %v3113 = vsel %vm927, %v3081, 0.0
  %v3114 = vsel %vm928, %v3082, 0.0
  %v3115 = vsel %vm929, %v3083, 0.0
  %v3116 = vsel %vm930, %v3084, 0.0
  %v3117 = vsel %vm931, %v3085, 0.0
  %v3118 = vsel %vm932, %v3086, 0.0
  %v3119 = vsel %vm933, %v3087, 0.0
  %v3120 = vsel %vm934, %v3088, 0.0
  %v3121 = vsel %vm935, %v3089, 0.0
  %v3122 = vsel %vm936, %v3090, 0.0
  %v3123 = vsel %vm937, %v3091, 0.0
  %v3124 = vsel %vm938, %v3092, 0.0
  %v3125 = vsel %vm939, %v3093, 0.0
  %v3126 = vsel %vm940, %v3094, 0.0
  %v3127 = vld [vmem:[#allocation2 + $0x24f] sm:$0xff]
  %v3128 = vld [vmem:[#allocation2 + $0x257] sm:$0xff]
  %v3129 = vsel %vm749, %v2969, 0.0
  %v3130 = vsel %vm750, %v2970, 0.0
  %v3131 = vsel %vm751, %v2971, 0.0
  %v3132 = vsel %vm752, %v2972, 0.0
  %v3133 = vsel %vm753, %v2973, 0.0
  %v3134 = vsel %vm754, %v2974, 0.0
  %v3135 = vsel %vm755, %v2975, 0.0
  %v3136 = vsel %vm756, %v2976, 0.0
  %v3137 = vsel %vm757, %v2977, 0.0
  %v3138 = vsel %vm758, %v2978, 0.0
  %v3139 = vsel %vm759, %v2979, 0.0
  %v3140 = vsel %vm760, %v2980, 0.0
  %v3141 = vsel %vm761, %v2981, 0.0
  %v3142 = vsel %vm762, %v2982, 0.0
  %v3143 = vsel %vm763, %v2983, 0.0
  %v3144 = vsel %vm764, %v2984, 0.0
  %v3145 = vsel %vm765, %v2985, 0.0
  %v3146 = vsel %vm766, %v2986, 0.0
  %v3147 = vsel %vm767, %v2987, 0.0
  %v3148 = vsel %vm768, %v2988, 0.0
  %v3149 = vsel %vm769, %v2989, 0.0
  %v3150 = vsel %vm770, %v2990, 0.0
  %v3151 = vsel %vm771, %v2991, 0.0
  %v3152 = vsel %vm772, %v2992, 0.0
  %v3153 = vsel %vm773, %v2993, 0.0
  %v3154 = vsel %vm774, %v2994, 0.0
  %v3155 = vsel %vm775, %v2995, 0.0
  %v3156 = vsel %vm776, %v2996, 0.0
  %v3157 = vsel %vm777, %v2997, 0.0
  %v3158 = vsel %vm778, %v2998, 0.0
  %v3159 = vsel %vm779, %v3127, 0.0
  %v3160 = vsel %vm780, %v3128, 0.0
  %v3161 = vld [vmem:[#allocation2 + $0x250] sm:$0xff]
  %v3162 = vld [vmem:[#allocation2 + $0x258] sm:$0xff]
  %v3163 = vld [vmem:[#allocation2 + $0x251] sm:$0xff]
  %v3164 = vld [vmem:[#allocation2 + $0x259] sm:$0xff]
  %v3165 = vsel %vm909, %v3065, 0.0
  %v3166 = vsel %vm910, %v3066, 0.0
  %v3167 = vsel %vm911, %v3067, 0.0
  %v3168 = vsel %vm912, %v3068, 0.0
  %v3169 = vsel %vm913, %v3069, 0.0
  %v3170 = vsel %vm914, %v3070, 0.0
  %v3171 = vsel %vm915, %v3071, 0.0
  %v3172 = vsel %vm916, %v3072, 0.0
  %v3173 = vsel %vm917, %v3073, 0.0
  %v3174 = vsel %vm918, %v3074, 0.0
  %v3175 = vsel %vm919, %v3075, 0.0
  %v3176 = vsel %vm920, %v3076, 0.0
  %v3177 = vsel %vm921, %v3077, 0.0
  %v3178 = vsel %vm922, %v3078, 0.0
  %v3179 = vsel %vm923, %v3079, 0.0
  %v3180 = vsel %vm924, %v3080, 0.0
  %v3181 = vsel %vm925, %v3081, 0.0
  %v3182 = vsel %vm926, %v3082, 0.0
  %v3183 = vsel %vm927, %v3083, 0.0
  %v3184 = vsel %vm928, %v3084, 0.0
  %v3185 = vsel %vm929, %v3085, 0.0
  %v3186 = vsel %vm930, %v3086, 0.0
  %v3187 = vsel %vm931, %v3087, 0.0
  %v3188 = vsel %vm932, %v3088, 0.0
  %v3189 = vsel %vm933, %v3089, 0.0
  %v3190 = vsel %vm934, %v3090, 0.0
  %v3191 = vsel %vm935, %v3091, 0.0
  %v3192 = vsel %vm936, %v3092, 0.0
  %v3193 = vsel %vm937, %v3093, 0.0
  %v3194 = vsel %vm938, %v3094, 0.0
  %v3195 = vsel %vm939, %v3163, 0.0
  %v3196 = vsel %vm940, %v3164, 0.0
  %v3197 = vld [vmem:[#allocation2 + $0x25f] sm:$0xff]
  %v3198 = vld [vmem:[#allocation2 + $0x267] sm:$0xff]
  %v3199 = vsel %vm749, %v2971, 0.0
  %v3200 = vsel %vm750, %v2972, 0.0
  %v3201 = vsel %vm751, %v2973, 0.0
  %v3202 = vsel %vm752, %v2974, 0.0
  %v3203 = vsel %vm753, %v2975, 0.0
  %v3204 = vsel %vm754, %v2976, 0.0
  %v3205 = vsel %vm755, %v2977, 0.0
  %v3206 = vsel %vm756, %v2978, 0.0
  %v3207 = vsel %vm757, %v2979, 0.0
  %v3208 = vsel %vm758, %v2980, 0.0
  %v3209 = vsel %vm759, %v2981, 0.0
  %v3210 = vsel %vm760, %v2982, 0.0
  %v3211 = vsel %vm761, %v2983, 0.0
  %v3212 = vsel %vm762, %v2984, 0.0
  %v3213 = vsel %vm763, %v2985, 0.0
  %v3214 = vsel %vm764, %v2986, 0.0
  %v3215 = vsel %vm765, %v2987, 0.0
  %v3216 = vsel %vm766, %v2988, 0.0
  %v3217 = vsel %vm767, %v2989, 0.0
  %v3218 = vsel %vm768, %v2990, 0.0
  %v3219 = vsel %vm769, %v2991, 0.0
  %v3220 = vsel %vm770, %v2992, 0.0
  %v3221 = vsel %vm771, %v2993, 0.0
  %v3222 = vsel %vm772, %v2994, 0.0
  %v3223 = vsel %vm773, %v2995, 0.0
  %v3224 = vsel %vm774, %v2996, 0.0
  %v3225 = vsel %vm775, %v2997, 0.0
  %v3226 = vsel %vm776, %v2998, 0.0
  %v3227 = vsel %vm777, %v3127, 0.0
  %v3228 = vsel %vm778, %v3128, 0.0
  %v3229 = vsel %vm779, %v3197, 0.0
  %v3230 = vsel %vm780, %v3198, 0.0
  %v3231 = vld [vmem:[#allocation2 + $0x260] sm:$0xff]
  %v3232 = vld [vmem:[#allocation2 + $0x268] sm:$0xff]
  %v3233 = vld [vmem:[#allocation2 + $0x261] sm:$0xff]
  %v3234 = vld [vmem:[#allocation2 + $0x269] sm:$0xff]
  %v3235 = vsel %vm909, %v3067, 0.0
  %v3236 = vsel %vm910, %v3068, 0.0
  %v3237 = vsel %vm911, %v3069, 0.0
  %v3238 = vsel %vm912, %v3070, 0.0
  %v3239 = vsel %vm913, %v3071, 0.0
  %v3240 = vsel %vm914, %v3072, 0.0
  %v3241 = vsel %vm915, %v3073, 0.0
  %v3242 = vsel %vm916, %v3074, 0.0
  %v3243 = vsel %vm917, %v3075, 0.0
  %v3244 = vsel %vm918, %v3076, 0.0
  %v3245 = vsel %vm919, %v3077, 0.0
  %v3246 = vsel %vm920, %v3078, 0.0
  %v3247 = vsel %vm921, %v3079, 0.0
  %v3248 = vsel %vm922, %v3080, 0.0
  %v3249 = vsel %vm923, %v3081, 0.0
  %v3250 = vsel %vm924, %v3082, 0.0
  %v3251 = vsel %vm925, %v3083, 0.0
  %v3252 = vsel %vm926, %v3084, 0.0
  %v3253 = vsel %vm927, %v3085, 0.0
  %v3254 = vsel %vm928, %v3086, 0.0
  %v3255 = vsel %vm929, %v3087, 0.0
  %v3256 = vsel %vm930, %v3088, 0.0
  %v3257 = vsel %vm931, %v3089, 0.0
  %v3258 = vsel %vm932, %v3090, 0.0
  %v3259 = vsel %vm933, %v3091, 0.0
  %v3260 = vsel %vm934, %v3092, 0.0
  %v3261 = vsel %vm935, %v3093, 0.0
  %v3262 = vsel %vm936, %v3094, 0.0
  %v3263 = vsel %vm937, %v3163, 0.0
  %v3264 = vsel %vm938, %v3164, 0.0
  %v3265 = vsel %vm939, %v3233, 0.0
  %v3266 = vsel %vm940, %v3234, 0.0
  %3299 = vrot.lane.b32.xlu0 %v3031, 4
  %v3300 = vpop.permute.xlu0 %3299
  %3301 = vrot.lane.b32.xlu0 %v3032, 4
  %v3302 = vpop.permute.xlu0 %3301
  %3303 = vrot.lane.b32.xlu0 %v3033, 4
  %v3304 = vpop.permute.xlu0 %3303
  %3305 = vrot.lane.b32.xlu0 %v3034, 4
  %v3306 = vpop.permute.xlu0 %3305
  %3307 = vrot.lane.b32.xlu0 %v3035, 4
  %v3308 = vpop.permute.xlu0 %3307
  %3309 = vrot.lane.b32.xlu0 %v3036, 4
  %v3310 = vpop.permute.xlu0 %3309
  %3311 = vrot.lane.b32.xlu0 %v3037, 4
  %v3312 = vpop.permute.xlu0 %3311
  %3313 = vrot.lane.b32.xlu0 %v3038, 4
  %v3314 = vpop.permute.xlu0 %3313
  %3315 = vrot.lane.b32.xlu0 %v3039, 4
  %v3316 = vpop.permute.xlu0 %3315
  %3317 = vrot.lane.b32.xlu0 %v3040, 4
  %v3318 = vpop.permute.xlu0 %3317
  %3319 = vrot.lane.b32.xlu0 %v3041, 4
  %v3320 = vpop.permute.xlu0 %3319
  %3321 = vrot.lane.b32.xlu0 %v3042, 4
  %v3322 = vpop.permute.xlu0 %3321
  %3323 = vrot.lane.b32.xlu0 %v3043, 4
  %v3324 = vpop.permute.xlu0 %3323
  %3325 = vrot.lane.b32.xlu0 %v3044, 4
  %v3326 = vpop.permute.xlu0 %3325
  %3327 = vrot.lane.b32.xlu0 %v3045, 4
  %v3328 = vpop.permute.xlu0 %3327
  %3329 = vrot.lane.b32.xlu0 %v3046, 4
  %v3330 = vpop.permute.xlu0 %3329
  %3331 = vrot.lane.b32.xlu0 %v3047, 4
  %v3332 = vpop.permute.xlu0 %3331
  %3333 = vrot.lane.b32.xlu0 %v3048, 4
  %v3334 = vpop.permute.xlu0 %3333
  %3335 = vrot.lane.b32.xlu0 %v3049, 4
  %v3336 = vpop.permute.xlu0 %3335
  %3337 = vrot.lane.b32.xlu0 %v3050, 4
  %v3338 = vpop.permute.xlu0 %3337
  %3339 = vrot.lane.b32.xlu0 %v3051, 4
  %v3340 = vpop.permute.xlu0 %3339
  %3341 = vrot.lane.b32.xlu0 %v3052, 4
  %v3342 = vpop.permute.xlu0 %3341
  %3343 = vrot.lane.b32.xlu0 %v3053, 4
  %v3344 = vpop.permute.xlu0 %3343
  %3345 = vrot.lane.b32.xlu0 %v3054, 4
  %v3346 = vpop.permute.xlu0 %3345
  %3347 = vrot.lane.b32.xlu0 %v3055, 4
  %v3348 = vpop.permute.xlu0 %3347
  %3349 = vrot.lane.b32.xlu0 %v3056, 4
  %v3350 = vpop.permute.xlu0 %3349
  %3351 = vrot.lane.b32.xlu0 %v3057, 4
  %v3352 = vpop.permute.xlu0 %3351
  %3353 = vrot.lane.b32.xlu0 %v3058, 4
  %v3354 = vpop.permute.xlu0 %3353
  %3355 = vrot.lane.b32.xlu0 %v3059, 4
  %v3356 = vpop.permute.xlu0 %3355
  %3357 = vrot.lane.b32.xlu0 %v3060, 4
  %v3358 = vpop.permute.xlu0 %3357
  %3359 = vrot.lane.b32.xlu0 %v3061, 4
  %v3360 = vpop.permute.xlu0 %3359
  %3361 = vrot.lane.b32.xlu0 %v3062, 4
  %v3362 = vpop.permute.xlu0 %3361
  %3427 = vrot.lane.b32.xlu0 %v3095, 8
  %v3428 = vpop.permute.xlu0 %3427
  %3429 = vrot.lane.b32.xlu0 %v3096, 8
  %v3430 = vpop.permute.xlu0 %3429
  %3431 = vrot.lane.b32.xlu0 %v3097, 8
  %v3432 = vpop.permute.xlu0 %3431
  %3433 = vrot.lane.b32.xlu0 %v3098, 8
  %v3434 = vpop.permute.xlu0 %3433
  %3435 = vrot.lane.b32.xlu0 %v3099, 8
  %v3436 = vpop.permute.xlu0 %3435
  %3437 = vrot.lane.b32.xlu0 %v3100, 8
  %v3438 = vpop.permute.xlu0 %3437
  %3439 = vrot.lane.b32.xlu0 %v3101, 8
  %v3440 = vpop.permute.xlu0 %3439
  %3441 = vrot.lane.b32.xlu0 %v3102, 8
  %v3442 = vpop.permute.xlu0 %3441
  %3443 = vrot.lane.b32.xlu0 %v3103, 8
  %v3444 = vpop.permute.xlu0 %3443
  %3445 = vrot.lane.b32.xlu0 %v3104, 8
  %v3446 = vpop.permute.xlu0 %3445
  %3447 = vrot.lane.b32.xlu0 %v3105, 8
  %v3448 = vpop.permute.xlu0 %3447
  %3449 = vrot.lane.b32.xlu0 %v3106, 8
  %v3450 = vpop.permute.xlu0 %3449
  %3451 = vrot.lane.b32.xlu0 %v3107, 8
  %v3452 = vpop.permute.xlu0 %3451
  %3453 = vrot.lane.b32.xlu0 %v3108, 8
  %v3454 = vpop.permute.xlu0 %3453
  %3455 = vrot.lane.b32.xlu0 %v3109, 8
  %v3456 = vpop.permute.xlu0 %3455
  %3457 = vrot.lane.b32.xlu0 %v3110, 8
  %v3458 = vpop.permute.xlu0 %3457
  %3459 = vrot.lane.b32.xlu0 %v3111, 8
  %v3460 = vpop.permute.xlu0 %3459
  %3461 = vrot.lane.b32.xlu0 %v3112, 8
  %v3462 = vpop.permute.xlu0 %3461
  %3463 = vrot.lane.b32.xlu0 %v3113, 8
  %v3464 = vpop.permute.xlu0 %3463
  %3465 = vrot.lane.b32.xlu0 %v3114, 8
  %v3466 = vpop.permute.xlu0 %3465
  %3467 = vrot.lane.b32.xlu0 %v3115, 8
  %v3468 = vpop.permute.xlu0 %3467
  %3469 = vrot.lane.b32.xlu0 %v3116, 8
  %v3470 = vpop.permute.xlu0 %3469
  %3471 = vrot.lane.b32.xlu0 %v3117, 8
  %v3472 = vpop.permute.xlu0 %3471
  %3473 = vrot.lane.b32.xlu0 %v3118, 8
  %v3474 = vpop.permute.xlu0 %3473
  %3475 = vrot.lane.b32.xlu0 %v3119, 8
  %v3476 = vpop.permute.xlu0 %3475
  %3477 = vrot.lane.b32.xlu0 %v3120, 8
  %v3478 = vpop.permute.xlu0 %3477
  %3479 = vrot.lane.b32.xlu0 %v3121, 8
  %v3480 = vpop.permute.xlu0 %3479
  %3481 = vrot.lane.b32.xlu0 %v3122, 8
  %v3482 = vpop.permute.xlu0 %3481
  %3483 = vrot.lane.b32.xlu0 %v3123, 8
  %v3484 = vpop.permute.xlu0 %3483
  %3485 = vrot.lane.b32.xlu0 %v3124, 8
  %v3486 = vpop.permute.xlu0 %3485
  %3487 = vrot.lane.b32.xlu0 %v3125, 8
  %v3488 = vpop.permute.xlu0 %3487
  %3489 = vrot.lane.b32.xlu0 %v3126, 8
  %v3490 = vpop.permute.xlu0 %3489
  %3555 = vrot.lane.b32.xlu0 %v3129, 12
  %v3556 = vpop.permute.xlu0 %3555
  %3557 = vrot.lane.b32.xlu0 %v3130, 12
  %v3558 = vpop.permute.xlu0 %3557
  %3559 = vrot.lane.b32.xlu0 %v3131, 12
  %v3560 = vpop.permute.xlu0 %3559
  %3561 = vrot.lane.b32.xlu0 %v3132, 12
  %v3562 = vpop.permute.xlu0 %3561
  %3563 = vrot.lane.b32.xlu0 %v3133, 12
  %v3564 = vpop.permute.xlu0 %3563
  %3565 = vrot.lane.b32.xlu0 %v3134, 12
  %v3566 = vpop.permute.xlu0 %3565
  %3567 = vrot.lane.b32.xlu0 %v3135, 12
  %v3568 = vpop.permute.xlu0 %3567
  %3569 = vrot.lane.b32.xlu0 %v3136, 12
  %v3570 = vpop.permute.xlu0 %3569
  %3571 = vrot.lane.b32.xlu0 %v3137, 12
  %v3572 = vpop.permute.xlu0 %3571
  %3573 = vrot.lane.b32.xlu0 %v3138, 12
  %v3574 = vpop.permute.xlu0 %3573
  %3575 = vrot.lane.b32.xlu0 %v3139, 12
  %v3576 = vpop.permute.xlu0 %3575
  %3577 = vrot.lane.b32.xlu0 %v3140, 12
  %v3578 = vpop.permute.xlu0 %3577
  %3579 = vrot.lane.b32.xlu0 %v3141, 12
  %v3580 = vpop.permute.xlu0 %3579
  %3581 = vrot.lane.b32.xlu0 %v3142, 12
  %v3582 = vpop.permute.xlu0 %3581
  %3583 = vrot.lane.b32.xlu0 %v3143, 12
  %v3584 = vpop.permute.xlu0 %3583
  %3585 = vrot.lane.b32.xlu0 %v3144, 12
  %v3586 = vpop.permute.xlu0 %3585
  %3587 = vrot.lane.b32.xlu0 %v3145, 12
  %v3588 = vpop.permute.xlu0 %3587
  %3589 = vrot.lane.b32.xlu0 %v3146, 12
  %v3590 = vpop.permute.xlu0 %3589
  %3591 = vrot.lane.b32.xlu0 %v3147, 12
  %v3592 = vpop.permute.xlu0 %3591
  %3593 = vrot.lane.b32.xlu0 %v3148, 12
  %v3594 = vpop.permute.xlu0 %3593
  %3595 = vrot.lane.b32.xlu0 %v3149, 12
  %v3596 = vpop.permute.xlu0 %3595
  %3597 = vrot.lane.b32.xlu0 %v3150, 12
  %v3598 = vpop.permute.xlu0 %3597
  %3599 = vrot.lane.b32.xlu0 %v3151, 12
  %v3600 = vpop.permute.xlu0 %3599
  %3601 = vrot.lane.b32.xlu0 %v3152, 12
  %v3602 = vpop.permute.xlu0 %3601
  %3603 = vrot.lane.b32.xlu0 %v3153, 12
  %v3604 = vpop.permute.xlu0 %3603
  %3605 = vrot.lane.b32.xlu0 %v3154, 12
  %v3606 = vpop.permute.xlu0 %3605
  %3607 = vrot.lane.b32.xlu0 %v3155, 12
  %v3608 = vpop.permute.xlu0 %3607
  %3609 = vrot.lane.b32.xlu0 %v3156, 12
  %v3610 = vpop.permute.xlu0 %3609
  %3611 = vrot.lane.b32.xlu0 %v3157, 12
  %v3612 = vpop.permute.xlu0 %3611
  %3613 = vrot.lane.b32.xlu0 %v3158, 12
  %v3614 = vpop.permute.xlu0 %3613
  %3615 = vrot.lane.b32.xlu0 %v3159, 12
  %v3616 = vpop.permute.xlu0 %3615
  %3617 = vrot.lane.b32.xlu0 %v3160, 12
  %v3618 = vpop.permute.xlu0 %3617
  %3653 = vrot.lane.b32.xlu0 %v3033, 16
  %v3654 = vpop.permute.xlu0 %3653
  %3655 = vrot.lane.b32.xlu0 %v3034, 16
  %v3656 = vpop.permute.xlu0 %3655
  %3657 = vrot.lane.b32.xlu0 %v3035, 16
  %v3658 = vpop.permute.xlu0 %3657
  %3659 = vrot.lane.b32.xlu0 %v3036, 16
  %v3660 = vpop.permute.xlu0 %3659
  %3661 = vrot.lane.b32.xlu0 %v3037, 16
  %v3662 = vpop.permute.xlu0 %3661
  %3663 = vrot.lane.b32.xlu0 %v3038, 16
  %v3664 = vpop.permute.xlu0 %3663
  %3665 = vrot.lane.b32.xlu0 %v3039, 16
  %v3666 = vpop.permute.xlu0 %3665
  %3667 = vrot.lane.b32.xlu0 %v3040, 16
  %v3668 = vpop.permute.xlu0 %3667
  %3669 = vrot.lane.b32.xlu0 %v3041, 16
  %v3670 = vpop.permute.xlu0 %3669
  %3671 = vrot.lane.b32.xlu0 %v3042, 16
  %v3672 = vpop.permute.xlu0 %3671
  %3673 = vrot.lane.b32.xlu0 %v3043, 16
  %v3674 = vpop.permute.xlu0 %3673
  %3675 = vrot.lane.b32.xlu0 %v3044, 16
  %v3676 = vpop.permute.xlu0 %3675
  %3677 = vrot.lane.b32.xlu0 %v3045, 16
  %v3678 = vpop.permute.xlu0 %3677
  %3679 = vrot.lane.b32.xlu0 %v3046, 16
  %v3680 = vpop.permute.xlu0 %3679
  %3681 = vrot.lane.b32.xlu0 %v3047, 16
  %v3682 = vpop.permute.xlu0 %3681
  %3683 = vrot.lane.b32.xlu0 %v3048, 16
  %v3684 = vpop.permute.xlu0 %3683
  %3685 = vrot.lane.b32.xlu0 %v3049, 16
  %v3686 = vpop.permute.xlu0 %3685
  %3687 = vrot.lane.b32.xlu0 %v3050, 16
  %v3688 = vpop.permute.xlu0 %3687
  %3689 = vrot.lane.b32.xlu0 %v3051, 16
  %v3690 = vpop.permute.xlu0 %3689
  %3691 = vrot.lane.b32.xlu0 %v3052, 16
  %v3692 = vpop.permute.xlu0 %3691
  %3693 = vrot.lane.b32.xlu0 %v3053, 16
  %v3694 = vpop.permute.xlu0 %3693
  %3695 = vrot.lane.b32.xlu0 %v3054, 16
  %v3696 = vpop.permute.xlu0 %3695
  %3697 = vrot.lane.b32.xlu0 %v3055, 16
  %v3698 = vpop.permute.xlu0 %3697
  %3699 = vrot.lane.b32.xlu0 %v3056, 16
  %v3700 = vpop.permute.xlu0 %3699
  %3701 = vrot.lane.b32.xlu0 %v3057, 16
  %v3702 = vpop.permute.xlu0 %3701
  %3703 = vrot.lane.b32.xlu0 %v3058, 16
  %v3704 = vpop.permute.xlu0 %3703
  %3705 = vrot.lane.b32.xlu0 %v3059, 16
  %v3706 = vpop.permute.xlu0 %3705
  %3707 = vrot.lane.b32.xlu0 %v3060, 16
  %v3708 = vpop.permute.xlu0 %3707
  %3709 = vrot.lane.b32.xlu0 %v3061, 16
  %v3710 = vpop.permute.xlu0 %3709
  %3711 = vrot.lane.b32.xlu0 %v3062, 16
  %v3712 = vpop.permute.xlu0 %3711
  %3713 = vrot.lane.b32.xlu0 %v3161, 16
  %v3714 = vpop.permute.xlu0 %3713
  %3715 = vrot.lane.b32.xlu0 %v3162, 16
  %v3716 = vpop.permute.xlu0 %3715
  %3781 = vrot.lane.b32.xlu0 %v3165, 20
  %v3782 = vpop.permute.xlu0 %3781
  %3783 = vrot.lane.b32.xlu0 %v3166, 20
  %v3784 = vpop.permute.xlu0 %3783
  %3785 = vrot.lane.b32.xlu0 %v3167, 20
  %v3786 = vpop.permute.xlu0 %3785
  %3787 = vrot.lane.b32.xlu0 %v3168, 20
  %v3788 = vpop.permute.xlu0 %3787
  %3789 = vrot.lane.b32.xlu0 %v3169, 20
  %v3790 = vpop.permute.xlu0 %3789
  %3791 = vrot.lane.b32.xlu0 %v3170, 20
  %v3792 = vpop.permute.xlu0 %3791
  %3793 = vrot.lane.b32.xlu0 %v3171, 20
  %v3794 = vpop.permute.xlu0 %3793
  %3795 = vrot.lane.b32.xlu0 %v3172, 20
  %v3796 = vpop.permute.xlu0 %3795
  %3797 = vrot.lane.b32.xlu0 %v3173, 20
  %v3798 = vpop.permute.xlu0 %3797
  %3799 = vrot.lane.b32.xlu0 %v3174, 20
  %v3800 = vpop.permute.xlu0 %3799
  %3801 = vrot.lane.b32.xlu0 %v3175, 20
  %v3802 = vpop.permute.xlu0 %3801
  %3803 = vrot.lane.b32.xlu0 %v3176, 20
  %v3804 = vpop.permute.xlu0 %3803
  %3805 = vrot.lane.b32.xlu0 %v3177, 20
  %v3806 = vpop.permute.xlu0 %3805
  %3807 = vrot.lane.b32.xlu0 %v3178, 20
  %v3808 = vpop.permute.xlu0 %3807
  %3809 = vrot.lane.b32.xlu0 %v3179, 20
  %v3810 = vpop.permute.xlu0 %3809
  %3811 = vrot.lane.b32.xlu0 %v3180, 20
  %v3812 = vpop.permute.xlu0 %3811
  %3813 = vrot.lane.b32.xlu0 %v3181, 20
  %v3814 = vpop.permute.xlu0 %3813
  %3815 = vrot.lane.b32.xlu0 %v3182, 20
  %v3816 = vpop.permute.xlu0 %3815
  %3817 = vrot.lane.b32.xlu0 %v3183, 20
  %v3818 = vpop.permute.xlu0 %3817
  %3819 = vrot.lane.b32.xlu0 %v3184, 20
  %v3820 = vpop.permute.xlu0 %3819
  %3821 = vrot.lane.b32.xlu0 %v3185, 20
  %v3822 = vpop.permute.xlu0 %3821
  %3823 = vrot.lane.b32.xlu0 %v3186, 20
  %v3824 = vpop.permute.xlu0 %3823
  %3825 = vrot.lane.b32.xlu0 %v3187, 20
  %v3826 = vpop.permute.xlu0 %3825
  %3827 = vrot.lane.b32.xlu0 %v3188, 20
  %v3828 = vpop.permute.xlu0 %3827
  %3829 = vrot.lane.b32.xlu0 %v3189, 20
  %v3830 = vpop.permute.xlu0 %3829
  %3831 = vrot.lane.b32.xlu0 %v3190, 20
  %v3832 = vpop.permute.xlu0 %3831
  %3833 = vrot.lane.b32.xlu0 %v3191, 20
  %v3834 = vpop.permute.xlu0 %3833
  %3835 = vrot.lane.b32.xlu0 %v3192, 20
  %v3836 = vpop.permute.xlu0 %3835
  %3837 = vrot.lane.b32.xlu0 %v3193, 20
  %v3838 = vpop.permute.xlu0 %3837
  %3839 = vrot.lane.b32.xlu0 %v3194, 20
  %v3840 = vpop.permute.xlu0 %3839
  %3841 = vrot.lane.b32.xlu0 %v3195, 20
  %v3842 = vpop.permute.xlu0 %3841
  %3843 = vrot.lane.b32.xlu0 %v3196, 20
  %v3844 = vpop.permute.xlu0 %3843
  %3909 = vrot.lane.b32.xlu0 %v3199, 24
  %v3910 = vpop.permute.xlu0 %3909
  %3911 = vrot.lane.b32.xlu0 %v3200, 24
  %v3912 = vpop.permute.xlu0 %3911
  %3913 = vrot.lane.b32.xlu0 %v3201, 24
  %v3914 = vpop.permute.xlu0 %3913
  %3915 = vrot.lane.b32.xlu0 %v3202, 24
  %v3916 = vpop.permute.xlu0 %3915
  %3917 = vrot.lane.b32.xlu0 %v3203, 24
  %v3918 = vpop.permute.xlu0 %3917
  %3919 = vrot.lane.b32.xlu0 %v3204, 24
  %v3920 = vpop.permute.xlu0 %3919
  %3921 = vrot.lane.b32.xlu0 %v3205, 24
  %v3922 = vpop.permute.xlu0 %3921
  %3923 = vrot.lane.b32.xlu0 %v3206, 24
  %v3924 = vpop.permute.xlu0 %3923
  %3925 = vrot.lane.b32.xlu0 %v3207, 24
  %v3926 = vpop.permute.xlu0 %3925
  %3927 = vrot.lane.b32.xlu0 %v3208, 24
  %v3928 = vpop.permute.xlu0 %3927
  %3929 = vrot.lane.b32.xlu0 %v3209, 24
  %v3930 = vpop.permute.xlu0 %3929
  %3931 = vrot.lane.b32.xlu0 %v3210, 24
  %v3932 = vpop.permute.xlu0 %3931
  %3933 = vrot.lane.b32.xlu0 %v3211, 24
  %v3934 = vpop.permute.xlu0 %3933
  %3935 = vrot.lane.b32.xlu0 %v3212, 24
  %v3936 = vpop.permute.xlu0 %3935
  %3937 = vrot.lane.b32.xlu0 %v3213, 24
  %v3938 = vpop.permute.xlu0 %3937
  %3939 = vrot.lane.b32.xlu0 %v3214, 24
  %v3940 = vpop.permute.xlu0 %3939
  %3941 = vrot.lane.b32.xlu0 %v3215, 24
  %v3942 = vpop.permute.xlu0 %3941
  %3943 = vrot.lane.b32.xlu0 %v3216, 24
  %v3944 = vpop.permute.xlu0 %3943
  %3945 = vrot.lane.b32.xlu0 %v3217, 24
  %v3946 = vpop.permute.xlu0 %3945
  %3947 = vrot.lane.b32.xlu0 %v3218, 24
  %v3948 = vpop.permute.xlu0 %3947
  %3949 = vrot.lane.b32.xlu0 %v3219, 24
  %v3950 = vpop.permute.xlu0 %3949
  %3951 = vrot.lane.b32.xlu0 %v3220, 24
  %v3952 = vpop.permute.xlu0 %3951
  %3953 = vrot.lane.b32.xlu0 %v3221, 24
  %v3954 = vpop.permute.xlu0 %3953
  %3955 = vrot.lane.b32.xlu0 %v3222, 24
  %v3956 = vpop.permute.xlu0 %3955
  %3957 = vrot.lane.b32.xlu0 %v3223, 24
  %v3958 = vpop.permute.xlu0 %3957
  %3959 = vrot.lane.b32.xlu0 %v3224, 24
  %v3960 = vpop.permute.xlu0 %3959
  %3961 = vrot.lane.b32.xlu0 %v3225, 24
  %v3962 = vpop.permute.xlu0 %3961
  %3963 = vrot.lane.b32.xlu0 %v3226, 24
  %v3964 = vpop.permute.xlu0 %3963
  %3965 = vrot.lane.b32.xlu0 %v3227, 24
  %v3966 = vpop.permute.xlu0 %3965
  %3967 = vrot.lane.b32.xlu0 %v3228, 24
  %v3968 = vpop.permute.xlu0 %3967
  %3969 = vrot.lane.b32.xlu0 %v3229, 24
  %v3970 = vpop.permute.xlu0 %3969
  %3971 = vrot.lane.b32.xlu0 %v3230, 24
  %v3972 = vpop.permute.xlu0 %3971
  %4007 = vrot.lane.b32.xlu0 %v3035, 28
  %v4008 = vpop.permute.xlu0 %4007
  %4009 = vrot.lane.b32.xlu0 %v3036, 28
  %v4010 = vpop.permute.xlu0 %4009
  %4011 = vrot.lane.b32.xlu0 %v3037, 28
  %v4012 = vpop.permute.xlu0 %4011
  %4013 = vrot.lane.b32.xlu0 %v3038, 28
  %v4014 = vpop.permute.xlu0 %4013
  %4015 = vrot.lane.b32.xlu0 %v3039, 28
  %v4016 = vpop.permute.xlu0 %4015
  %4017 = vrot.lane.b32.xlu0 %v3040, 28
  %v4018 = vpop.permute.xlu0 %4017
  %4019 = vrot.lane.b32.xlu0 %v3041, 28
  %v4020 = vpop.permute.xlu0 %4019
  %4021 = vrot.lane.b32.xlu0 %v3042, 28
  %v4022 = vpop.permute.xlu0 %4021
  %4023 = vrot.lane.b32.xlu0 %v3043, 28
  %v4024 = vpop.permute.xlu0 %4023
  %4025 = vrot.lane.b32.xlu0 %v3044, 28
  %v4026 = vpop.permute.xlu0 %4025
  %4027 = vrot.lane.b32.xlu0 %v3045, 28
  %v4028 = vpop.permute.xlu0 %4027
  %4029 = vrot.lane.b32.xlu0 %v3046, 28
  %v4030 = vpop.permute.xlu0 %4029
  %4031 = vrot.lane.b32.xlu0 %v3047, 28
  %v4032 = vpop.permute.xlu0 %4031
  %4033 = vrot.lane.b32.xlu0 %v3048, 28
  %v4034 = vpop.permute.xlu0 %4033
  %4035 = vrot.lane.b32.xlu0 %v3049, 28
  %v4036 = vpop.permute.xlu0 %4035
  %4037 = vrot.lane.b32.xlu0 %v3050, 28
  %v4038 = vpop.permute.xlu0 %4037
  %4039 = vrot.lane.b32.xlu0 %v3051, 28
  %v4040 = vpop.permute.xlu0 %4039
  %4041 = vrot.lane.b32.xlu0 %v3052, 28
  %v4042 = vpop.permute.xlu0 %4041
  %4043 = vrot.lane.b32.xlu0 %v3053, 28
  %v4044 = vpop.permute.xlu0 %4043
  %4045 = vrot.lane.b32.xlu0 %v3054, 28
  %v4046 = vpop.permute.xlu0 %4045
  %4047 = vrot.lane.b32.xlu0 %v3055, 28
  %v4048 = vpop.permute.xlu0 %4047
  %4049 = vrot.lane.b32.xlu0 %v3056, 28
  %v4050 = vpop.permute.xlu0 %4049
  %4051 = vrot.lane.b32.xlu0 %v3057, 28
  %v4052 = vpop.permute.xlu0 %4051
  %4053 = vrot.lane.b32.xlu0 %v3058, 28
  %v4054 = vpop.permute.xlu0 %4053
  %4055 = vrot.lane.b32.xlu0 %v3059, 28
  %v4056 = vpop.permute.xlu0 %4055
  %4057 = vrot.lane.b32.xlu0 %v3060, 28
  %v4058 = vpop.permute.xlu0 %4057
  %4059 = vrot.lane.b32.xlu0 %v3061, 28
  %v4060 = vpop.permute.xlu0 %4059
  %4061 = vrot.lane.b32.xlu0 %v3062, 28
  %v4062 = vpop.permute.xlu0 %4061
  %4063 = vrot.lane.b32.xlu0 %v3161, 28
  %v4064 = vpop.permute.xlu0 %4063
  %4065 = vrot.lane.b32.xlu0 %v3162, 28
  %v4066 = vpop.permute.xlu0 %4065
  %4067 = vrot.lane.b32.xlu0 %v3231, 28
  %v4068 = vpop.permute.xlu0 %4067
  %4069 = vrot.lane.b32.xlu0 %v3232, 28
  %v4070 = vpop.permute.xlu0 %4069
  %4135 = vrot.lane.b32.xlu0 %v3235, 32
  %v4136 = vpop.permute.xlu0 %4135
  %4137 = vrot.lane.b32.xlu0 %v3236, 32
  %v4138 = vpop.permute.xlu0 %4137
  %4139 = vrot.lane.b32.xlu0 %v3237, 32
  %v4140 = vpop.permute.xlu0 %4139
  %4141 = vrot.lane.b32.xlu0 %v3238, 32
  %v4142 = vpop.permute.xlu0 %4141
  %4143 = vrot.lane.b32.xlu0 %v3239, 32
  %v4144 = vpop.permute.xlu0 %4143
  %4145 = vrot.lane.b32.xlu0 %v3240, 32
  %v4146 = vpop.permute.xlu0 %4145
  %4147 = vrot.lane.b32.xlu0 %v3241, 32
  %v4148 = vpop.permute.xlu0 %4147
  %4149 = vrot.lane.b32.xlu0 %v3242, 32
  %v4150 = vpop.permute.xlu0 %4149
  %4151 = vrot.lane.b32.xlu0 %v3243, 32
  %v4152 = vpop.permute.xlu0 %4151
  %4153 = vrot.lane.b32.xlu0 %v3244, 32
  %v4154 = vpop.permute.xlu0 %4153
  %4155 = vrot.lane.b32.xlu0 %v3245, 32
  %v4156 = vpop.permute.xlu0 %4155
  %4157 = vrot.lane.b32.xlu0 %v3246, 32
  %v4158 = vpop.permute.xlu0 %4157
  %4159 = vrot.lane.b32.xlu0 %v3247, 32
  %v4160 = vpop.permute.xlu0 %4159
  %4161 = vrot.lane.b32.xlu0 %v3248, 32
  %v4162 = vpop.permute.xlu0 %4161
  %4163 = vrot.lane.b32.xlu0 %v3249, 32
  %v4164 = vpop.permute.xlu0 %4163
  %4165 = vrot.lane.b32.xlu0 %v3250, 32
  %v4166 = vpop.permute.xlu0 %4165
  %4167 = vrot.lane.b32.xlu0 %v3251, 32
  %v4168 = vpop.permute.xlu0 %4167
  %4169 = vrot.lane.b32.xlu0 %v3252, 32
  %v4170 = vpop.permute.xlu0 %4169
  %4171 = vrot.lane.b32.xlu0 %v3253, 32
  %v4172 = vpop.permute.xlu0 %4171
  %4173 = vrot.lane.b32.xlu0 %v3254, 32
  %v4174 = vpop.permute.xlu0 %4173
  %4175 = vrot.lane.b32.xlu0 %v3255, 32
  %v4176 = vpop.permute.xlu0 %4175
  %4177 = vrot.lane.b32.xlu0 %v3256, 32
  %v4178 = vpop.permute.xlu0 %4177
  %4179 = vrot.lane.b32.xlu0 %v3257, 32
  %v4180 = vpop.permute.xlu0 %4179
  %4181 = vrot.lane.b32.xlu0 %v3258, 32
  %v4182 = vpop.permute.xlu0 %4181
  %4183 = vrot.lane.b32.xlu0 %v3259, 32
  %v4184 = vpop.permute.xlu0 %4183
  %4185 = vrot.lane.b32.xlu0 %v3260, 32
  %v4186 = vpop.permute.xlu0 %4185
  %4187 = vrot.lane.b32.xlu0 %v3261, 32
  %v4188 = vpop.permute.xlu0 %4187
  %4189 = vrot.lane.b32.xlu0 %v3262, 32
  %v4190 = vpop.permute.xlu0 %4189
  %4191 = vrot.lane.b32.xlu0 %v3263, 32
  %v4192 = vpop.permute.xlu0 %4191
  %4193 = vrot.lane.b32.xlu0 %v3264, 32
  %v4194 = vpop.permute.xlu0 %4193
  %4195 = vrot.lane.b32.xlu0 %v3265, 32
  %v4196 = vpop.permute.xlu0 %4195
  %4197 = vrot.lane.b32.xlu0 %v3266, 32
  %v4198 = vpop.permute.xlu0 %4197
  %v4231 = vsel %vm500, %v2999, %v3300
  %v4232 = vsel %vm500, %v3000, %v3302
  %v4233 = vsel %vm500, %v3001, %v3304
  %v4234 = vsel %vm500, %v3002, %v3306
  %v4235 = vsel %vm500, %v3003, %v3308
  %v4236 = vsel %vm500, %v3004, %v3310
  %v4237 = vsel %vm500, %v3005, %v3312
  %v4238 = vsel %vm500, %v3006, %v3314
  %v4239 = vsel %vm500, %v3007, %v3316
  %v4240 = vsel %vm500, %v3008, %v3318
  %v4241 = vsel %vm500, %v3009, %v3320
  %v4242 = vsel %vm500, %v3010, %v3322
  %v4243 = vsel %vm500, %v3011, %v3324
  %v4244 = vsel %vm500, %v3012, %v3326
  %v4245 = vsel %vm500, %v3013, %v3328
  %v4246 = vsel %vm500, %v3014, %v3330
  %v4247 = vsel %vm500, %v3015, %v3332
  %v4248 = vsel %vm500, %v3016, %v3334
  %v4249 = vsel %vm500, %v3017, %v3336
  %v4250 = vsel %vm500, %v3018, %v3338
  %v4251 = vsel %vm500, %v3019, %v3340
  %v4252 = vsel %vm500, %v3020, %v3342
  %v4253 = vsel %vm500, %v3021, %v3344
  %v4254 = vsel %vm500, %v3022, %v3346
  %v4255 = vsel %vm500, %v3023, %v3348
  %v4256 = vsel %vm500, %v3024, %v3350
  %v4257 = vsel %vm500, %v3025, %v3352
  %v4258 = vsel %vm500, %v3026, %v3354
  %v4259 = vsel %vm500, %v3027, %v3356
  %v4260 = vsel %vm500, %v3028, %v3358
  %v4261 = vsel %vm500, %v3029, %v3360
  %v4262 = vsel %vm500, %v3030, %v3362
  %v4263 = vsel %vm2109, %v4231, %v3428
  %v4264 = vsel %vm2109, %v4232, %v3430
  %v4265 = vsel %vm2109, %v4233, %v3432
  %v4266 = vsel %vm2109, %v4234, %v3434
  %v4267 = vsel %vm2109, %v4235, %v3436
  %v4268 = vsel %vm2109, %v4236, %v3438
  %v4269 = vsel %vm2109, %v4237, %v3440
  %v4270 = vsel %vm2109, %v4238, %v3442
  %v4271 = vsel %vm2109, %v4239, %v3444
  %v4272 = vsel %vm2109, %v4240, %v3446
  %v4273 = vsel %vm2109, %v4241, %v3448
  %v4274 = vsel %vm2109, %v4242, %v3450
  %v4275 = vsel %vm2109, %v4243, %v3452
  %v4276 = vsel %vm2109, %v4244, %v3454
  %v4277 = vsel %vm2109, %v4245, %v3456
  %v4278 = vsel %vm2109, %v4246, %v3458
  %v4279 = vsel %vm2109, %v4247, %v3460
  %v4280 = vsel %vm2109, %v4248, %v3462
  %v4281 = vsel %vm2109, %v4249, %v3464
  %v4282 = vsel %vm2109, %v4250, %v3466
  %v4283 = vsel %vm2109, %v4251, %v3468
  %v4284 = vsel %vm2109, %v4252, %v3470
  %v4285 = vsel %vm2109, %v4253, %v3472
  %v4286 = vsel %vm2109, %v4254, %v3474
  %v4287 = vsel %vm2109, %v4255, %v3476
  %v4288 = vsel %vm2109, %v4256, %v3478
  %v4289 = vsel %vm2109, %v4257, %v3480
  %v4290 = vsel %vm2109, %v4258, %v3482
  %v4291 = vsel %vm2109, %v4259, %v3484
  %v4292 = vsel %vm2109, %v4260, %v3486
  %v4293 = vsel %vm2109, %v4261, %v3488
  %v4294 = vsel %vm2109, %v4262, %v3490
  %v4295 = vsel %vm2142, %v4263, %v3556
  %v4296 = vsel %vm2142, %v4264, %v3558
  %v4297 = vsel %vm2142, %v4265, %v3560
  %v4298 = vsel %vm2142, %v4266, %v3562
  %v4299 = vsel %vm2142, %v4267, %v3564
  %v4300 = vsel %vm2142, %v4268, %v3566
  %v4301 = vsel %vm2142, %v4269, %v3568
  %v4302 = vsel %vm2142, %v4270, %v3570
  %v4303 = vsel %vm2142, %v4271, %v3572
  %v4304 = vsel %vm2142, %v4272, %v3574
  %v4305 = vsel %vm2142, %v4273, %v3576
  %v4306 = vsel %vm2142, %v4274, %v3578
  %v4307 = vsel %vm2142, %v4275, %v3580
  %v4308 = vsel %vm2142, %v4276, %v3582
  %v4309 = vsel %vm2142, %v4277, %v3584
  %v4310 = vsel %vm2142, %v4278, %v3586
  %v4311 = vsel %vm2142, %v4279, %v3588
  %v4312 = vsel %vm2142, %v4280, %v3590
  %v4313 = vsel %vm2142, %v4281, %v3592
  %v4314 = vsel %vm2142, %v4282, %v3594
  %v4315 = vsel %vm2142, %v4283, %v3596
  %v4316 = vsel %vm2142, %v4284, %v3598
  %v4317 = vsel %vm2142, %v4285, %v3600
  %v4318 = vsel %vm2142, %v4286, %v3602
  %v4319 = vsel %vm2142, %v4287, %v3604
  %v4320 = vsel %vm2142, %v4288, %v3606
  %v4321 = vsel %vm2142, %v4289, %v3608
  %v4322 = vsel %vm2142, %v4290, %v3610
  %v4323 = vsel %vm2142, %v4291, %v3612
  %v4324 = vsel %vm2142, %v4292, %v3614
  %v4325 = vsel %vm2142, %v4293, %v3616
  %v4326 = vsel %vm2142, %v4294, %v3618
  %v4327 = vsel %vm2175, %v4295, %v3654
  %v4328 = vsel %vm2175, %v4296, %v3656
  %v4329 = vsel %vm2175, %v4297, %v3658
  %v4330 = vsel %vm2175, %v4298, %v3660
  %v4331 = vsel %vm2175, %v4299, %v3662
  %v4332 = vsel %vm2175, %v4300, %v3664
  %v4333 = vsel %vm2175, %v4301, %v3666
  %v4334 = vsel %vm2175, %v4302, %v3668
  %v4335 = vsel %vm2175, %v4303, %v3670
  %v4336 = vsel %vm2175, %v4304, %v3672
  %v4337 = vsel %vm2175, %v4305, %v3674
  %v4338 = vsel %vm2175, %v4306, %v3676
  %v4339 = vsel %vm2175, %v4307, %v3678
  %v4340 = vsel %vm2175, %v4308, %v3680
  %v4341 = vsel %vm2175, %v4309, %v3682
  %v4342 = vsel %vm2175, %v4310, %v3684
  %v4343 = vsel %vm2175, %v4311, %v3686
  %v4344 = vsel %vm2175, %v4312, %v3688
  %v4345 = vsel %vm2175, %v4313, %v3690
  %v4346 = vsel %vm2175, %v4314, %v3692
  %v4347 = vsel %vm2175, %v4315, %v3694
  %v4348 = vsel %vm2175, %v4316, %v3696
  %v4349 = vsel %vm2175, %v4317, %v3698
  %v4350 = vsel %vm2175, %v4318, %v3700
  %v4351 = vsel %vm2175, %v4319, %v3702
  %v4352 = vsel %vm2175, %v4320, %v3704
  %v4353 = vsel %vm2175, %v4321, %v3706
  %v4354 = vsel %vm2175, %v4322, %v3708
  %v4355 = vsel %vm2175, %v4323, %v3710
  %v4356 = vsel %vm2175, %v4324, %v3712
  %v4357 = vsel %vm2175, %v4325, %v3714
  %v4358 = vsel %vm2175, %v4326, %v3716
  %v4359 = vsel %vm2208, %v4327, %v3782
  %v4360 = vsel %vm2208, %v4328, %v3784
  %v4361 = vsel %vm2208, %v4329, %v3786
  %v4362 = vsel %vm2208, %v4330, %v3788
  %v4363 = vsel %vm2208, %v4331, %v3790
  %v4364 = vsel %vm2208, %v4332, %v3792
  %v4365 = vsel %vm2208, %v4333, %v3794
  %v4366 = vsel %vm2208, %v4334, %v3796
  %v4367 = vsel %vm2208, %v4335, %v3798
  %v4368 = vsel %vm2208, %v4336, %v3800
  %v4369 = vsel %vm2208, %v4337, %v3802
  %v4370 = vsel %vm2208, %v4338, %v3804
  %v4371 = vsel %vm2208, %v4339, %v3806
  %v4372 = vsel %vm2208, %v4340, %v3808
  %v4373 = vsel %vm2208, %v4341, %v3810
  %v4374 = vsel %vm2208, %v4342, %v3812
  %v4375 = vsel %vm2208, %v4343, %v3814
  %v4376 = vsel %vm2208, %v4344, %v3816
  %v4377 = vsel %vm2208, %v4345, %v3818
  %v4378 = vsel %vm2208, %v4346, %v3820
  %v4379 = vsel %vm2208, %v4347, %v3822
  %v4380 = vsel %vm2208, %v4348, %v3824
  %v4381 = vsel %vm2208, %v4349, %v3826
  %v4382 = vsel %vm2208, %v4350, %v3828
  %v4383 = vsel %vm2208, %v4351, %v3830
  %v4384 = vsel %vm2208, %v4352, %v3832
  %v4385 = vsel %vm2208, %v4353, %v3834
  %v4386 = vsel %vm2208, %v4354, %v3836
  %v4387 = vsel %vm2208, %v4355, %v3838
  %v4388 = vsel %vm2208, %v4356, %v3840
  %v4389 = vsel %vm2208, %v4357, %v3842
  %v4390 = vsel %vm2208, %v4358, %v3844
  %v4391 = vsel %vm2241, %v4359, %v3910
  %v4392 = vsel %vm2241, %v4360, %v3912
  %v4393 = vsel %vm2241, %v4361, %v3914
  %v4394 = vsel %vm2241, %v4362, %v3916
  %v4395 = vsel %vm2241, %v4363, %v3918
  %v4396 = vsel %vm2241, %v4364, %v3920
  %v4397 = vsel %vm2241, %v4365, %v3922
  %v4398 = vsel %vm2241, %v4366, %v3924
  %v4399 = vsel %vm2241, %v4367, %v3926
  %v4400 = vsel %vm2241, %v4368, %v3928
  %v4401 = vsel %vm2241, %v4369, %v3930
  %v4402 = vsel %vm2241, %v4370, %v3932
  %v4403 = vsel %vm2241, %v4371, %v3934
  %v4404 = vsel %vm2241, %v4372, %v3936
  %v4405 = vsel %vm2241, %v4373, %v3938
  %v4406 = vsel %vm2241, %v4374, %v3940
  %v4407 = vsel %vm2241, %v4375, %v3942
  %v4408 = vsel %vm2241, %v4376, %v3944
  %v4409 = vsel %vm2241, %v4377, %v3946
  %v4410 = vsel %vm2241, %v4378, %v3948
  %v4411 = vsel %vm2241, %v4379, %v3950
  %v4412 = vsel %vm2241, %v4380, %v3952
  %v4413 = vsel %vm2241, %v4381, %v3954
  %v4414 = vsel %vm2241, %v4382, %v3956
  %v4415 = vsel %vm2241, %v4383, %v3958
  %v4416 = vsel %vm2241, %v4384, %v3960
  %v4417 = vsel %vm2241, %v4385, %v3962
  %v4418 = vsel %vm2241, %v4386, %v3964
  %v4419 = vsel %vm2241, %v4387, %v3966
  %v4420 = vsel %vm2241, %v4388, %v3968
  %v4421 = vsel %vm2241, %v4389, %v3970
  %v4422 = vsel %vm2241, %v4390, %v3972
  %v4423 = vsel %vm2274, %v4391, %v4008
  %v4424 = vsel %vm2274, %v4392, %v4010
  %v4425 = vsel %vm2274, %v4393, %v4012
  %v4426 = vsel %vm2274, %v4394, %v4014
  %v4427 = vsel %vm2274, %v4395, %v4016
  %v4428 = vsel %vm2274, %v4396, %v4018
  %v4429 = vsel %vm2274, %v4397, %v4020
  %v4430 = vsel %vm2274, %v4398, %v4022
  %v4431 = vsel %vm2274, %v4399, %v4024
  %v4432 = vsel %vm2274, %v4400, %v4026
  %v4433 = vsel %vm2274, %v4401, %v4028
  %v4434 = vsel %vm2274, %v4402, %v4030
  %v4435 = vsel %vm2274, %v4403, %v4032
  %v4436 = vsel %vm2274, %v4404, %v4034
  %v4437 = vsel %vm2274, %v4405, %v4036
  %v4438 = vsel %vm2274, %v4406, %v4038
  %v4439 = vsel %vm2274, %v4407, %v4040
  %v4440 = vsel %vm2274, %v4408, %v4042
  %v4441 = vsel %vm2274, %v4409, %v4044
  %v4442 = vsel %vm2274, %v4410, %v4046
  %v4443 = vsel %vm2274, %v4411, %v4048
  %v4444 = vsel %vm2274, %v4412, %v4050
  %v4445 = vsel %vm2274, %v4413, %v4052
  %v4446 = vsel %vm2274, %v4414, %v4054
  %v4447 = vsel %vm2274, %v4415, %v4056
  %v4448 = vsel %vm2274, %v4416, %v4058
  %v4449 = vsel %vm2274, %v4417, %v4060
  %v4450 = vsel %vm2274, %v4418, %v4062
  %v4451 = vsel %vm2274, %v4419, %v4064
  %v4452 = vsel %vm2274, %v4420, %v4066
  %v4453 = vsel %vm2274, %v4421, %v4068
  %v4454 = vsel %vm2274, %v4422, %v4070
  %v4455 = vsel %vm2307, %v4423, %v4136
  %v4456 = vsel %vm2307, %v4424, %v4138
  %v4457 = vsel %vm2307, %v4425, %v4140
  %v4458 = vsel %vm2307, %v4426, %v4142
  %v4459 = vsel %vm2307, %v4427, %v4144
  %v4460 = vsel %vm2307, %v4428, %v4146
  %v4461 = vsel %vm2307, %v4429, %v4148
  %v4462 = vsel %vm2307, %v4430, %v4150
  %v4463 = vsel %vm2307, %v4431, %v4152
  %v4464 = vsel %vm2307, %v4432, %v4154
  %v4465 = vsel %vm2307, %v4433, %v4156
  %v4466 = vsel %vm2307, %v4434, %v4158
  %v4467 = vsel %vm2307, %v4435, %v4160
  %v4468 = vsel %vm2307, %v4436, %v4162
  %v4469 = vsel %vm2307, %v4437, %v4164
  %v4470 = vsel %vm2307, %v4438, %v4166
  %v4471 = vsel %vm2307, %v4439, %v4168
  %v4472 = vsel %vm2307, %v4440, %v4170
  %v4473 = vsel %vm2307, %v4441, %v4172
  %v4474 = vsel %vm2307, %v4442, %v4174
  %v4475 = vsel %vm2307, %v4443, %v4176
  %v4476 = vsel %vm2307, %v4444, %v4178
  %v4477 = vsel %vm2307, %v4445, %v4180
  %v4478 = vsel %vm2307, %v4446, %v4182
  %v4479 = vsel %vm2307, %v4447, %v4184
  %v4480 = vsel %vm2307, %v4448, %v4186
  %v4481 = vsel %vm2307, %v4449, %v4188
  %v4482 = vsel %vm2307, %v4450, %v4190
  %v4483 = vsel %vm2307, %v4451, %v4192
  %v4484 = vsel %vm2307, %v4452, %v4194
  %v4485 = vsel %vm2307, %v4453, %v4196
  %v4486 = vsel %vm2307, %v4454, %v4198
  %v4487 = vld [vmem:[%s3] sm:$0xff]
  %v4488 = vld [vmem:[%s3 + $0x8] sm:$0xff]
  %v4489 = vld [vmem:[%s3 + $0x10] sm:$0xff]
  %v4490 = vld [vmem:[%s3 + $0x18] sm:$0xff]
  %v4491 = vld [vmem:[%s3 + $0x20] sm:$0xf]
  %v4493 = vsel %vm2345, %v4455, 0
  %v4496 = vsel %vm2345, %v4456, 0
  %v4499 = vsel %vm2345, %v4457, 0
  %v4502 = vsel %vm2345, %v4458, 0
  %v4505 = vsel %vm2345, %v4459, 0
  %v4508 = vsel %vm2345, %v4460, 0
  %v4511 = vsel %vm2345, %v4461, 0
  %v4514 = vsel %vm2345, %v4462, 0
  %v4517 = vsel %vm2345, %v4463, 0
  %v4520 = vsel %vm2345, %v4464, 0
  %v4523 = vsel %vm2345, %v4465, 0
  %v4526 = vsel %vm2345, %v4466, 0
  %v4529 = vsel %vm2345, %v4467, 0
  %v4532 = vsel %vm2345, %v4468, 0
  %v4535 = vsel %vm2345, %v4469, 0
  %v4538 = vsel %vm2345, %v4470, 0
  %v4541 = vsel %vm2345, %v4471, 0
  %v4544 = vsel %vm2345, %v4472, 0
  %v4547 = vsel %vm2345, %v4473, 0
  %v4550 = vsel %vm2345, %v4474, 0
  %v4553 = vsel %vm2345, %v4475, 0
  %v4556 = vsel %vm2345, %v4476, 0
  %v4559 = vsel %vm2345, %v4477, 0
  %v4562 = vsel %vm2345, %v4478, 0
  %v4565 = vsel %vm2345, %v4479, 0
  %v4568 = vsel %vm2345, %v4480, 0
  %v4571 = vsel %vm2345, %v4481, 0
  %v4574 = vsel %vm2345, %v4482, 0
  %v4577 = vsel %vm2345, %v4483, 0
  %v4580 = vsel %vm2345, %v4484, 0
  %v4583 = vsel %vm2345, %v4485, 0
  %v4586 = vsel %vm2345, %v4486, 0
  %v4589 = vsel %vm2442, %v4491, 0
  %4591 = vmatpush.msra.mxu0 0.0
  %4592 = vmatpush.msra.mxu0 0.0
  %4593 = vmatpush.msra.mxu0 0.0
  %4594 = vmatpush.msra.mxu0 0.0
  %4595 = vmatpush.msra.mxu0 0.0
  %4596 = vmatpush.msra.mxu0 0.0
  %4597 = vmatpush.msra.mxu0 0.0
  %4598 = vmatpush.msra.mxu0 0.0
  %4599 = vmatpush.msra.mxu0 0.0
  %4600 = vmatpush.msra.mxu0 0.0
  %4601 = vmatpush.msra.mxu0 0.0
  %4602 = vmatpush.msra.mxu0 %v4589
  %4603 = vmatpush.msra.mxu0 %v4490
  %4604 = vmatpush.msra.mxu0 %v4489
  %4605 = vmatpush.msra.mxu0 %v4488
  %4606 = vmatpush.msra.mxu0 %v4487
  %4607 = vmatmul.f32.gmra.mxu0 %v4493
  %v4608 = vpop.f32.mrf.mxu0
  %v4609 = vadd.f32 0.0, %v4608
  %4610 = vmatmul.f32.gmra.mxu0 %v4496
  %v4611 = vpop.f32.mrf.mxu0
  %v4612 = vadd.f32 0.0, %v4611
  %4613 = vmatmul.f32.gmra.mxu0 %v4499
  %v4614 = vpop.f32.mrf.mxu0
  %v4615 = vadd.f32 0.0, %v4614
  %4616 = vmatmul.f32.gmra.mxu0 %v4502
  %v4617 = vpop.f32.mrf.mxu0
  %v4618 = vadd.f32 0.0, %v4617
  %4619 = vmatmul.f32.gmra.mxu0 %v4505
  %v4620 = vpop.f32.mrf.mxu0
  %v4621 = vadd.f32 0.0, %v4620
  %4622 = vmatmul.f32.gmra.mxu0 %v4508
  %v4623 = vpop.f32.mrf.mxu0
  %v4624 = vadd.f32 0.0, %v4623
  %4625 = vmatmul.f32.gmra.mxu0 %v4511
  %v4626 = vpop.f32.mrf.mxu0
  %v4627 = vadd.f32 0.0, %v4626
  %4628 = vmatmul.f32.gmra.mxu0 %v4514
  %v4629 = vpop.f32.mrf.mxu0
  %v4630 = vadd.f32 0.0, %v4629
  %4631 = vmatmul.f32.gmra.mxu0 %v4517
  %v4632 = vpop.f32.mrf.mxu0
  %v4633 = vadd.f32 0.0, %v4632
  %4634 = vmatmul.f32.gmra.mxu0 %v4520
  %v4635 = vpop.f32.mrf.mxu0
  %v4636 = vadd.f32 0.0, %v4635
  %4637 = vmatmul.f32.gmra.mxu0 %v4523
  %v4638 = vpop.f32.mrf.mxu0
  %v4639 = vadd.f32 0.0, %v4638
  %4640 = vmatmul.f32.gmra.mxu0 %v4526
  %v4641 = vpop.f32.mrf.mxu0
  %v4642 = vadd.f32 0.0, %v4641
  %4643 = vmatmul.f32.gmra.mxu0 %v4529
  %v4644 = vpop.f32.mrf.mxu0
  %v4645 = vadd.f32 0.0, %v4644
  %4646 = vmatmul.f32.gmra.mxu0 %v4532
  %v4647 = vpop.f32.mrf.mxu0
  %v4648 = vadd.f32 0.0, %v4647
  %4649 = vmatmul.f32.gmra.mxu0 %v4535
  %v4650 = vpop.f32.mrf.mxu0
  %v4651 = vadd.f32 0.0, %v4650
  %4652 = vmatmul.f32.gmra.mxu0 %v4538
  %v4653 = vpop.f32.mrf.mxu0
  %v4654 = vadd.f32 0.0, %v4653
  %4655 = vmatmul.f32.gmra.mxu0 %v4541
  %v4656 = vpop.f32.mrf.mxu0
  %v4657 = vadd.f32 0.0, %v4656
  %4658 = vmatmul.f32.gmra.mxu0 %v4544
  %v4659 = vpop.f32.mrf.mxu0
  %v4660 = vadd.f32 0.0, %v4659
  %4661 = vmatmul.f32.gmra.mxu0 %v4547
  %v4662 = vpop.f32.mrf.mxu0
  %v4663 = vadd.f32 0.0, %v4662
  %4664 = vmatmul.f32.gmra.mxu0 %v4550
  %v4665 = vpop.f32.mrf.mxu0
  %v4666 = vadd.f32 0.0, %v4665
  %4667 = vmatmul.f32.gmra.mxu0 %v4553
  %v4668 = vpop.f32.mrf.mxu0
  %v4669 = vadd.f32 0.0, %v4668
  %4670 = vmatmul.f32.gmra.mxu0 %v4556
  %v4671 = vpop.f32.mrf.mxu0
  %v4672 = vadd.f32 0.0, %v4671
  %4673 = vmatmul.f32.gmra.mxu0 %v4559
  %v4674 = vpop.f32.mrf.mxu0
  %v4675 = vadd.f32 0.0, %v4674
  %4676 = vmatmul.f32.gmra.mxu0 %v4562
  %v4677 = vpop.f32.mrf.mxu0
  %v4678 = vadd.f32 0.0, %v4677
  %4679 = vmatmul.f32.gmra.mxu0 %v4565
  %v4680 = vpop.f32.mrf.mxu0
  %v4681 = vadd.f32 0.0, %v4680
  %4682 = vmatmul.f32.gmra.mxu0 %v4568
  %v4683 = vpop.f32.mrf.mxu0
  %v4684 = vadd.f32 0.0, %v4683
  %4685 = vmatmul.f32.gmra.mxu0 %v4571
  %v4686 = vpop.f32.mrf.mxu0
  %v4687 = vadd.f32 0.0, %v4686
  %4688 = vmatmul.f32.gmra.mxu0 %v4574
  %v4689 = vpop.f32.mrf.mxu0
  %v4690 = vadd.f32 0.0, %v4689
  %4691 = vmatmul.f32.gmra.mxu0 %v4577
  %v4692 = vpop.f32.mrf.mxu0
  %v4693 = vadd.f32 0.0, %v4692
  %4694 = vmatmul.f32.gmra.mxu0 %v4580
  %v4695 = vpop.f32.mrf.mxu0
  %v4696 = vadd.f32 0.0, %v4695
  %4697 = vmatmul.f32.gmra.mxu0 %v4583
  %v4698 = vpop.f32.mrf.mxu0
  %v4699 = vadd.f32 0.0, %v4698
  %4700 = vmatmul.f32.gmra.mxu0 %v4586
  %v4701 = vpop.f32.mrf.mxu0
  %v4702 = vadd.f32 0.0, %v4701
  %4703 = vdwg.mxu0
  %s4704 = scalar_lea.vmem %s4, 256
  %4705 = vst.msk [vmem:[%s4704] sm:$0xff] %vm500, %v4609
  %4706 = vst.msk [vmem:[%s4704 + $0x8] sm:$0xff] %vm500, %v4612
  %4707 = vst.msk [vmem:[%s4704 + $0x10] sm:$0xff] %vm500, %v4615
  %4708 = vst.msk [vmem:[%s4704 + $0x18] sm:$0xff] %vm500, %v4618
  %4709 = vst.msk [vmem:[%s4704 + $0x20] sm:$0xff] %vm500, %v4621
  %4710 = vst.msk [vmem:[%s4704 + $0x28] sm:$0xff] %vm500, %v4624
  %4711 = vst.msk [vmem:[%s4704 + $0x30] sm:$0xff] %vm500, %v4627
  %4712 = vst.msk [vmem:[%s4704 + $0x38] sm:$0xff] %vm500, %v4630
  %4713 = vst.msk [vmem:[%s4704 + $0x40] sm:$0xff] %vm500, %v4633
  %4714 = vst.msk [vmem:[%s4704 + $0x48] sm:$0xff] %vm500, %v4636
  %4715 = vst.msk [vmem:[%s4704 + $0x50] sm:$0xff] %vm500, %v4639
  %4716 = vst.msk [vmem:[%s4704 + $0x58] sm:$0xff] %vm500, %v4642
  %4717 = vst.msk [vmem:[%s4704 + $0x60] sm:$0xff] %vm500, %v4645
  %4718 = vst.msk [vmem:[%s4704 + $0x68] sm:$0xff] %vm500, %v4648
  %4719 = vst.msk [vmem:[%s4704 + $0x70] sm:$0xff] %vm500, %v4651
  %4720 = vst.msk [vmem:[%s4704 + $0x78] sm:$0xff] %vm500, %v4654
  %4721 = vst.msk [vmem:[%s4704 + $0x80] sm:$0xff] %vm500, %v4657
  %4722 = vst.msk [vmem:[%s4704 + $0x88] sm:$0xff] %vm500, %v4660
  %4723 = vst.msk [vmem:[%s4704 + $0x90] sm:$0xff] %vm500, %v4663
  %4724 = vst.msk [vmem:[%s4704 + $0x98] sm:$0xff] %vm500, %v4666
  %4725 = vst.msk [vmem:[%s4704 + $0xa0] sm:$0xff] %vm500, %v4669
  %4726 = vst.msk [vmem:[%s4704 + $0xa8] sm:$0xff] %vm500, %v4672
  %4727 = vst.msk [vmem:[%s4704 + $0xb0] sm:$0xff] %vm500, %v4675
  %4728 = vst.msk [vmem:[%s4704 + $0xb8] sm:$0xff] %vm500, %v4678
  %4729 = vst.msk [vmem:[%s4704 + $0xc0] sm:$0xff] %vm500, %v4681
  %4730 = vst.msk [vmem:[%s4704 + $0xc8] sm:$0xff] %vm500, %v4684
  %4731 = vst.msk [vmem:[%s4704 + $0xd0] sm:$0xff] %vm500, %v4687
  %4732 = vst.msk [vmem:[%s4704 + $0xd8] sm:$0xff] %vm500, %v4690
  %4733 = vst.msk [vmem:[%s4704 + $0xe0] sm:$0xff] %vm500, %v4693
  %4734 = vst.msk [vmem:[%s4704 + $0xe8] sm:$0xff] %vm500, %v4696
  %4735 = vst.msk [vmem:[%s4704 + $0xf0] sm:$0xff] %vm500, %v4699
  %4736 = vst.msk [vmem:[%s4704 + $0xf8] sm:$0xff] %vm500, %v4702
  %v4737 = vsel %vm500, %v4609, 0.0
  %v4738 = vsel %vm500, %v4612, 0.0
  %v4739 = vadd.f32 %v4737, %v4738
  %v4740 = vsel %vm500, %v4615, 0.0
  %v4741 = vadd.f32 %v4739, %v4740
  %v4742 = vsel %vm500, %v4618, 0.0
  %v4743 = vadd.f32 %v4741, %v4742
  %v4744 = vsel %vm500, %v4621, 0.0
  %v4745 = vadd.f32 %v4743, %v4744
  %v4746 = vsel %vm500, %v4624, 0.0
  %v4747 = vadd.f32 %v4745, %v4746
  %v4748 = vsel %vm500, %v4627, 0.0
  %v4749 = vadd.f32 %v4747, %v4748
  %v4750 = vsel %vm500, %v4630, 0.0
  %v4751 = vadd.f32 %v4749, %v4750
  %v4752 = vsel %vm500, %v4633, 0.0
  %v4753 = vadd.f32 %v4751, %v4752
  %v4754 = vsel %vm500, %v4636, 0.0
  %v4755 = vadd.f32 %v4753, %v4754
  %v4756 = vsel %vm500, %v4639, 0.0
  %v4757 = vadd.f32 %v4755, %v4756
  %v4758 = vsel %vm500, %v4642, 0.0
  %v4759 = vadd.f32 %v4757, %v4758
  %v4760 = vsel %vm500, %v4645, 0.0
  %v4761 = vadd.f32 %v4759, %v4760
  %v4762 = vsel %vm500, %v4648, 0.0
  %v4763 = vadd.f32 %v4761, %v4762
  %v4764 = vsel %vm500, %v4651, 0.0
  %v4765 = vadd.f32 %v4763, %v4764
  %v4766 = vsel %vm500, %v4654, 0.0
  %v4767 = vadd.f32 %v4765, %v4766
  %v4768 = vsel %vm500, %v4657, 0.0
  %v4769 = vadd.f32 %v4767, %v4768
  %v4770 = vsel %vm500, %v4660, 0.0
  %v4771 = vadd.f32 %v4769, %v4770
  %v4772 = vsel %vm500, %v4663, 0.0
  %v4773 = vadd.f32 %v4771, %v4772
  %v4774 = vsel %vm500, %v4666, 0.0
  %v4775 = vadd.f32 %v4773, %v4774
  %v4776 = vsel %vm500, %v4669, 0.0
  %v4777 = vadd.f32 %v4775, %v4776
  %v4778 = vsel %vm500, %v4672, 0.0
  %v4779 = vadd.f32 %v4777, %v4778
  %v4780 = vsel %vm500, %v4675, 0.0
  %v4781 = vadd.f32 %v4779, %v4780
  %v4782 = vsel %vm500, %v4678, 0.0
  %v4783 = vadd.f32 %v4781, %v4782
  %v4784 = vsel %vm500, %v4681, 0.0
  %v4785 = vadd.f32 %v4783, %v4784
  %v4786 = vsel %vm500, %v4684, 0.0
  %v4787 = vadd.f32 %v4785, %v4786
  %v4788 = vsel %vm500, %v4687, 0.0
  %v4789 = vadd.f32 %v4787, %v4788
  %v4790 = vsel %vm500, %v4690, 0.0
  %v4791 = vadd.f32 %v4789, %v4790
  %v4792 = vsel %vm500, %v4693, 0.0
  %v4793 = vadd.f32 %v4791, %v4792
  %v4794 = vsel %vm500, %v4696, 0.0
  %v4795 = vadd.f32 %v4793, %v4794
  %v4796 = vsel %vm500, %v4699, 0.0
  %v4797 = vadd.f32 %v4795, %v4796
  %v4798 = vsel %vm500, %v4702, 0.0
  %v4799 = vadd.f32 %v4797, %v4798
  %v4800 = vrot.slane %v4799, 4
  %v4801 = vadd.f32 %v4799, %v4800
  %v4802 = vrot.slane %v4801, 2
  %v4803 = vadd.f32 %v4801, %v4802
  %v4804 = vrot.slane %v4803, 1
  %v4805 = vadd.f32 %v4803, %v4804
  %v4806 = vmul.f32 %v4805, 0.00390625
  %v4807 = vsub.f32 %v4609, %v4806
  %v4808 = vsub.f32 %v4612, %v4806
  %v4809 = vsub.f32 %v4615, %v4806
  %v4810 = vsub.f32 %v4618, %v4806
  %v4811 = vsub.f32 %v4621, %v4806
  %v4812 = vsub.f32 %v4624, %v4806
  %v4813 = vsub.f32 %v4627, %v4806
  %v4814 = vsub.f32 %v4630, %v4806
  %v4815 = vsub.f32 %v4633, %v4806
  %v4816 = vsub.f32 %v4636, %v4806
  %v4817 = vsub.f32 %v4639, %v4806
  %v4818 = vsub.f32 %v4642, %v4806
  %v4819 = vsub.f32 %v4645, %v4806
  %v4820 = vsub.f32 %v4648, %v4806
  %v4821 = vsub.f32 %v4651, %v4806
  %v4822 = vsub.f32 %v4654, %v4806
  %v4823 = vsub.f32 %v4657, %v4806
  %v4824 = vsub.f32 %v4660, %v4806
  %v4825 = vsub.f32 %v4663, %v4806
  %v4826 = vsub.f32 %v4666, %v4806
  %v4827 = vsub.f32 %v4669, %v4806
  %v4828 = vsub.f32 %v4672, %v4806
  %v4829 = vsub.f32 %v4675, %v4806
  %v4830 = vsub.f32 %v4678, %v4806
  %v4831 = vsub.f32 %v4681, %v4806
  %v4832 = vsub.f32 %v4684, %v4806
  %v4833 = vsub.f32 %v4687, %v4806
  %v4834 = vsub.f32 %v4690, %v4806
  %v4835 = vsub.f32 %v4693, %v4806
  %v4836 = vsub.f32 %v4696, %v4806
  %v4837 = vsub.f32 %v4699, %v4806
  %v4838 = vsub.f32 %v4702, %v4806
  %v4839 = vmul.f32 %v4807, %v4807
  %v4840 = vmul.f32 %v4808, %v4808
  %v4841 = vmul.f32 %v4809, %v4809
  %v4842 = vmul.f32 %v4810, %v4810
  %v4843 = vmul.f32 %v4811, %v4811
  %v4844 = vmul.f32 %v4812, %v4812
  %v4845 = vmul.f32 %v4813, %v4813
  %v4846 = vmul.f32 %v4814, %v4814
  %v4847 = vmul.f32 %v4815, %v4815
  %v4848 = vmul.f32 %v4816, %v4816
  %v4849 = vmul.f32 %v4817, %v4817
  %v4850 = vmul.f32 %v4818, %v4818
  %v4851 = vmul.f32 %v4819, %v4819
  %v4852 = vmul.f32 %v4820, %v4820
  %v4853 = vmul.f32 %v4821, %v4821
  %v4854 = vmul.f32 %v4822, %v4822
  %v4855 = vmul.f32 %v4823, %v4823
  %v4856 = vmul.f32 %v4824, %v4824
  %v4857 = vmul.f32 %v4825, %v4825
  %v4858 = vmul.f32 %v4826, %v4826
  %v4859 = vmul.f32 %v4827, %v4827
  %v4860 = vmul.f32 %v4828, %v4828
  %v4861 = vmul.f32 %v4829, %v4829
  %v4862 = vmul.f32 %v4830, %v4830
  %v4863 = vmul.f32 %v4831, %v4831
  %v4864 = vmul.f32 %v4832, %v4832
  %v4865 = vmul.f32 %v4833, %v4833
  %v4866 = vmul.f32 %v4834, %v4834
  %v4867 = vmul.f32 %v4835, %v4835
  %v4868 = vmul.f32 %v4836, %v4836
  %v4869 = vmul.f32 %v4837, %v4837
  %v4870 = vmul.f32 %v4838, %v4838
  %v4871 = vsel %vm500, %v4839, 0.0
  %v4872 = vsel %vm500, %v4840, 0.0
  %v4873 = vadd.f32 %v4871, %v4872
  %v4874 = vsel %vm500, %v4841, 0.0
  %v4875 = vadd.f32 %v4873, %v4874
  %v4876 = vsel %vm500, %v4842, 0.0
  %v4877 = vadd.f32 %v4875, %v4876
  %v4878 = vsel %vm500, %v4843, 0.0
  %v4879 = vadd.f32 %v4877, %v4878
  %v4880 = vsel %vm500, %v4844, 0.0
  %v4881 = vadd.f32 %v4879, %v4880
  %v4882 = vsel %vm500, %v4845, 0.0
  %v4883 = vadd.f32 %v4881, %v4882
  %v4884 = vsel %vm500, %v4846, 0.0
  %v4885 = vadd.f32 %v4883, %v4884
  %v4886 = vsel %vm500, %v4847, 0.0
  %v4887 = vadd.f32 %v4885, %v4886
  %v4888 = vsel %vm500, %v4848, 0.0
  %v4889 = vadd.f32 %v4887, %v4888
  %v4890 = vsel %vm500, %v4849, 0.0
  %v4891 = vadd.f32 %v4889, %v4890
  %v4892 = vsel %vm500, %v4850, 0.0
  %v4893 = vadd.f32 %v4891, %v4892
  %v4894 = vsel %vm500, %v4851, 0.0
  %v4895 = vadd.f32 %v4893, %v4894
  %v4896 = vsel %vm500, %v4852, 0.0
  %v4897 = vadd.f32 %v4895, %v4896
  %v4898 = vsel %vm500, %v4853, 0.0
  %v4899 = vadd.f32 %v4897, %v4898
  %v4900 = vsel %vm500, %v4854, 0.0
  %v4901 = vadd.f32 %v4899, %v4900
  %v4902 = vsel %vm500, %v4855, 0.0
  %v4903 = vadd.f32 %v4901, %v4902
  %v4904 = vsel %vm500, %v4856, 0.0
  %v4905 = vadd.f32 %v4903, %v4904
  %v4906 = vsel %vm500, %v4857, 0.0
  %v4907 = vadd.f32 %v4905, %v4906
  %v4908 = vsel %vm500, %v4858, 0.0
  %v4909 = vadd.f32 %v4907, %v4908
  %v4910 = vsel %vm500, %v4859, 0.0
  %v4911 = vadd.f32 %v4909, %v4910
  %v4912 = vsel %vm500, %v4860, 0.0
  %v4913 = vadd.f32 %v4911, %v4912
  %v4914 = vsel %vm500, %v4861, 0.0
  %v4915 = vadd.f32 %v4913, %v4914
  %v4916 = vsel %vm500, %v4862, 0.0
  %v4917 = vadd.f32 %v4915, %v4916
  %v4918 = vsel %vm500, %v4863, 0.0
  %v4919 = vadd.f32 %v4917, %v4918
  %v4920 = vsel %vm500, %v4864, 0.0
  %v4921 = vadd.f32 %v4919, %v4920
  %v4922 = vsel %vm500, %v4865, 0.0
  %v4923 = vadd.f32 %v4921, %v4922
  %v4924 = vsel %vm500, %v4866, 0.0
  %v4925 = vadd.f32 %v4923, %v4924
  %v4926 = vsel %vm500, %v4867, 0.0
  %v4927 = vadd.f32 %v4925, %v4926
  %v4928 = vsel %vm500, %v4868, 0.0
  %v4929 = vadd.f32 %v4927, %v4928
  %v4930 = vsel %vm500, %v4869, 0.0
  %v4931 = vadd.f32 %v4929, %v4930
  %v4932 = vsel %vm500, %v4870, 0.0
  %v4933 = vadd.f32 %v4931, %v4932
  %v4934 = vrot.slane %v4933, 4
  %v4935 = vadd.f32 %v4933, %v4934
  %v4936 = vrot.slane %v4935, 2
  %v4937 = vadd.f32 %v4935, %v4936
  %v4938 = vrot.slane %v4937, 1
  %v4939 = vadd.f32 %v4937, %v4938
  %v4940 = vsel %vm2794, %v4805, %v4939
  %s4941 = scalar_lea.vmem %s5, 2
  %4942 = vst.msk [vmem:[%s4941] sm:$0x3] %vm2796, %v4940
  // Predicated region
  $region18: #{basic_block_forward_nhwc.4} parent=0 // pred_check
    _
  $region19: #{basic_block_forward_nhwc.4} parent=0 // pred_check_branch
    %4944 = sbr.rel (0) target = $region21
  $region20: #{basic_block_forward_nhwc.4} parent=0 // pred_region
    _
  $region21: #{basic_block_forward_nhwc.4} parent=0 // pred_fallthru
    _
  // Predicated region
  $region22: #{basic_block_forward_nhwc.4} parent=0 // pred_check
    _
  $region23: #{basic_block_forward_nhwc.4} parent=0 // pred_check_branch
    %4946 = sbr.rel (0) target = $region25
  $region24: #{basic_block_forward_nhwc.4} parent=0 // pred_region
    _
  $region25: #{basic_block_forward_nhwc.4} parent=0 // pred_fallthru
    _
  // Predicated region
  $region26: #{basic_block_forward_nhwc.4} parent=0 // pred_check
    _
  $region27: #{basic_block_forward_nhwc.4} parent=0 // pred_check_branch
    %4948 = sbr.rel (0) target = $region29
  $region28: #{basic_block_forward_nhwc.4} parent=0 // pred_region
    _
  $region29: #{basic_block_forward_nhwc.4} parent=0 // pred_fallthru
    _
  // Predicated region
  $region30: #{basic_block_forward_nhwc.4} parent=0 // pred_check
    _
  $region31: #{basic_block_forward_nhwc.4} parent=0 // pred_check_branch
    %4950 = sbr.rel (0) target = $region33
  $region32: #{basic_block_forward_nhwc.4} parent=0 // pred_region
    _
  $region33: #{basic_block_forward_nhwc.4} parent=0 // pred_fallthru
    _

</llo_original>
